<compile_context>
chip_gen: v5e
topology: v5e:2x2
jax: 0.10.0
libtpu: 0.0.40
codegen_flags: <defaults>
</compile_context>

<pallas_src>
import functools

import jax
import jax.numpy as jnp
from jax.experimental import pallas as pl
from jax.experimental.pallas import tpu as pltpu


# Scoped-VMEM limit: big enough that large row tiles compile on v5e/v6e (default
# scoped limit is 16/32 MiB of 128 MiB physical) while still legal on v7x (64 MiB physical).
_VMEM_LIMIT_BYTES = 64 * 1024 * 1024


# ---------------------------------------------------------------------------
# layout helpers (single transpose at block entry / exit) + small JAX glue
# ---------------------------------------------------------------------------

def to_seq(x):
    # einops 'b c h w -> b (h w) c'
    B, C = x.shape[:2]
    return x.reshape(B, C, -1).transpose(0, 2, 1)


def from_seq(x, data_shape):
    # einops 'b s c -> b c s' followed by reshape of the spatial axis
    B, S, C = x.shape
    return x.transpose(0, 2, 1).reshape((B, C) + tuple(data_shape))


def group_norm(x, num_groups, gamma, beta, eps=1e-6):
    # x: (B, C, L) -- matches torch.nn.GroupNorm(num_groups, C, eps) on 3D input
    B, C, L = x.shape
    xg = x.reshape(B, num_groups, (C // num_groups) * L)
    mean = jnp.mean(xg, axis=-1, keepdims=True)
    var = jnp.mean((xg - mean) ** 2, axis=-1, keepdims=True)
    xg = (xg - mean) / jnp.sqrt(var + eps)
    x = xg.reshape(B, C, L)
    return x * gamma[None, :, None] + beta[None, :, None]


def _row_tile(m, max_tile=512):
    """Largest legal row tile: a single step when it fits (best for 1-TC v5e/v6e),
    otherwise the largest power-of-two divisor <= max_tile. Returning m itself is
    always legal (block == full array dim satisfies the (8,128) rule)."""
    if m <= max_tile:
        return m
    for d in (512, 256, 128, 64, 32, 16, 8):
        if d <= max_tile and m % d == 0:
            return d
    return m


# ---------------------------------------------------------------------------
# in-kernel exact-GELU (erf) helper
# ---------------------------------------------------------------------------

_SQRT_HALF = 0.7071067811865476


def _erf(x):
    # Abramowitz & Stegun 7.1.26 polynomial, |error| <= 1.5e-7 (~f32 eps).
    # Used instead of lax.erf because erf_p has no guaranteed Mosaic lowering.
    p = 0.3275911
    a1, a2, a3, a4, a5 = (0.254829592, -0.284496736, 1.421413741,
                          -1.453152027, 1.061405429)
    ax = jnp.abs(x)
    t = 1.0 / (1.0 + p * ax)
    poly = ((((a5 * t + a4) * t + a3) * t + a2) * t + a1) * t
    y = 1.0 - poly * jnp.exp(-ax * ax)
    return jnp.where(x < 0, -y, y)


def _gelu_exact(x):
    # matches torch.nn.functional.gelu (default erf-based) to ~1e-7
    return 0.5 * x * (1.0 + _erf(x * _SQRT_HALF))


# ---------------------------------------------------------------------------
# kernel 1: fused LayerNorm (+ additive context) + QKV + attention + out-proj
#           + bias + block residual, one grid step per batch element
# ---------------------------------------------------------------------------

def _fused_attn_kernel(*refs, heads, dim_head, w_cols, has_ctx, eps):
    if has_ctx:
        x_ref, ctx_ref, g_ref, b_ref, wqkv_ref, wo_ref, bo_ref, o_ref = refs
    else:
        x_ref, g_ref, b_ref, wqkv_ref, wo_ref, bo_ref, o_ref = refs

    x = x_ref[...].astype(jnp.float32)                         # (N, C)
    n_rows, C = x.shape
    inner = heads * dim_head

    # LayerNorm (f32 VPU math)
    mean = jnp.mean(x, axis=-1, keepdims=True)
    xc = x - mean
    var = jnp.mean(xc * xc, axis=-1, keepdims=True)
    xn = xc * jax.lax.rsqrt(var + eps)
    xn = xn * g_ref[...].astype(jnp.float32) + b_ref[...].astype(jnp.float32)

    xq = xn
    if has_ctx:
        # ctx is constant along W: broadcast (H, C) -> (H, W, C) -> (H*W, C) in VMEM,
        # avoiding an (M, C) HBM round trip of the broadcast context.
        ctx = ctx_ref[...].astype(jnp.float32)                  # (H, C)
        h_rows = ctx.shape[0]
        xq = xn + jnp.broadcast_to(ctx[:, None, :],
                                   (h_rows, w_cols, C)).reshape(n_rows, C)

    # packed [q|k|v] matmul; 1/sqrt(d) is folded into the q columns offline.
    qkv = jnp.dot(xq.astype(wqkv_ref.dtype), wqkv_ref[...],
                  preferred_element_type=jnp.float32)           # (N, 3*inner)

    # per-head attention (static unroll); heads accumulate into one (N, inner) slab
    # so the out-projection is a single inner-deep MXU matmul.
    # NOTE: dim_head and the q/k/v column offsets are 128-aligned in this config;
    # non-128-aligned head dims would force per-head relayouts.
    heads_out = []
    for h in range(heads):
        lo = h * dim_head
        q = qkv[:, lo:lo + dim_head].astype(jnp.bfloat16)
        k = qkv[:, inner + lo:inner + lo + dim_head].astype(jnp.bfloat16)
        v = qkv[:, 2 * inner + lo:2 * inner + lo + dim_head].astype(jnp.bfloat16)
        s = jax.lax.dot_general(q, k, (((1,), (1,)), ((), ())),
                                preferred_element_type=jnp.float32)   # (N, N)
        p = jnp.exp(s - jnp.max(s, axis=-1, keepdims=True))
        l = jnp.sum(p, axis=-1, keepdims=True)
        o_h = jnp.dot(p.astype(jnp.bfloat16), v,
                      preferred_element_type=jnp.float32)             # (N, D)
        # defer normalization to the (N, D) output; EUP approx reciprocal is ~free
        heads_out.append(o_h * pl.reciprocal(l, approx=True))
    o_all = heads_out[0] if heads == 1 else jnp.concatenate(heads_out, axis=-1)

    out = jnp.dot(o_all.astype(wo_ref.dtype), wo_ref[...],
                  preferred_element_type=jnp.float32)
    out = out + bo_ref[...].astype(jnp.float32) + xn            # fused bias + residual(xn)
    o_ref[...] = out.astype(o_ref.dtype)


def fused_ln_attn(x, gamma, beta, wqkv, wo, bo, *, ctx=None, batch, seq,
                  heads, dim_head, w_cols, eps=1e-5):
    """x: (batch*seq, C) rows. Returns attention(LN(x) [+ ctx]) @ wo + bo + LN(x)."""
    M, C = x.shape
    KO = wqkv.shape[1]
    inner = heads * dim_head
    has_ctx = ctx is not None

    def inv(shape):
        # grid-invariant operand: single-buffered (loaded once, half the VMEM)
        return pl.BlockSpec(shape, lambda b: (0, 0), pipeline_mode=pl.Buffered(1))

    in_specs = [pl.BlockSpec((seq, C), lambda b: (b, 0))]
    inputs = [x]
    if has_ctx:
        h_rows = ctx.shape[0] // batch
        in_specs.append(pl.BlockSpec((h_rows, C), lambda b: (b, 0)))
        inputs.append(ctx)
    in_specs += [inv((1, C)), inv((1, C)), inv((C, KO)), inv((inner, C)), inv((1, C))]
    inputs += [gamma.reshape(1, C), beta.reshape(1, C), wqkv, wo, bo.reshape(1, C)]

    # TODO(synk): flash-style kv tiling for large seq (required earliest on v7x 64 MiB VMEM).
    return pl.pallas_call(
        functools.partial(_fused_attn_kernel, heads=heads, dim_head=dim_head,
                          w_cols=w_cols, has_ctx=has_ctx, eps=eps),
        out_shape=jax.ShapeDtypeStruct((M, C), x.dtype),
        grid=(batch,),
        in_specs=in_specs,
        out_specs=pl.BlockSpec((seq, C), lambda b: (b, 0)),
        compiler_params=pltpu.CompilerParams(
            dimension_semantics=("parallel",),
            vmem_limit_bytes=_VMEM_LIMIT_BYTES),
    )(*inputs)


# ---------------------------------------------------------------------------
# kernel 2: (optional LayerNorm) + GEGLU feed-forward (+ optional residual)
# ---------------------------------------------------------------------------

def _geglu_kernel(*refs, use_ln, add_residual, eps):
    if use_ln:
        (x_ref, g_ref, b_ref, w1a_ref, b1a_ref, w1g_ref, b1g_ref,
         w2_ref, b2_ref, o_ref) = refs
    else:
        (x_ref, w1a_ref, b1a_ref, w1g_ref, b1g_ref, w2_ref, b2_ref, o_ref) = refs
    x = x_ref[...].astype(jnp.float32)
    if use_ln:
        mean = jnp.mean(x, axis=-1, keepdims=True)
        xc = x - mean
        var = jnp.mean(xc * xc, axis=-1, keepdims=True)
        x = xc * jax.lax.rsqrt(var + eps)
        x = x * g_ref[...].astype(jnp.float32) + b_ref[...].astype(jnp.float32)
    # cast only at the MXU boundary; GELU/mul stay f32 (v5e VPU has no bf16)
    xm = x.astype(w1a_ref.dtype)
    gate = jnp.dot(xm, w1g_ref[...],
                   preferred_element_type=jnp.float32) + b1g_ref[...].astype(jnp.float32)
    gate = _gelu_exact(gate)
    val = jnp.dot(xm, w1a_ref[...],
                  preferred_element_type=jnp.float32) + b1a_ref[...].astype(jnp.float32)
    h = (val * gate).astype(w2_ref.dtype)
    out = jnp.dot(h, w2_ref[...],
                  preferred_element_type=jnp.float32) + b2_ref[...].astype(jnp.float32)
    if add_residual:
        out = out + x                                   # residual of the *normed* input
    o_ref[...] = out.astype(o_ref.dtype)


def geglu_ff(x, p, *, gamma=None, beta=None, add_residual=False, eps=1e-5):
    M, K = x.shape
    inner = p["w1a"].shape[1]
    NO = p["w2"].shape[1]
    tm = _row_tile(M)
    use_ln = gamma is not None

    def inv(shape):
        return pl.BlockSpec(shape, lambda i: (0, 0), pipeline_mode=pl.Buffered(1))

    in_specs = [pl.BlockSpec((tm, K), lambda i: (i, 0))]
    inputs = [x]
    if use_ln:
        in_specs += [inv((1, K)), inv((1, K))]
        inputs += [gamma.reshape(1, K), beta.reshape(1, K)]
    in_specs += [inv((K, inner)), inv((1, inner)),
                 inv((K, inner)), inv((1, inner)),
                 inv((inner, NO)), inv((1, NO))]
    inputs += [p["w1a"], p["b1a"].reshape(1, inner),
               p["w1g"], p["b1g"].reshape(1, inner),
               p["w2"], p["b2"].reshape(1, NO)]
    return pl.pallas_call(
        functools.partial(_geglu_kernel, use_ln=use_ln,
                          add_residual=add_residual, eps=eps),
        out_shape=jax.ShapeDtypeStruct((M, NO), x.dtype),
        grid=(M // tm,),
        in_specs=in_specs,
        out_specs=pl.BlockSpec((tm, NO), lambda i: (i, 0)),
        compiler_params=pltpu.CompilerParams(
            dimension_semantics=("parallel",),
            vmem_limit_bytes=_VMEM_LIMIT_BYTES),
    )(*inputs)


# ---------------------------------------------------------------------------
# one-time parameter preparation (outside the per-step jit)
# ---------------------------------------------------------------------------

def prepare_params(params, *, heads, dim_head, matmul_dtype=jnp.bfloat16):
    """Concat wq|wk|wv (with 1/sqrt(d) folded into wq), split GEGLU w1/b1 into
    value/gate halves, and cast MXU weight operands to bf16 (accum stays f32)."""
    scale = dim_head ** (-0.5)

    def prep_attn(p):
        wqkv = jnp.concatenate([p["wq"] * scale, p["wk"], p["wv"]], axis=1)
        return dict(wqkv=wqkv.astype(matmul_dtype),
                    wo=p["wo"].astype(matmul_dtype),
                    bo=p["bo"].astype(jnp.float32))

    def prep_ff(p, dtype):
        inner = p["w1"].shape[1] // 2
        return dict(w1a=p["w1"][:, :inner].astype(dtype),
                    w1g=p["w1"][:, inner:].astype(dtype),
                    b1a=p["b1"][:inner].astype(jnp.float32),
                    b1g=p["b1"][inner:].astype(jnp.float32),
                    w2=p["w2"].astype(dtype),
                    b2=p["b2"].astype(jnp.float32))

    pc = params["attn_c"]
    return {
        "norm1_g": params["norm1_g"], "norm1_b": params["norm1_b"],
        "norm2_g": params["norm2_g"], "norm2_b": params["norm2_b"],
        "norm3_g": params["norm3_g"], "norm3_b": params["norm3_b"],
        "attn_c": {
            **prep_attn(pc),
            # proj_c is tiny and its output feeds GroupNorm (which rescales to O(1)
            # and amplifies relative error), so keep its matmuls in f32.
            "proj_c": prep_ff(pc["proj_c"], jnp.float32),
            "norm_g": pc["norm_g"], "norm_b": pc["norm_b"],
        },
        "attn_s": prep_attn(params["attn_s"]),
        "ff": prep_ff(params["ff"], matmul_dtype),
    }


# ---------------------------------------------------------------------------
# module forward (sequence layout end-to-end)
# ---------------------------------------------------------------------------

def additive_condition_block(prep, x, context, *, heads, dim_head, axis_x, axis_c):
    B, C, H, W = x.shape
    Bc, Cc, Hc, Wc = context.shape
    assert C % 32 == 0, "GroupNorm(32, dim) requires dim % 32 == 0"
    N = H * W
    M = B * N

    # single layout change at entry: NCHW -> (B*H*W, C) rows
    x_seq = to_seq(x).reshape(M, C)

    # ---- context conditioning path (small tensors; one Pallas GEGLU + JAX glue) ----
    pc = prep["attn_c"]
    ctx_rows = to_seq(context).reshape(Bc * Hc * Wc, Cc)
    ctx_proj = geglu_ff(ctx_rows, pc["proj_c"])                    # (B*Hc*Wc, C)
    ctx = from_seq(ctx_proj.reshape(B, Hc * Wc, C), (Hc, Wc))      # (B, C, Hc, Wc)
    dim_reduce = tuple(sorted(set(range(4)) - {0, 1, axis_c}))
    ctx = jnp.mean(ctx, axis=dim_reduce)                           # (B, C, L)
    ctx = group_norm(ctx, 32, pc["norm_g"], pc["norm_b"], eps=1e-6)
    # unsqueeze(-1).tile(n) + F.interpolate(nearest, (H, W)) collapses to a nearest
    # gather along H that is constant along W (the tiled axis is constant).
    L = ctx.shape[-1]
    row_idx = (jnp.arange(H) * L) // H
    ctx_bh = jnp.transpose(ctx[:, :, row_idx], (0, 2, 1)).reshape(B * H, C)  # (B*H, C)

    # ---- attn_c: LN1 + ctx add + QKV + attention + out-proj + bias + residual ----
    x_seq = fused_ln_attn(x_seq, prep["norm1_g"], prep["norm1_b"],
                          pc["wqkv"], pc["wo"], pc["bo"], ctx=ctx_bh,
                          batch=B, seq=N, heads=heads, dim_head=dim_head, w_cols=W)

    # ---- attn_s: LN2 + QKV + self-attention + out-proj + bias + residual ----
    ps = prep["attn_s"]
    x_seq = fused_ln_attn(x_seq, prep["norm2_g"], prep["norm2_b"],
                          ps["wqkv"], ps["wo"], ps["bo"], ctx=None,
                          batch=B, seq=N, heads=heads, dim_head=dim_head, w_cols=W)

    # ---- LN3 + gated GEGLU feed-forward + residual, fully fused ----
    x_seq = geglu_ff(x_seq, prep["ff"],
                     gamma=prep["norm3_g"], beta=prep["norm3_b"],
                     add_residual=True)

    # single layout change at exit
    return from_seq(x_seq.reshape(B, N, C), (H, W))


# ---------------------------------------------------------------------------
# pure-JAX reference (mirrors the PyTorch module literally) for verification
# ---------------------------------------------------------------------------

def reference_forward(params, x, context, *, heads, dim_head, axis_x, axis_c):
    B, C, H, W = x.shape

    def ln(t, g, b, eps=1e-5):
        m = jnp.mean(t, axis=-1, keepdims=True)
        v = jnp.mean((t - m) ** 2, axis=-1, keepdims=True)
        return (t - m) / jnp.sqrt(v + eps) * g + b

    def ff(t, p):
        h = t @ p["w1"] + p["b1"]
        inner = p["w1"].shape[1] // 2
        return (h[..., :inner] * jax.nn.gelu(h[..., inner:], approximate=False)) @ p["w2"] + p["b2"]

    def attn(t, p):                                   # t: (B, N, C)
        Bq, Nq, _ = t.shape
        def split(u):
            return u.reshape(Bq, Nq, heads, dim_head).transpose(0, 2, 1, 3)
        q, k, v = split(t @ p["wq"]), split(t @ p["wk"]), split(t @ p["wv"])
        s = jnp.einsum("bhid,bhjd->bhij", q, k) * (dim_head ** (-0.5))
        a = jax.nn.softmax(s, axis=-1)
        o = jnp.einsum("bhij,bhjd->bhid", a, v)
        o = o.transpose(0, 2, 1, 3).reshape(Bq, Nq, heads * dim_head)
        return o @ p["wo"] + p["bo"]

    x_seq = to_seq(x)
    xn1 = ln(x_seq, params["norm1_g"], params["norm1_b"])
    pc = params["attn_c"]
    ctx = from_seq(ff(to_seq(context), pc["proj_c"]), context.shape[2:])
    dim_reduce = tuple(sorted(set(range(4)) - {0, 1, axis_c}))
    ctx = jnp.mean(ctx, axis=dim_reduce)
    ctx = group_norm(ctx, 32, pc["norm_g"], pc["norm_b"], eps=1e-6)
    n = x.shape[sorted(set(range(4)) - {axis_x})[-1]]
    ctx_t = jnp.tile(ctx[..., None], (1, 1, 1, n))
    ri = (jnp.arange(H) * ctx_t.shape[2]) // H
    ci = (jnp.arange(W) * ctx_t.shape[3]) // W
    ctx4 = ctx_t[:, :, ri][:, :, :, ci]
    xq = from_seq(xn1, (H, W)) + ctx4
    x_seq = attn(to_seq(xq), pc) + xn1
    xn2 = ln(x_seq, params["norm2_g"], params["norm2_b"])
    x_seq = attn(xn2, params["attn_s"]) + xn2
    xn3 = ln(x_seq, params["norm3_g"], params["norm3_b"])
    x_seq = ff(xn3, params["ff"]) + xn3
    return from_seq(x_seq, (H, W))


# ---------------------------------------------------------------------------
# deterministic synthetic parameters
# ---------------------------------------------------------------------------

def init_params(key, dim, n_heads, d_head, context_dim):
    assert dim % 32 == 0
    inner = n_heads * d_head
    keys = iter(jax.random.split(key, 64))

    def nrm(shape, scale=0.02):
        return scale * jax.random.normal(next(keys), shape, jnp.float32)

    def ln_pair(n):
        g = 1.0 + 0.1 * jax.random.normal(next(keys), (n,), jnp.float32)
        b = 0.1 * jax.random.normal(next(keys), (n,), jnp.float32)
        return g, b

    def attn_p():
        return dict(wq=nrm((dim, inner)), wk=nrm((dim, inner)), wv=nrm((dim, inner)),
                    wo=nrm((inner, dim)), bo=nrm((dim,)))

    n1g, n1b = ln_pair(dim)
    n2g, n2b = ln_pair(dim)
    n3g, n3b = ln_pair(dim)
    gng, gnb = ln_pair(dim)
    return {
        "norm1_g": n1g, "norm1_b": n1b,
        "norm2_g": n2g, "norm2_b": n2b,
        "norm3_g": n3g, "norm3_b": n3b,
        "attn_c": {
            "proj_c": dict(w1=nrm((context_dim, 2 * 4 * context_dim)),
                           b1=nrm((2 * 4 * context_dim,)),
                           w2=nrm((4 * context_dim, dim)),
                           b2=nrm((dim,))),
            "norm_g": gng, "norm_b": gnb,
            **attn_p(),
        },
        "attn_s": attn_p(),
        "ff": dict(w1=nrm((dim, 2 * 4 * dim)), b1=nrm((2 * 4 * dim,)),
                   w2=nrm((4 * dim, dim)), b2=nrm((dim,))),
    }


if __name__ == "__main__":
    # Small but lane/MXU-friendly config: C = 128 and d_head = 128 keep every
    # out_spec lane-dense and all head slices / contractions 128-aligned.
    B, dim, H, W = 2, 128, 8, 8
    context_dim, Hc, Wc = 64, 4, 4
    n_heads, d_head = 2, 128
    axis_x, axis_c = 2, 2

    key = jax.random.PRNGKey(0)
    kx, kc, kp = jax.random.split(key, 3)
    x = jax.random.normal(kx, (B, dim, H, W), jnp.float32)
    context = jax.random.normal(kc, (B, context_dim, Hc, Wc), jnp.float32)
    params = init_params(kp, dim, n_heads, d_head, context_dim)

    # one-time parameter prep (wqkv concat + scale fold, GEGLU split, bf16 cast)
    prep = prepare_params(params, heads=n_heads, dim_head=d_head)

    fwd = jax.jit(functools.partial(additive_condition_block,
                                    heads=n_heads, dim_head=d_head,
                                    axis_x=axis_x, axis_c=axis_c))
    out = jax.block_until_ready(fwd(prep, x, context))
    assert out.shape == (B, dim, H, W), out.shape
    assert bool(jnp.all(jnp.isfinite(out)))

    ref = jax.block_until_ready(
        reference_forward(params, x, context, heads=n_heads, dim_head=d_head,
                          axis_x=axis_x, axis_c=axis_c))
    max_err = float(jnp.max(jnp.abs(out - ref)))
    assert max_err < 5e-2, f"mismatch vs pure-JAX reference: {max_err}"
    print("KERNEL_OK")
</pallas_src>

<mosaic_0001>
module attributes {stable_mosaic.version = 11 : i64} {
  func.func @_geglu_kernel(%arg0: i32, %arg1: memref<32x64xf32, #tpu.memory_space<vmem>>, %arg2: memref<64x256xf32, #tpu.memory_space<vmem>>, %arg3: memref<1x256xf32, #tpu.memory_space<vmem>>, %arg4: memref<64x256xf32, #tpu.memory_space<vmem>>, %arg5: memref<1x256xf32, #tpu.memory_space<vmem>>, %arg6: memref<256x128xf32, #tpu.memory_space<vmem>>, %arg7: memref<1x128xf32, #tpu.memory_space<vmem>>, %arg8: memref<32x128xf32, #tpu.memory_space<vmem>>) attributes {dimension_semantics = [#tpu.dimension_semantics<parallel>], iteration_bounds = array<i64: 1>, scalar_prefetch = 0 : i64, scratch_operands = 0 : i64, tpu.core_type = #tpu.core_type<tc>, window_params = [{transform_indices = @transform_0, window_bounds = array<i64: 32, 64>}, {pipeline_mode = #tpu.pipeline_mode<synchronous>, transform_indices = @transform_1, window_bounds = array<i64: 64, 256>}, {pipeline_mode = #tpu.pipeline_mode<synchronous>, transform_indices = @transform_2, window_bounds = array<i64: 1, 256>}, {pipeline_mode = #tpu.pipeline_mode<synchronous>, transform_indices = @transform_3, window_bounds = array<i64: 64, 256>}, {pipeline_mode = #tpu.pipeline_mode<synchronous>, transform_indices = @transform_4, window_bounds = array<i64: 1, 256>}, {pipeline_mode = #tpu.pipeline_mode<synchronous>, transform_indices = @transform_5, window_bounds = array<i64: 256, 128>}, {pipeline_mode = #tpu.pipeline_mode<synchronous>, transform_indices = @transform_6, window_bounds = array<i64: 1, 128>}, {transform_indices = @transform_7, window_bounds = array<i64: 32, 128>}]} {
    %c0 = arith.constant 0 : index
    %c0_0 = arith.constant 0 : index
    %0 = vector.load %arg1[%c0, %c0_0] : memref<32x64xf32, #tpu.memory_space<vmem>>, vector<32x64xf32>
    %c0_1 = arith.constant 0 : index
    %c0_2 = arith.constant 0 : index
    %1 = vector.load %arg4[%c0_1, %c0_2] : memref<64x256xf32, #tpu.memory_space<vmem>>, vector<64x256xf32>
    %cst = arith.constant dense<0.000000e+00> : vector<32x256xf32>
    %2 = tpu.matmul %0, %1, %cst {dimension_numbers = #tpu.dot_dimension_numbers<[1], [0], [0], [1], [0, 0, 1, 1], [], []>} : vector<32x64xf32>, vector<64x256xf32>, vector<32x256xf32> -> vector<32x256xf32>
    %c0_3 = arith.constant 0 : index
    %c0_4 = arith.constant 0 : index
    %3 = vector.load %arg5[%c0_3, %c0_4] : memref<1x256xf32, #tpu.memory_space<vmem>>, vector<1x256xf32>
    %4 = vector.broadcast %3 : vector<1x256xf32> to vector<32x256xf32>
    %5 = arith.addf %2, %4 : vector<32x256xf32>
    %cst_5 = arith.constant 5.000000e-01 : f32
    %6 = vector.broadcast %cst_5 : f32 to vector<32x256xf32>
    %7 = arith.mulf %6, %5 : vector<32x256xf32>
    %cst_6 = arith.constant 0.707106769 : f32
    %8 = vector.broadcast %cst_6 : f32 to vector<32x256xf32>
    %9 = arith.mulf %5, %8 : vector<32x256xf32>
    %10 = math.absf %9 : vector<32x256xf32>
    %cst_7 = arith.constant 0.327591091 : f32
    %11 = vector.broadcast %cst_7 : f32 to vector<32x256xf32>
    %12 = arith.mulf %11, %10 : vector<32x256xf32>
    %cst_8 = arith.constant 1.000000e+00 : f32
    %13 = vector.broadcast %cst_8 : f32 to vector<32x256xf32>
    %14 = arith.addf %13, %12 : vector<32x256xf32>
    %cst_9 = arith.constant 1.000000e+00 : f32
    %15 = vector.broadcast %cst_9 : f32 to vector<32x256xf32>
    %16 = arith.divf %15, %14 : vector<32x256xf32>
    %cst_10 = arith.constant 1.06140542 : f32
    %17 = vector.broadcast %cst_10 : f32 to vector<32x256xf32>
    %18 = arith.mulf %17, %16 : vector<32x256xf32>
    %cst_11 = arith.constant -1.45315206 : f32
    %19 = vector.broadcast %cst_11 : f32 to vector<32x256xf32>
    %20 = arith.addf %18, %19 : vector<32x256xf32>
    %21 = arith.mulf %20, %16 : vector<32x256xf32>
    %cst_12 = arith.constant 1.42141378 : f32
    %22 = vector.broadcast %cst_12 : f32 to vector<32x256xf32>
    %23 = arith.addf %21, %22 : vector<32x256xf32>
    %24 = arith.mulf %23, %16 : vector<32x256xf32>
    %cst_13 = arith.constant -0.284496725 : f32
    %25 = vector.broadcast %cst_13 : f32 to vector<32x256xf32>
    %26 = arith.addf %24, %25 : vector<32x256xf32>
    %27 = arith.mulf %26, %16 : vector<32x256xf32>
    %cst_14 = arith.constant 0.254829586 : f32
    %28 = vector.broadcast %cst_14 : f32 to vector<32x256xf32>
    %29 = arith.addf %27, %28 : vector<32x256xf32>
    %30 = arith.mulf %29, %16 : vector<32x256xf32>
    %cst_15 = arith.constant 0.000000e+00 : f32
    %31 = vector.broadcast %cst_15 : f32 to vector<32x256xf32>
    %32 = arith.subf %31, %10 : vector<32x256xf32>
    %33 = arith.mulf %32, %10 : vector<32x256xf32>
    %34 = math.exp %33 : vector<32x256xf32>
    %35 = arith.mulf %30, %34 : vector<32x256xf32>
    %cst_16 = arith.constant 1.000000e+00 : f32
    %36 = vector.broadcast %cst_16 : f32 to vector<32x256xf32>
    %37 = arith.subf %36, %35 : vector<32x256xf32>
    %cst_17 = arith.constant 0.000000e+00 : f32
    %38 = vector.broadcast %cst_17 : f32 to vector<32x256xf32>
    %39 = arith.cmpf olt, %9, %38 : vector<32x256xf32>
    %cst_18 = arith.constant 0.000000e+00 : f32
    %40 = vector.broadcast %cst_18 : f32 to vector<32x256xf32>
    %41 = arith.subf %40, %37 : vector<32x256xf32>
    %42 = arith.select %39, %41, %37 : vector<32x256xi1>, vector<32x256xf32>
    %cst_19 = arith.constant 1.000000e+00 : f32
    %43 = vector.broadcast %cst_19 : f32 to vector<32x256xf32>
    %44 = arith.addf %43, %42 : vector<32x256xf32>
    %45 = arith.mulf %7, %44 : vector<32x256xf32>
    %c0_20 = arith.constant 0 : index
    %c0_21 = arith.constant 0 : index
    %46 = vector.load %arg2[%c0_20, %c0_21] : memref<64x256xf32, #tpu.memory_space<vmem>>, vector<64x256xf32>
    %cst_22 = arith.constant dense<0.000000e+00> : vector<32x256xf32>
    %47 = tpu.matmul %0, %46, %cst_22 {dimension_numbers = #tpu.dot_dimension_numbers<[1], [0], [0], [1], [0, 0, 1, 1], [], []>} : vector<32x64xf32>, vector<64x256xf32>, vector<32x256xf32> -> vector<32x256xf32>
    %c0_23 = arith.constant 0 : index
    %c0_24 = arith.constant 0 : index
    %48 = vector.load %arg3[%c0_23, %c0_24] : memref<1x256xf32, #tpu.memory_space<vmem>>, vector<1x256xf32>
    %49 = vector.broadcast %48 : vector<1x256xf32> to vector<32x256xf32>
    %50 = arith.addf %47, %49 : vector<32x256xf32>
    %51 = arith.mulf %50, %45 : vector<32x256xf32>
    %c0_25 = arith.constant 0 : index
    %c0_26 = arith.constant 0 : index
    %52 = vector.load %arg6[%c0_25, %c0_26] : memref<256x128xf32, #tpu.memory_space<vmem>>, vector<256x128xf32>
    %cst_27 = arith.constant dense<0.000000e+00> : vector<32x128xf32>
    %53 = tpu.matmul %51, %52, %cst_27 {dimension_numbers = #tpu.dot_dimension_numbers<[1], [0], [0], [1], [0, 0, 1, 1], [], []>} : vector<32x256xf32>, vector<256x128xf32>, vector<32x128xf32> -> vector<32x128xf32>
    %c0_28 = arith.constant 0 : index
    %c0_29 = arith.constant 0 : index
    %54 = vector.load %arg7[%c0_28, %c0_29] : memref<1x128xf32, #tpu.memory_space<vmem>>, vector<1x128xf32>
    %55 = vector.broadcast %54 : vector<1x128xf32> to vector<32x128xf32>
    %56 = arith.addf %53, %55 : vector<32x128xf32>
    %c0_30 = arith.constant 0 : index
    %c0_31 = arith.constant 0 : index
    %57 = vector.load %arg8[%c0_30, %c0_31] : memref<32x128xf32, #tpu.memory_space<vmem>>, vector<32x128xf32>
    tpu.vector_store %arg8[%c0_30, %c0_31], %56 {strides = array<i32>} : memref<32x128xf32, #tpu.memory_space<vmem>>, vector<32x128xf32>,
    return
  }
  func.func @transform_0(%arg0: i32) -> (i32, i32) {
    %c0_i32 = arith.constant 0 : i32
    %c0_i32_0 = arith.constant 0 : i32
    return %arg0, %c0_i32 : i32, i32
  }
  func.func @transform_1(%arg0: i32) -> (i32, i32) {
    %c0_i32 = arith.constant 0 : i32
    %c0_i32_0 = arith.constant 0 : i32
    %c0_i32_1 = arith.constant 0 : i32
    return %c0_i32, %c0_i32_0 : i32, i32
  }
  func.func @transform_2(%arg0: i32) -> (i32, i32) {
    %c0_i32 = arith.constant 0 : i32
    %c0_i32_0 = arith.constant 0 : i32
    %c0_i32_1 = arith.constant 0 : i32
    return %c0_i32, %c0_i32_0 : i32, i32
  }
  func.func @transform_3(%arg0: i32) -> (i32, i32) {
    %c0_i32 = arith.constant 0 : i32
    %c0_i32_0 = arith.constant 0 : i32
    %c0_i32_1 = arith.constant 0 : i32
    return %c0_i32, %c0_i32_0 : i32, i32
  }
  func.func @transform_4(%arg0: i32) -> (i32, i32) {
    %c0_i32 = arith.constant 0 : i32
    %c0_i32_0 = arith.constant 0 : i32
    %c0_i32_1 = arith.constant 0 : i32
    return %c0_i32, %c0_i32_0 : i32, i32
  }
  func.func @transform_5(%arg0: i32) -> (i32, i32) {
    %c0_i32 = arith.constant 0 : i32
    %c0_i32_0 = arith.constant 0 : i32
    %c0_i32_1 = arith.constant 0 : i32
    return %c0_i32, %c0_i32_0 : i32, i32
  }
  func.func @transform_6(%arg0: i32) -> (i32, i32) {
    %c0_i32 = arith.constant 0 : i32
    %c0_i32_0 = arith.constant 0 : i32
    %c0_i32_1 = arith.constant 0 : i32
    return %c0_i32, %c0_i32_0 : i32, i32
  }
  func.func @transform_7(%arg0: i32) -> (i32, i32) {
    %c0_i32 = arith.constant 0 : i32
    %c0_i32_0 = arith.constant 0 : i32
    return %arg0, %c0_i32 : i32, i32
  }
}

module attributes {stable_mosaic.version = 11 : i64} {
  func.func @_fused_attn_kernel(%arg0: i32, %arg1: memref<64x128xf32, #tpu.memory_space<vmem>>, %arg2: memref<8x128xf32, #tpu.memory_space<vmem>>, %arg3: memref<1x128xf32, #tpu.memory_space<vmem>>, %arg4: memref<1x128xf32, #tpu.memory_space<vmem>>, %arg5: memref<128x768xbf16, #tpu.memory_space<vmem>>, %arg6: memref<256x128xbf16, #tpu.memory_space<vmem>>, %arg7: memref<1x128xf32, #tpu.memory_space<vmem>>, %arg8: memref<64x128xf32, #tpu.memory_space<vmem>>) attributes {dimension_semantics = [#tpu.dimension_semantics<parallel>], iteration_bounds = array<i64: 2>, scalar_prefetch = 0 : i64, scratch_operands = 0 : i64, tpu.core_type = #tpu.core_type<tc>, window_params = [{transform_indices = @transform_0, window_bounds = array<i64: 64, 128>}, {transform_indices = @transform_1, window_bounds = array<i64: 8, 128>}, {pipeline_mode = #tpu.pipeline_mode<synchronous>, transform_indices = @transform_2, window_bounds = array<i64: 1, 128>}, {pipeline_mode = #tpu.pipeline_mode<synchronous>, transform_indices = @transform_3, window_bounds = array<i64: 1, 128>}, {pipeline_mode = #tpu.pipeline_mode<synchronous>, transform_indices = @transform_4, window_bounds = array<i64: 128, 768>}, {pipeline_mode = #tpu.pipeline_mode<synchronous>, transform_indices = @transform_5, window_bounds = array<i64: 256, 128>}, {pipeline_mode = #tpu.pipeline_mode<synchronous>, transform_indices = @transform_6, window_bounds = array<i64: 1, 128>}, {transform_indices = @transform_7, window_bounds = array<i64: 64, 128>}]} {
    %c0 = arith.constant 0 : index
    %c0_0 = arith.constant 0 : index
    %0 = vector.load %arg1[%c0, %c0_0] : memref<64x128xf32, #tpu.memory_space<vmem>>, vector<64x128xf32>
    %cst = arith.constant dense<0.000000e+00> : vector<64xf32>
    %1 = vector.multi_reduction <add>, %0, %cst [1] : vector<64x128xf32> to vector<64xf32>
    %2 = vector.shape_cast %1 : vector<64xf32> to vector<64x1xf32>
    %cst_1 = arith.constant 1.280000e+02 : f32
    %3 = vector.broadcast %cst_1 : f32 to vector<64x1xf32>
    %4 = arith.divf %2, %3 : vector<64x1xf32>
    %5 = vector.broadcast %4 : vector<64x1xf32> to vector<64x128xf32>
    %6 = arith.subf %0, %5 : vector<64x128xf32>
    %7 = arith.mulf %6, %6 : vector<64x128xf32>
    %cst_2 = arith.constant dense<0.000000e+00> : vector<64xf32>
    %8 = vector.multi_reduction <add>, %7, %cst_2 [1] : vector<64x128xf32> to vector<64xf32>
    %9 = vector.shape_cast %8 : vector<64xf32> to vector<64x1xf32>
    %cst_3 = arith.constant 1.280000e+02 : f32
    %10 = vector.broadcast %cst_3 : f32 to vector<64x1xf32>
    %11 = arith.divf %9, %10 : vector<64x1xf32>
    %cst_4 = arith.constant 9.99999974E-6 : f32
    %12 = vector.broadcast %cst_4 : f32 to vector<64x1xf32>
    %13 = arith.addf %11, %12 : vector<64x1xf32>
    %14 = math.rsqrt %13 : vector<64x1xf32>
    %15 = vector.broadcast %14 : vector<64x1xf32> to vector<64x128xf32>
    %16 = arith.mulf %6, %15 : vector<64x128xf32>
    %c0_5 = arith.constant 0 : index
    %c0_6 = arith.constant 0 : index
    %17 = vector.load %arg3[%c0_5, %c0_6] : memref<1x128xf32, #tpu.memory_space<vmem>>, vector<1x128xf32>
    %18 = vector.broadcast %17 : vector<1x128xf32> to vector<64x128xf32>
    %19 = arith.mulf %16, %18 : vector<64x128xf32>
    %c0_7 = arith.constant 0 : index
    %c0_8 = arith.constant 0 : index
    %20 = vector.load %arg4[%c0_7, %c0_8] : memref<1x128xf32, #tpu.memory_space<vmem>>, vector<1x128xf32>
    %21 = vector.broadcast %20 : vector<1x128xf32> to vector<64x128xf32>
    %22 = arith.addf %19, %21 : vector<64x128xf32>
    %c0_9 = arith.constant 0 : index
    %c0_10 = arith.constant 0 : index
    %23 = vector.load %arg2[%c0_9, %c0_10] : memref<8x128xf32, #tpu.memory_space<vmem>>, vector<8x128xf32>
    %24 = vector.shape_cast %23 : vector<8x128xf32> to vector<8x1x128xf32>
    %25 = vector.shape_cast %24 : vector<8x1x128xf32> to vector<8x1x128xf32>
    %26 = vector.broadcast %25 : vector<8x1x128xf32> to vector<8x8x128xf32>
    %27 = vector.shape_cast %26 : vector<8x8x128xf32> to vector<64x128xf32>
    %28 = arith.addf %22, %27 : vector<64x128xf32>
    %29 = arith.truncf %28 : vector<64x128xf32> to vector<64x128xbf16>
    %c0_11 = arith.constant 0 : index
    %c0_12 = arith.constant 0 : index
    %30 = vector.load %arg5[%c0_11, %c0_12] : memref<128x768xbf16, #tpu.memory_space<vmem>>, vector<128x768xbf16>
    %cst_13 = arith.constant dense<0.000000e+00> : vector<64x768xf32>
    %31 = tpu.matmul %29, %30, %cst_13 {dimension_numbers = #tpu.dot_dimension_numbers<[1], [0], [0], [1], [0, 0, 1, 1], [], []>} : vector<64x128xbf16>, vector<128x768xbf16>, vector<64x768xf32> -> vector<64x768xf32>
    %32 = vector.extract_strided_slice %31 {offsets = [0, 0], sizes = [64, 128], strides = [1, 1]} : vector<64x768xf32> to vector<64x128xf32>
    %33 = arith.truncf %32 : vector<64x128xf32> to vector<64x128xbf16>
    %34 = vector.extract_strided_slice %31 {offsets = [0, 256], sizes = [64, 128], strides = [1, 1]} : vector<64x768xf32> to vector<64x128xf32>
    %35 = arith.truncf %34 : vector<64x128xf32> to vector<64x128xbf16>
    %36 = vector.extract_strided_slice %31 {offsets = [0, 512], sizes = [64, 128], strides = [1, 1]} : vector<64x768xf32> to vector<64x128xf32>
    %37 = arith.truncf %36 : vector<64x128xf32> to vector<64x128xbf16>
    %cst_14 = arith.constant dense<0.000000e+00> : vector<64x64xf32>
    %38 = tpu.matmul %33, %35, %cst_14 {dimension_numbers = #tpu.dot_dimension_numbers<[1], [1], [0], [0], [0, 0, 1, 0], [], []>} : vector<64x128xbf16>, vector<64x128xbf16>, vector<64x64xf32> -> vector<64x64xf32>
    %cst_15 = arith.constant dense<0xFF800000> : vector<64xf32>
    %39 = vector.multi_reduction <maximumf>, %38, %cst_15 [1] : vector<64x64xf32> to vector<64xf32>
    %40 = vector.shape_cast %39 : vector<64xf32> to vector<64x1xf32>
    %41 = vector.broadcast %40 : vector<64x1xf32> to vector<64x64xf32>
    %42 = arith.subf %38, %41 : vector<64x64xf32>
    %43 = math.exp %42 : vector<64x64xf32>
    %cst_16 = arith.constant dense<0.000000e+00> : vector<64xf32>
    %44 = vector.multi_reduction <add>, %43, %cst_16 [1] : vector<64x64xf32> to vector<64xf32>
    %45 = vector.shape_cast %44 : vector<64xf32> to vector<64x1xf32>
    %46 = arith.truncf %43 : vector<64x64xf32> to vector<64x64xbf16>
    %cst_17 = arith.constant dense<0.000000e+00> : vector<64x128xf32>
    %47 = tpu.matmul %46, %37, %cst_17 {dimension_numbers = #tpu.dot_dimension_numbers<[1], [0], [0], [1], [0, 0, 1, 1], [], []>} : vector<64x64xbf16>, vector<64x128xbf16>, vector<64x128xf32> -> vector<64x128xf32>
    %48 = tpu.reciprocal %45 {approx = true} : vector<64x1xf32> -> vector<64x1xf32>
    %49 = vector.broadcast %48 : vector<64x1xf32> to vector<64x128xf32>
    %50 = arith.mulf %47, %49 : vector<64x128xf32>
    %51 = vector.extract_strided_slice %31 {offsets = [0, 128], sizes = [64, 128], strides = [1, 1]} : vector<64x768xf32> to vector<64x128xf32>
    %52 = arith.truncf %51 : vector<64x128xf32> to vector<64x128xbf16>
    %53 = vector.extract_strided_slice %31 {offsets = [0, 384], sizes = [64, 128], strides = [1, 1]} : vector<64x768xf32> to vector<64x128xf32>
    %54 = arith.truncf %53 : vector<64x128xf32> to vector<64x128xbf16>
    %55 = vector.extract_strided_slice %31 {offsets = [0, 640], sizes = [64, 128], strides = [1, 1]} : vector<64x768xf32> to vector<64x128xf32>
    %56 = arith.truncf %55 : vector<64x128xf32> to vector<64x128xbf16>
    %cst_18 = arith.constant dense<0.000000e+00> : vector<64x64xf32>
    %57 = tpu.matmul %52, %54, %cst_18 {dimension_numbers = #tpu.dot_dimension_numbers<[1], [1], [0], [0], [0, 0, 1, 0], [], []>} : vector<64x128xbf16>, vector<64x128xbf16>, vector<64x64xf32> -> vector<64x64xf32>
    %cst_19 = arith.constant dense<0xFF800000> : vector<64xf32>
    %58 = vector.multi_reduction <maximumf>, %57, %cst_19 [1] : vector<64x64xf32> to vector<64xf32>
    %59 = vector.shape_cast %58 : vector<64xf32> to vector<64x1xf32>
    %60 = vector.broadcast %59 : vector<64x1xf32> to vector<64x64xf32>
    %61 = arith.subf %57, %60 : vector<64x64xf32>
    %62 = math.exp %61 : vector<64x64xf32>
    %cst_20 = arith.constant dense<0.000000e+00> : vector<64xf32>
    %63 = vector.multi_reduction <add>, %62, %cst_20 [1] : vector<64x64xf32> to vector<64xf32>
    %64 = vector.shape_cast %63 : vector<64xf32> to vector<64x1xf32>
    %65 = arith.truncf %62 : vector<64x64xf32> to vector<64x64xbf16>
    %cst_21 = arith.constant dense<0.000000e+00> : vector<64x128xf32>
    %66 = tpu.matmul %65, %56, %cst_21 {dimension_numbers = #tpu.dot_dimension_numbers<[1], [0], [0], [1], [0, 0, 1, 1], [], []>} : vector<64x64xbf16>, vector<64x128xbf16>, vector<64x128xf32> -> vector<64x128xf32>
    %67 = tpu.reciprocal %64 {approx = true} : vector<64x1xf32> -> vector<64x1xf32>
    %68 = vector.broadcast %67 : vector<64x1xf32> to vector<64x128xf32>
    %69 = arith.mulf %66, %68 : vector<64x128xf32>
    %70 = tpu.concatenate %50, %69 in 1 : vector<64x128xf32>, vector<64x128xf32> -> vector<64x256xf32>
    %71 = arith.truncf %70 : vector<64x256xf32> to vector<64x256xbf16>
    %c0_22 = arith.constant 0 : index
    %c0_23 = arith.constant 0 : index
    %72 = vector.load %arg6[%c0_22, %c0_23] : memref<256x128xbf16, #tpu.memory_space<vmem>>, vector<256x128xbf16>
    %cst_24 = arith.constant dense<0.000000e+00> : vector<64x128xf32>
    %73 = tpu.matmul %71, %72, %cst_24 {dimension_numbers = #tpu.dot_dimension_numbers<[1], [0], [0], [1], [0, 0, 1, 1], [], []>} : vector<64x256xbf16>, vector<256x128xbf16>, vector<64x128xf32> -> vector<64x128xf32>
    %c0_25 = arith.constant 0 : index
    %c0_26 = arith.constant 0 : index
    %74 = vector.load %arg7[%c0_25, %c0_26] : memref<1x128xf32, #tpu.memory_space<vmem>>, vector<1x128xf32>
    %75 = vector.broadcast %74 : vector<1x128xf32> to vector<64x128xf32>
    %76 = arith.addf %73, %75 : vector<64x128xf32>
    %77 = arith.addf %76, %22 : vector<64x128xf32>
    %c0_27 = arith.constant 0 : index
    %c0_28 = arith.constant 0 : index
    %78 = vector.load %arg8[%c0_27, %c0_28] : memref<64x128xf32, #tpu.memory_space<vmem>>, vector<64x128xf32>
    tpu.vector_store %arg8[%c0_27, %c0_28], %77 {strides = array<i32>} : memref<64x128xf32, #tpu.memory_space<vmem>>, vector<64x128xf32>,
    return
  }
  func.func @transform_0(%arg0: i32) -> (i32, i32) {
    %c0_i32 = arith.constant 0 : i32
    %c0_i32_0 = arith.constant 0 : i32
    return %arg0, %c0_i32 : i32, i32
  }
  func.func @transform_1(%arg0: i32) -> (i32, i32) {
    %c0_i32 = arith.constant 0 : i32
    %c0_i32_0 = arith.constant 0 : i32
    return %arg0, %c0_i32 : i32, i32
  }
  func.func @transform_2(%arg0: i32) -> (i32, i32) {
    %c0_i32 = arith.constant 0 : i32
    %c0_i32_0 = arith.constant 0 : i32
    %c0_i32_1 = arith.constant 0 : i32
    return %c0_i32, %c0_i32_0 : i32, i32
  }
  func.func @transform_3(%arg0: i32) -> (i32, i32) {
    %c0_i32 = arith.constant 0 : i32
    %c0_i32_0 = arith.constant 0 : i32
    %c0_i32_1 = arith.constant 0 : i32
    return %c0_i32, %c0_i32_0 : i32, i32
  }
  func.func @transform_4(%arg0: i32) -> (i32, i32) {
    %c0_i32 = arith.constant 0 : i32
    %c0_i32_0 = arith.constant 0 : i32
    %c0_i32_1 = arith.constant 0 : i32
    return %c0_i32, %c0_i32_0 : i32, i32
  }
  func.func @transform_5(%arg0: i32) -> (i32, i32) {
    %c0_i32 = arith.constant 0 : i32
    %c0_i32_0 = arith.constant 0 : i32
    %c0_i32_1 = arith.constant 0 : i32
    return %c0_i32, %c0_i32_0 : i32, i32
  }
  func.func @transform_6(%arg0: i32) -> (i32, i32) {
    %c0_i32 = arith.constant 0 : i32
    %c0_i32_0 = arith.constant 0 : i32
    %c0_i32_1 = arith.constant 0 : i32
    return %c0_i32, %c0_i32_0 : i32, i32
  }
  func.func @transform_7(%arg0: i32) -> (i32, i32) {
    %c0_i32 = arith.constant 0 : i32
    %c0_i32_0 = arith.constant 0 : i32
    return %arg0, %c0_i32 : i32, i32
  }
}

module attributes {stable_mosaic.version = 11 : i64} {
  func.func @_fused_attn_kernel(%arg0: i32, %arg1: memref<64x128xf32, #tpu.memory_space<vmem>>, %arg2: memref<1x128xf32, #tpu.memory_space<vmem>>, %arg3: memref<1x128xf32, #tpu.memory_space<vmem>>, %arg4: memref<128x768xbf16, #tpu.memory_space<vmem>>, %arg5: memref<256x128xbf16, #tpu.memory_space<vmem>>, %arg6: memref<1x128xf32, #tpu.memory_space<vmem>>, %arg7: memref<64x128xf32, #tpu.memory_space<vmem>>) attributes {dimension_semantics = [#tpu.dimension_semantics<parallel>], iteration_bounds = array<i64: 2>, scalar_prefetch = 0 : i64, scratch_operands = 0 : i64, tpu.core_type = #tpu.core_type<tc>, window_params = [{transform_indices = @transform_0, window_bounds = array<i64: 64, 128>}, {pipeline_mode = #tpu.pipeline_mode<synchronous>, transform_indices = @transform_1, window_bounds = array<i64: 1, 128>}, {pipeline_mode = #tpu.pipeline_mode<synchronous>, transform_indices = @transform_2, window_bounds = array<i64: 1, 128>}, {pipeline_mode = #tpu.pipeline_mode<synchronous>, transform_indices = @transform_3, window_bounds = array<i64: 128, 768>}, {pipeline_mode = #tpu.pipeline_mode<synchronous>, transform_indices = @transform_4, window_bounds = array<i64: 256, 128>}, {pipeline_mode = #tpu.pipeline_mode<synchronous>, transform_indices = @transform_5, window_bounds = array<i64: 1, 128>}, {transform_indices = @transform_6, window_bounds = array<i64: 64, 128>}]} {
    %c0 = arith.constant 0 : index
    %c0_0 = arith.constant 0 : index
    %0 = vector.load %arg1[%c0, %c0_0] : memref<64x128xf32, #tpu.memory_space<vmem>>, vector<64x128xf32>
    %cst = arith.constant dense<0.000000e+00> : vector<64xf32>
    %1 = vector.multi_reduction <add>, %0, %cst [1] : vector<64x128xf32> to vector<64xf32>
    %2 = vector.shape_cast %1 : vector<64xf32> to vector<64x1xf32>
    %cst_1 = arith.constant 1.280000e+02 : f32
    %3 = vector.broadcast %cst_1 : f32 to vector<64x1xf32>
    %4 = arith.divf %2, %3 : vector<64x1xf32>
    %5 = vector.broadcast %4 : vector<64x1xf32> to vector<64x128xf32>
    %6 = arith.subf %0, %5 : vector<64x128xf32>
    %7 = arith.mulf %6, %6 : vector<64x128xf32>
    %cst_2 = arith.constant dense<0.000000e+00> : vector<64xf32>
    %8 = vector.multi_reduction <add>, %7, %cst_2 [1] : vector<64x128xf32> to vector<64xf32>
    %9 = vector.shape_cast %8 : vector<64xf32> to vector<64x1xf32>
    %cst_3 = arith.constant 1.280000e+02 : f32
    %10 = vector.broadcast %cst_3 : f32 to vector<64x1xf32>
    %11 = arith.divf %9, %10 : vector<64x1xf32>
    %cst_4 = arith.constant 9.99999974E-6 : f32
    %12 = vector.broadcast %cst_4 : f32 to vector<64x1xf32>
    %13 = arith.addf %11, %12 : vector<64x1xf32>
    %14 = math.rsqrt %13 : vector<64x1xf32>
    %15 = vector.broadcast %14 : vector<64x1xf32> to vector<64x128xf32>
    %16 = arith.mulf %6, %15 : vector<64x128xf32>
    %c0_5 = arith.constant 0 : index
    %c0_6 = arith.constant 0 : index
    %17 = vector.load %arg2[%c0_5, %c0_6] : memref<1x128xf32, #tpu.memory_space<vmem>>, vector<1x128xf32>
    %18 = vector.broadcast %17 : vector<1x128xf32> to vector<64x128xf32>
    %19 = arith.mulf %16, %18 : vector<64x128xf32>
    %c0_7 = arith.constant 0 : index
    %c0_8 = arith.constant 0 : index
    %20 = vector.load %arg3[%c0_7, %c0_8] : memref<1x128xf32, #tpu.memory_space<vmem>>, vector<1x128xf32>
    %21 = vector.broadcast %20 : vector<1x128xf32> to vector<64x128xf32>
    %22 = arith.addf %19, %21 : vector<64x128xf32>
    %23 = arith.truncf %22 : vector<64x128xf32> to vector<64x128xbf16>
    %c0_9 = arith.constant 0 : index
    %c0_10 = arith.constant 0 : index
    %24 = vector.load %arg4[%c0_9, %c0_10] : memref<128x768xbf16, #tpu.memory_space<vmem>>, vector<128x768xbf16>
    %cst_11 = arith.constant dense<0.000000e+00> : vector<64x768xf32>
    %25 = tpu.matmul %23, %24, %cst_11 {dimension_numbers = #tpu.dot_dimension_numbers<[1], [0], [0], [1], [0, 0, 1, 1], [], []>} : vector<64x128xbf16>, vector<128x768xbf16>, vector<64x768xf32> -> vector<64x768xf32>
    %26 = vector.extract_strided_slice %25 {offsets = [0, 0], sizes = [64, 128], strides = [1, 1]} : vector<64x768xf32> to vector<64x128xf32>
    %27 = arith.truncf %26 : vector<64x128xf32> to vector<64x128xbf16>
    %28 = vector.extract_strided_slice %25 {offsets = [0, 256], sizes = [64, 128], strides = [1, 1]} : vector<64x768xf32> to vector<64x128xf32>
    %29 = arith.truncf %28 : vector<64x128xf32> to vector<64x128xbf16>
    %30 = vector.extract_strided_slice %25 {offsets = [0, 512], sizes = [64, 128], strides = [1, 1]} : vector<64x768xf32> to vector<64x128xf32>
    %31 = arith.truncf %30 : vector<64x128xf32> to vector<64x128xbf16>
    %cst_12 = arith.constant dense<0.000000e+00> : vector<64x64xf32>
    %32 = tpu.matmul %27, %29, %cst_12 {dimension_numbers = #tpu.dot_dimension_numbers<[1], [1], [0], [0], [0, 0, 1, 0], [], []>} : vector<64x128xbf16>, vector<64x128xbf16>, vector<64x64xf32> -> vector<64x64xf32>
    %cst_13 = arith.constant dense<0xFF800000> : vector<64xf32>
    %33 = vector.multi_reduction <maximumf>, %32, %cst_13 [1] : vector<64x64xf32> to vector<64xf32>
    %34 = vector.shape_cast %33 : vector<64xf32> to vector<64x1xf32>
    %35 = vector.broadcast %34 : vector<64x1xf32> to vector<64x64xf32>
    %36 = arith.subf %32, %35 : vector<64x64xf32>
    %37 = math.exp %36 : vector<64x64xf32>
    %cst_14 = arith.constant dense<0.000000e+00> : vector<64xf32>
    %38 = vector.multi_reduction <add>, %37, %cst_14 [1] : vector<64x64xf32> to vector<64xf32>
    %39 = vector.shape_cast %38 : vector<64xf32> to vector<64x1xf32>
    %40 = arith.truncf %37 : vector<64x64xf32> to vector<64x64xbf16>
    %cst_15 = arith.constant dense<0.000000e+00> : vector<64x128xf32>
    %41 = tpu.matmul %40, %31, %cst_15 {dimension_numbers = #tpu.dot_dimension_numbers<[1], [0], [0], [1], [0, 0, 1, 1], [], []>} : vector<64x64xbf16>, vector<64x128xbf16>, vector<64x128xf32> -> vector<64x128xf32>
    %42 = tpu.reciprocal %39 {approx = true} : vector<64x1xf32> -> vector<64x1xf32>
    %43 = vector.broadcast %42 : vector<64x1xf32> to vector<64x128xf32>
    %44 = arith.mulf %41, %43 : vector<64x128xf32>
    %45 = vector.extract_strided_slice %25 {offsets = [0, 128], sizes = [64, 128], strides = [1, 1]} : vector<64x768xf32> to vector<64x128xf32>
    %46 = arith.truncf %45 : vector<64x128xf32> to vector<64x128xbf16>
    %47 = vector.extract_strided_slice %25 {offsets = [0, 384], sizes = [64, 128], strides = [1, 1]} : vector<64x768xf32> to vector<64x128xf32>
    %48 = arith.truncf %47 : vector<64x128xf32> to vector<64x128xbf16>
    %49 = vector.extract_strided_slice %25 {offsets = [0, 640], sizes = [64, 128], strides = [1, 1]} : vector<64x768xf32> to vector<64x128xf32>
    %50 = arith.truncf %49 : vector<64x128xf32> to vector<64x128xbf16>
    %cst_16 = arith.constant dense<0.000000e+00> : vector<64x64xf32>
    %51 = tpu.matmul %46, %48, %cst_16 {dimension_numbers = #tpu.dot_dimension_numbers<[1], [1], [0], [0], [0, 0, 1, 0], [], []>} : vector<64x128xbf16>, vector<64x128xbf16>, vector<64x64xf32> -> vector<64x64xf32>
    %cst_17 = arith.constant dense<0xFF800000> : vector<64xf32>
    %52 = vector.multi_reduction <maximumf>, %51, %cst_17 [1] : vector<64x64xf32> to vector<64xf32>
    %53 = vector.shape_cast %52 : vector<64xf32> to vector<64x1xf32>
    %54 = vector.broadcast %53 : vector<64x1xf32> to vector<64x64xf32>
    %55 = arith.subf %51, %54 : vector<64x64xf32>
    %56 = math.exp %55 : vector<64x64xf32>
    %cst_18 = arith.constant dense<0.000000e+00> : vector<64xf32>
    %57 = vector.multi_reduction <add>, %56, %cst_18 [1] : vector<64x64xf32> to vector<64xf32>
    %58 = vector.shape_cast %57 : vector<64xf32> to vector<64x1xf32>
    %59 = arith.truncf %56 : vector<64x64xf32> to vector<64x64xbf16>
    %cst_19 = arith.constant dense<0.000000e+00> : vector<64x128xf32>
    %60 = tpu.matmul %59, %50, %cst_19 {dimension_numbers = #tpu.dot_dimension_numbers<[1], [0], [0], [1], [0, 0, 1, 1], [], []>} : vector<64x64xbf16>, vector<64x128xbf16>, vector<64x128xf32> -> vector<64x128xf32>
    %61 = tpu.reciprocal %58 {approx = true} : vector<64x1xf32> -> vector<64x1xf32>
    %62 = vector.broadcast %61 : vector<64x1xf32> to vector<64x128xf32>
    %63 = arith.mulf %60, %62 : vector<64x128xf32>
    %64 = tpu.concatenate %44, %63 in 1 : vector<64x128xf32>, vector<64x128xf32> -> vector<64x256xf32>
    %65 = arith.truncf %64 : vector<64x256xf32> to vector<64x256xbf16>
    %c0_20 = arith.constant 0 : index
    %c0_21 = arith.constant 0 : index
    %66 = vector.load %arg5[%c0_20, %c0_21] : memref<256x128xbf16, #tpu.memory_space<vmem>>, vector<256x128xbf16>
    %cst_22 = arith.constant dense<0.000000e+00> : vector<64x128xf32>
    %67 = tpu.matmul %65, %66, %cst_22 {dimension_numbers = #tpu.dot_dimension_numbers<[1], [0], [0], [1], [0, 0, 1, 1], [], []>} : vector<64x256xbf16>, vector<256x128xbf16>, vector<64x128xf32> -> vector<64x128xf32>
    %c0_23 = arith.constant 0 : index
    %c0_24 = arith.constant 0 : index
    %68 = vector.load %arg6[%c0_23, %c0_24] : memref<1x128xf32, #tpu.memory_space<vmem>>, vector<1x128xf32>
    %69 = vector.broadcast %68 : vector<1x128xf32> to vector<64x128xf32>
    %70 = arith.addf %67, %69 : vector<64x128xf32>
    %71 = arith.addf %70, %22 : vector<64x128xf32>
    %c0_25 = arith.constant 0 : index
    %c0_26 = arith.constant 0 : index
    %72 = vector.load %arg7[%c0_25, %c0_26] : memref<64x128xf32, #tpu.memory_space<vmem>>, vector<64x128xf32>
    tpu.vector_store %arg7[%c0_25, %c0_26], %71 {strides = array<i32>} : memref<64x128xf32, #tpu.memory_space<vmem>>, vector<64x128xf32>,
    return
  }
  func.func @transform_0(%arg0: i32) -> (i32, i32) {
    %c0_i32 = arith.constant 0 : i32
    %c0_i32_0 = arith.constant 0 : i32
    return %arg0, %c0_i32 : i32, i32
  }
  func.func @transform_1(%arg0: i32) -> (i32, i32) {
    %c0_i32 = arith.constant 0 : i32
    %c0_i32_0 = arith.constant 0 : i32
    %c0_i32_1 = arith.constant 0 : i32
    return %c0_i32, %c0_i32_0 : i32, i32
  }
  func.func @transform_2(%arg0: i32) -> (i32, i32) {
    %c0_i32 = arith.constant 0 : i32
    %c0_i32_0 = arith.constant 0 : i32
    %c0_i32_1 = arith.constant 0 : i32
    return %c0_i32, %c0_i32_0 : i32, i32
  }
  func.func @transform_3(%arg0: i32) -> (i32, i32) {
    %c0_i32 = arith.constant 0 : i32
    %c0_i32_0 = arith.constant 0 : i32
    %c0_i32_1 = arith.constant 0 : i32
    return %c0_i32, %c0_i32_0 : i32, i32
  }
  func.func @transform_4(%arg0: i32) -> (i32, i32) {
    %c0_i32 = arith.constant 0 : i32
    %c0_i32_0 = arith.constant 0 : i32
    %c0_i32_1 = arith.constant 0 : i32
    return %c0_i32, %c0_i32_0 : i32, i32
  }
  func.func @transform_5(%arg0: i32) -> (i32, i32) {
    %c0_i32 = arith.constant 0 : i32
    %c0_i32_0 = arith.constant 0 : i32
    %c0_i32_1 = arith.constant 0 : i32
    return %c0_i32, %c0_i32_0 : i32, i32
  }
  func.func @transform_6(%arg0: i32) -> (i32, i32) {
    %c0_i32 = arith.constant 0 : i32
    %c0_i32_0 = arith.constant 0 : i32
    return %arg0, %c0_i32 : i32, i32
  }
}

module attributes {stable_mosaic.version = 11 : i64} {
  func.func @_geglu_kernel(%arg0: i32, %arg1: memref<128x128xf32, #tpu.memory_space<vmem>>, %arg2: memref<1x128xf32, #tpu.memory_space<vmem>>, %arg3: memref<1x128xf32, #tpu.memory_space<vmem>>, %arg4: memref<128x512xbf16, #tpu.memory_space<vmem>>, %arg5: memref<1x512xf32, #tpu.memory_space<vmem>>, %arg6: memref<128x512xbf16, #tpu.memory_space<vmem>>, %arg7: memref<1x512xf32, #tpu.memory_space<vmem>>, %arg8: memref<512x128xbf16, #tpu.memory_space<vmem>>, %arg9: memref<1x128xf32, #tpu.memory_space<vmem>>, %arg10: memref<128x128xf32, #tpu.memory_space<vmem>>) attributes {dimension_semantics = [#tpu.dimension_semantics<parallel>], iteration_bounds = array<i64: 1>, scalar_prefetch = 0 : i64, scratch_operands = 0 : i64, tpu.core_type = #tpu.core_type<tc>, window_params = [{transform_indices = @transform_0, window_bounds = array<i64: 128, 128>}, {pipeline_mode = #tpu.pipeline_mode<synchronous>, transform_indices = @transform_1, window_bounds = array<i64: 1, 128>}, {pipeline_mode = #tpu.pipeline_mode<synchronous>, transform_indices = @transform_2, window_bounds = array<i64: 1, 128>}, {pipeline_mode = #tpu.pipeline_mode<synchronous>, transform_indices = @transform_3, window_bounds = array<i64: 128, 512>}, {pipeline_mode = #tpu.pipeline_mode<synchronous>, transform_indices = @transform_4, window_bounds = array<i64: 1, 512>}, {pipeline_mode = #tpu.pipeline_mode<synchronous>, transform_indices = @transform_5, window_bounds = array<i64: 128, 512>}, {pipeline_mode = #tpu.pipeline_mode<synchronous>, transform_indices = @transform_6, window_bounds = array<i64: 1, 512>}, {pipeline_mode = #tpu.pipeline_mode<synchronous>, transform_indices = @transform_7, window_bounds = array<i64: 512, 128>}, {pipeline_mode = #tpu.pipeline_mode<synchronous>, transform_indices = @transform_8, window_bounds = array<i64: 1, 128>}, {transform_indices = @transform_9, window_bounds = array<i64: 128, 128>}]} {
    %c0 = arith.constant 0 : index
    %c0_0 = arith.constant 0 : index
    %0 = vector.load %arg1[%c0, %c0_0] : memref<128x128xf32, #tpu.memory_space<vmem>>, vector<128x128xf32>
    %cst = arith.constant dense<0.000000e+00> : vector<128xf32>
    %1 = vector.multi_reduction <add>, %0, %cst [1] : vector<128x128xf32> to vector<128xf32>
    %2 = vector.shape_cast %1 : vector<128xf32> to vector<128x1xf32>
    %cst_1 = arith.constant 1.280000e+02 : f32
    %3 = vector.broadcast %cst_1 : f32 to vector<128x1xf32>
    %4 = arith.divf %2, %3 : vector<128x1xf32>
    %5 = vector.broadcast %4 : vector<128x1xf32> to vector<128x128xf32>
    %6 = arith.subf %0, %5 : vector<128x128xf32>
    %7 = arith.mulf %6, %6 : vector<128x128xf32>
    %cst_2 = arith.constant dense<0.000000e+00> : vector<128xf32>
    %8 = vector.multi_reduction <add>, %7, %cst_2 [1] : vector<128x128xf32> to vector<128xf32>
    %9 = vector.shape_cast %8 : vector<128xf32> to vector<128x1xf32>
    %cst_3 = arith.constant 1.280000e+02 : f32
    %10 = vector.broadcast %cst_3 : f32 to vector<128x1xf32>
    %11 = arith.divf %9, %10 : vector<128x1xf32>
    %cst_4 = arith.constant 9.99999974E-6 : f32
    %12 = vector.broadcast %cst_4 : f32 to vector<128x1xf32>
    %13 = arith.addf %11, %12 : vector<128x1xf32>
    %14 = math.rsqrt %13 : vector<128x1xf32>
    %15 = vector.broadcast %14 : vector<128x1xf32> to vector<128x128xf32>
    %16 = arith.mulf %6, %15 : vector<128x128xf32>
    %c0_5 = arith.constant 0 : index
    %c0_6 = arith.constant 0 : index
    %17 = vector.load %arg2[%c0_5, %c0_6] : memref<1x128xf32, #tpu.memory_space<vmem>>, vector<1x128xf32>
    %18 = vector.broadcast %17 : vector<1x128xf32> to vector<128x128xf32>
    %19 = arith.mulf %16, %18 : vector<128x128xf32>
    %c0_7 = arith.constant 0 : index
    %c0_8 = arith.constant 0 : index
    %20 = vector.load %arg3[%c0_7, %c0_8] : memref<1x128xf32, #tpu.memory_space<vmem>>, vector<1x128xf32>
    %21 = vector.broadcast %20 : vector<1x128xf32> to vector<128x128xf32>
    %22 = arith.addf %19, %21 : vector<128x128xf32>
    %23 = arith.truncf %22 : vector<128x128xf32> to vector<128x128xbf16>
    %c0_9 = arith.constant 0 : index
    %c0_10 = arith.constant 0 : index
    %24 = vector.load %arg6[%c0_9, %c0_10] : memref<128x512xbf16, #tpu.memory_space<vmem>>, vector<128x512xbf16>
    %cst_11 = arith.constant dense<0.000000e+00> : vector<128x512xf32>
    %25 = tpu.matmul %23, %24, %cst_11 {dimension_numbers = #tpu.dot_dimension_numbers<[1], [0], [0], [1], [0, 0, 1, 1], [], []>} : vector<128x128xbf16>, vector<128x512xbf16>, vector<128x512xf32> -> vector<128x512xf32>
    %c0_12 = arith.constant 0 : index
    %c0_13 = arith.constant 0 : index
    %26 = vector.load %arg7[%c0_12, %c0_13] : memref<1x512xf32, #tpu.memory_space<vmem>>, vector<1x512xf32>
    %27 = vector.broadcast %26 : vector<1x512xf32> to vector<128x512xf32>
    %28 = arith.addf %25, %27 : vector<128x512xf32>
    %cst_14 = arith.constant 5.000000e-01 : f32
    %29 = vector.broadcast %cst_14 : f32 to vector<128x512xf32>
    %30 = arith.mulf %29, %28 : vector<128x512xf32>
    %cst_15 = arith.constant 0.707106769 : f32
    %31 = vector.broadcast %cst_15 : f32 to vector<128x512xf32>
    %32 = arith.mulf %28, %31 : vector<128x512xf32>
    %33 = math.absf %32 : vector<128x512xf32>
    %cst_16 = arith.constant 0.327591091 : f32
    %34 = vector.broadcast %cst_16 : f32 to vector<128x512xf32>
    %35 = arith.mulf %34, %33 : vector<128x512xf32>
    %cst_17 = arith.constant 1.000000e+00 : f32
    %36 = vector.broadcast %cst_17 : f32 to vector<128x512xf32>
    %37 = arith.addf %36, %35 : vector<128x512xf32>
    %cst_18 = arith.constant 1.000000e+00 : f32
    %38 = vector.broadcast %cst_18 : f32 to vector<128x512xf32>
    %39 = arith.divf %38, %37 : vector<128x512xf32>
    %cst_19 = arith.constant 1.06140542 : f32
    %40 = vector.broadcast %cst_19 : f32 to vector<128x512xf32>
    %41 = arith.mulf %40, %39 : vector<128x512xf32>
    %cst_20 = arith.constant -1.45315206 : f32
    %42 = vector.broadcast %cst_20 : f32 to vector<128x512xf32>
    %43 = arith.addf %41, %42 : vector<128x512xf32>
    %44 = arith.mulf %43, %39 : vector<128x512xf32>
    %cst_21 = arith.constant 1.42141378 : f32
    %45 = vector.broadcast %cst_21 : f32 to vector<128x512xf32>
    %46 = arith.addf %44, %45 : vector<128x512xf32>
    %47 = arith.mulf %46, %39 : vector<128x512xf32>
    %cst_22 = arith.constant -0.284496725 : f32
    %48 = vector.broadcast %cst_22 : f32 to vector<128x512xf32>
    %49 = arith.addf %47, %48 : vector<128x512xf32>
    %50 = arith.mulf %49, %39 : vector<128x512xf32>
    %cst_23 = arith.constant 0.254829586 : f32
    %51 = vector.broadcast %cst_23 : f32 to vector<128x512xf32>
    %52 = arith.addf %50, %51 : vector<128x512xf32>
    %53 = arith.mulf %52, %39 : vector<128x512xf32>
    %cst_24 = arith.constant 0.000000e+00 : f32
    %54 = vector.broadcast %cst_24 : f32 to vector<128x512xf32>
    %55 = arith.subf %54, %33 : vector<128x512xf32>
    %56 = arith.mulf %55, %33 : vector<128x512xf32>
    %57 = math.exp %56 : vector<128x512xf32>
    %58 = arith.mulf %53, %57 : vector<128x512xf32>
    %cst_25 = arith.constant 1.000000e+00 : f32
    %59 = vector.broadcast %cst_25 : f32 to vector<128x512xf32>
    %60 = arith.subf %59, %58 : vector<128x512xf32>
    %cst_26 = arith.constant 0.000000e+00 : f32
    %61 = vector.broadcast %cst_26 : f32 to vector<128x512xf32>
    %62 = arith.cmpf olt, %32, %61 : vector<128x512xf32>
    %cst_27 = arith.constant 0.000000e+00 : f32
    %63 = vector.broadcast %cst_27 : f32 to vector<128x512xf32>
    %64 = arith.subf %63, %60 : vector<128x512xf32>
    %65 = arith.select %62, %64, %60 : vector<128x512xi1>, vector<128x512xf32>
    %cst_28 = arith.constant 1.000000e+00 : f32
    %66 = vector.broadcast %cst_28 : f32 to vector<128x512xf32>
    %67 = arith.addf %66, %65 : vector<128x512xf32>
    %68 = arith.mulf %30, %67 : vector<128x512xf32>
    %c0_29 = arith.constant 0 : index
    %c0_30 = arith.constant 0 : index
    %69 = vector.load %arg4[%c0_29, %c0_30] : memref<128x512xbf16, #tpu.memory_space<vmem>>, vector<128x512xbf16>
    %cst_31 = arith.constant dense<0.000000e+00> : vector<128x512xf32>
    %70 = tpu.matmul %23, %69, %cst_31 {dimension_numbers = #tpu.dot_dimension_numbers<[1], [0], [0], [1], [0, 0, 1, 1], [], []>} : vector<128x128xbf16>, vector<128x512xbf16>, vector<128x512xf32> -> vector<128x512xf32>
    %c0_32 = arith.constant 0 : index
    %c0_33 = arith.constant 0 : index
    %71 = vector.load %arg5[%c0_32, %c0_33] : memref<1x512xf32, #tpu.memory_space<vmem>>, vector<1x512xf32>
    %72 = vector.broadcast %71 : vector<1x512xf32> to vector<128x512xf32>
    %73 = arith.addf %70, %72 : vector<128x512xf32>
    %74 = arith.mulf %73, %68 : vector<128x512xf32>
    %75 = arith.truncf %74 : vector<128x512xf32> to vector<128x512xbf16>
    %c0_34 = arith.constant 0 : index
    %c0_35 = arith.constant 0 : index
    %76 = vector.load %arg8[%c0_34, %c0_35] : memref<512x128xbf16, #tpu.memory_space<vmem>>, vector<512x128xbf16>
    %cst_36 = arith.constant dense<0.000000e+00> : vector<128x128xf32>
    %77 = tpu.matmul %75, %76, %cst_36 {dimension_numbers = #tpu.dot_dimension_numbers<[1], [0], [0], [1], [0, 0, 1, 1], [], []>} : vector<128x512xbf16>, vector<512x128xbf16>, vector<128x128xf32> -> vector<128x128xf32>
    %c0_37 = arith.constant 0 : index
    %c0_38 = arith.constant 0 : index
    %78 = vector.load %arg9[%c0_37, %c0_38] : memref<1x128xf32, #tpu.memory_space<vmem>>, vector<1x128xf32>
    %79 = vector.broadcast %78 : vector<1x128xf32> to vector<128x128xf32>
    %80 = arith.addf %77, %79 : vector<128x128xf32>
    %81 = arith.addf %80, %22 : vector<128x128xf32>
    %c0_39 = arith.constant 0 : index
    %c0_40 = arith.constant 0 : index
    %82 = vector.load %arg10[%c0_39, %c0_40] : memref<128x128xf32, #tpu.memory_space<vmem>>, vector<128x128xf32>
    tpu.vector_store %arg10[%c0_39, %c0_40], %81 {strides = array<i32>} : memref<128x128xf32, #tpu.memory_space<vmem>>, vector<128x128xf32>,
    return
  }
  func.func @transform_0(%arg0: i32) -> (i32, i32) {
    %c0_i32 = arith.constant 0 : i32
    %c0_i32_0 = arith.constant 0 : i32
    return %arg0, %c0_i32 : i32, i32
  }
  func.func @transform_1(%arg0: i32) -> (i32, i32) {
    %c0_i32 = arith.constant 0 : i32
    %c0_i32_0 = arith.constant 0 : i32
    %c0_i32_1 = arith.constant 0 : i32
    return %c0_i32, %c0_i32_0 : i32, i32
  }
  func.func @transform_2(%arg0: i32) -> (i32, i32) {
    %c0_i32 = arith.constant 0 : i32
    %c0_i32_0 = arith.constant 0 : i32
    %c0_i32_1 = arith.constant 0 : i32
    return %c0_i32, %c0_i32_0 : i32, i32
  }
  func.func @transform_3(%arg0: i32) -> (i32, i32) {
    %c0_i32 = arith.constant 0 : i32
    %c0_i32_0 = arith.constant 0 : i32
    %c0_i32_1 = arith.constant 0 : i32
    return %c0_i32, %c0_i32_0 : i32, i32
  }
  func.func @transform_4(%arg0: i32) -> (i32, i32) {
    %c0_i32 = arith.constant 0 : i32
    %c0_i32_0 = arith.constant 0 : i32
    %c0_i32_1 = arith.constant 0 : i32
    return %c0_i32, %c0_i32_0 : i32, i32
  }
  func.func @transform_5(%arg0: i32) -> (i32, i32) {
    %c0_i32 = arith.constant 0 : i32
    %c0_i32_0 = arith.constant 0 : i32
    %c0_i32_1 = arith.constant 0 : i32
    return %c0_i32, %c0_i32_0 : i32, i32
  }
  func.func @transform_6(%arg0: i32) -> (i32, i32) {
    %c0_i32 = arith.constant 0 : i32
    %c0_i32_0 = arith.constant 0 : i32
    %c0_i32_1 = arith.constant 0 : i32
    return %c0_i32, %c0_i32_0 : i32, i32
  }
  func.func @transform_7(%arg0: i32) -> (i32, i32) {
    %c0_i32 = arith.constant 0 : i32
    %c0_i32_0 = arith.constant 0 : i32
    %c0_i32_1 = arith.constant 0 : i32
    return %c0_i32, %c0_i32_0 : i32, i32
  }
  func.func @transform_8(%arg0: i32) -> (i32, i32) {
    %c0_i32 = arith.constant 0 : i32
    %c0_i32_0 = arith.constant 0 : i32
    %c0_i32_1 = arith.constant 0 : i32
    return %c0_i32, %c0_i32_0 : i32, i32
  }
  func.func @transform_9(%arg0: i32) -> (i32, i32) {
    %c0_i32 = arith.constant 0 : i32
    %c0_i32_0 = arith.constant 0 : i32
    return %arg0, %c0_i32 : i32, i32
  }
}

</mosaic_0001>

<llo_original>
// kernel: additive_condition_block.4
$region0: #{additive_condition_block.4}
  #allocation0 [shape = 'u32[]', space=smem, size = 0x4, offset = 0x4, fixed_abs, tag = 'smem constant byte address 0x4 - core index']
  #allocation1 [shape = 'u32[72,128]{1,0:T(1,128)}', space=vmem, size = 0x9000, scoped, tag = 'internal scratch']
  %s0 = inlined_call_operand.vmem [shape: f32[32,64], index: 0, kind: input, shape index: {}]
  %s1 = inlined_call_operand.hbm [shape: f32[64,256], index: 1, kind: input, shape index: {}]
  %s2 = inlined_call_operand.vmem [shape: f32[1,256], index: 2, kind: input, shape index: {}]
  %s3 = inlined_call_operand.hbm [shape: f32[64,256], index: 3, kind: input, shape index: {}]
  %s4 = inlined_call_operand.vmem [shape: f32[1,256], index: 4, kind: input, shape index: {}]
  %s5 = inlined_call_operand.hbm [shape: f32[256,128], index: 5, kind: input, shape index: {}]
  %s6 = inlined_call_operand.vmem [shape: f32[1,128], index: 6, kind: input, shape index: {}]
  %s7 = inlined_call_operand.vmem [shape: f32[32,128], index: 7, kind: output, shape index: {}]
  %s8 = sld [smem:[#allocation0]]
  $region50: #{additive_condition_block.4} parent=0
    _
  %s10 = ssub.s32 1, %s8
  %s11 = scalar_select 0, %s10, %s8
  $region1: #{additive_condition_block.4} parent=0
    #allocation2 [shape = 'u8[65536]{0}', space=vmem, size = 0x10000, scoped, tag = 'input window, operand 1, single buffered']
    #allocation3 [shape = 's32[1]{0}', space=sflag, size = 0x4, scoped, tag = 'scoped memory for additive_condition_block.4']
    #allocation4 [shape = 'u8[65536]{0}', space=vmem, size = 0x10000, scoped, tag = 'input window, operand 3, single buffered']
    #allocation5 [shape = 's32[1]{0}', space=sflag, size = 0x4, scoped, tag = 'scoped memory for additive_condition_block.4']
    #allocation6 [shape = 'u8[131072]{0}', space=vmem, size = 0x20000, scoped, tag = 'input window, operand 5, single buffered']
    %12 = vsyncpa [#allocation3], 0
    %13 = vsyncpa [#allocation5], 0
    // Predicated region
    $region2: #{additive_condition_block.4} parent=1 // pred_check
      _
    $region3: #{additive_condition_block.4} parent=1 // pred_check_branch
      %15 = sbr.rel (0) target = $region5
    $region4: #{additive_condition_block.4} parent=1 // pred_region
      _
    $region5: #{additive_condition_block.4} parent=1 // pred_fallthru
      _
    // Predicated region
    $region6: #{additive_condition_block.4} parent=1 // pred_check
      _
    $region7: #{additive_condition_block.4} parent=1 // pred_check_branch
      %17 = sbr.rel (0) target = $region9
    $region8: #{additive_condition_block.4} parent=1 // pred_region
      %19 = vsyncadd [#allocation3], 0
      %s20 = sshll.u32 %s1, 4
      %s21 = int_to_ptr.hbm [resolvable:$true] %s20
      %s22 = sshll.u32 [#allocation2], 4
      %s23 = int_to_ptr.vmem [resolvable:$true] %s22
      %28 = dma.hbm_to_vmem [thread:$0]  %s21, 2048, %s23, [#allocation3], 256, 256, 16
    $region9: #{additive_condition_block.4} parent=1 // pred_fallthru
      _
    // Predicated region
    $region10: #{additive_condition_block.4} parent=1 // pred_check
      _
    $region11: #{additive_condition_block.4} parent=1 // pred_check_branch
      %30 = sbr.rel (0) target = $region13
    $region12: #{additive_condition_block.4} parent=1 // pred_region
      _
    $region13: #{additive_condition_block.4} parent=1 // pred_fallthru
      _
    // Predicated region
    $region14: #{additive_condition_block.4} parent=1 // pred_check
      _
    $region15: #{additive_condition_block.4} parent=1 // pred_check_branch
      %32 = sbr.rel (0) target = $region17
    $region16: #{additive_condition_block.4} parent=1 // pred_region
      %34 = vsyncadd [#allocation5], 0
      %s35 = sshll.u32 %s3, 4
      %s36 = int_to_ptr.hbm [resolvable:$true] %s35
      %s37 = sshll.u32 [#allocation4], 4
      %s38 = int_to_ptr.vmem [resolvable:$true] %s37
      %43 = dma.hbm_to_vmem [thread:$0]  %s36, 2048, %s38, [#allocation5], 256, 256, 16
    $region17: #{additive_condition_block.4} parent=1 // pred_fallthru
      _
    // Predicated region
    $region18: #{additive_condition_block.4} parent=1 // pred_check
      _
    $region19: #{additive_condition_block.4} parent=1 // pred_check_branch
      %45 = sbr.rel (0) target = $region21
    $region20: #{additive_condition_block.4} parent=1 // pred_region
      _
    $region21: #{additive_condition_block.4} parent=1 // pred_fallthru
      _
    // Predicated region
    $region22: #{additive_condition_block.4} parent=1 // pred_check
      _
    $region23: #{additive_condition_block.4} parent=1 // pred_check_branch
      %47 = sbr.rel (0) target = $region25
    $region24: #{additive_condition_block.4} parent=1 // pred_region
      %49 = vsyncadd [#allocation5], 0
      %s50 = sshll.u32 %s5, 4
      %s51 = int_to_ptr.hbm [resolvable:$true] %s50
      %s52 = sshll.u32 [#allocation6], 4
      %s53 = int_to_ptr.vmem [resolvable:$true] %s52
      %58 = dma.hbm_to_vmem [thread:$0]  %s51, 4096, %s53, [#allocation5], 128, 128, 8
    $region25: #{additive_condition_block.4} parent=1 // pred_fallthru
      _
    // Predicated region
    $region26: #{additive_condition_block.4} parent=1 // pred_check
      _
    $region27: #{additive_condition_block.4} parent=1 // pred_check_branch
      %60 = sbr.rel (0) target = $region29
    $region28: #{additive_condition_block.4} parent=1 // pred_region
      _
    $region29: #{additive_condition_block.4} parent=1 // pred_fallthru
      _
    // Predicated region
    $region30: #{additive_condition_block.4} parent=1 // pred_check
      _
    $region31: #{additive_condition_block.4} parent=1 // pred_check_branch
      %62 = sbr.rel (0) target = $region33
    $region32: #{additive_condition_block.4} parent=1 // pred_region
      %64 = dma.done [#allocation3], 2048
    $region33: #{additive_condition_block.4} parent=1 // pred_fallthru
      _
    // Predicated region
    $region34: #{additive_condition_block.4} parent=1 // pred_check
      _
    $region35: #{additive_condition_block.4} parent=1 // pred_check_branch
      %66 = sbr.rel (0) target = $region37
    $region36: #{additive_condition_block.4} parent=1 // pred_region
      %68 = dma.done [#allocation5], 2048
    $region37: #{additive_condition_block.4} parent=1 // pred_fallthru
      _
    // Predicated region
    $region38: #{additive_condition_block.4} parent=1 // pred_check
      _
    $region39: #{additive_condition_block.4} parent=1 // pred_check_branch
      %70 = sbr.rel (0) target = $region41
    $region40: #{additive_condition_block.4} parent=1 // pred_region
      %72 = dma.done [#allocation5], 4096
    $region41: #{additive_condition_block.4} parent=1 // pred_fallthru
      _
    %v73 = vld [vmem:[%s0] sm:$0xff]
    %v74 = vld [vmem:[%s0 + $0x8] sm:$0xff]
    %v75 = vld [vmem:[%s0 + $0x10] sm:$0xff]
    %v76 = vld [vmem:[%s0 + $0x18] sm:$0xff]
    %v77 = vld [vmem:[#allocation4] sm:$0xff]
    %v78 = vld [vmem:[#allocation4 + $0x8] sm:$0xff]
    %v79 = vld [vmem:[#allocation4 + $0x10] sm:$0xff]
    %v80 = vld [vmem:[#allocation4 + $0x18] sm:$0xff]
    %v81 = vld [vmem:[#allocation4 + $0x20] sm:$0xff]
    %v82 = vld [vmem:[#allocation4 + $0x28] sm:$0xff]
    %v83 = vld [vmem:[#allocation4 + $0x30] sm:$0xff]
    %v84 = vld [vmem:[#allocation4 + $0x38] sm:$0xff]
    %v85 = vld [vmem:[#allocation4 + $0x40] sm:$0xff]
    %v86 = vld [vmem:[#allocation4 + $0x48] sm:$0xff]
    %v87 = vld [vmem:[#allocation4 + $0x50] sm:$0xff]
    %v88 = vld [vmem:[#allocation4 + $0x58] sm:$0xff]
    %v89 = vld [vmem:[#allocation4 + $0x60] sm:$0xff]
    %v90 = vld [vmem:[#allocation4 + $0x68] sm:$0xff]
    %v91 = vld [vmem:[#allocation4 + $0x70] sm:$0xff]
    %v92 = vld [vmem:[#allocation4 + $0x78] sm:$0xff]
    %v93 = vld [vmem:[%s4] sm:$0x3]
    %v95 = vperm.slane %v93, 0
    %v96 = vperm.slane %v93, 1
    %vm99 = vcmask 523264
    %v101 = vsel %vm99, %v73, 0
    %v104 = vsel %vm99, %v74, 0
    %v107 = vsel %vm99, %v75, 0
    %v110 = vsel %vm99, %v76, 0
    %112 = vmatpush.msra.mxu0 0.0
    %113 = vmatpush.msra.mxu0 0.0
    %114 = vmatpush.msra.mxu0 0.0
    %115 = vmatpush.msra.mxu0 0.0
    %116 = vmatpush.msra.mxu0 0.0
    %117 = vmatpush.msra.mxu0 0.0
    %118 = vmatpush.msra.mxu0 0.0
    %119 = vmatpush.msra.mxu0 0.0
    %120 = vmatpush.msra.mxu0 %v91
    %121 = vmatpush.msra.mxu0 %v89
    %122 = vmatpush.msra.mxu0 %v87
    %123 = vmatpush.msra.mxu0 %v85
    %124 = vmatpush.msra.mxu0 %v83
    %125 = vmatpush.msra.mxu0 %v81
    %126 = vmatpush.msra.mxu0 %v79
    %127 = vmatpush.msra.mxu0 %v77
    %128 = vmatmul.f32.gmra.mxu0 %v101
    %v129 = vpop.f32.mrf.mxu0
    %v130 = vadd.f32 %v95, %v129
    %131 = vmatmul.f32.gmra.mxu0 %v104
    %v132 = vpop.f32.mrf.mxu0
    %v133 = vadd.f32 %v95, %v132
    %134 = vmatmul.f32.gmra.mxu0 %v107
    %v135 = vpop.f32.mrf.mxu0
    %v136 = vadd.f32 %v95, %v135
    %137 = vmatmul.f32.gmra.mxu0 %v110
    %v138 = vpop.f32.mrf.mxu0
    %v139 = vadd.f32 %v95, %v138
    %140 = vdwg.mxu0
    %141 = vmatpush.msra.mxu0 0.0
    %142 = vmatpush.msra.mxu0 0.0
    %143 = vmatpush.msra.mxu0 0.0
    %144 = vmatpush.msra.mxu0 0.0
    %145 = vmatpush.msra.mxu0 0.0
    %146 = vmatpush.msra.mxu0 0.0
    %147 = vmatpush.msra.mxu0 0.0
    %148 = vmatpush.msra.mxu0 0.0
    %149 = vmatpush.msra.mxu0 %v92
    %150 = vmatpush.msra.mxu0 %v90
    %151 = vmatpush.msra.mxu0 %v88
    %152 = vmatpush.msra.mxu0 %v86
    %153 = vmatpush.msra.mxu0 %v84
    %154 = vmatpush.msra.mxu0 %v82
    %155 = vmatpush.msra.mxu0 %v80
    %156 = vmatpush.msra.mxu0 %v78
    %157 = vmatmul.f32.gmra.mxu0 %v101
    %v158 = vpop.f32.mrf.mxu0
    %v159 = vadd.f32 %v96, %v158
    %160 = vmatmul.f32.gmra.mxu0 %v104
    %v161 = vpop.f32.mrf.mxu0
    %v162 = vadd.f32 %v96, %v161
    %163 = vmatmul.f32.gmra.mxu0 %v107
    %v164 = vpop.f32.mrf.mxu0
    %v165 = vadd.f32 %v96, %v164
    %166 = vmatmul.f32.gmra.mxu0 %v110
    %v167 = vpop.f32.mrf.mxu0
    %v168 = vadd.f32 %v96, %v167
    %169 = vdwg.mxu0
    %v170 = vmul.f32 %v130, 0.5
    %v171 = vmul.f32 %v159, 0.5
    %v172 = vmul.f32 %v133, 0.5
    %v173 = vmul.f32 %v162, 0.5
    %v174 = vmul.f32 %v136, 0.5
    %v175 = vmul.f32 %v165, 0.5
    %v176 = vmul.f32 %v139, 0.5
    %v177 = vmul.f32 %v168, 0.5
    %v178 = vmul.f32 %v130, 0.70710677
    %v179 = vmul.f32 %v159, 0.70710677
    %v180 = vmul.f32 %v133, 0.70710677
    %v181 = vmul.f32 %v162, 0.70710677
    %v182 = vmul.f32 %v136, 0.70710677
    %v183 = vmul.f32 %v165, 0.70710677
    %v184 = vmul.f32 %v139, 0.70710677
    %v185 = vmul.f32 %v168, 0.70710677
    %v186 = vand.u32 2147483647, %v178
    %v187 = vand.u32 2147483647, %v179
    %v188 = vand.u32 2147483647, %v180
    %v189 = vand.u32 2147483647, %v181
    %v190 = vand.u32 2147483647, %v182
    %v191 = vand.u32 2147483647, %v183
    %v192 = vand.u32 2147483647, %v184
    %v193 = vand.u32 2147483647, %v185
    %v194 = vmul.f32 %v186, 0.3275911
    %v195 = vmul.f32 %v187, 0.3275911
    %v196 = vmul.f32 %v188, 0.3275911
    %v197 = vmul.f32 %v189, 0.3275911
    %v198 = vmul.f32 %v190, 0.3275911
    %v199 = vmul.f32 %v191, 0.3275911
    %v200 = vmul.f32 %v192, 0.3275911
    %v201 = vmul.f32 %v193, 0.3275911
    %v202 = vadd.f32 %v194, 1.0
    %v203 = vadd.f32 %v195, 1.0
    %v204 = vadd.f32 %v196, 1.0
    %v205 = vadd.f32 %v197, 1.0
    %v206 = vadd.f32 %v198, 1.0
    %v207 = vadd.f32 %v199, 1.0
    %v208 = vadd.f32 %v200, 1.0
    %v209 = vadd.f32 %v201, 1.0
    %v210 = vrcp.pop %v202
    %v211 = vmul.f32 %v202, %v210
    %v212 = vsub.f32 1.0, %v211
    %v213 = vmul.f32 %v210, %v212
    %v214 = vadd.f32 %v210, %v213
    %vm215 = vweird.f32 %v202
    %vm216 = vweird.f32 %v210
    %vm217 = vmor %vm215, %vm216
    %v218 = vsel %vm217, %v210, %v214
    %v219 = vand.u32 2147483647, %v202
    %vm220 = vcmp.eq.f32.partialorder %v219, 8.507059e+37
    %v221 = vand.u32 %v202, 2147483648
    %v222 = vor.u32 1.1754944e-38, %v221
    %v223 = vsel %vm220, %v222, %v218
    %v224 = vmul.f32 1.0, %v223
    %v225 = vrcp.pop %v203
    %v226 = vmul.f32 %v203, %v225
    %v227 = vsub.f32 1.0, %v226
    %v228 = vmul.f32 %v225, %v227
    %v229 = vadd.f32 %v225, %v228
    %vm230 = vweird.f32 %v203
    %vm231 = vweird.f32 %v225
    %vm232 = vmor %vm230, %vm231
    %v233 = vsel %vm232, %v225, %v229
    %v234 = vand.u32 2147483647, %v203
    %vm235 = vcmp.eq.f32.partialorder %v234, 8.507059e+37
    %v236 = vand.u32 %v203, 2147483648
    %v237 = vor.u32 1.1754944e-38, %v236
    %v238 = vsel %vm235, %v237, %v233
    %v239 = vmul.f32 1.0, %v238
    %v240 = vrcp.pop %v204
    %v241 = vmul.f32 %v204, %v240
    %v242 = vsub.f32 1.0, %v241
    %v243 = vmul.f32 %v240, %v242
    %v244 = vadd.f32 %v240, %v243
    %vm245 = vweird.f32 %v204
    %vm246 = vweird.f32 %v240
    %vm247 = vmor %vm245, %vm246
    %v248 = vsel %vm247, %v240, %v244
    %v249 = vand.u32 2147483647, %v204
    %vm250 = vcmp.eq.f32.partialorder %v249, 8.507059e+37
    %v251 = vand.u32 %v204, 2147483648
    %v252 = vor.u32 1.1754944e-38, %v251
    %v253 = vsel %vm250, %v252, %v248
    %v254 = vmul.f32 1.0, %v253
    %v255 = vrcp.pop %v205
    %v256 = vmul.f32 %v205, %v255
    %v257 = vsub.f32 1.0, %v256
    %v258 = vmul.f32 %v255, %v257
    %v259 = vadd.f32 %v255, %v258
    %vm260 = vweird.f32 %v205
    %vm261 = vweird.f32 %v255
    %vm262 = vmor %vm260, %vm261
    %v263 = vsel %vm262, %v255, %v259
    %v264 = vand.u32 2147483647, %v205
    %vm265 = vcmp.eq.f32.partialorder %v264, 8.507059e+37
    %v266 = vand.u32 %v205, 2147483648
    %v267 = vor.u32 1.1754944e-38, %v266
    %v268 = vsel %vm265, %v267, %v263
    %v269 = vmul.f32 1.0, %v268
    %v270 = vrcp.pop %v206
    %v271 = vmul.f32 %v206, %v270
    %v272 = vsub.f32 1.0, %v271
    %v273 = vmul.f32 %v270, %v272
    %v274 = vadd.f32 %v270, %v273
    %vm275 = vweird.f32 %v206
    %vm276 = vweird.f32 %v270
    %vm277 = vmor %vm275, %vm276
    %v278 = vsel %vm277, %v270, %v274
    %v279 = vand.u32 2147483647, %v206
    %vm280 = vcmp.eq.f32.partialorder %v279, 8.507059e+37
    %v281 = vand.u32 %v206, 2147483648
    %v282 = vor.u32 1.1754944e-38, %v281
    %v283 = vsel %vm280, %v282, %v278
    %v284 = vmul.f32 1.0, %v283
    %v285 = vrcp.pop %v207
    %v286 = vmul.f32 %v207, %v285
    %v287 = vsub.f32 1.0, %v286
    %v288 = vmul.f32 %v285, %v287
    %v289 = vadd.f32 %v285, %v288
    %vm290 = vweird.f32 %v207
    %vm291 = vweird.f32 %v285
    %vm292 = vmor %vm290, %vm291
    %v293 = vsel %vm292, %v285, %v289
    %v294 = vand.u32 2147483647, %v207
    %vm295 = vcmp.eq.f32.partialorder %v294, 8.507059e+37
    %v296 = vand.u32 %v207, 2147483648
    %v297 = vor.u32 1.1754944e-38, %v296
    %v298 = vsel %vm295, %v297, %v293
    %v299 = vmul.f32 1.0, %v298
    %v300 = vrcp.pop %v208
    %v301 = vmul.f32 %v208, %v300
    %v302 = vsub.f32 1.0, %v301
    %v303 = vmul.f32 %v300, %v302
    %v304 = vadd.f32 %v300, %v303
    %vm305 = vweird.f32 %v208
    %vm306 = vweird.f32 %v300
    %vm307 = vmor %vm305, %vm306
    %v308 = vsel %vm307, %v300, %v304
    %v309 = vand.u32 2147483647, %v208
    %vm310 = vcmp.eq.f32.partialorder %v309, 8.507059e+37
    %v311 = vand.u32 %v208, 2147483648
    %v312 = vor.u32 1.1754944e-38, %v311
    %v313 = vsel %vm310, %v312, %v308
    %v314 = vmul.f32 1.0, %v313
    %v315 = vrcp.pop %v209
    %v316 = vmul.f32 %v209, %v315
    %v317 = vsub.f32 1.0, %v316
    %v318 = vmul.f32 %v315, %v317
    %v319 = vadd.f32 %v315, %v318
    %vm320 = vweird.f32 %v209
    %vm321 = vweird.f32 %v315
    %vm322 = vmor %vm320, %vm321
    %v323 = vsel %vm322, %v315, %v319
    %v324 = vand.u32 2147483647, %v209
    %vm325 = vcmp.eq.f32.partialorder %v324, 8.507059e+37
    %v326 = vand.u32 %v209, 2147483648
    %v327 = vor.u32 1.1754944e-38, %v326
    %v328 = vsel %vm325, %v327, %v323
    %v329 = vmul.f32 1.0, %v328
    %v330 = vmul.f32 %v224, 1.0614054
    %v331 = vmul.f32 %v239, 1.0614054
    %v332 = vmul.f32 %v254, 1.0614054
    %v333 = vmul.f32 %v269, 1.0614054
    %v334 = vmul.f32 %v284, 1.0614054
    %v335 = vmul.f32 %v299, 1.0614054
    %v336 = vmul.f32 %v314, 1.0614054
    %v337 = vmul.f32 %v329, 1.0614054
    %v338 = vadd.f32 %v330, -1.4531521
    %v339 = vadd.f32 %v331, -1.4531521
    %v340 = vadd.f32 %v332, -1.4531521
    %v341 = vadd.f32 %v333, -1.4531521
    %v342 = vadd.f32 %v334, -1.4531521
    %v343 = vadd.f32 %v335, -1.4531521
    %v344 = vadd.f32 %v336, -1.4531521
    %v345 = vadd.f32 %v337, -1.4531521
    %v346 = vmul.f32 %v338, %v224
    %v347 = vmul.f32 %v339, %v239
    %v348 = vmul.f32 %v340, %v254
    %v349 = vmul.f32 %v341, %v269
    %v350 = vmul.f32 %v342, %v284
    %v351 = vmul.f32 %v343, %v299
    %v352 = vmul.f32 %v344, %v314
    %v353 = vmul.f32 %v345, %v329
    %v354 = vadd.f32 %v346, 1.4214138
    %v355 = vadd.f32 %v347, 1.4214138
    %v356 = vadd.f32 %v348, 1.4214138
    %v357 = vadd.f32 %v349, 1.4214138
    %v358 = vadd.f32 %v350, 1.4214138
    %v359 = vadd.f32 %v351, 1.4214138
    %v360 = vadd.f32 %v352, 1.4214138
    %v361 = vadd.f32 %v353, 1.4214138
    %v362 = vmul.f32 %v354, %v224
    %v363 = vmul.f32 %v355, %v239
    %v364 = vmul.f32 %v356, %v254
    %v365 = vmul.f32 %v357, %v269
    %v366 = vmul.f32 %v358, %v284
    %v367 = vmul.f32 %v359, %v299
    %v368 = vmul.f32 %v360, %v314
    %v369 = vmul.f32 %v361, %v329
    %v370 = vadd.f32 %v362, -0.28449672
    %v371 = vadd.f32 %v363, -0.28449672
    %v372 = vadd.f32 %v364, -0.28449672
    %v373 = vadd.f32 %v365, -0.28449672
    %v374 = vadd.f32 %v366, -0.28449672
    %v375 = vadd.f32 %v367, -0.28449672
    %v376 = vadd.f32 %v368, -0.28449672
    %v377 = vadd.f32 %v369, -0.28449672
    %v378 = vmul.f32 %v370, %v224
    %v379 = vmul.f32 %v371, %v239
    %v380 = vmul.f32 %v372, %v254
    %v381 = vmul.f32 %v373, %v269
    %v382 = vmul.f32 %v374, %v284
    %v383 = vmul.f32 %v375, %v299
    %v384 = vmul.f32 %v376, %v314
    %v385 = vmul.f32 %v377, %v329
    %v386 = vadd.f32 %v378, 0.2548296
    %v387 = vadd.f32 %v379, 0.2548296
    %v388 = vadd.f32 %v380, 0.2548296
    %v389 = vadd.f32 %v381, 0.2548296
    %v390 = vadd.f32 %v382, 0.2548296
    %v391 = vadd.f32 %v383, 0.2548296
    %v392 = vadd.f32 %v384, 0.2548296
    %v393 = vadd.f32 %v385, 0.2548296
    %v394 = vmul.f32 %v386, %v224
    %v395 = vmul.f32 %v387, %v239
    %v396 = vmul.f32 %v388, %v254
    %v397 = vmul.f32 %v389, %v269
    %v398 = vmul.f32 %v390, %v284
    %v399 = vmul.f32 %v391, %v299
    %v400 = vmul.f32 %v392, %v314
    %v401 = vmul.f32 %v393, %v329
    %v402 = vsub.f32 0.0, %v186
    %v403 = vsub.f32 0.0, %v187
    %v404 = vsub.f32 0.0, %v188
    %v405 = vsub.f32 0.0, %v189
    %v406 = vsub.f32 0.0, %v190
    %v407 = vsub.f32 0.0, %v191
    %v408 = vsub.f32 0.0, %v192
    %v409 = vsub.f32 0.0, %v193
    %v410 = vmul.f32 %v402, %v186
    %v411 = vmul.f32 %v403, %v187
    %v412 = vmul.f32 %v404, %v188
    %v413 = vmul.f32 %v405, %v189
    %v414 = vmul.f32 %v406, %v190
    %v415 = vmul.f32 %v407, %v191
    %v416 = vmul.f32 %v408, %v192
    %v417 = vmul.f32 %v409, %v193
    %v418 = vmul.f32 %v410, 1.442695
    %v419 = vpow.pop %v418
    %v420 = vmul.f32 %v411, 1.442695
    %v421 = vpow.pop %v420
    %v422 = vmul.f32 %v412, 1.442695
    %v423 = vpow.pop %v422
    %v424 = vmul.f32 %v413, 1.442695
    %v425 = vpow.pop %v424
    %v426 = vmul.f32 %v414, 1.442695
    %v427 = vpow.pop %v426
    %v428 = vmul.f32 %v415, 1.442695
    %v429 = vpow.pop %v428
    %v430 = vmul.f32 %v416, 1.442695
    %v431 = vpow.pop %v430
    %v432 = vmul.f32 %v417, 1.442695
    %v433 = vpow.pop %v432
    %v434 = vmul.f32 %v394, %v419
    %v435 = vmul.f32 %v395, %v421
    %v436 = vmul.f32 %v396, %v423
    %v437 = vmul.f32 %v397, %v425
    %v438 = vmul.f32 %v398, %v427
    %v439 = vmul.f32 %v399, %v429
    %v440 = vmul.f32 %v400, %v431
    %v441 = vmul.f32 %v401, %v433
    %v442 = vsub.f32 1.0, %v434
    %v443 = vsub.f32 1.0, %v435
    %v444 = vsub.f32 1.0, %v436
    %v445 = vsub.f32 1.0, %v437
    %v446 = vsub.f32 1.0, %v438
    %v447 = vsub.f32 1.0, %v439
    %v448 = vsub.f32 1.0, %v440
    %v449 = vsub.f32 1.0, %v441
    %vm450 = vcmp.lt.f32.partialorder %v178, 0.0
    %vm451 = vcmp.lt.f32.partialorder %v179, 0.0
    %vm452 = vcmp.lt.f32.partialorder %v180, 0.0
    %vm453 = vcmp.lt.f32.partialorder %v181, 0.0
    %vm454 = vcmp.lt.f32.partialorder %v182, 0.0
    %vm455 = vcmp.lt.f32.partialorder %v183, 0.0
    %vm456 = vcmp.lt.f32.partialorder %v184, 0.0
    %vm457 = vcmp.lt.f32.partialorder %v185, 0.0
    %v458 = vsub.f32 0.0, %v442
    %v459 = vsub.f32 0.0, %v443
    %v460 = vsub.f32 0.0, %v444
    %v461 = vsub.f32 0.0, %v445
    %v462 = vsub.f32 0.0, %v446
    %v463 = vsub.f32 0.0, %v447
    %v464 = vsub.f32 0.0, %v448
    %v465 = vsub.f32 0.0, %v449
    %v466 = vsel %vm450, %v458, %v442
    %v467 = vsel %vm451, %v459, %v443
    %v468 = vsel %vm452, %v460, %v444
    %v469 = vsel %vm453, %v461, %v445
    %v470 = vsel %vm454, %v462, %v446
    %v471 = vsel %vm455, %v463, %v447
    %v472 = vsel %vm456, %v464, %v448
    %v473 = vsel %vm457, %v465, %v449
    %v474 = vadd.f32 %v466, 1.0
    %v475 = vadd.f32 %v467, 1.0
    %v476 = vadd.f32 %v468, 1.0
    %v477 = vadd.f32 %v469, 1.0
    %v478 = vadd.f32 %v470, 1.0
    %v479 = vadd.f32 %v471, 1.0
    %v480 = vadd.f32 %v472, 1.0
    %v481 = vadd.f32 %v473, 1.0
    %v482 = vmul.f32 %v170, %v474
    %v483 = vmul.f32 %v171, %v475
    %v484 = vmul.f32 %v172, %v476
    %v485 = vmul.f32 %v173, %v477
    %v486 = vmul.f32 %v174, %v478
    %v487 = vmul.f32 %v175, %v479
    %v488 = vmul.f32 %v176, %v480
    %v489 = vmul.f32 %v177, %v481
    %v490 = vld [vmem:[#allocation2] sm:$0xff]
    %v491 = vld [vmem:[#allocation2 + $0x8] sm:$0xff]
    %v492 = vld [vmem:[#allocation2 + $0x10] sm:$0xff]
    %v493 = vld [vmem:[#allocation2 + $0x18] sm:$0xff]
    %v494 = vld [vmem:[#allocation2 + $0x20] sm:$0xff]
    %v495 = vld [vmem:[#allocation2 + $0x28] sm:$0xff]
    %v496 = vld [vmem:[#allocation2 + $0x30] sm:$0xff]
    %v497 = vld [vmem:[#allocation2 + $0x38] sm:$0xff]
    %v498 = vld [vmem:[#allocation2 + $0x40] sm:$0xff]
    %v499 = vld [vmem:[#allocation2 + $0x48] sm:$0xff]
    %v500 = vld [vmem:[#allocation2 + $0x50] sm:$0xff]
    %v501 = vld [vmem:[#allocation2 + $0x58] sm:$0xff]
    %v502 = vld [vmem:[#allocation2 + $0x60] sm:$0xff]
    %v503 = vld [vmem:[#allocation2 + $0x68] sm:$0xff]
    %v504 = vld [vmem:[#allocation2 + $0x70] sm:$0xff]
    %v505 = vld [vmem:[#allocation2 + $0x78] sm:$0xff]
    %v506 = vld [vmem:[%s2] sm:$0x3]
    %v508 = vperm.slane %v506, 0
    %v509 = vperm.slane %v506, 1
    %512 = vmatpush.msra.mxu0 0.0
    %513 = vmatpush.msra.mxu0 0.0
    %514 = vmatpush.msra.mxu0 0.0
    %515 = vmatpush.msra.mxu0 0.0
    %516 = vmatpush.msra.mxu0 0.0
    %517 = vmatpush.msra.mxu0 0.0
    %518 = vmatpush.msra.mxu0 0.0
    %519 = vmatpush.msra.mxu0 0.0
    %520 = vmatpush.msra.mxu0 %v504
    %521 = vmatpush.msra.mxu0 %v502
    %522 = vmatpush.msra.mxu0 %v500
    %523 = vmatpush.msra.mxu0 %v498
    %524 = vmatpush.msra.mxu0 %v496
    %525 = vmatpush.msra.mxu0 %v494
    %526 = vmatpush.msra.mxu0 %v492
    %527 = vmatpush.msra.mxu0 %v490
    %528 = vmatmul.f32.gmra.mxu0 %v101
    %v529 = vpop.f32.mrf.mxu0
    %v530 = vadd.f32 %v508, %v529
    %531 = vmatmul.f32.gmra.mxu0 %v104
    %v532 = vpop.f32.mrf.mxu0
    %v533 = vadd.f32 %v508, %v532
    %534 = vmatmul.f32.gmra.mxu0 %v107
    %v535 = vpop.f32.mrf.mxu0
    %v536 = vadd.f32 %v508, %v535
    %537 = vmatmul.f32.gmra.mxu0 %v110
    %v538 = vpop.f32.mrf.mxu0
    %v539 = vadd.f32 %v508, %v538
    %540 = vdwg.mxu0
    %541 = vmatpush.msra.mxu0 0.0
    %542 = vmatpush.msra.mxu0 0.0
    %543 = vmatpush.msra.mxu0 0.0
    %544 = vmatpush.msra.mxu0 0.0
    %545 = vmatpush.msra.mxu0 0.0
    %546 = vmatpush.msra.mxu0 0.0
    %547 = vmatpush.msra.mxu0 0.0
    %548 = vmatpush.msra.mxu0 0.0
    %549 = vmatpush.msra.mxu0 %v505
    %550 = vmatpush.msra.mxu0 %v503
    %551 = vmatpush.msra.mxu0 %v501
    %552 = vmatpush.msra.mxu0 %v499
    %553 = vmatpush.msra.mxu0 %v497
    %554 = vmatpush.msra.mxu0 %v495
    %555 = vmatpush.msra.mxu0 %v493
    %556 = vmatpush.msra.mxu0 %v491
    %557 = vmatmul.f32.gmra.mxu0 %v101
    %v558 = vpop.f32.mrf.mxu0
    %v559 = vadd.f32 %v509, %v558
    %560 = vmatmul.f32.gmra.mxu0 %v104
    %v561 = vpop.f32.mrf.mxu0
    %v562 = vadd.f32 %v509, %v561
    %563 = vmatmul.f32.gmra.mxu0 %v107
    %v564 = vpop.f32.mrf.mxu0
    %v565 = vadd.f32 %v509, %v564
    %566 = vmatmul.f32.gmra.mxu0 %v110
    %v567 = vpop.f32.mrf.mxu0
    %v568 = vadd.f32 %v509, %v567
    %569 = vdwg.mxu0
    %v570 = vmul.f32 %v530, %v482
    %v571 = vmul.f32 %v559, %v483
    %v572 = vmul.f32 %v533, %v484
    %v573 = vmul.f32 %v562, %v485
    %v574 = vmul.f32 %v536, %v486
    %v575 = vmul.f32 %v565, %v487
    %v576 = vmul.f32 %v539, %v488
    %v577 = vmul.f32 %v568, %v489
    %v578 = vld [vmem:[#allocation6] sm:$0xff]
    %v579 = vld [vmem:[#allocation6 + $0x8] sm:$0xff]
    %v580 = vld [vmem:[#allocation6 + $0x10] sm:$0xff]
    %v581 = vld [vmem:[#allocation6 + $0x18] sm:$0xff]
    %v582 = vld [vmem:[#allocation6 + $0x20] sm:$0xff]
    %v583 = vld [vmem:[#allocation6 + $0x28] sm:$0xff]
    %v584 = vld [vmem:[#allocation6 + $0x30] sm:$0xff]
    %v585 = vld [vmem:[#allocation6 + $0x38] sm:$0xff]
    %v586 = vld [vmem:[#allocation6 + $0x40] sm:$0xff]
    %v587 = vld [vmem:[#allocation6 + $0x48] sm:$0xff]
    %v588 = vld [vmem:[#allocation6 + $0x50] sm:$0xff]
    %v589 = vld [vmem:[#allocation6 + $0x58] sm:$0xff]
    %v590 = vld [vmem:[#allocation6 + $0x60] sm:$0xff]
    %v591 = vld [vmem:[#allocation6 + $0x68] sm:$0xff]
    %v592 = vld [vmem:[#allocation6 + $0x70] sm:$0xff]
    %v593 = vld [vmem:[#allocation6 + $0x78] sm:$0xff]
    %v594 = vld [vmem:[#allocation6 + $0x80] sm:$0xff]
    %v595 = vld [vmem:[#allocation6 + $0x88] sm:$0xff]
    %v596 = vld [vmem:[#allocation6 + $0x90] sm:$0xff]
    %v597 = vld [vmem:[#allocation6 + $0x98] sm:$0xff]
    %v598 = vld [vmem:[#allocation6 + $0xa0] sm:$0xff]
    %v599 = vld [vmem:[#allocation6 + $0xa8] sm:$0xff]
    %v600 = vld [vmem:[#allocation6 + $0xb0] sm:$0xff]
    %v601 = vld [vmem:[#allocation6 + $0xb8] sm:$0xff]
    %v602 = vld [vmem:[#allocation6 + $0xc0] sm:$0xff]
    %v603 = vld [vmem:[#allocation6 + $0xc8] sm:$0xff]
    %v604 = vld [vmem:[#allocation6 + $0xd0] sm:$0xff]
    %v605 = vld [vmem:[#allocation6 + $0xd8] sm:$0xff]
    %v606 = vld [vmem:[#allocation6 + $0xe0] sm:$0xff]
    %v607 = vld [vmem:[#allocation6 + $0xe8] sm:$0xff]
    %v608 = vld [vmem:[#allocation6 + $0xf0] sm:$0xff]
    %v609 = vld [vmem:[#allocation6 + $0xf8] sm:$0xff]
    %v610 = vld [vmem:[%s6] sm:$0x1]
    %v612 = vperm.slane %v610, 0
    %614 = vmatpush.msra.mxu0 %v593
    %615 = vmatpush.msra.mxu0 %v592
    %616 = vmatpush.msra.mxu0 %v591
    %617 = vmatpush.msra.mxu0 %v590
    %618 = vmatpush.msra.mxu0 %v589
    %619 = vmatpush.msra.mxu0 %v588
    %620 = vmatpush.msra.mxu0 %v587
    %621 = vmatpush.msra.mxu0 %v586
    %622 = vmatpush.msra.mxu0 %v585
    %623 = vmatpush.msra.mxu0 %v584
    %624 = vmatpush.msra.mxu0 %v583
    %625 = vmatpush.msra.mxu0 %v582
    %626 = vmatpush.msra.mxu0 %v581
    %627 = vmatpush.msra.mxu0 %v580
    %628 = vmatpush.msra.mxu0 %v579
    %629 = vmatpush.msra.mxu0 %v578
    %630 = vmatmul.f32.gmra.mxu0 %v570
    %v631 = vpop.f32.mrf.mxu0
    %v632 = vadd.f32 %v612, %v631
    %633 = vmatmul.f32.gmra.mxu0 %v572
    %v634 = vpop.f32.mrf.mxu0
    %v635 = vadd.f32 %v612, %v634
    %636 = vmatmul.f32.gmra.mxu0 %v574
    %v637 = vpop.f32.mrf.mxu0
    %v638 = vadd.f32 %v612, %v637
    %639 = vmatmul.f32.gmra.mxu0 %v576
    %v640 = vpop.f32.mrf.mxu0
    %v641 = vadd.f32 %v612, %v640
    %642 = vdwg.mxu0
    %643 = vmatpush.msra.mxu0 %v609
    %644 = vmatpush.msra.mxu0 %v608
    %645 = vmatpush.msra.mxu0 %v607
    %646 = vmatpush.msra.mxu0 %v606
    %647 = vmatpush.msra.mxu0 %v605
    %648 = vmatpush.msra.mxu0 %v604
    %649 = vmatpush.msra.mxu0 %v603
    %650 = vmatpush.msra.mxu0 %v602
    %651 = vmatpush.msra.mxu0 %v601
    %652 = vmatpush.msra.mxu0 %v600
    %653 = vmatpush.msra.mxu0 %v599
    %654 = vmatpush.msra.mxu0 %v598
    %655 = vmatpush.msra.mxu0 %v597
    %656 = vmatpush.msra.mxu0 %v596
    %657 = vmatpush.msra.mxu0 %v595
    %658 = vmatpush.msra.mxu0 %v594
    %659 = vmatmul.f32.gmra.mxu0 %v571
    %v660 = vpop.f32.mrf.mxu0
    %v661 = vadd.f32 %v632, %v660
    %662 = vmatmul.f32.gmra.mxu0 %v573
    %v663 = vpop.f32.mrf.mxu0
    %v664 = vadd.f32 %v635, %v663
    %665 = vmatmul.f32.gmra.mxu0 %v575
    %v666 = vpop.f32.mrf.mxu0
    %v667 = vadd.f32 %v638, %v666
    %668 = vmatmul.f32.gmra.mxu0 %v577
    %v669 = vpop.f32.mrf.mxu0
    %v670 = vadd.f32 %v641, %v669
    %671 = vdwg.mxu0
    %672 = vst [vmem:[%s7] sm:$0xff] %v661
    %673 = vst [vmem:[%s7 + $0x8] sm:$0xff] %v664
    %674 = vst [vmem:[%s7 + $0x10] sm:$0xff] %v667
    %675 = vst [vmem:[%s7 + $0x18] sm:$0xff] %v670
    // Predicated region
    $region42: #{additive_condition_block.4} parent=1 // pred_check
      _
    $region43: #{additive_condition_block.4} parent=1 // pred_check_branch
      %677 = sbr.rel (0) target = $region45
    $region44: #{additive_condition_block.4} parent=1 // pred_region
      _
    $region45: #{additive_condition_block.4} parent=1 // pred_fallthru
      _
    // Predicated region
    $region46: #{additive_condition_block.4} parent=1 // pred_check
      _
    $region47: #{additive_condition_block.4} parent=1 // pred_check_branch
      %679 = sbr.rel (0) target = $region49
    $region48: #{additive_condition_block.4} parent=1 // pred_region
      _
    $region49: #{additive_condition_block.4} parent=1 // pred_fallthru
      _
    %680 = vsyncpa [#allocation3], 1
    %681 = vsyncpa [#allocation5], 1

// kernel: additive_condition_block.5
$region0: #{additive_condition_block.5}
  #allocation0 [shape = 'u32[]', space=smem, size = 0x4, offset = 0x4, fixed_abs, tag = 'smem constant byte address 0x4 - core index']
  #allocation1 [shape = 'u32[72,128]{1,0:T(1,128)}', space=vmem, size = 0x9000, scoped, tag = 'internal scratch']
  %s0 = inlined_call_operand.vmem [shape: f32[128,128], index: 0, kind: input, shape index: {}]
  %s1 = inlined_call_operand.vmem [shape: f32[16,128], index: 1, kind: input, shape index: {}]
  %s2 = inlined_call_operand.vmem [shape: f32[1,128], index: 2, kind: input, shape index: {}]
  %s3 = inlined_call_operand.vmem [shape: f32[1,128], index: 3, kind: input, shape index: {}]
  %s4 = inlined_call_operand.vmem [shape: bf16[128,768], index: 4, kind: input, shape index: {}]
  %s5 = inlined_call_operand.vmem [shape: bf16[256,128], index: 5, kind: input, shape index: {}]
  %s6 = inlined_call_operand.vmem [shape: f32[1,128], index: 6, kind: input, shape index: {}]
  %s7 = inlined_call_operand.vmem [shape: f32[128,128], index: 7, kind: output, shape index: {}]
  %s8 = sld [smem:[#allocation0]]
  $region61: #{additive_condition_block.5} parent=0
    _
  %s10 = ssub.s32 1, %s8
  %s11 = scalar_select 0, %s10, %s8
  loop: start=0, step=1, limit=4
  $region2: #{additive_condition_block.5} parent=0 // loop_pre_header
    _
  $region3: #{additive_condition_block.5} parent=0 // loop_header
    %s13 = sphi 0, %s17
    %p14 = scmp.ge.s32.totalorder %s13, 4
    %s23 = sphi 0, %s25
    %s26 = sphi 0, %s23
    %s27 = sphi 0, %s26
    %s43 = sphi 0, %s27
    %s49 = sphi 0, %s51
    %s52 = sphi 0, %s49
    %s53 = sphi 0, %s52
    %s69 = sphi 0, %s53
    %s73 = sphi 0, %s73
    %s75 = sphi 0, %s73
    %s76 = sphi 0, %s75
    %s90 = sphi 0, %s76
    %s94 = sphi 0, %s94
    %s96 = sphi 0, %s94
    %s97 = sphi 0, %s96
    %s111 = sphi 0, %s97
    %s115 = sphi 0, %s115
    %s117 = sphi 0, %s115
    %s118 = sphi 0, %s117
    %s132 = sphi 0, %s118
    %s136 = sphi 0, %s136
    %s138 = sphi 0, %s136
    %s139 = sphi 0, %s138
    %s153 = sphi 0, %s139
    %s157 = sphi 0, %s157
    %s159 = sphi 0, %s157
    %s160 = sphi 0, %s159
    %s174 = sphi 0, %s160
    %s180 = sphi 0, %s182
    %s183 = sphi 0, %s180
    %s184 = sphi 0, %s183
    %s200 = sphi 0, %s184
  $region4: #{additive_condition_block.5} parent=0 // loop_header_branch
    %16 = sbr.rel (%p14) target = $region8
  $region5: #{additive_condition_block.5} parent=0 // loop_body
    %s18 = ssub.s32 %s13, 1
    %s19 = ssub.s32 %s13, 2
    %s20 = sadd.s32 %s13, 1
    %s21 = ssub.s32 %s13, %s20
    %p22 = scmp.eq.s32.totalorder %s21, 0
    %s24 = sadd.s32 %s23, 1
    %s25 = scalar_select %p22, %s23, %s24
    %p28 = pneg %p22
    %p29 = scmp.eq.s32.totalorder %s13, 1
    %p30 = por %p28, %p29
    %p31 = scmp.ne.s32.totalorder %s23, %s26
    %p32 = scmp.eq.s32.totalorder %s13, 0
    %p33 = por %p31, %p32
    %p34 = scmp.ne.s32.totalorder %s23, %s26
    %p35 = scmp.eq.s32.totalorder %s18, 1
    %p36 = por %p34, %p35
    %p37 = scmp.ne.s32.totalorder %s26, %s27
    %p38 = scmp.eq.s32.totalorder %s18, 0
    %p39 = por %p37, %p38
    %p40 = scmp.ne.s32.totalorder %s26, %s27
    %p41 = scmp.eq.s32.totalorder %s19, 1
    %p42 = por %p40, %p41
    %p44 = scmp.ne.s32.totalorder %s27, %s43
    %p45 = scmp.eq.s32.totalorder %s19, 0
    %p46 = por %p44, %p45
    %s47 = ssub.s32 %s13, %s20
    %p48 = scmp.eq.s32.totalorder %s47, 0
    %s50 = sadd.s32 %s49, 1
    %s51 = scalar_select %p48, %s49, %s50
    %p54 = pneg %p48
    %p55 = scmp.eq.s32.totalorder %s13, 1
    %p56 = por %p54, %p55
    %p57 = scmp.ne.s32.totalorder %s49, %s52
    %p58 = scmp.eq.s32.totalorder %s13, 0
    %p59 = por %p57, %p58
    %p60 = scmp.ne.s32.totalorder %s49, %s52
    %p61 = scmp.eq.s32.totalorder %s18, 1
    %p62 = por %p60, %p61
    %p63 = scmp.ne.s32.totalorder %s52, %s53
    %p64 = scmp.eq.s32.totalorder %s18, 0
    %p65 = por %p63, %p64
    %p66 = scmp.ne.s32.totalorder %s52, %s53
    %p67 = scmp.eq.s32.totalorder %s19, 1
    %p68 = por %p66, %p67
    %p70 = scmp.ne.s32.totalorder %s53, %s69
    %p71 = scmp.eq.s32.totalorder %s19, 0
    %p72 = por %p70, %p71
    %s74 = sadd.s32 %s73, 1
    %p77 = scmp.eq.s32.totalorder %s13, 1
    %p78 = scmp.ne.s32.totalorder %s73, %s75
    %p79 = scmp.eq.s32.totalorder %s13, 0
    %p80 = por %p78, %p79
    %p81 = scmp.ne.s32.totalorder %s73, %s75
    %p82 = scmp.eq.s32.totalorder %s18, 1
    %p83 = por %p81, %p82
    %p84 = scmp.ne.s32.totalorder %s75, %s76
    %p85 = scmp.eq.s32.totalorder %s18, 0
    %p86 = por %p84, %p85
    %p87 = scmp.ne.s32.totalorder %s75, %s76
    %p88 = scmp.eq.s32.totalorder %s19, 1
    %p89 = por %p87, %p88
    %p91 = scmp.ne.s32.totalorder %s76, %s90
    %p92 = scmp.eq.s32.totalorder %s19, 0
    %p93 = por %p91, %p92
    %s95 = sadd.s32 %s94, 1
    %p98 = scmp.eq.s32.totalorder %s13, 1
    %p99 = scmp.ne.s32.totalorder %s94, %s96
    %p100 = scmp.eq.s32.totalorder %s13, 0
    %p101 = por %p99, %p100
    %p102 = scmp.ne.s32.totalorder %s94, %s96
    %p103 = scmp.eq.s32.totalorder %s18, 1
    %p104 = por %p102, %p103
    %p105 = scmp.ne.s32.totalorder %s96, %s97
    %p106 = scmp.eq.s32.totalorder %s18, 0
    %p107 = por %p105, %p106
    %p108 = scmp.ne.s32.totalorder %s96, %s97
    %p109 = scmp.eq.s32.totalorder %s19, 1
    %p110 = por %p108, %p109
    %p112 = scmp.ne.s32.totalorder %s97, %s111
    %p113 = scmp.eq.s32.totalorder %s19, 0
    %p114 = por %p112, %p113
    %s116 = sadd.s32 %s115, 1
    %p119 = scmp.eq.s32.totalorder %s13, 1
    %p120 = scmp.ne.s32.totalorder %s115, %s117
    %p121 = scmp.eq.s32.totalorder %s13, 0
    %p122 = por %p120, %p121
    %p123 = scmp.ne.s32.totalorder %s115, %s117
    %p124 = scmp.eq.s32.totalorder %s18, 1
    %p125 = por %p123, %p124
    %p126 = scmp.ne.s32.totalorder %s117, %s118
    %p127 = scmp.eq.s32.totalorder %s18, 0
    %p128 = por %p126, %p127
    %p129 = scmp.ne.s32.totalorder %s117, %s118
    %p130 = scmp.eq.s32.totalorder %s19, 1
    %p131 = por %p129, %p130
    %p133 = scmp.ne.s32.totalorder %s118, %s132
    %p134 = scmp.eq.s32.totalorder %s19, 0
    %p135 = por %p133, %p134
    %s137 = sadd.s32 %s136, 1
    %p140 = scmp.eq.s32.totalorder %s13, 1
    %p141 = scmp.ne.s32.totalorder %s136, %s138
    %p142 = scmp.eq.s32.totalorder %s13, 0
    %p143 = por %p141, %p142
    %p144 = scmp.ne.s32.totalorder %s136, %s138
    %p145 = scmp.eq.s32.totalorder %s18, 1
    %p146 = por %p144, %p145
    %p147 = scmp.ne.s32.totalorder %s138, %s139
    %p148 = scmp.eq.s32.totalorder %s18, 0
    %p149 = por %p147, %p148
    %p150 = scmp.ne.s32.totalorder %s138, %s139
    %p151 = scmp.eq.s32.totalorder %s19, 1
    %p152 = por %p150, %p151
    %p154 = scmp.ne.s32.totalorder %s139, %s153
    %p155 = scmp.eq.s32.totalorder %s19, 0
    %p156 = por %p154, %p155
    %s158 = sadd.s32 %s157, 1
    %p161 = scmp.eq.s32.totalorder %s13, 1
    %p162 = scmp.ne.s32.totalorder %s157, %s159
    %p163 = scmp.eq.s32.totalorder %s13, 0
    %p164 = por %p162, %p163
    %p165 = scmp.ne.s32.totalorder %s157, %s159
    %p166 = scmp.eq.s32.totalorder %s18, 1
    %p167 = por %p165, %p166
    %p168 = scmp.ne.s32.totalorder %s159, %s160
    %p169 = scmp.eq.s32.totalorder %s18, 0
    %p170 = por %p168, %p169
    %p171 = scmp.ne.s32.totalorder %s159, %s160
    %p172 = scmp.eq.s32.totalorder %s19, 1
    %p173 = por %p171, %p172
    %p175 = scmp.ne.s32.totalorder %s160, %s174
    %p176 = scmp.eq.s32.totalorder %s19, 0
    %p177 = por %p175, %p176
    %s178 = ssub.s32 %s13, %s20
    %p179 = scmp.eq.s32.totalorder %s178, 0
    %s181 = sadd.s32 %s180, 1
    %s182 = scalar_select %p179, %s180, %s181
    %p185 = pneg %p179
    %p186 = scmp.eq.s32.totalorder %s13, 1
    %p187 = por %p185, %p186
    %p188 = scmp.ne.s32.totalorder %s180, %s183
    %p189 = scmp.eq.s32.totalorder %s13, 0
    %p190 = por %p188, %p189
    %p191 = scmp.ne.s32.totalorder %s180, %s183
    %p192 = scmp.eq.s32.totalorder %s18, 1
    %p193 = por %p191, %p192
    %p194 = scmp.ne.s32.totalorder %s183, %s184
    %p195 = scmp.eq.s32.totalorder %s18, 0
    %p196 = por %p194, %p195
    %p197 = scmp.ne.s32.totalorder %s183, %s184
    %p198 = scmp.eq.s32.totalorder %s19, 1
    %p199 = por %p197, %p198
    %p201 = scmp.ne.s32.totalorder %s184, %s200
    %p202 = scmp.eq.s32.totalorder %s19, 0
    %p203 = por %p201, %p202
    %p204 = scmp.le.s32.totalorder 1, %s13
    %p205 = scmp.lt.s32.totalorder %s13, 3
    %p206 = pnand %p204, %p205
    %p207 = pneg %p206
    // Predicated region
    $region9: #{additive_condition_block.5} parent=5 // pred_check
      _
    $region10: #{additive_condition_block.5} parent=5 // pred_check_branch
      %209 = sbr.rel (%p206) target = $region12
    $region11: #{additive_condition_block.5} parent=5 // pred_region
      %s210 = ssub.s32 %s13, 1
      // Predicated region
      $region13: #{additive_condition_block.5} parent=11 // pred_check
        %p211 = pneg %p86
      $region14: #{additive_condition_block.5} parent=11 // pred_check_branch
        %213 = sbr.rel (%p211) target = $region16
      $region15: #{additive_condition_block.5} parent=11 // pred_region
        _
      $region16: #{additive_condition_block.5} parent=11 // pred_fallthru
        _
      // Predicated region
      $region17: #{additive_condition_block.5} parent=11 // pred_check
        %p214 = pneg %p107
      $region18: #{additive_condition_block.5} parent=11 // pred_check_branch
        %216 = sbr.rel (%p214) target = $region20
      $region19: #{additive_condition_block.5} parent=11 // pred_region
        _
      $region20: #{additive_condition_block.5} parent=11 // pred_fallthru
        _
      // Predicated region
      $region21: #{additive_condition_block.5} parent=11 // pred_check
        %p217 = pneg %p128
      $region22: #{additive_condition_block.5} parent=11 // pred_check_branch
        %219 = sbr.rel (%p217) target = $region24
      $region23: #{additive_condition_block.5} parent=11 // pred_region
        _
      $region24: #{additive_condition_block.5} parent=11 // pred_fallthru
        _
      // Predicated region
      $region25: #{additive_condition_block.5} parent=11 // pred_check
        %p220 = pneg %p149
      $region26: #{additive_condition_block.5} parent=11 // pred_check_branch
        %222 = sbr.rel (%p220) target = $region28
      $region27: #{additive_condition_block.5} parent=11 // pred_region
        _
      $region28: #{additive_condition_block.5} parent=11 // pred_fallthru
        _
      // Predicated region
      $region29: #{additive_condition_block.5} parent=11 // pred_check
        %p223 = pneg %p170
      $region30: #{additive_condition_block.5} parent=11 // pred_check_branch
        %225 = sbr.rel (%p223) target = $region32
      $region31: #{additive_condition_block.5} parent=11 // pred_region
        _
      $region32: #{additive_condition_block.5} parent=11 // pred_fallthru
        _
    $region12: #{additive_condition_block.5} parent=5 // pred_fallthru
      _
    %p226 = scmp.lt.s32.totalorder %s13, 2
    // Predicated region
    $region33: #{additive_condition_block.5} parent=5 // pred_check
      %p227 = pneg %p226
    $region34: #{additive_condition_block.5} parent=5 // pred_check_branch
      %229 = sbr.rel (%p227) target = $region36
    $region35: #{additive_condition_block.5} parent=5 // pred_region
      // Predicated region
      $region37: #{additive_condition_block.5} parent=35 // pred_check
        %p230 = pneg %p33
      $region38: #{additive_condition_block.5} parent=35 // pred_check_branch
        %232 = sbr.rel (%p230) target = $region40
      $region39: #{additive_condition_block.5} parent=35 // pred_region
        %s233 = smul.u32 8, %s13
        %p234 = scmp.lt.s32.totalorder %s233, 15
        %s235 = scalar_select %p234, %s233, 15
        %s236 = smul.addr %s235, 8
        %s237 = scalar_lea.vmem %s0, %s236
        %s238 = smul.u32 8, %s13
      $region40: #{additive_condition_block.5} parent=35 // pred_fallthru
        _
      // Predicated region
      $region41: #{additive_condition_block.5} parent=35 // pred_check
        %p239 = pneg %p59
      $region42: #{additive_condition_block.5} parent=35 // pred_check_branch
        %241 = sbr.rel (%p239) target = $region44
      $region43: #{additive_condition_block.5} parent=35 // pred_region
        %p242 = scmp.lt.s32.totalorder %s13, 1
        %s243 = scalar_select %p242, %s13, 1
        %s244 = smul.addr %s243, 8
        %s245 = scalar_lea.vmem %s1, %s244
      $region44: #{additive_condition_block.5} parent=35 // pred_fallthru
        _
    $region36: #{additive_condition_block.5} parent=5 // pred_fallthru
      _
    %p246 = scmp.le.s32.totalorder 1, %s13
    %p247 = scmp.lt.s32.totalorder %s13, 3
    %p248 = pnand %p246, %p247
    %p249 = pneg %p248
    // Predicated region
    $region45: #{additive_condition_block.5} parent=5 // pred_check
      _
    $region46: #{additive_condition_block.5} parent=5 // pred_check_branch
      %251 = sbr.rel (%p248) target = $region48
    $region47: #{additive_condition_block.5} parent=5 // pred_region
      %s252 = ssub.s32 %s13, 1
      %s253 = smul.u32 8, %s18
      %p254 = scmp.lt.s32.totalorder %s253, 15
      %s255 = scalar_select %p254, %s253, 15
      %s256 = smul.addr %s255, 8
      %s257 = scalar_lea.vmem %s0, %s256
      %p258 = pneg %p39
      %p259 = pneg %p36
      %p260 = scmp.lt.s32.totalorder %s18, 1
      %s261 = scalar_select %p260, %s18, 1
      %s262 = smul.addr %s261, 8
      %s263 = scalar_lea.vmem %s1, %s262
      %p264 = pneg %p65
      %p265 = pneg %p62
      %p266 = pneg %p86
      %p267 = pneg %p83
      %p268 = pneg %p107
      %p269 = pneg %p104
      %p270 = pneg %p128
      %p271 = pneg %p125
      %p272 = pneg %p149
      %p273 = pneg %p146
      %p274 = pneg %p170
      %p275 = pneg %p167
      %p276 = pneg %p196
      %p277 = pneg %p193
      %s278 = smul.u32 8, %s18
      %p279 = scmp.lt.s32.totalorder %s278, 15
      %s280 = scalar_select %p279, %s278, 15
      %s281 = smul.addr %s280, 8
      %s282 = scalar_lea.vmem %s7, %s281
      %s283 = smul.u32 8, %s18
      %p284 = scmp.lt.s32.totalorder %s283, 15
      %s285 = scalar_select %p284, %s283, 15
      %s286 = smul.addr %s285, 8
      %s287 = scalar_lea.vmem %s0, %s286
      %s288 = smul.u32 8, %s18
      %p289 = scmp.lt.s32.totalorder %s18, 1
      %s290 = scalar_select %p289, %s18, 1
      %s291 = smul.addr %s290, 8
      %s292 = scalar_lea.vmem %s1, %s291
      %s293 = smul.u32 8, %s18
      %p294 = scmp.lt.s32.totalorder %s293, 15
      %s295 = scalar_select %p294, %s293, 15
      %s296 = smul.addr %s295, 8
      %s297 = scalar_lea.vmem %s7, %s296
      %s298 = smul.u32 8, %s18
      %v300 = vld [vmem:[%s287] sm:$0xff]
      %v301 = vld [vmem:[%s287 + $0x8] sm:$0xff]
      %v302 = vld [vmem:[%s287 + $0x10] sm:$0xff]
      %v303 = vld [vmem:[%s287 + $0x18] sm:$0xff]
      %v304 = vld [vmem:[%s287 + $0x20] sm:$0xff]
      %v305 = vld [vmem:[%s287 + $0x28] sm:$0xff]
      %v306 = vld [vmem:[%s287 + $0x30] sm:$0xff]
      %v307 = vld [vmem:[%s287 + $0x38] sm:$0xff]
      %308 = vadd.xlane.f32.xlu0 %v300
      %v309 = vpop.xlane.xlu0 %308
      %310 = vadd.xlane.f32.xlu0 %v301
      %v311 = vpop.xlane.xlu0 %310
      %312 = vadd.xlane.f32.xlu0 %v302
      %v313 = vpop.xlane.xlu0 %312
      %314 = vadd.xlane.f32.xlu0 %v303
      %v315 = vpop.xlane.xlu0 %314
      %316 = vadd.xlane.f32.xlu0 %v304
      %v317 = vpop.xlane.xlu0 %316
      %318 = vadd.xlane.f32.xlu0 %v305
      %v319 = vpop.xlane.xlu0 %318
      %320 = vadd.xlane.f32.xlu0 %v306
      %v321 = vpop.xlane.xlu0 %320
      %322 = vadd.xlane.f32.xlu0 %v307
      %v323 = vpop.xlane.xlu0 %322
      %v324 = vrcp.pop 128.0
      %v325 = vmul.f32 128.0, %v324
      %v326 = vsub.f32 1.0, %v325
      %v327 = vmul.f32 %v324, %v326
      %v328 = vadd.f32 %v324, %v327
      %vm329 = vweird.f32 %v324
      %v330 = vsel %vm329, %v324, %v328
      %v331 = vmul.f32 %v309, %v330
      %v332 = vmul.f32 %v311, %v330
      %v333 = vmul.f32 %v313, %v330
      %v334 = vmul.f32 %v315, %v330
      %v335 = vmul.f32 %v317, %v330
      %v336 = vmul.f32 %v319, %v330
      %v337 = vmul.f32 %v321, %v330
      %v338 = vmul.f32 %v323, %v330
      %v339 = vsub.f32 %v300, %v331
      %v340 = vsub.f32 %v301, %v332
      %v341 = vsub.f32 %v302, %v333
      %v342 = vsub.f32 %v303, %v334
      %v343 = vsub.f32 %v304, %v335
      %v344 = vsub.f32 %v305, %v336
      %v345 = vsub.f32 %v306, %v337
      %v346 = vsub.f32 %v307, %v338
      %v347 = vmul.f32 %v339, %v339
      %v348 = vmul.f32 %v340, %v340
      %v349 = vmul.f32 %v341, %v341
      %v350 = vmul.f32 %v342, %v342
      %v351 = vmul.f32 %v343, %v343
      %v352 = vmul.f32 %v344, %v344
      %v353 = vmul.f32 %v345, %v345
      %v354 = vmul.f32 %v346, %v346
      %355 = vadd.xlane.f32.xlu0 %v347
      %v356 = vpop.xlane.xlu0 %355
      %357 = vadd.xlane.f32.xlu0 %v348
      %v358 = vpop.xlane.xlu0 %357
      %359 = vadd.xlane.f32.xlu0 %v349
      %v360 = vpop.xlane.xlu0 %359
      %361 = vadd.xlane.f32.xlu0 %v350
      %v362 = vpop.xlane.xlu0 %361
      %363 = vadd.xlane.f32.xlu0 %v351
      %v364 = vpop.xlane.xlu0 %363
      %365 = vadd.xlane.f32.xlu0 %v352
      %v366 = vpop.xlane.xlu0 %365
      %367 = vadd.xlane.f32.xlu0 %v353
      %v368 = vpop.xlane.xlu0 %367
      %369 = vadd.xlane.f32.xlu0 %v354
      %v370 = vpop.xlane.xlu0 %369
      %v371 = vmul.f32 %v356, %v330
      %v372 = vmul.f32 %v358, %v330
      %v373 = vmul.f32 %v360, %v330
      %v374 = vmul.f32 %v362, %v330
      %v375 = vmul.f32 %v364, %v330
      %v376 = vmul.f32 %v366, %v330
      %v377 = vmul.f32 %v368, %v330
      %v378 = vmul.f32 %v370, %v330
      %v379 = vadd.f32 %v371, 1e-05
      %v380 = vadd.f32 %v372, 1e-05
      %v381 = vadd.f32 %v373, 1e-05
      %v382 = vadd.f32 %v374, 1e-05
      %v383 = vadd.f32 %v375, 1e-05
      %v384 = vadd.f32 %v376, 1e-05
      %v385 = vadd.f32 %v377, 1e-05
      %v386 = vadd.f32 %v378, 1e-05
      %v387 = vrsqrt.pop %v379
      %v388 = vmul.f32 %v387, %v379
      %v389 = vmul.f32 %v388, %v387
      %v390 = vmul.f32 0.5, %v389
      %v391 = vsub.f32 1.5, %v390
      %v392 = vmul.f32 %v387, %v391
      %vm393 = vweird.f32 %v379
      %vm394 = vweird.f32 %v387
      %vm395 = vmor %vm393, %vm394
      %v396 = vsel %vm395, %v387, %v392
      %v397 = vrsqrt.pop %v380
      %v398 = vmul.f32 %v397, %v380
      %v399 = vmul.f32 %v398, %v397
      %v400 = vmul.f32 0.5, %v399
      %v401 = vsub.f32 1.5, %v400
      %v402 = vmul.f32 %v397, %v401
      %vm403 = vweird.f32 %v380
      %vm404 = vweird.f32 %v397
      %vm405 = vmor %vm403, %vm404
      %v406 = vsel %vm405, %v397, %v402
      %v407 = vrsqrt.pop %v381
      %v408 = vmul.f32 %v407, %v381
      %v409 = vmul.f32 %v408, %v407
      %v410 = vmul.f32 0.5, %v409
      %v411 = vsub.f32 1.5, %v410
      %v412 = vmul.f32 %v407, %v411
      %vm413 = vweird.f32 %v381
      %vm414 = vweird.f32 %v407
      %vm415 = vmor %vm413, %vm414
      %v416 = vsel %vm415, %v407, %v412
      %v417 = vrsqrt.pop %v382
      %v418 = vmul.f32 %v417, %v382
      %v419 = vmul.f32 %v418, %v417
      %v420 = vmul.f32 0.5, %v419
      %v421 = vsub.f32 1.5, %v420
      %v422 = vmul.f32 %v417, %v421
      %vm423 = vweird.f32 %v382
      %vm424 = vweird.f32 %v417
      %vm425 = vmor %vm423, %vm424
      %v426 = vsel %vm425, %v417, %v422
      %v427 = vrsqrt.pop %v383
      %v428 = vmul.f32 %v427, %v383
      %v429 = vmul.f32 %v428, %v427
      %v430 = vmul.f32 0.5, %v429
      %v431 = vsub.f32 1.5, %v430
      %v432 = vmul.f32 %v427, %v431
      %vm433 = vweird.f32 %v383
      %vm434 = vweird.f32 %v427
      %vm435 = vmor %vm433, %vm434
      %v436 = vsel %vm435, %v427, %v432
      %v437 = vrsqrt.pop %v384
      %v438 = vmul.f32 %v437, %v384
      %v439 = vmul.f32 %v438, %v437
      %v440 = vmul.f32 0.5, %v439
      %v441 = vsub.f32 1.5, %v440
      %v442 = vmul.f32 %v437, %v441
      %vm443 = vweird.f32 %v384
      %vm444 = vweird.f32 %v437
      %vm445 = vmor %vm443, %vm444
      %v446 = vsel %vm445, %v437, %v442
      %v447 = vrsqrt.pop %v385
      %v448 = vmul.f32 %v447, %v385
      %v449 = vmul.f32 %v448, %v447
      %v450 = vmul.f32 0.5, %v449
      %v451 = vsub.f32 1.5, %v450
      %v452 = vmul.f32 %v447, %v451
      %vm453 = vweird.f32 %v385
      %vm454 = vweird.f32 %v447
      %vm455 = vmor %vm453, %vm454
      %v456 = vsel %vm455, %v447, %v452
      %v457 = vrsqrt.pop %v386
      %v458 = vmul.f32 %v457, %v386
      %v459 = vmul.f32 %v458, %v457
      %v460 = vmul.f32 0.5, %v459
      %v461 = vsub.f32 1.5, %v460
      %v462 = vmul.f32 %v457, %v461
      %vm463 = vweird.f32 %v386
      %vm464 = vweird.f32 %v457
      %vm465 = vmor %vm463, %vm464
      %v466 = vsel %vm465, %v457, %v462
      %v467 = vmul.f32 %v339, %v396
      %v468 = vmul.f32 %v340, %v406
      %v469 = vmul.f32 %v341, %v416
      %v470 = vmul.f32 %v342, %v426
      %v471 = vmul.f32 %v343, %v436
      %v472 = vmul.f32 %v344, %v446
      %v473 = vmul.f32 %v345, %v456
      %v474 = vmul.f32 %v346, %v466
      %v475 = vld [vmem:[%s2] sm:$0x1]
      %v477 = vperm.slane %v475, 0
      %v479 = vmul.f32 %v467, %v477
      %v480 = vmul.f32 %v468, %v477
      %v481 = vmul.f32 %v469, %v477
      %v482 = vmul.f32 %v470, %v477
      %v483 = vmul.f32 %v471, %v477
      %v484 = vmul.f32 %v472, %v477
      %v485 = vmul.f32 %v473, %v477
      %v486 = vmul.f32 %v474, %v477
      %v487 = vld [vmem:[%s3] sm:$0x1]
      %v489 = vperm.slane %v487, 0
      %v491 = vadd.f32 %v479, %v489
      %v492 = vadd.f32 %v480, %v489
      %v493 = vadd.f32 %v481, %v489
      %v494 = vadd.f32 %v482, %v489
      %v495 = vadd.f32 %v483, %v489
      %v496 = vadd.f32 %v484, %v489
      %v497 = vadd.f32 %v485, %v489
      %v498 = vadd.f32 %v486, %v489
      %v499 = vld [vmem:[%s292] sm:$0xff]
      %v501 = vrot.slane %v499, 1
      %v502 = vrot.slane %v499, 2
      %v503 = vrot.slane %v499, 3
      %v504 = vrot.slane %v499, 4
      %v505 = vrot.slane %v499, 5
      %v506 = vrot.slane %v499, 6
      %v507 = vrot.slane %v499, 7
      %v508 = vperm.slane %v499, 0
      %v509 = vperm.slane %v501, 0
      %v510 = vperm.slane %v502, 0
      %v511 = vperm.slane %v503, 0
      %v512 = vperm.slane %v504, 0
      %v513 = vperm.slane %v505, 0
      %v514 = vperm.slane %v506, 0
      %v515 = vperm.slane %v507, 0
      %v524 = vadd.f32 %v491, %v508
      %v525 = vadd.f32 %v492, %v509
      %v526 = vadd.f32 %v493, %v510
      %v527 = vadd.f32 %v494, %v511
      %v528 = vadd.f32 %v495, %v512
      %v529 = vadd.f32 %v496, %v513
      %v530 = vadd.f32 %v497, %v514
      %v531 = vadd.f32 %v498, %v515
      %v532 = vpack.c.bf16 %v525, %v524
      %v533 = vpack.c.bf16 %v527, %v526
      %v534 = vpack.c.bf16 %v529, %v528
      %v535 = vpack.c.bf16 %v531, %v530
      %v536 = vld [vmem:[%s4] sm:$0xff]
      %v537 = vld [vmem:[%s4 + $0x8] sm:$0xff]
      %v538 = vld [vmem:[%s4 + $0x10] sm:$0xff]
      %v539 = vld [vmem:[%s4 + $0x18] sm:$0xff]
      %v540 = vld [vmem:[%s4 + $0x20] sm:$0xff]
      %v541 = vld [vmem:[%s4 + $0x28] sm:$0xff]
      %v542 = vld [vmem:[%s4 + $0x30] sm:$0xff]
      %v543 = vld [vmem:[%s4 + $0x38] sm:$0xff]
      %v544 = vld [vmem:[%s4 + $0x40] sm:$0xff]
      %v545 = vld [vmem:[%s4 + $0x48] sm:$0xff]
      %v546 = vld [vmem:[%s4 + $0x50] sm:$0xff]
      %v547 = vld [vmem:[%s4 + $0x58] sm:$0xff]
      %v548 = vld [vmem:[%s4 + $0x60] sm:$0xff]
      %v549 = vld [vmem:[%s4 + $0x68] sm:$0xff]
      %v550 = vld [vmem:[%s4 + $0x70] sm:$0xff]
      %v551 = vld [vmem:[%s4 + $0x78] sm:$0xff]
      %v552 = vld [vmem:[%s4 + $0x80] sm:$0xff]
      %v553 = vld [vmem:[%s4 + $0x88] sm:$0xff]
      %v554 = vld [vmem:[%s4 + $0x90] sm:$0xff]
      %v555 = vld [vmem:[%s4 + $0x98] sm:$0xff]
      %v556 = vld [vmem:[%s4 + $0xa0] sm:$0xff]
      %v557 = vld [vmem:[%s4 + $0xa8] sm:$0xff]
      %v558 = vld [vmem:[%s4 + $0xb0] sm:$0xff]
      %v559 = vld [vmem:[%s4 + $0xb8] sm:$0xff]
      %v560 = vld [vmem:[%s4 + $0xc0] sm:$0xff]
      %v561 = vld [vmem:[%s4 + $0xc8] sm:$0xff]
      %v562 = vld [vmem:[%s4 + $0xd0] sm:$0xff]
      %v563 = vld [vmem:[%s4 + $0xd8] sm:$0xff]
      %v564 = vld [vmem:[%s4 + $0xe0] sm:$0xff]
      %v565 = vld [vmem:[%s4 + $0xe8] sm:$0xff]
      %v566 = vld [vmem:[%s4 + $0xf0] sm:$0xff]
      %v567 = vld [vmem:[%s4 + $0xf8] sm:$0xff]
      %v568 = vld [vmem:[%s4 + $0x100] sm:$0xff]
      %v569 = vld [vmem:[%s4 + $0x108] sm:$0xff]
      %v570 = vld [vmem:[%s4 + $0x110] sm:$0xff]
      %v571 = vld [vmem:[%s4 + $0x118] sm:$0xff]
      %v572 = vld [vmem:[%s4 + $0x120] sm:$0xff]
      %v573 = vld [vmem:[%s4 + $0x128] sm:$0xff]
      %v574 = vld [vmem:[%s4 + $0x130] sm:$0xff]
      %v575 = vld [vmem:[%s4 + $0x138] sm:$0xff]
      %v576 = vld [vmem:[%s4 + $0x140] sm:$0xff]
      %v577 = vld [vmem:[%s4 + $0x148] sm:$0xff]
      %v578 = vld [vmem:[%s4 + $0x150] sm:$0xff]
      %v579 = vld [vmem:[%s4 + $0x158] sm:$0xff]
      %v580 = vld [vmem:[%s4 + $0x160] sm:$0xff]
      %v581 = vld [vmem:[%s4 + $0x168] sm:$0xff]
      %v582 = vld [vmem:[%s4 + $0x170] sm:$0xff]
      %v583 = vld [vmem:[%s4 + $0x178] sm:$0xff]
      %v632 = vunpack.c.l.b16 %v536
      %v633 = vunpack.c.h.b16 %v536
      %v634 = vunpack.c.l.b16 %v537
      %v635 = vunpack.c.h.b16 %v537
      %v636 = vunpack.c.l.b16 %v538
      %v637 = vunpack.c.h.b16 %v538
      %v638 = vunpack.c.l.b16 %v539
      %v639 = vunpack.c.h.b16 %v539
      %v640 = vunpack.c.l.b16 %v540
      %v641 = vunpack.c.h.b16 %v540
      %v642 = vunpack.c.l.b16 %v541
      %v643 = vunpack.c.h.b16 %v541
      %v644 = vunpack.c.l.b16 %v542
      %v645 = vunpack.c.h.b16 %v542
      %v646 = vunpack.c.l.b16 %v543
      %v647 = vunpack.c.h.b16 %v543
      %v648 = vunpack.c.l.b16 %v544
      %v649 = vunpack.c.h.b16 %v544
      %v650 = vunpack.c.l.b16 %v545
      %v651 = vunpack.c.h.b16 %v545
      %v652 = vunpack.c.l.b16 %v546
      %v653 = vunpack.c.h.b16 %v546
      %v654 = vunpack.c.l.b16 %v547
      %v655 = vunpack.c.h.b16 %v547
      %v656 = vunpack.c.l.b16 %v548
      %v657 = vunpack.c.h.b16 %v548
      %v658 = vunpack.c.l.b16 %v549
      %v659 = vunpack.c.h.b16 %v549
      %v660 = vunpack.c.l.b16 %v550
      %v661 = vunpack.c.h.b16 %v550
      %v662 = vunpack.c.l.b16 %v551
      %v663 = vunpack.c.h.b16 %v551
      %v664 = vunpack.c.l.b16 %v552
      %v665 = vunpack.c.h.b16 %v552
      %v666 = vunpack.c.l.b16 %v553
      %v667 = vunpack.c.h.b16 %v553
      %v668 = vunpack.c.l.b16 %v554
      %v669 = vunpack.c.h.b16 %v554
      %v670 = vunpack.c.l.b16 %v555
      %v671 = vunpack.c.h.b16 %v555
      %v672 = vunpack.c.l.b16 %v556
      %v673 = vunpack.c.h.b16 %v556
      %v674 = vunpack.c.l.b16 %v557
      %v675 = vunpack.c.h.b16 %v557
      %v676 = vunpack.c.l.b16 %v558
      %v677 = vunpack.c.h.b16 %v558
      %v678 = vunpack.c.l.b16 %v559
      %v679 = vunpack.c.h.b16 %v559
      %v680 = vunpack.c.l.b16 %v560
      %v681 = vunpack.c.h.b16 %v560
      %v682 = vunpack.c.l.b16 %v561
      %v683 = vunpack.c.h.b16 %v561
      %v684 = vunpack.c.l.b16 %v562
      %v685 = vunpack.c.h.b16 %v562
      %v686 = vunpack.c.l.b16 %v563
      %v687 = vunpack.c.h.b16 %v563
      %v688 = vunpack.c.l.b16 %v564
      %v689 = vunpack.c.h.b16 %v564
      %v690 = vunpack.c.l.b16 %v565
      %v691 = vunpack.c.h.b16 %v565
      %v692 = vunpack.c.l.b16 %v566
      %v693 = vunpack.c.h.b16 %v566
      %v694 = vunpack.c.l.b16 %v567
      %v695 = vunpack.c.h.b16 %v567
      %v696 = vunpack.c.l.b16 %v568
      %v697 = vunpack.c.h.b16 %v568
      %v698 = vunpack.c.l.b16 %v569
      %v699 = vunpack.c.h.b16 %v569
      %v700 = vunpack.c.l.b16 %v570
      %v701 = vunpack.c.h.b16 %v570
      %v702 = vunpack.c.l.b16 %v571
      %v703 = vunpack.c.h.b16 %v571
      %v704 = vunpack.c.l.b16 %v572
      %v705 = vunpack.c.h.b16 %v572
      %v706 = vunpack.c.l.b16 %v573
      %v707 = vunpack.c.h.b16 %v573
      %v708 = vunpack.c.l.b16 %v574
      %v709 = vunpack.c.h.b16 %v574
      %v710 = vunpack.c.l.b16 %v575
      %v711 = vunpack.c.h.b16 %v575
      %v712 = vunpack.c.l.b16 %v576
      %v713 = vunpack.c.h.b16 %v576
      %v714 = vunpack.c.l.b16 %v577
      %v715 = vunpack.c.h.b16 %v577
      %v716 = vunpack.c.l.b16 %v578
      %v717 = vunpack.c.h.b16 %v578
      %v718 = vunpack.c.l.b16 %v579
      %v719 = vunpack.c.h.b16 %v579
      %v720 = vunpack.c.l.b16 %v580
      %v721 = vunpack.c.h.b16 %v580
      %v722 = vunpack.c.l.b16 %v581
      %v723 = vunpack.c.h.b16 %v581
      %v724 = vunpack.c.l.b16 %v582
      %v725 = vunpack.c.h.b16 %v582
      %v726 = vunpack.c.l.b16 %v583
      %v727 = vunpack.c.h.b16 %v583
      %v728 = vpack.c.b16 %v638, %v632
      %v729 = vpack.c.b16 %v639, %v633
      %v730 = vpack.c.b16 %v640, %v634
      %v731 = vpack.c.b16 %v641, %v635
      %v732 = vpack.c.b16 %v642, %v636
      %v733 = vpack.c.b16 %v643, %v637
      %v734 = vpack.c.b16 %v650, %v644
      %v735 = vpack.c.b16 %v651, %v645
      %v736 = vpack.c.b16 %v652, %v646
      %v737 = vpack.c.b16 %v653, %v647
      %v738 = vpack.c.b16 %v654, %v648
      %v739 = vpack.c.b16 %v655, %v649
      %v740 = vpack.c.b16 %v662, %v656
      %v741 = vpack.c.b16 %v663, %v657
      %v742 = vpack.c.b16 %v664, %v658
      %v743 = vpack.c.b16 %v665, %v659
      %v744 = vpack.c.b16 %v666, %v660
      %v745 = vpack.c.b16 %v667, %v661
      %v746 = vpack.c.b16 %v674, %v668
      %v747 = vpack.c.b16 %v675, %v669
      %v748 = vpack.c.b16 %v676, %v670
      %v749 = vpack.c.b16 %v677, %v671
      %v750 = vpack.c.b16 %v678, %v672
      %v751 = vpack.c.b16 %v679, %v673
      %v752 = vpack.c.b16 %v686, %v680
      %v753 = vpack.c.b16 %v687, %v681
      %v754 = vpack.c.b16 %v688, %v682
      %v755 = vpack.c.b16 %v689, %v683
      %v756 = vpack.c.b16 %v690, %v684
      %v757 = vpack.c.b16 %v691, %v685
      %v758 = vpack.c.b16 %v698, %v692
      %v759 = vpack.c.b16 %v699, %v693
      %v760 = vpack.c.b16 %v700, %v694
      %v761 = vpack.c.b16 %v701, %v695
      %v762 = vpack.c.b16 %v702, %v696
      %v763 = vpack.c.b16 %v703, %v697
      %v764 = vpack.c.b16 %v710, %v704
      %v765 = vpack.c.b16 %v711, %v705
      %v766 = vpack.c.b16 %v712, %v706
      %v767 = vpack.c.b16 %v713, %v707
      %v768 = vpack.c.b16 %v714, %v708
      %v769 = vpack.c.b16 %v715, %v709
      %v770 = vpack.c.b16 %v722, %v716
      %v771 = vpack.c.b16 %v723, %v717
      %v772 = vpack.c.b16 %v724, %v718
      %v773 = vpack.c.b16 %v725, %v719
      %v774 = vpack.c.b16 %v726, %v720
      %v775 = vpack.c.b16 %v727, %v721
      %824 = vmatpush.bf16.msra.mxu0 %v770
      %825 = vmatpush.bf16.msra.mxu0 %v764
      %826 = vmatpush.bf16.msra.mxu0 %v758
      %827 = vmatpush.bf16.msra.mxu0 %v752
      %828 = vmatpush.bf16.msra.mxu0 %v746
      %829 = vmatpush.bf16.msra.mxu0 %v740
      %830 = vmatpush.bf16.msra.mxu0 %v734
      %831 = vmatpush.bf16.msra.mxu0 %v728
      %832 = vmatmul.bf16.gmra.mxu0 %v532
      %v833 = vpop.f32.mrf.mxu0
      %v834 = vadd.f32 0.0, %v833
      %v835 = vpop.f32.mrf.mxu0
      %v836 = vadd.f32 0.0, %v835
      %837 = vmatmul.bf16.gmra.mxu0 %v533
      %v838 = vpop.f32.mrf.mxu0
      %v839 = vadd.f32 0.0, %v838
      %v840 = vpop.f32.mrf.mxu0
      %v841 = vadd.f32 0.0, %v840
      %842 = vmatmul.bf16.gmra.mxu0 %v534
      %v843 = vpop.f32.mrf.mxu0
      %v844 = vadd.f32 0.0, %v843
      %v845 = vpop.f32.mrf.mxu0
      %v846 = vadd.f32 0.0, %v845
      %847 = vmatmul.bf16.gmra.mxu0 %v535
      %v848 = vpop.f32.mrf.mxu0
      %v849 = vadd.f32 0.0, %v848
      %v850 = vpop.f32.mrf.mxu0
      %v851 = vadd.f32 0.0, %v850
      %852 = vdwg.mxu0
      %853 = vmatpush.bf16.msra.mxu0 %v771
      %854 = vmatpush.bf16.msra.mxu0 %v765
      %855 = vmatpush.bf16.msra.mxu0 %v759
      %856 = vmatpush.bf16.msra.mxu0 %v753
      %857 = vmatpush.bf16.msra.mxu0 %v747
      %858 = vmatpush.bf16.msra.mxu0 %v741
      %859 = vmatpush.bf16.msra.mxu0 %v735
      %860 = vmatpush.bf16.msra.mxu0 %v729
      %861 = vmatmul.bf16.gmra.mxu0 %v532
      %v862 = vpop.f32.mrf.mxu0
      %v863 = vadd.f32 0.0, %v862
      %v864 = vpop.f32.mrf.mxu0
      %v865 = vadd.f32 0.0, %v864
      %866 = vmatmul.bf16.gmra.mxu0 %v533
      %v867 = vpop.f32.mrf.mxu0
      %v868 = vadd.f32 0.0, %v867
      %v869 = vpop.f32.mrf.mxu0
      %v870 = vadd.f32 0.0, %v869
      %871 = vmatmul.bf16.gmra.mxu0 %v534
      %v872 = vpop.f32.mrf.mxu0
      %v873 = vadd.f32 0.0, %v872
      %v874 = vpop.f32.mrf.mxu0
      %v875 = vadd.f32 0.0, %v874
      %876 = vmatmul.bf16.gmra.mxu0 %v535
      %v877 = vpop.f32.mrf.mxu0
      %v878 = vadd.f32 0.0, %v877
      %v879 = vpop.f32.mrf.mxu0
      %v880 = vadd.f32 0.0, %v879
      %881 = vdwg.mxu0
      %882 = vmatpush.bf16.msra.mxu0 %v772
      %883 = vmatpush.bf16.msra.mxu0 %v766
      %884 = vmatpush.bf16.msra.mxu0 %v760
      %885 = vmatpush.bf16.msra.mxu0 %v754
      %886 = vmatpush.bf16.msra.mxu0 %v748
      %887 = vmatpush.bf16.msra.mxu0 %v742
      %888 = vmatpush.bf16.msra.mxu0 %v736
      %889 = vmatpush.bf16.msra.mxu0 %v730
      %890 = vmatmul.bf16.gmra.mxu0 %v532
      %v891 = vpop.f32.mrf.mxu0
      %v892 = vadd.f32 0.0, %v891
      %v893 = vpop.f32.mrf.mxu0
      %v894 = vadd.f32 0.0, %v893
      %895 = vmatmul.bf16.gmra.mxu0 %v533
      %v896 = vpop.f32.mrf.mxu0
      %v897 = vadd.f32 0.0, %v896
      %v898 = vpop.f32.mrf.mxu0
      %v899 = vadd.f32 0.0, %v898
      %900 = vmatmul.bf16.gmra.mxu0 %v534
      %v901 = vpop.f32.mrf.mxu0
      %v902 = vadd.f32 0.0, %v901
      %v903 = vpop.f32.mrf.mxu0
      %v904 = vadd.f32 0.0, %v903
      %905 = vmatmul.bf16.gmra.mxu0 %v535
      %v906 = vpop.f32.mrf.mxu0
      %v907 = vadd.f32 0.0, %v906
      %v908 = vpop.f32.mrf.mxu0
      %v909 = vadd.f32 0.0, %v908
      %910 = vdwg.mxu0
      %911 = vmatpush.bf16.msra.mxu0 %v773
      %912 = vmatpush.bf16.msra.mxu0 %v767
      %913 = vmatpush.bf16.msra.mxu0 %v761
      %914 = vmatpush.bf16.msra.mxu0 %v755
      %915 = vmatpush.bf16.msra.mxu0 %v749
      %916 = vmatpush.bf16.msra.mxu0 %v743
      %917 = vmatpush.bf16.msra.mxu0 %v737
      %918 = vmatpush.bf16.msra.mxu0 %v731
      %919 = vmatmul.bf16.gmra.mxu0 %v532
      %v920 = vpop.f32.mrf.mxu0
      %v921 = vadd.f32 0.0, %v920
      %v922 = vpop.f32.mrf.mxu0
      %v923 = vadd.f32 0.0, %v922
      %924 = vmatmul.bf16.gmra.mxu0 %v533
      %v925 = vpop.f32.mrf.mxu0
      %v926 = vadd.f32 0.0, %v925
      %v927 = vpop.f32.mrf.mxu0
      %v928 = vadd.f32 0.0, %v927
      %929 = vmatmul.bf16.gmra.mxu0 %v534
      %v930 = vpop.f32.mrf.mxu0
      %v931 = vadd.f32 0.0, %v930
      %v932 = vpop.f32.mrf.mxu0
      %v933 = vadd.f32 0.0, %v932
      %934 = vmatmul.bf16.gmra.mxu0 %v535
      %v935 = vpop.f32.mrf.mxu0
      %v936 = vadd.f32 0.0, %v935
      %v937 = vpop.f32.mrf.mxu0
      %v938 = vadd.f32 0.0, %v937
      %939 = vdwg.mxu0
      %940 = vmatpush.bf16.msra.mxu0 %v774
      %941 = vmatpush.bf16.msra.mxu0 %v768
      %942 = vmatpush.bf16.msra.mxu0 %v762
      %943 = vmatpush.bf16.msra.mxu0 %v756
      %944 = vmatpush.bf16.msra.mxu0 %v750
      %945 = vmatpush.bf16.msra.mxu0 %v744
      %946 = vmatpush.bf16.msra.mxu0 %v738
      %947 = vmatpush.bf16.msra.mxu0 %v732
      %948 = vmatmul.bf16.gmra.mxu0 %v532
      %v949 = vpop.f32.mrf.mxu0
      %v950 = vadd.f32 0.0, %v949
      %v951 = vpop.f32.mrf.mxu0
      %v952 = vadd.f32 0.0, %v951
      %953 = vmatmul.bf16.gmra.mxu0 %v533
      %v954 = vpop.f32.mrf.mxu0
      %v955 = vadd.f32 0.0, %v954
      %v956 = vpop.f32.mrf.mxu0
      %v957 = vadd.f32 0.0, %v956
      %958 = vmatmul.bf16.gmra.mxu0 %v534
      %v959 = vpop.f32.mrf.mxu0
      %v960 = vadd.f32 0.0, %v959
      %v961 = vpop.f32.mrf.mxu0
      %v962 = vadd.f32 0.0, %v961
      %963 = vmatmul.bf16.gmra.mxu0 %v535
      %v964 = vpop.f32.mrf.mxu0
      %v965 = vadd.f32 0.0, %v964
      %v966 = vpop.f32.mrf.mxu0
      %v967 = vadd.f32 0.0, %v966
      %968 = vdwg.mxu0
      %969 = vmatpush.bf16.msra.mxu0 %v775
      %970 = vmatpush.bf16.msra.mxu0 %v769
      %971 = vmatpush.bf16.msra.mxu0 %v763
      %972 = vmatpush.bf16.msra.mxu0 %v757
      %973 = vmatpush.bf16.msra.mxu0 %v751
      %974 = vmatpush.bf16.msra.mxu0 %v745
      %975 = vmatpush.bf16.msra.mxu0 %v739
      %976 = vmatpush.bf16.msra.mxu0 %v733
      %977 = vmatmul.bf16.gmra.mxu0 %v532
      %v978 = vpop.f32.mrf.mxu0
      %v979 = vadd.f32 0.0, %v978
      %v980 = vpop.f32.mrf.mxu0
      %v981 = vadd.f32 0.0, %v980
      %982 = vmatmul.bf16.gmra.mxu0 %v533
      %v983 = vpop.f32.mrf.mxu0
      %v984 = vadd.f32 0.0, %v983
      %v985 = vpop.f32.mrf.mxu0
      %v986 = vadd.f32 0.0, %v985
      %987 = vmatmul.bf16.gmra.mxu0 %v534
      %v988 = vpop.f32.mrf.mxu0
      %v989 = vadd.f32 0.0, %v988
      %v990 = vpop.f32.mrf.mxu0
      %v991 = vadd.f32 0.0, %v990
      %992 = vmatmul.bf16.gmra.mxu0 %v535
      %v993 = vpop.f32.mrf.mxu0
      %v994 = vadd.f32 0.0, %v993
      %v995 = vpop.f32.mrf.mxu0
      %v996 = vadd.f32 0.0, %v995
      %997 = vdwg.mxu0
      %v998 = vpack.c.bf16 %v836, %v834
      %v999 = vpack.c.bf16 %v841, %v839
      %v1000 = vpack.c.bf16 %v846, %v844
      %v1001 = vpack.c.bf16 %v851, %v849
      %v1002 = vpack.c.bf16 %v894, %v892
      %v1003 = vpack.c.bf16 %v899, %v897
      %v1004 = vpack.c.bf16 %v904, %v902
      %v1005 = vpack.c.bf16 %v909, %v907
      %v1006 = vpack.c.bf16 %v952, %v950
      %v1007 = vpack.c.bf16 %v957, %v955
      %v1008 = vpack.c.bf16 %v962, %v960
      %v1009 = vpack.c.bf16 %v967, %v965
      %1010 = vmatpush.bf16.xpose.msra.mxu0 0
      %1011 = vmatpush.bf16.xpose.msra.mxu0 0
      %1012 = vmatpush.bf16.xpose.msra.mxu0 0
      %1013 = vmatpush.bf16.xpose.msra.mxu0 0
      %1014 = vmatpush.bf16.xpose.msra.mxu0 %v1005
      %1015 = vmatpush.bf16.xpose.msra.mxu0 %v1004
      %1016 = vmatpush.bf16.xpose.msra.mxu0 %v1003
      %1017 = vmatpush.bf16.xpose.msra.mxu0 %v1002
      %1018 = vmatmul.bf16.gmra.mxu0 %v998
      %v1019 = vpop.f32.mrf.mxu0
      %v1020 = vadd.f32 0.0, %v1019
      %v1021 = vpop.f32.mrf.mxu0
      %v1022 = vadd.f32 0.0, %v1021
      %1023 = vmatmul.bf16.gmra.mxu0 %v999
      %v1024 = vpop.f32.mrf.mxu0
      %v1025 = vadd.f32 0.0, %v1024
      %v1026 = vpop.f32.mrf.mxu0
      %v1027 = vadd.f32 0.0, %v1026
      %1028 = vmatmul.bf16.gmra.mxu0 %v1000
      %v1029 = vpop.f32.mrf.mxu0
      %v1030 = vadd.f32 0.0, %v1029
      %v1031 = vpop.f32.mrf.mxu0
      %v1032 = vadd.f32 0.0, %v1031
      %1033 = vmatmul.bf16.gmra.mxu0 %v1001
      %v1034 = vpop.f32.mrf.mxu0
      %v1035 = vadd.f32 0.0, %v1034
      %v1036 = vpop.f32.mrf.mxu0
      %v1037 = vadd.f32 0.0, %v1036
      %1038 = vdwg.mxu0
      %vm1039 = vcmask 523264
      %v1040 = vsel %vm1039, %v1020, -inf
      %1041 = vmax.xlane.f32.xlu0 %v1040
      %v1042 = vpop.xlane.xlu0 %1041
      %v1043 = vsel %vm1039, %v1022, -inf
      %1044 = vmax.xlane.f32.xlu0 %v1043
      %v1045 = vpop.xlane.xlu0 %1044
      %v1046 = vsel %vm1039, %v1025, -inf
      %1047 = vmax.xlane.f32.xlu0 %v1046
      %v1048 = vpop.xlane.xlu0 %1047
      %v1049 = vsel %vm1039, %v1027, -inf
      %1050 = vmax.xlane.f32.xlu0 %v1049
      %v1051 = vpop.xlane.xlu0 %1050
      %v1052 = vsel %vm1039, %v1030, -inf
      %1053 = vmax.xlane.f32.xlu0 %v1052
      %v1054 = vpop.xlane.xlu0 %1053
      %v1055 = vsel %vm1039, %v1032, -inf
      %1056 = vmax.xlane.f32.xlu0 %v1055
      %v1057 = vpop.xlane.xlu0 %1056
      %v1058 = vsel %vm1039, %v1035, -inf
      %1059 = vmax.xlane.f32.xlu0 %v1058
      %v1060 = vpop.xlane.xlu0 %1059
      %v1061 = vsel %vm1039, %v1037, -inf
      %1062 = vmax.xlane.f32.xlu0 %v1061
      %v1063 = vpop.xlane.xlu0 %1062
      %v1064 = vsub.f32 %v1020, %v1042
      %v1065 = vsub.f32 %v1022, %v1045
      %v1066 = vsub.f32 %v1025, %v1048
      %v1067 = vsub.f32 %v1027, %v1051
      %v1068 = vsub.f32 %v1030, %v1054
      %v1069 = vsub.f32 %v1032, %v1057
      %v1070 = vsub.f32 %v1035, %v1060
      %v1071 = vsub.f32 %v1037, %v1063
      %v1072 = vmul.f32 %v1064, 1.442695
      %v1073 = vpow.pop %v1072
      %v1074 = vmul.f32 %v1065, 1.442695
      %v1075 = vpow.pop %v1074
      %v1076 = vmul.f32 %v1066, 1.442695
      %v1077 = vpow.pop %v1076
      %v1078 = vmul.f32 %v1067, 1.442695
      %v1079 = vpow.pop %v1078
      %v1080 = vmul.f32 %v1068, 1.442695
      %v1081 = vpow.pop %v1080
      %v1082 = vmul.f32 %v1069, 1.442695
      %v1083 = vpow.pop %v1082
      %v1084 = vmul.f32 %v1070, 1.442695
      %v1085 = vpow.pop %v1084
      %v1086 = vmul.f32 %v1071, 1.442695
      %v1087 = vpow.pop %v1086
      %v1088 = vsel %vm1039, %v1073, 0.0
      %1089 = vadd.xlane.f32.xlu0 %v1088
      %v1090 = vpop.xlane.xlu0 %1089
      %v1091 = vsel %vm1039, %v1075, 0.0
      %1092 = vadd.xlane.f32.xlu0 %v1091
      %v1093 = vpop.xlane.xlu0 %1092
      %v1094 = vsel %vm1039, %v1077, 0.0
      %1095 = vadd.xlane.f32.xlu0 %v1094
      %v1096 = vpop.xlane.xlu0 %1095
      %v1097 = vsel %vm1039, %v1079, 0.0
      %1098 = vadd.xlane.f32.xlu0 %v1097
      %v1099 = vpop.xlane.xlu0 %1098
      %v1100 = vsel %vm1039, %v1081, 0.0
      %1101 = vadd.xlane.f32.xlu0 %v1100
      %v1102 = vpop.xlane.xlu0 %1101
      %v1103 = vsel %vm1039, %v1083, 0.0
      %1104 = vadd.xlane.f32.xlu0 %v1103
      %v1105 = vpop.xlane.xlu0 %1104
      %v1106 = vsel %vm1039, %v1085, 0.0
      %1107 = vadd.xlane.f32.xlu0 %v1106
      %v1108 = vpop.xlane.xlu0 %1107
      %v1109 = vsel %vm1039, %v1087, 0.0
      %1110 = vadd.xlane.f32.xlu0 %v1109
      %v1111 = vpop.xlane.xlu0 %1110
      %v1112 = vpack.c.bf16 %v1075, %v1073
      %v1113 = vpack.c.bf16 %v1079, %v1077
      %v1114 = vpack.c.bf16 %v1083, %v1081
      %v1115 = vpack.c.bf16 %v1087, %v1085
      %v1117 = vsel %vm1039, %v1112, 0
      %v1120 = vsel %vm1039, %v1113, 0
      %v1123 = vsel %vm1039, %v1114, 0
      %v1126 = vsel %vm1039, %v1115, 0
      %1128 = vmatpush.bf16.msra.mxu0 0
      %1129 = vmatpush.bf16.msra.mxu0 0
      %1130 = vmatpush.bf16.msra.mxu0 0
      %1131 = vmatpush.bf16.msra.mxu0 0
      %1132 = vmatpush.bf16.msra.mxu0 %v1009
      %1133 = vmatpush.bf16.msra.mxu0 %v1008
      %1134 = vmatpush.bf16.msra.mxu0 %v1007
      %1135 = vmatpush.bf16.msra.mxu0 %v1006
      %1136 = vmatmul.bf16.gmra.mxu0 %v1117
      %v1137 = vpop.f32.mrf.mxu0
      %v1138 = vadd.f32 0.0, %v1137
      %v1139 = vpop.f32.mrf.mxu0
      %v1140 = vadd.f32 0.0, %v1139
      %1141 = vmatmul.bf16.gmra.mxu0 %v1120
      %v1142 = vpop.f32.mrf.mxu0
      %v1143 = vadd.f32 0.0, %v1142
      %v1144 = vpop.f32.mrf.mxu0
      %v1145 = vadd.f32 0.0, %v1144
      %1146 = vmatmul.bf16.gmra.mxu0 %v1123
      %v1147 = vpop.f32.mrf.mxu0
      %v1148 = vadd.f32 0.0, %v1147
      %v1149 = vpop.f32.mrf.mxu0
      %v1150 = vadd.f32 0.0, %v1149
      %1151 = vmatmul.bf16.gmra.mxu0 %v1126
      %v1152 = vpop.f32.mrf.mxu0
      %v1153 = vadd.f32 0.0, %v1152
      %v1154 = vpop.f32.mrf.mxu0
      %v1155 = vadd.f32 0.0, %v1154
      %1156 = vdwg.mxu0
      %v1157 = vrcp.pop %v1090
      %v1158 = vrcp.pop %v1093
      %v1159 = vrcp.pop %v1096
      %v1160 = vrcp.pop %v1099
      %v1161 = vrcp.pop %v1102
      %v1162 = vrcp.pop %v1105
      %v1163 = vrcp.pop %v1108
      %v1164 = vrcp.pop %v1111
      %v1165 = vmul.f32 %v1138, %v1157
      %v1166 = vmul.f32 %v1140, %v1158
      %v1167 = vmul.f32 %v1143, %v1159
      %v1168 = vmul.f32 %v1145, %v1160
      %v1169 = vmul.f32 %v1148, %v1161
      %v1170 = vmul.f32 %v1150, %v1162
      %v1171 = vmul.f32 %v1153, %v1163
      %v1172 = vmul.f32 %v1155, %v1164
      %v1173 = vpack.c.bf16 %v865, %v863
      %v1174 = vpack.c.bf16 %v870, %v868
      %v1175 = vpack.c.bf16 %v875, %v873
      %v1176 = vpack.c.bf16 %v880, %v878
      %v1177 = vpack.c.bf16 %v923, %v921
      %v1178 = vpack.c.bf16 %v928, %v926
      %v1179 = vpack.c.bf16 %v933, %v931
      %v1180 = vpack.c.bf16 %v938, %v936
      %v1181 = vpack.c.bf16 %v981, %v979
      %v1182 = vpack.c.bf16 %v986, %v984
      %v1183 = vpack.c.bf16 %v991, %v989
      %v1184 = vpack.c.bf16 %v996, %v994
      %1185 = vmatpush.bf16.xpose.msra.mxu0 0
      %1186 = vmatpush.bf16.xpose.msra.mxu0 0
      %1187 = vmatpush.bf16.xpose.msra.mxu0 0
      %1188 = vmatpush.bf16.xpose.msra.mxu0 0
      %1189 = vmatpush.bf16.xpose.msra.mxu0 %v1180
      %1190 = vmatpush.bf16.xpose.msra.mxu0 %v1179
      %1191 = vmatpush.bf16.xpose.msra.mxu0 %v1178
      %1192 = vmatpush.bf16.xpose.msra.mxu0 %v1177
      %1193 = vmatmul.bf16.gmra.mxu0 %v1173
      %v1194 = vpop.f32.mrf.mxu0
      %v1195 = vadd.f32 0.0, %v1194
      %v1196 = vpop.f32.mrf.mxu0
      %v1197 = vadd.f32 0.0, %v1196
      %1198 = vmatmul.bf16.gmra.mxu0 %v1174
      %v1199 = vpop.f32.mrf.mxu0
      %v1200 = vadd.f32 0.0, %v1199
      %v1201 = vpop.f32.mrf.mxu0
      %v1202 = vadd.f32 0.0, %v1201
      %1203 = vmatmul.bf16.gmra.mxu0 %v1175
      %v1204 = vpop.f32.mrf.mxu0
      %v1205 = vadd.f32 0.0, %v1204
      %v1206 = vpop.f32.mrf.mxu0
      %v1207 = vadd.f32 0.0, %v1206
      %1208 = vmatmul.bf16.gmra.mxu0 %v1176
      %v1209 = vpop.f32.mrf.mxu0
      %v1210 = vadd.f32 0.0, %v1209
      %v1211 = vpop.f32.mrf.mxu0
      %v1212 = vadd.f32 0.0, %v1211
      %1213 = vdwg.mxu0
      %v1214 = vsel %vm1039, %v1195, -inf
      %1215 = vmax.xlane.f32.xlu0 %v1214
      %v1216 = vpop.xlane.xlu0 %1215
      %v1217 = vsel %vm1039, %v1197, -inf
      %1218 = vmax.xlane.f32.xlu0 %v1217
      %v1219 = vpop.xlane.xlu0 %1218
      %v1220 = vsel %vm1039, %v1200, -inf
      %1221 = vmax.xlane.f32.xlu0 %v1220
      %v1222 = vpop.xlane.xlu0 %1221
      %v1223 = vsel %vm1039, %v1202, -inf
      %1224 = vmax.xlane.f32.xlu0 %v1223
      %v1225 = vpop.xlane.xlu0 %1224
      %v1226 = vsel %vm1039, %v1205, -inf
      %1227 = vmax.xlane.f32.xlu0 %v1226
      %v1228 = vpop.xlane.xlu0 %1227
      %v1229 = vsel %vm1039, %v1207, -inf
      %1230 = vmax.xlane.f32.xlu0 %v1229
      %v1231 = vpop.xlane.xlu0 %1230
      %v1232 = vsel %vm1039, %v1210, -inf
      %1233 = vmax.xlane.f32.xlu0 %v1232
      %v1234 = vpop.xlane.xlu0 %1233
      %v1235 = vsel %vm1039, %v1212, -inf
      %1236 = vmax.xlane.f32.xlu0 %v1235
      %v1237 = vpop.xlane.xlu0 %1236
      %v1238 = vsub.f32 %v1195, %v1216
      %v1239 = vsub.f32 %v1197, %v1219
      %v1240 = vsub.f32 %v1200, %v1222
      %v1241 = vsub.f32 %v1202, %v1225
      %v1242 = vsub.f32 %v1205, %v1228
      %v1243 = vsub.f32 %v1207, %v1231
      %v1244 = vsub.f32 %v1210, %v1234
      %v1245 = vsub.f32 %v1212, %v1237
      %v1246 = vmul.f32 %v1238, 1.442695
      %v1247 = vpow.pop %v1246
      %v1248 = vmul.f32 %v1239, 1.442695
      %v1249 = vpow.pop %v1248
      %v1250 = vmul.f32 %v1240, 1.442695
      %v1251 = vpow.pop %v1250
      %v1252 = vmul.f32 %v1241, 1.442695
      %v1253 = vpow.pop %v1252
      %v1254 = vmul.f32 %v1242, 1.442695
      %v1255 = vpow.pop %v1254
      %v1256 = vmul.f32 %v1243, 1.442695
      %v1257 = vpow.pop %v1256
      %v1258 = vmul.f32 %v1244, 1.442695
      %v1259 = vpow.pop %v1258
      %v1260 = vmul.f32 %v1245, 1.442695
      %v1261 = vpow.pop %v1260
      %v1262 = vsel %vm1039, %v1247, 0.0
      %1263 = vadd.xlane.f32.xlu0 %v1262
      %v1264 = vpop.xlane.xlu0 %1263
      %v1265 = vsel %vm1039, %v1249, 0.0
      %1266 = vadd.xlane.f32.xlu0 %v1265
      %v1267 = vpop.xlane.xlu0 %1266
      %v1268 = vsel %vm1039, %v1251, 0.0
      %1269 = vadd.xlane.f32.xlu0 %v1268
      %v1270 = vpop.xlane.xlu0 %1269
      %v1271 = vsel %vm1039, %v1253, 0.0
      %1272 = vadd.xlane.f32.xlu0 %v1271
      %v1273 = vpop.xlane.xlu0 %1272
      %v1274 = vsel %vm1039, %v1255, 0.0
      %1275 = vadd.xlane.f32.xlu0 %v1274
      %v1276 = vpop.xlane.xlu0 %1275
      %v1277 = vsel %vm1039, %v1257, 0.0
      %1278 = vadd.xlane.f32.xlu0 %v1277
      %v1279 = vpop.xlane.xlu0 %1278
      %v1280 = vsel %vm1039, %v1259, 0.0
      %1281 = vadd.xlane.f32.xlu0 %v1280
      %v1282 = vpop.xlane.xlu0 %1281
      %v1283 = vsel %vm1039, %v1261, 0.0
      %1284 = vadd.xlane.f32.xlu0 %v1283
      %v1285 = vpop.xlane.xlu0 %1284
      %v1286 = vpack.c.bf16 %v1249, %v1247
      %v1287 = vpack.c.bf16 %v1253, %v1251
      %v1288 = vpack.c.bf16 %v1257, %v1255
      %v1289 = vpack.c.bf16 %v1261, %v1259
      %v1291 = vsel %vm1039, %v1286, 0
      %v1294 = vsel %vm1039, %v1287, 0
      %v1297 = vsel %vm1039, %v1288, 0
      %v1300 = vsel %vm1039, %v1289, 0
      %1302 = vmatpush.bf16.msra.mxu0 0
      %1303 = vmatpush.bf16.msra.mxu0 0
      %1304 = vmatpush.bf16.msra.mxu0 0
      %1305 = vmatpush.bf16.msra.mxu0 0
      %1306 = vmatpush.bf16.msra.mxu0 %v1184
      %1307 = vmatpush.bf16.msra.mxu0 %v1183
      %1308 = vmatpush.bf16.msra.mxu0 %v1182
      %1309 = vmatpush.bf16.msra.mxu0 %v1181
      %1310 = vmatmul.bf16.gmra.mxu0 %v1291
      %v1311 = vpop.f32.mrf.mxu0
      %v1312 = vadd.f32 0.0, %v1311
      %v1313 = vpop.f32.mrf.mxu0
      %v1314 = vadd.f32 0.0, %v1313
      %1315 = vmatmul.bf16.gmra.mxu0 %v1294
      %v1316 = vpop.f32.mrf.mxu0
      %v1317 = vadd.f32 0.0, %v1316
      %v1318 = vpop.f32.mrf.mxu0
      %v1319 = vadd.f32 0.0, %v1318
      %1320 = vmatmul.bf16.gmra.mxu0 %v1297
      %v1321 = vpop.f32.mrf.mxu0
      %v1322 = vadd.f32 0.0, %v1321
      %v1323 = vpop.f32.mrf.mxu0
      %v1324 = vadd.f32 0.0, %v1323
      %1325 = vmatmul.bf16.gmra.mxu0 %v1300
      %v1326 = vpop.f32.mrf.mxu0
      %v1327 = vadd.f32 0.0, %v1326
      %v1328 = vpop.f32.mrf.mxu0
      %v1329 = vadd.f32 0.0, %v1328
      %1330 = vdwg.mxu0
      %v1331 = vrcp.pop %v1264
      %v1332 = vrcp.pop %v1267
      %v1333 = vrcp.pop %v1270
      %v1334 = vrcp.pop %v1273
      %v1335 = vrcp.pop %v1276
      %v1336 = vrcp.pop %v1279
      %v1337 = vrcp.pop %v1282
      %v1338 = vrcp.pop %v1285
      %v1339 = vmul.f32 %v1312, %v1331
      %v1340 = vmul.f32 %v1314, %v1332
      %v1341 = vmul.f32 %v1317, %v1333
      %v1342 = vmul.f32 %v1319, %v1334
      %v1343 = vmul.f32 %v1322, %v1335
      %v1344 = vmul.f32 %v1324, %v1336
      %v1345 = vmul.f32 %v1327, %v1337
      %v1346 = vmul.f32 %v1329, %v1338
      %v1347 = vpack.c.bf16 %v1166, %v1165
      %v1348 = vpack.c.bf16 %v1340, %v1339
      %v1349 = vpack.c.bf16 %v1168, %v1167
      %v1350 = vpack.c.bf16 %v1342, %v1341
      %v1351 = vpack.c.bf16 %v1170, %v1169
      %v1352 = vpack.c.bf16 %v1344, %v1343
      %v1353 = vpack.c.bf16 %v1172, %v1171
      %v1354 = vpack.c.bf16 %v1346, %v1345
      %v1355 = vld [vmem:[%s5] sm:$0xf]
      %v1356 = vld [vmem:[%s5 + $0x4] sm:$0xf]
      %v1357 = vld [vmem:[%s5 + $0x8] sm:$0xf]
      %v1358 = vld [vmem:[%s5 + $0xc] sm:$0xf]
      %v1359 = vld [vmem:[%s5 + $0x10] sm:$0xf]
      %v1360 = vld [vmem:[%s5 + $0x14] sm:$0xf]
      %v1361 = vld [vmem:[%s5 + $0x18] sm:$0xf]
      %v1362 = vld [vmem:[%s5 + $0x1c] sm:$0xf]
      %v1363 = vld [vmem:[%s5 + $0x20] sm:$0xf]
      %v1364 = vld [vmem:[%s5 + $0x24] sm:$0xf]
      %v1365 = vld [vmem:[%s5 + $0x28] sm:$0xf]
      %v1366 = vld [vmem:[%s5 + $0x2c] sm:$0xf]
      %v1367 = vld [vmem:[%s5 + $0x30] sm:$0xf]
      %v1368 = vld [vmem:[%s5 + $0x34] sm:$0xf]
      %v1369 = vld [vmem:[%s5 + $0x38] sm:$0xf]
      %v1370 = vld [vmem:[%s5 + $0x3c] sm:$0xf]
      %v1371 = vld [vmem:[%s5 + $0x40] sm:$0xf]
      %v1372 = vld [vmem:[%s5 + $0x44] sm:$0xf]
      %v1373 = vld [vmem:[%s5 + $0x48] sm:$0xf]
      %v1374 = vld [vmem:[%s5 + $0x4c] sm:$0xf]
      %v1375 = vld [vmem:[%s5 + $0x50] sm:$0xf]
      %v1376 = vld [vmem:[%s5 + $0x54] sm:$0xf]
      %v1377 = vld [vmem:[%s5 + $0x58] sm:$0xf]
      %v1378 = vld [vmem:[%s5 + $0x5c] sm:$0xf]
      %v1379 = vld [vmem:[%s5 + $0x60] sm:$0xf]
      %v1380 = vld [vmem:[%s5 + $0x64] sm:$0xf]
      %v1381 = vld [vmem:[%s5 + $0x68] sm:$0xf]
      %v1382 = vld [vmem:[%s5 + $0x6c] sm:$0xf]
      %v1383 = vld [vmem:[%s5 + $0x70] sm:$0xf]
      %v1384 = vld [vmem:[%s5 + $0x74] sm:$0xf]
      %v1385 = vld [vmem:[%s5 + $0x78] sm:$0xf]
      %v1386 = vld [vmem:[%s5 + $0x7c] sm:$0xf]
      %v1387 = vld [vmem:[%s6] sm:$0x1]
      %v1389 = vperm.slane %v1387, 0
      %v1423 = vunpack.c.l.b16 %v1355
      %v1424 = vunpack.c.l.b16 %v1356
      %v1425 = vunpack.c.l.b16 %v1357
      %v1426 = vunpack.c.l.b16 %v1358
      %v1427 = vunpack.c.l.b16 %v1359
      %v1428 = vunpack.c.l.b16 %v1360
      %v1429 = vunpack.c.l.b16 %v1361
      %v1430 = vunpack.c.l.b16 %v1362
      %v1431 = vunpack.c.l.b16 %v1363
      %v1432 = vunpack.c.l.b16 %v1364
      %v1433 = vunpack.c.l.b16 %v1365
      %v1434 = vunpack.c.l.b16 %v1366
      %v1435 = vunpack.c.l.b16 %v1367
      %v1436 = vunpack.c.l.b16 %v1368
      %v1437 = vunpack.c.l.b16 %v1369
      %v1438 = vunpack.c.l.b16 %v1370
      %v1439 = vunpack.c.l.b16 %v1371
      %v1440 = vunpack.c.l.b16 %v1372
      %v1441 = vunpack.c.l.b16 %v1373
      %v1442 = vunpack.c.l.b16 %v1374
      %v1443 = vunpack.c.l.b16 %v1375
      %v1444 = vunpack.c.l.b16 %v1376
      %v1445 = vunpack.c.l.b16 %v1377
      %v1446 = vunpack.c.l.b16 %v1378
      %v1447 = vunpack.c.l.b16 %v1379
      %v1448 = vunpack.c.l.b16 %v1380
      %v1449 = vunpack.c.l.b16 %v1381
      %v1450 = vunpack.c.l.b16 %v1382
      %v1451 = vunpack.c.l.b16 %v1383
      %v1452 = vunpack.c.l.b16 %v1384
      %v1453 = vunpack.c.l.b16 %v1385
      %v1454 = vunpack.c.l.b16 %v1386
      %v1455 = vpack.c.b16 %v1424, %v1423
      %v1456 = vpack.c.b16 %v1426, %v1425
      %v1457 = vpack.c.b16 %v1428, %v1427
      %v1458 = vpack.c.b16 %v1430, %v1429
      %v1459 = vpack.c.b16 %v1432, %v1431
      %v1460 = vpack.c.b16 %v1434, %v1433
      %v1461 = vpack.c.b16 %v1436, %v1435
      %v1462 = vpack.c.b16 %v1438, %v1437
      %v1463 = vpack.c.b16 %v1440, %v1439
      %v1464 = vpack.c.b16 %v1442, %v1441
      %v1465 = vpack.c.b16 %v1444, %v1443
      %v1466 = vpack.c.b16 %v1446, %v1445
      %v1467 = vpack.c.b16 %v1448, %v1447
      %v1468 = vpack.c.b16 %v1450, %v1449
      %v1469 = vpack.c.b16 %v1452, %v1451
      %v1470 = vpack.c.b16 %v1454, %v1453
      %1487 = vmatpush.bf16.msra.mxu0 %v1462
      %1488 = vmatpush.bf16.msra.mxu0 %v1461
      %1489 = vmatpush.bf16.msra.mxu0 %v1460
      %1490 = vmatpush.bf16.msra.mxu0 %v1459
      %1491 = vmatpush.bf16.msra.mxu0 %v1458
      %1492 = vmatpush.bf16.msra.mxu0 %v1457
      %1493 = vmatpush.bf16.msra.mxu0 %v1456
      %1494 = vmatpush.bf16.msra.mxu0 %v1455
      %1495 = vmatmul.bf16.gmra.mxu0 %v1347
      %v1496 = vpop.f32.mrf.mxu0
      %v1497 = vadd.f32 %v1389, %v1496
      %v1498 = vpop.f32.mrf.mxu0
      %v1499 = vadd.f32 %v1389, %v1498
      %1500 = vmatmul.bf16.gmra.mxu0 %v1349
      %v1501 = vpop.f32.mrf.mxu0
      %v1502 = vadd.f32 %v1389, %v1501
      %v1503 = vpop.f32.mrf.mxu0
      %v1504 = vadd.f32 %v1389, %v1503
      %1505 = vmatmul.bf16.gmra.mxu0 %v1351
      %v1506 = vpop.f32.mrf.mxu0
      %v1507 = vadd.f32 %v1389, %v1506
      %v1508 = vpop.f32.mrf.mxu0
      %v1509 = vadd.f32 %v1389, %v1508
      %1510 = vmatmul.bf16.gmra.mxu0 %v1353
      %v1511 = vpop.f32.mrf.mxu0
      %v1512 = vadd.f32 %v1389, %v1511
      %v1513 = vpop.f32.mrf.mxu0
      %v1514 = vadd.f32 %v1389, %v1513
      %1515 = vdwg.mxu0
      %1516 = vmatpush.bf16.msra.mxu0 %v1470
      %1517 = vmatpush.bf16.msra.mxu0 %v1469
      %1518 = vmatpush.bf16.msra.mxu0 %v1468
      %1519 = vmatpush.bf16.msra.mxu0 %v1467
      %1520 = vmatpush.bf16.msra.mxu0 %v1466
      %1521 = vmatpush.bf16.msra.mxu0 %v1465
      %1522 = vmatpush.bf16.msra.mxu0 %v1464
      %1523 = vmatpush.bf16.msra.mxu0 %v1463
      %1524 = vmatmul.bf16.gmra.mxu0 %v1348
      %v1525 = vpop.f32.mrf.mxu0
      %v1526 = vadd.f32 %v1497, %v1525
      %v1527 = vpop.f32.mrf.mxu0
      %v1528 = vadd.f32 %v1499, %v1527
      %1529 = vmatmul.bf16.gmra.mxu0 %v1350
      %v1530 = vpop.f32.mrf.mxu0
      %v1531 = vadd.f32 %v1502, %v1530
      %v1532 = vpop.f32.mrf.mxu0
      %v1533 = vadd.f32 %v1504, %v1532
      %1534 = vmatmul.bf16.gmra.mxu0 %v1352
      %v1535 = vpop.f32.mrf.mxu0
      %v1536 = vadd.f32 %v1507, %v1535
      %v1537 = vpop.f32.mrf.mxu0
      %v1538 = vadd.f32 %v1509, %v1537
      %1539 = vmatmul.bf16.gmra.mxu0 %v1354
      %v1540 = vpop.f32.mrf.mxu0
      %v1541 = vadd.f32 %v1512, %v1540
      %v1542 = vpop.f32.mrf.mxu0
      %v1543 = vadd.f32 %v1514, %v1542
      %1544 = vdwg.mxu0
      %v1545 = vadd.f32 %v1526, %v491
      %v1546 = vadd.f32 %v1528, %v492
      %v1547 = vadd.f32 %v1531, %v493
      %v1548 = vadd.f32 %v1533, %v494
      %v1549 = vadd.f32 %v1536, %v495
      %v1550 = vadd.f32 %v1538, %v496
      %v1551 = vadd.f32 %v1541, %v497
      %v1552 = vadd.f32 %v1543, %v498
      %1553 = vst [vmem:[%s297] sm:$0xff] %v1545
      %1554 = vst [vmem:[%s297 + $0x8] sm:$0xff] %v1546
      %1555 = vst [vmem:[%s297 + $0x10] sm:$0xff] %v1547
      %1556 = vst [vmem:[%s297 + $0x18] sm:$0xff] %v1548
      %1557 = vst [vmem:[%s297 + $0x20] sm:$0xff] %v1549
      %1558 = vst [vmem:[%s297 + $0x28] sm:$0xff] %v1550
      %1559 = vst [vmem:[%s297 + $0x30] sm:$0xff] %v1551
      %1560 = vst [vmem:[%s297 + $0x38] sm:$0xff] %v1552
      %s1561 = smul.u32 8, %s18
      %p1562 = scmp.lt.s32.totalorder %s1561, 15
      %s1563 = scalar_select %p1562, %s1561, 15
      %s1564 = smul.addr %s1563, 8
      %s1565 = scalar_lea.vmem %s7, %s1564
      // Predicated region
      $region49: #{additive_condition_block.5} parent=47 // pred_check
        %p1566 = pneg %p193
      $region50: #{additive_condition_block.5} parent=47 // pred_check_branch
        %1568 = sbr.rel (%p1566) target = $region52
      $region51: #{additive_condition_block.5} parent=47 // pred_region
        %s1569 = smul.u32 8, %s18
      $region52: #{additive_condition_block.5} parent=47 // pred_fallthru
        _
    $region48: #{additive_condition_block.5} parent=5 // pred_fallthru
      _
    %p1570 = scmp.le.s32.totalorder 2, %s13
    // Predicated region
    $region53: #{additive_condition_block.5} parent=5 // pred_check
      %p1571 = pneg %p1570
    $region54: #{additive_condition_block.5} parent=5 // pred_check_branch
      %1573 = sbr.rel (%p1571) target = $region56
    $region55: #{additive_condition_block.5} parent=5 // pred_region
      %s1574 = ssub.s32 %s13, 2
      // Predicated region
      $region57: #{additive_condition_block.5} parent=55 // pred_check
        %p1575 = pneg %p199
      $region58: #{additive_condition_block.5} parent=55 // pred_check_branch
        %1577 = sbr.rel (%p1575) target = $region60
      $region59: #{additive_condition_block.5} parent=55 // pred_region
        %s1578 = smul.u32 8, %s19
        %p1579 = scmp.lt.s32.totalorder %s1578, 15
        %s1580 = scalar_select %p1579, %s1578, 15
        %s1581 = smul.addr %s1580, 8
        %s1582 = scalar_lea.vmem %s7, %s1581
      $region60: #{additive_condition_block.5} parent=55 // pred_fallthru
        _
    $region56: #{additive_condition_block.5} parent=5 // pred_fallthru
      _
  $region6: #{additive_condition_block.5} parent=0 // loop_footer
    %s17 = sadd.s32 1, %s13
  $region7: #{additive_condition_block.5} parent=0 // loop_footer_branch
    %12 = sbr.rel target = $region3
  $region8: #{additive_condition_block.5} parent=0 // loop_exit
    _

// kernel: additive_condition_block.6
$region0: #{additive_condition_block.6}
  #allocation0 [shape = 'u32[]', space=smem, size = 0x4, offset = 0x4, fixed_abs, tag = 'smem constant byte address 0x4 - core index']
  #allocation1 [shape = 'u32[72,128]{1,0:T(1,128)}', space=vmem, size = 0x9000, scoped, tag = 'internal scratch']
  %s0 = inlined_call_operand.vmem [shape: f32[128,128], index: 0, kind: input, shape index: {}]
  %s1 = inlined_call_operand.vmem [shape: f32[1,128], index: 1, kind: input, shape index: {}]
  %s2 = inlined_call_operand.vmem [shape: f32[1,128], index: 2, kind: input, shape index: {}]
  %s3 = inlined_call_operand.vmem [shape: bf16[128,768], index: 3, kind: input, shape index: {}]
  %s4 = inlined_call_operand.hbm [shape: bf16[256,128], index: 4, kind: input, shape index: {}]
  %s5 = inlined_call_operand.vmem [shape: f32[1,128], index: 5, kind: input, shape index: {}]
  %s6 = inlined_call_operand.vmem [shape: f32[128,128], index: 6, kind: output, shape index: {}]
  %s7 = sld [smem:[#allocation0]]
  $region61: #{additive_condition_block.6} parent=0
    _
  %s9 = ssub.s32 1, %s7
  %s10 = scalar_select 0, %s9, %s7
  $region1: #{additive_condition_block.6} parent=0
    #allocation2 [shape = 'u8[65536]{0}', space=vmem, size = 0x10000, scoped, tag = 'input window, operand 4, single buffered']
    #allocation3 [shape = 's32[2]{0}', space=sflag, size = 0x8, scoped, tag = 'scoped memory for additive_condition_block.6']
    %11 = vsyncpa [#allocation3], 0
    loop: start=0, step=1, limit=4
    $region2: #{additive_condition_block.6} parent=1 // loop_pre_header
      _
    $region3: #{additive_condition_block.6} parent=1 // loop_header
      %s13 = sphi 0, %s17
      %p14 = scmp.ge.s32.totalorder %s13, 4
      %s23 = sphi 0, %s25
      %s26 = sphi 0, %s23
      %s27 = sphi 0, %s26
      %s43 = sphi 0, %s27
      %s47 = sphi 0, %s47
      %s49 = sphi 0, %s47
      %s50 = sphi 0, %s49
      %s64 = sphi 0, %s50
      %s68 = sphi 0, %s68
      %s70 = sphi 0, %s68
      %s71 = sphi 0, %s70
      %s85 = sphi 0, %s71
      %s89 = sphi 0, %s89
      %s91 = sphi 0, %s89
      %s92 = sphi 0, %s91
      %s106 = sphi 0, %s92
      %s110 = sphi 0, %s110
      %s112 = sphi 0, %s110
      %s113 = sphi 0, %s112
      %s127 = sphi 0, %s113
      %s131 = sphi 0, %s131
      %s133 = sphi 0, %s131
      %s134 = sphi 0, %s133
      %s148 = sphi 0, %s134
      %s154 = sphi 0, %s156
      %s157 = sphi 0, %s154
      %s158 = sphi 0, %s157
      %s174 = sphi 0, %s158
    $region4: #{additive_condition_block.6} parent=1 // loop_header_branch
      %16 = sbr.rel (%p14) target = $region8
    $region5: #{additive_condition_block.6} parent=1 // loop_body
      %s18 = ssub.s32 %s13, 1
      %s19 = ssub.s32 %s13, 2
      %s20 = sadd.s32 %s13, 1
      %s21 = ssub.s32 %s13, %s20
      %p22 = scmp.eq.s32.totalorder %s21, 0
      %s24 = sadd.s32 %s23, 1
      %s25 = scalar_select %p22, %s23, %s24
      %p28 = pneg %p22
      %p29 = scmp.eq.s32.totalorder %s13, 1
      %p30 = por %p28, %p29
      %p31 = scmp.ne.s32.totalorder %s23, %s26
      %p32 = scmp.eq.s32.totalorder %s13, 0
      %p33 = por %p31, %p32
      %p34 = scmp.ne.s32.totalorder %s23, %s26
      %p35 = scmp.eq.s32.totalorder %s18, 1
      %p36 = por %p34, %p35
      %p37 = scmp.ne.s32.totalorder %s26, %s27
      %p38 = scmp.eq.s32.totalorder %s18, 0
      %p39 = por %p37, %p38
      %p40 = scmp.ne.s32.totalorder %s26, %s27
      %p41 = scmp.eq.s32.totalorder %s19, 1
      %p42 = por %p40, %p41
      %p44 = scmp.ne.s32.totalorder %s27, %s43
      %p45 = scmp.eq.s32.totalorder %s19, 0
      %p46 = por %p44, %p45
      %s48 = sadd.s32 %s47, 1
      %p51 = scmp.eq.s32.totalorder %s13, 1
      %p52 = scmp.ne.s32.totalorder %s47, %s49
      %p53 = scmp.eq.s32.totalorder %s13, 0
      %p54 = por %p52, %p53
      %p55 = scmp.ne.s32.totalorder %s47, %s49
      %p56 = scmp.eq.s32.totalorder %s18, 1
      %p57 = por %p55, %p56
      %p58 = scmp.ne.s32.totalorder %s49, %s50
      %p59 = scmp.eq.s32.totalorder %s18, 0
      %p60 = por %p58, %p59
      %p61 = scmp.ne.s32.totalorder %s49, %s50
      %p62 = scmp.eq.s32.totalorder %s19, 1
      %p63 = por %p61, %p62
      %p65 = scmp.ne.s32.totalorder %s50, %s64
      %p66 = scmp.eq.s32.totalorder %s19, 0
      %p67 = por %p65, %p66
      %s69 = sadd.s32 %s68, 1
      %p72 = scmp.eq.s32.totalorder %s13, 1
      %p73 = scmp.ne.s32.totalorder %s68, %s70
      %p74 = scmp.eq.s32.totalorder %s13, 0
      %p75 = por %p73, %p74
      %p76 = scmp.ne.s32.totalorder %s68, %s70
      %p77 = scmp.eq.s32.totalorder %s18, 1
      %p78 = por %p76, %p77
      %p79 = scmp.ne.s32.totalorder %s70, %s71
      %p80 = scmp.eq.s32.totalorder %s18, 0
      %p81 = por %p79, %p80
      %p82 = scmp.ne.s32.totalorder %s70, %s71
      %p83 = scmp.eq.s32.totalorder %s19, 1
      %p84 = por %p82, %p83
      %p86 = scmp.ne.s32.totalorder %s71, %s85
      %p87 = scmp.eq.s32.totalorder %s19, 0
      %p88 = por %p86, %p87
      %s90 = sadd.s32 %s89, 1
      %p93 = scmp.eq.s32.totalorder %s13, 1
      %p94 = scmp.ne.s32.totalorder %s89, %s91
      %p95 = scmp.eq.s32.totalorder %s13, 0
      %p96 = por %p94, %p95
      %p97 = scmp.ne.s32.totalorder %s89, %s91
      %p98 = scmp.eq.s32.totalorder %s18, 1
      %p99 = por %p97, %p98
      %p100 = scmp.ne.s32.totalorder %s91, %s92
      %p101 = scmp.eq.s32.totalorder %s18, 0
      %p102 = por %p100, %p101
      %p103 = scmp.ne.s32.totalorder %s91, %s92
      %p104 = scmp.eq.s32.totalorder %s19, 1
      %p105 = por %p103, %p104
      %p107 = scmp.ne.s32.totalorder %s92, %s106
      %p108 = scmp.eq.s32.totalorder %s19, 0
      %p109 = por %p107, %p108
      %s111 = sadd.s32 %s110, 1
      %p114 = scmp.eq.s32.totalorder %s13, 1
      %p115 = scmp.ne.s32.totalorder %s110, %s112
      %p116 = scmp.eq.s32.totalorder %s13, 0
      %p117 = por %p115, %p116
      %p118 = scmp.ne.s32.totalorder %s110, %s112
      %p119 = scmp.eq.s32.totalorder %s18, 1
      %p120 = por %p118, %p119
      %p121 = scmp.ne.s32.totalorder %s112, %s113
      %p122 = scmp.eq.s32.totalorder %s18, 0
      %p123 = por %p121, %p122
      %p124 = scmp.ne.s32.totalorder %s112, %s113
      %p125 = scmp.eq.s32.totalorder %s19, 1
      %p126 = por %p124, %p125
      %p128 = scmp.ne.s32.totalorder %s113, %s127
      %p129 = scmp.eq.s32.totalorder %s19, 0
      %p130 = por %p128, %p129
      %s132 = sadd.s32 %s131, 1
      %p135 = scmp.eq.s32.totalorder %s13, 1
      %p136 = scmp.ne.s32.totalorder %s131, %s133
      %p137 = scmp.eq.s32.totalorder %s13, 0
      %p138 = por %p136, %p137
      %p139 = scmp.ne.s32.totalorder %s131, %s133
      %p140 = scmp.eq.s32.totalorder %s18, 1
      %p141 = por %p139, %p140
      %p142 = scmp.ne.s32.totalorder %s133, %s134
      %p143 = scmp.eq.s32.totalorder %s18, 0
      %p144 = por %p142, %p143
      %p145 = scmp.ne.s32.totalorder %s133, %s134
      %p146 = scmp.eq.s32.totalorder %s19, 1
      %p147 = por %p145, %p146
      %p149 = scmp.ne.s32.totalorder %s134, %s148
      %p150 = scmp.eq.s32.totalorder %s19, 0
      %p151 = por %p149, %p150
      %s152 = ssub.s32 %s13, %s20
      %p153 = scmp.eq.s32.totalorder %s152, 0
      %s155 = sadd.s32 %s154, 1
      %s156 = scalar_select %p153, %s154, %s155
      %p159 = pneg %p153
      %p160 = scmp.eq.s32.totalorder %s13, 1
      %p161 = por %p159, %p160
      %p162 = scmp.ne.s32.totalorder %s154, %s157
      %p163 = scmp.eq.s32.totalorder %s13, 0
      %p164 = por %p162, %p163
      %p165 = scmp.ne.s32.totalorder %s154, %s157
      %p166 = scmp.eq.s32.totalorder %s18, 1
      %p167 = por %p165, %p166
      %p168 = scmp.ne.s32.totalorder %s157, %s158
      %p169 = scmp.eq.s32.totalorder %s18, 0
      %p170 = por %p168, %p169
      %p171 = scmp.ne.s32.totalorder %s157, %s158
      %p172 = scmp.eq.s32.totalorder %s19, 1
      %p173 = por %p171, %p172
      %p175 = scmp.ne.s32.totalorder %s158, %s174
      %p176 = scmp.eq.s32.totalorder %s19, 0
      %p177 = por %p175, %p176
      %p178 = scmp.le.s32.totalorder 1, %s13
      %p179 = scmp.lt.s32.totalorder %s13, 3
      %p180 = pnand %p178, %p179
      %p181 = pneg %p180
      // Predicated region
      $region9: #{additive_condition_block.6} parent=5 // pred_check
        _
      $region10: #{additive_condition_block.6} parent=5 // pred_check_branch
        %183 = sbr.rel (%p180) target = $region12
      $region11: #{additive_condition_block.6} parent=5 // pred_region
        %s184 = ssub.s32 %s13, 1
        // Predicated region
        $region13: #{additive_condition_block.6} parent=11 // pred_check
          %p185 = pneg %p60
        $region14: #{additive_condition_block.6} parent=11 // pred_check_branch
          %187 = sbr.rel (%p185) target = $region16
        $region15: #{additive_condition_block.6} parent=11 // pred_region
          _
        $region16: #{additive_condition_block.6} parent=11 // pred_fallthru
          _
        // Predicated region
        $region17: #{additive_condition_block.6} parent=11 // pred_check
          %p188 = pneg %p81
        $region18: #{additive_condition_block.6} parent=11 // pred_check_branch
          %190 = sbr.rel (%p188) target = $region20
        $region19: #{additive_condition_block.6} parent=11 // pred_region
          _
        $region20: #{additive_condition_block.6} parent=11 // pred_fallthru
          _
        // Predicated region
        $region21: #{additive_condition_block.6} parent=11 // pred_check
          %p191 = pneg %p102
        $region22: #{additive_condition_block.6} parent=11 // pred_check_branch
          %193 = sbr.rel (%p191) target = $region24
        $region23: #{additive_condition_block.6} parent=11 // pred_region
          _
        $region24: #{additive_condition_block.6} parent=11 // pred_fallthru
          _
        // Predicated region
        $region25: #{additive_condition_block.6} parent=11 // pred_check
          %p194 = pneg %p123
        $region26: #{additive_condition_block.6} parent=11 // pred_check_branch
          %196 = sbr.rel (%p194) target = $region28
        $region27: #{additive_condition_block.6} parent=11 // pred_region
          %198 = vsyncadd [#allocation3], 0
          %s199 = sshll.u32 %s4, 4
          %s200 = int_to_ptr.hbm [resolvable:$true] %s199
          %s201 = sshll.u32 [#allocation2], 4
          %s202 = int_to_ptr.vmem [resolvable:$true] %s201
          %207 = dma.hbm_to_vmem [thread:$0]  %s200, 2048, %s202, [#allocation3], 64, 64, 4
        $region28: #{additive_condition_block.6} parent=11 // pred_fallthru
          _
        // Predicated region
        $region29: #{additive_condition_block.6} parent=11 // pred_check
          %p208 = pneg %p144
        $region30: #{additive_condition_block.6} parent=11 // pred_check_branch
          %210 = sbr.rel (%p208) target = $region32
        $region31: #{additive_condition_block.6} parent=11 // pred_region
          _
        $region32: #{additive_condition_block.6} parent=11 // pred_fallthru
          _
      $region12: #{additive_condition_block.6} parent=5 // pred_fallthru
        _
      %p211 = scmp.lt.s32.totalorder %s13, 2
      // Predicated region
      $region33: #{additive_condition_block.6} parent=5 // pred_check
        %p212 = pneg %p211
      $region34: #{additive_condition_block.6} parent=5 // pred_check_branch
        %214 = sbr.rel (%p212) target = $region36
      $region35: #{additive_condition_block.6} parent=5 // pred_region
        // Predicated region
        $region37: #{additive_condition_block.6} parent=35 // pred_check
          %p215 = pneg %p33
        $region38: #{additive_condition_block.6} parent=35 // pred_check_branch
          %217 = sbr.rel (%p215) target = $region40
        $region39: #{additive_condition_block.6} parent=35 // pred_region
          %s218 = smul.u32 8, %s13
          %p219 = scmp.lt.s32.totalorder %s218, 15
          %s220 = scalar_select %p219, %s218, 15
          %s221 = smul.addr %s220, 8
          %s222 = scalar_lea.vmem %s0, %s221
          %s223 = smul.u32 8, %s13
        $region40: #{additive_condition_block.6} parent=35 // pred_fallthru
          _
      $region36: #{additive_condition_block.6} parent=5 // pred_fallthru
        _
      %p224 = scmp.le.s32.totalorder 1, %s13
      %p225 = scmp.lt.s32.totalorder %s13, 3
      %p226 = pnand %p224, %p225
      %p227 = pneg %p226
      // Predicated region
      $region41: #{additive_condition_block.6} parent=5 // pred_check
        _
      $region42: #{additive_condition_block.6} parent=5 // pred_check_branch
        %229 = sbr.rel (%p226) target = $region44
      $region43: #{additive_condition_block.6} parent=5 // pred_region
        %s230 = ssub.s32 %s13, 1
        // Predicated region
        $region45: #{additive_condition_block.6} parent=43 // pred_check
          %p231 = pneg %p123
        $region46: #{additive_condition_block.6} parent=43 // pred_check_branch
          %233 = sbr.rel (%p231) target = $region48
        $region47: #{additive_condition_block.6} parent=43 // pred_region
          %235 = dma.done [#allocation3], 2048
        $region48: #{additive_condition_block.6} parent=43 // pred_fallthru
          _
        %s236 = smul.u32 8, %s18
        %p237 = scmp.lt.s32.totalorder %s236, 15
        %s238 = scalar_select %p237, %s236, 15
        %s239 = smul.addr %s238, 8
        %s240 = scalar_lea.vmem %s0, %s239
        %p241 = pneg %p39
        %p242 = pneg %p36
        %p243 = pneg %p60
        %p244 = pneg %p57
        %p245 = pneg %p81
        %p246 = pneg %p78
        %p247 = pneg %p102
        %p248 = pneg %p99
        %p249 = pneg %p123
        %p250 = pneg %p120
        %p251 = pneg %p144
        %p252 = pneg %p141
        %p253 = pneg %p170
        %p254 = pneg %p167
        %s255 = smul.u32 8, %s18
        %p256 = scmp.lt.s32.totalorder %s255, 15
        %s257 = scalar_select %p256, %s255, 15
        %s258 = smul.addr %s257, 8
        %s259 = scalar_lea.vmem %s6, %s258
        %s260 = smul.u32 8, %s18
        %p261 = scmp.lt.s32.totalorder %s260, 15
        %s262 = scalar_select %p261, %s260, 15
        %s263 = smul.addr %s262, 8
        %s264 = scalar_lea.vmem %s0, %s263
        %s265 = smul.u32 8, %s18
        %s266 = smul.u32 8, %s18
        %p267 = scmp.lt.s32.totalorder %s266, 15
        %s268 = scalar_select %p267, %s266, 15
        %s269 = smul.addr %s268, 8
        %s270 = scalar_lea.vmem %s6, %s269
        %s271 = smul.u32 8, %s18
        %v273 = vld [vmem:[%s264] sm:$0xff]
        %v274 = vld [vmem:[%s264 + $0x8] sm:$0xff]
        %v275 = vld [vmem:[%s264 + $0x10] sm:$0xff]
        %v276 = vld [vmem:[%s264 + $0x18] sm:$0xff]
        %v277 = vld [vmem:[%s264 + $0x20] sm:$0xff]
        %v278 = vld [vmem:[%s264 + $0x28] sm:$0xff]
        %v279 = vld [vmem:[%s264 + $0x30] sm:$0xff]
        %v280 = vld [vmem:[%s264 + $0x38] sm:$0xff]
        %281 = vadd.xlane.f32.xlu0 %v273
        %v282 = vpop.xlane.xlu0 %281
        %283 = vadd.xlane.f32.xlu0 %v274
        %v284 = vpop.xlane.xlu0 %283
        %285 = vadd.xlane.f32.xlu0 %v275
        %v286 = vpop.xlane.xlu0 %285
        %287 = vadd.xlane.f32.xlu0 %v276
        %v288 = vpop.xlane.xlu0 %287
        %289 = vadd.xlane.f32.xlu0 %v277
        %v290 = vpop.xlane.xlu0 %289
        %291 = vadd.xlane.f32.xlu0 %v278
        %v292 = vpop.xlane.xlu0 %291
        %293 = vadd.xlane.f32.xlu0 %v279
        %v294 = vpop.xlane.xlu0 %293
        %295 = vadd.xlane.f32.xlu0 %v280
        %v296 = vpop.xlane.xlu0 %295
        %v297 = vrcp.pop 128.0
        %v298 = vmul.f32 128.0, %v297
        %v299 = vsub.f32 1.0, %v298
        %v300 = vmul.f32 %v297, %v299
        %v301 = vadd.f32 %v297, %v300
        %vm302 = vweird.f32 %v297
        %v303 = vsel %vm302, %v297, %v301
        %v304 = vmul.f32 %v282, %v303
        %v305 = vmul.f32 %v284, %v303
        %v306 = vmul.f32 %v286, %v303
        %v307 = vmul.f32 %v288, %v303
        %v308 = vmul.f32 %v290, %v303
        %v309 = vmul.f32 %v292, %v303
        %v310 = vmul.f32 %v294, %v303
        %v311 = vmul.f32 %v296, %v303
        %v312 = vsub.f32 %v273, %v304
        %v313 = vsub.f32 %v274, %v305
        %v314 = vsub.f32 %v275, %v306
        %v315 = vsub.f32 %v276, %v307
        %v316 = vsub.f32 %v277, %v308
        %v317 = vsub.f32 %v278, %v309
        %v318 = vsub.f32 %v279, %v310
        %v319 = vsub.f32 %v280, %v311
        %v320 = vmul.f32 %v312, %v312
        %v321 = vmul.f32 %v313, %v313
        %v322 = vmul.f32 %v314, %v314
        %v323 = vmul.f32 %v315, %v315
        %v324 = vmul.f32 %v316, %v316
        %v325 = vmul.f32 %v317, %v317
        %v326 = vmul.f32 %v318, %v318
        %v327 = vmul.f32 %v319, %v319
        %328 = vadd.xlane.f32.xlu0 %v320
        %v329 = vpop.xlane.xlu0 %328
        %330 = vadd.xlane.f32.xlu0 %v321
        %v331 = vpop.xlane.xlu0 %330
        %332 = vadd.xlane.f32.xlu0 %v322
        %v333 = vpop.xlane.xlu0 %332
        %334 = vadd.xlane.f32.xlu0 %v323
        %v335 = vpop.xlane.xlu0 %334
        %336 = vadd.xlane.f32.xlu0 %v324
        %v337 = vpop.xlane.xlu0 %336
        %338 = vadd.xlane.f32.xlu0 %v325
        %v339 = vpop.xlane.xlu0 %338
        %340 = vadd.xlane.f32.xlu0 %v326
        %v341 = vpop.xlane.xlu0 %340
        %342 = vadd.xlane.f32.xlu0 %v327
        %v343 = vpop.xlane.xlu0 %342
        %v344 = vmul.f32 %v329, %v303
        %v345 = vmul.f32 %v331, %v303
        %v346 = vmul.f32 %v333, %v303
        %v347 = vmul.f32 %v335, %v303
        %v348 = vmul.f32 %v337, %v303
        %v349 = vmul.f32 %v339, %v303
        %v350 = vmul.f32 %v341, %v303
        %v351 = vmul.f32 %v343, %v303
        %v352 = vadd.f32 %v344, 1e-05
        %v353 = vadd.f32 %v345, 1e-05
        %v354 = vadd.f32 %v346, 1e-05
        %v355 = vadd.f32 %v347, 1e-05
        %v356 = vadd.f32 %v348, 1e-05
        %v357 = vadd.f32 %v349, 1e-05
        %v358 = vadd.f32 %v350, 1e-05
        %v359 = vadd.f32 %v351, 1e-05
        %v360 = vrsqrt.pop %v352
        %v361 = vmul.f32 %v360, %v352
        %v362 = vmul.f32 %v361, %v360
        %v363 = vmul.f32 0.5, %v362
        %v364 = vsub.f32 1.5, %v363
        %v365 = vmul.f32 %v360, %v364
        %vm366 = vweird.f32 %v352
        %vm367 = vweird.f32 %v360
        %vm368 = vmor %vm366, %vm367
        %v369 = vsel %vm368, %v360, %v365
        %v370 = vrsqrt.pop %v353
        %v371 = vmul.f32 %v370, %v353
        %v372 = vmul.f32 %v371, %v370
        %v373 = vmul.f32 0.5, %v372
        %v374 = vsub.f32 1.5, %v373
        %v375 = vmul.f32 %v370, %v374
        %vm376 = vweird.f32 %v353
        %vm377 = vweird.f32 %v370
        %vm378 = vmor %vm376, %vm377
        %v379 = vsel %vm378, %v370, %v375
        %v380 = vrsqrt.pop %v354
        %v381 = vmul.f32 %v380, %v354
        %v382 = vmul.f32 %v381, %v380
        %v383 = vmul.f32 0.5, %v382
        %v384 = vsub.f32 1.5, %v383
        %v385 = vmul.f32 %v380, %v384
        %vm386 = vweird.f32 %v354
        %vm387 = vweird.f32 %v380
        %vm388 = vmor %vm386, %vm387
        %v389 = vsel %vm388, %v380, %v385
        %v390 = vrsqrt.pop %v355
        %v391 = vmul.f32 %v390, %v355
        %v392 = vmul.f32 %v391, %v390
        %v393 = vmul.f32 0.5, %v392
        %v394 = vsub.f32 1.5, %v393
        %v395 = vmul.f32 %v390, %v394
        %vm396 = vweird.f32 %v355
        %vm397 = vweird.f32 %v390
        %vm398 = vmor %vm396, %vm397
        %v399 = vsel %vm398, %v390, %v395
        %v400 = vrsqrt.pop %v356
        %v401 = vmul.f32 %v400, %v356
        %v402 = vmul.f32 %v401, %v400
        %v403 = vmul.f32 0.5, %v402
        %v404 = vsub.f32 1.5, %v403
        %v405 = vmul.f32 %v400, %v404
        %vm406 = vweird.f32 %v356
        %vm407 = vweird.f32 %v400
        %vm408 = vmor %vm406, %vm407
        %v409 = vsel %vm408, %v400, %v405
        %v410 = vrsqrt.pop %v357
        %v411 = vmul.f32 %v410, %v357
        %v412 = vmul.f32 %v411, %v410
        %v413 = vmul.f32 0.5, %v412
        %v414 = vsub.f32 1.5, %v413
        %v415 = vmul.f32 %v410, %v414
        %vm416 = vweird.f32 %v357
        %vm417 = vweird.f32 %v410
        %vm418 = vmor %vm416, %vm417
        %v419 = vsel %vm418, %v410, %v415
        %v420 = vrsqrt.pop %v358
        %v421 = vmul.f32 %v420, %v358
        %v422 = vmul.f32 %v421, %v420
        %v423 = vmul.f32 0.5, %v422
        %v424 = vsub.f32 1.5, %v423
        %v425 = vmul.f32 %v420, %v424
        %vm426 = vweird.f32 %v358
        %vm427 = vweird.f32 %v420
        %vm428 = vmor %vm426, %vm427
        %v429 = vsel %vm428, %v420, %v425
        %v430 = vrsqrt.pop %v359
        %v431 = vmul.f32 %v430, %v359
        %v432 = vmul.f32 %v431, %v430
        %v433 = vmul.f32 0.5, %v432
        %v434 = vsub.f32 1.5, %v433
        %v435 = vmul.f32 %v430, %v434
        %vm436 = vweird.f32 %v359
        %vm437 = vweird.f32 %v430
        %vm438 = vmor %vm436, %vm437
        %v439 = vsel %vm438, %v430, %v435
        %v440 = vmul.f32 %v312, %v369
        %v441 = vmul.f32 %v313, %v379
        %v442 = vmul.f32 %v314, %v389
        %v443 = vmul.f32 %v315, %v399
        %v444 = vmul.f32 %v316, %v409
        %v445 = vmul.f32 %v317, %v419
        %v446 = vmul.f32 %v318, %v429
        %v447 = vmul.f32 %v319, %v439
        %v448 = vld [vmem:[%s1] sm:$0x1]
        %v450 = vperm.slane %v448, 0
        %v452 = vmul.f32 %v440, %v450
        %v453 = vmul.f32 %v441, %v450
        %v454 = vmul.f32 %v442, %v450
        %v455 = vmul.f32 %v443, %v450
        %v456 = vmul.f32 %v444, %v450
        %v457 = vmul.f32 %v445, %v450
        %v458 = vmul.f32 %v446, %v450
        %v459 = vmul.f32 %v447, %v450
        %v460 = vld [vmem:[%s2] sm:$0x1]
        %v462 = vperm.slane %v460, 0
        %v464 = vadd.f32 %v452, %v462
        %v465 = vadd.f32 %v453, %v462
        %v466 = vadd.f32 %v454, %v462
        %v467 = vadd.f32 %v455, %v462
        %v468 = vadd.f32 %v456, %v462
        %v469 = vadd.f32 %v457, %v462
        %v470 = vadd.f32 %v458, %v462
        %v471 = vadd.f32 %v459, %v462
        %v472 = vpack.c.bf16 %v465, %v464
        %v473 = vpack.c.bf16 %v467, %v466
        %v474 = vpack.c.bf16 %v469, %v468
        %v475 = vpack.c.bf16 %v471, %v470
        %v476 = vld [vmem:[%s3] sm:$0xff]
        %v477 = vld [vmem:[%s3 + $0x8] sm:$0xff]
        %v478 = vld [vmem:[%s3 + $0x10] sm:$0xff]
        %v479 = vld [vmem:[%s3 + $0x18] sm:$0xff]
        %v480 = vld [vmem:[%s3 + $0x20] sm:$0xff]
        %v481 = vld [vmem:[%s3 + $0x28] sm:$0xff]
        %v482 = vld [vmem:[%s3 + $0x30] sm:$0xff]
        %v483 = vld [vmem:[%s3 + $0x38] sm:$0xff]
        %v484 = vld [vmem:[%s3 + $0x40] sm:$0xff]
        %v485 = vld [vmem:[%s3 + $0x48] sm:$0xff]
        %v486 = vld [vmem:[%s3 + $0x50] sm:$0xff]
        %v487 = vld [vmem:[%s3 + $0x58] sm:$0xff]
        %v488 = vld [vmem:[%s3 + $0x60] sm:$0xff]
        %v489 = vld [vmem:[%s3 + $0x68] sm:$0xff]
        %v490 = vld [vmem:[%s3 + $0x70] sm:$0xff]
        %v491 = vld [vmem:[%s3 + $0x78] sm:$0xff]
        %v492 = vld [vmem:[%s3 + $0x80] sm:$0xff]
        %v493 = vld [vmem:[%s3 + $0x88] sm:$0xff]
        %v494 = vld [vmem:[%s3 + $0x90] sm:$0xff]
        %v495 = vld [vmem:[%s3 + $0x98] sm:$0xff]
        %v496 = vld [vmem:[%s3 + $0xa0] sm:$0xff]
        %v497 = vld [vmem:[%s3 + $0xa8] sm:$0xff]
        %v498 = vld [vmem:[%s3 + $0xb0] sm:$0xff]
        %v499 = vld [vmem:[%s3 + $0xb8] sm:$0xff]
        %v500 = vld [vmem:[%s3 + $0xc0] sm:$0xff]
        %v501 = vld [vmem:[%s3 + $0xc8] sm:$0xff]
        %v502 = vld [vmem:[%s3 + $0xd0] sm:$0xff]
        %v503 = vld [vmem:[%s3 + $0xd8] sm:$0xff]
        %v504 = vld [vmem:[%s3 + $0xe0] sm:$0xff]
        %v505 = vld [vmem:[%s3 + $0xe8] sm:$0xff]
        %v506 = vld [vmem:[%s3 + $0xf0] sm:$0xff]
        %v507 = vld [vmem:[%s3 + $0xf8] sm:$0xff]
        %v508 = vld [vmem:[%s3 + $0x100] sm:$0xff]
        %v509 = vld [vmem:[%s3 + $0x108] sm:$0xff]
        %v510 = vld [vmem:[%s3 + $0x110] sm:$0xff]
        %v511 = vld [vmem:[%s3 + $0x118] sm:$0xff]
        %v512 = vld [vmem:[%s3 + $0x120] sm:$0xff]
        %v513 = vld [vmem:[%s3 + $0x128] sm:$0xff]
        %v514 = vld [vmem:[%s3 + $0x130] sm:$0xff]
        %v515 = vld [vmem:[%s3 + $0x138] sm:$0xff]
        %v516 = vld [vmem:[%s3 + $0x140] sm:$0xff]
        %v517 = vld [vmem:[%s3 + $0x148] sm:$0xff]
        %v518 = vld [vmem:[%s3 + $0x150] sm:$0xff]
        %v519 = vld [vmem:[%s3 + $0x158] sm:$0xff]
        %v520 = vld [vmem:[%s3 + $0x160] sm:$0xff]
        %v521 = vld [vmem:[%s3 + $0x168] sm:$0xff]
        %v522 = vld [vmem:[%s3 + $0x170] sm:$0xff]
        %v523 = vld [vmem:[%s3 + $0x178] sm:$0xff]
        %v572 = vunpack.c.l.b16 %v476
        %v573 = vunpack.c.h.b16 %v476
        %v574 = vunpack.c.l.b16 %v477
        %v575 = vunpack.c.h.b16 %v477
        %v576 = vunpack.c.l.b16 %v478
        %v577 = vunpack.c.h.b16 %v478
        %v578 = vunpack.c.l.b16 %v479
        %v579 = vunpack.c.h.b16 %v479
        %v580 = vunpack.c.l.b16 %v480
        %v581 = vunpack.c.h.b16 %v480
        %v582 = vunpack.c.l.b16 %v481
        %v583 = vunpack.c.h.b16 %v481
        %v584 = vunpack.c.l.b16 %v482
        %v585 = vunpack.c.h.b16 %v482
        %v586 = vunpack.c.l.b16 %v483
        %v587 = vunpack.c.h.b16 %v483
        %v588 = vunpack.c.l.b16 %v484
        %v589 = vunpack.c.h.b16 %v484
        %v590 = vunpack.c.l.b16 %v485
        %v591 = vunpack.c.h.b16 %v485
        %v592 = vunpack.c.l.b16 %v486
        %v593 = vunpack.c.h.b16 %v486
        %v594 = vunpack.c.l.b16 %v487
        %v595 = vunpack.c.h.b16 %v487
        %v596 = vunpack.c.l.b16 %v488
        %v597 = vunpack.c.h.b16 %v488
        %v598 = vunpack.c.l.b16 %v489
        %v599 = vunpack.c.h.b16 %v489
        %v600 = vunpack.c.l.b16 %v490
        %v601 = vunpack.c.h.b16 %v490
        %v602 = vunpack.c.l.b16 %v491
        %v603 = vunpack.c.h.b16 %v491
        %v604 = vunpack.c.l.b16 %v492
        %v605 = vunpack.c.h.b16 %v492
        %v606 = vunpack.c.l.b16 %v493
        %v607 = vunpack.c.h.b16 %v493
        %v608 = vunpack.c.l.b16 %v494
        %v609 = vunpack.c.h.b16 %v494
        %v610 = vunpack.c.l.b16 %v495
        %v611 = vunpack.c.h.b16 %v495
        %v612 = vunpack.c.l.b16 %v496
        %v613 = vunpack.c.h.b16 %v496
        %v614 = vunpack.c.l.b16 %v497
        %v615 = vunpack.c.h.b16 %v497
        %v616 = vunpack.c.l.b16 %v498
        %v617 = vunpack.c.h.b16 %v498
        %v618 = vunpack.c.l.b16 %v499
        %v619 = vunpack.c.h.b16 %v499
        %v620 = vunpack.c.l.b16 %v500
        %v621 = vunpack.c.h.b16 %v500
        %v622 = vunpack.c.l.b16 %v501
        %v623 = vunpack.c.h.b16 %v501
        %v624 = vunpack.c.l.b16 %v502
        %v625 = vunpack.c.h.b16 %v502
        %v626 = vunpack.c.l.b16 %v503
        %v627 = vunpack.c.h.b16 %v503
        %v628 = vunpack.c.l.b16 %v504
        %v629 = vunpack.c.h.b16 %v504
        %v630 = vunpack.c.l.b16 %v505
        %v631 = vunpack.c.h.b16 %v505
        %v632 = vunpack.c.l.b16 %v506
        %v633 = vunpack.c.h.b16 %v506
        %v634 = vunpack.c.l.b16 %v507
        %v635 = vunpack.c.h.b16 %v507
        %v636 = vunpack.c.l.b16 %v508
        %v637 = vunpack.c.h.b16 %v508
        %v638 = vunpack.c.l.b16 %v509
        %v639 = vunpack.c.h.b16 %v509
        %v640 = vunpack.c.l.b16 %v510
        %v641 = vunpack.c.h.b16 %v510
        %v642 = vunpack.c.l.b16 %v511
        %v643 = vunpack.c.h.b16 %v511
        %v644 = vunpack.c.l.b16 %v512
        %v645 = vunpack.c.h.b16 %v512
        %v646 = vunpack.c.l.b16 %v513
        %v647 = vunpack.c.h.b16 %v513
        %v648 = vunpack.c.l.b16 %v514
        %v649 = vunpack.c.h.b16 %v514
        %v650 = vunpack.c.l.b16 %v515
        %v651 = vunpack.c.h.b16 %v515
        %v652 = vunpack.c.l.b16 %v516
        %v653 = vunpack.c.h.b16 %v516
        %v654 = vunpack.c.l.b16 %v517
        %v655 = vunpack.c.h.b16 %v517
        %v656 = vunpack.c.l.b16 %v518
        %v657 = vunpack.c.h.b16 %v518
        %v658 = vunpack.c.l.b16 %v519
        %v659 = vunpack.c.h.b16 %v519
        %v660 = vunpack.c.l.b16 %v520
        %v661 = vunpack.c.h.b16 %v520
        %v662 = vunpack.c.l.b16 %v521
        %v663 = vunpack.c.h.b16 %v521
        %v664 = vunpack.c.l.b16 %v522
        %v665 = vunpack.c.h.b16 %v522
        %v666 = vunpack.c.l.b16 %v523
        %v667 = vunpack.c.h.b16 %v523
        %v668 = vpack.c.b16 %v578, %v572
        %v669 = vpack.c.b16 %v579, %v573
        %v670 = vpack.c.b16 %v580, %v574
        %v671 = vpack.c.b16 %v581, %v575
        %v672 = vpack.c.b16 %v582, %v576
        %v673 = vpack.c.b16 %v583, %v577
        %v674 = vpack.c.b16 %v590, %v584
        %v675 = vpack.c.b16 %v591, %v585
        %v676 = vpack.c.b16 %v592, %v586
        %v677 = vpack.c.b16 %v593, %v587
        %v678 = vpack.c.b16 %v594, %v588
        %v679 = vpack.c.b16 %v595, %v589
        %v680 = vpack.c.b16 %v602, %v596
        %v681 = vpack.c.b16 %v603, %v597
        %v682 = vpack.c.b16 %v604, %v598
        %v683 = vpack.c.b16 %v605, %v599
        %v684 = vpack.c.b16 %v606, %v600
        %v685 = vpack.c.b16 %v607, %v601
        %v686 = vpack.c.b16 %v614, %v608
        %v687 = vpack.c.b16 %v615, %v609
        %v688 = vpack.c.b16 %v616, %v610
        %v689 = vpack.c.b16 %v617, %v611
        %v690 = vpack.c.b16 %v618, %v612
        %v691 = vpack.c.b16 %v619, %v613
        %v692 = vpack.c.b16 %v626, %v620
        %v693 = vpack.c.b16 %v627, %v621
        %v694 = vpack.c.b16 %v628, %v622
        %v695 = vpack.c.b16 %v629, %v623
        %v696 = vpack.c.b16 %v630, %v624
        %v697 = vpack.c.b16 %v631, %v625
        %v698 = vpack.c.b16 %v638, %v632
        %v699 = vpack.c.b16 %v639, %v633
        %v700 = vpack.c.b16 %v640, %v634
        %v701 = vpack.c.b16 %v641, %v635
        %v702 = vpack.c.b16 %v642, %v636
        %v703 = vpack.c.b16 %v643, %v637
        %v704 = vpack.c.b16 %v650, %v644
        %v705 = vpack.c.b16 %v651, %v645
        %v706 = vpack.c.b16 %v652, %v646
        %v707 = vpack.c.b16 %v653, %v647
        %v708 = vpack.c.b16 %v654, %v648
        %v709 = vpack.c.b16 %v655, %v649
        %v710 = vpack.c.b16 %v662, %v656
        %v711 = vpack.c.b16 %v663, %v657
        %v712 = vpack.c.b16 %v664, %v658
        %v713 = vpack.c.b16 %v665, %v659
        %v714 = vpack.c.b16 %v666, %v660
        %v715 = vpack.c.b16 %v667, %v661
        %764 = vmatpush.bf16.msra.mxu0 %v710
        %765 = vmatpush.bf16.msra.mxu0 %v704
        %766 = vmatpush.bf16.msra.mxu0 %v698
        %767 = vmatpush.bf16.msra.mxu0 %v692
        %768 = vmatpush.bf16.msra.mxu0 %v686
        %769 = vmatpush.bf16.msra.mxu0 %v680
        %770 = vmatpush.bf16.msra.mxu0 %v674
        %771 = vmatpush.bf16.msra.mxu0 %v668
        %772 = vmatmul.bf16.gmra.mxu0 %v472
        %v773 = vpop.f32.mrf.mxu0
        %v774 = vadd.f32 0.0, %v773
        %v775 = vpop.f32.mrf.mxu0
        %v776 = vadd.f32 0.0, %v775
        %777 = vmatmul.bf16.gmra.mxu0 %v473
        %v778 = vpop.f32.mrf.mxu0
        %v779 = vadd.f32 0.0, %v778
        %v780 = vpop.f32.mrf.mxu0
        %v781 = vadd.f32 0.0, %v780
        %782 = vmatmul.bf16.gmra.mxu0 %v474
        %v783 = vpop.f32.mrf.mxu0
        %v784 = vadd.f32 0.0, %v783
        %v785 = vpop.f32.mrf.mxu0
        %v786 = vadd.f32 0.0, %v785
        %787 = vmatmul.bf16.gmra.mxu0 %v475
        %v788 = vpop.f32.mrf.mxu0
        %v789 = vadd.f32 0.0, %v788
        %v790 = vpop.f32.mrf.mxu0
        %v791 = vadd.f32 0.0, %v790
        %792 = vdwg.mxu0
        %793 = vmatpush.bf16.msra.mxu0 %v711
        %794 = vmatpush.bf16.msra.mxu0 %v705
        %795 = vmatpush.bf16.msra.mxu0 %v699
        %796 = vmatpush.bf16.msra.mxu0 %v693
        %797 = vmatpush.bf16.msra.mxu0 %v687
        %798 = vmatpush.bf16.msra.mxu0 %v681
        %799 = vmatpush.bf16.msra.mxu0 %v675
        %800 = vmatpush.bf16.msra.mxu0 %v669
        %801 = vmatmul.bf16.gmra.mxu0 %v472
        %v802 = vpop.f32.mrf.mxu0
        %v803 = vadd.f32 0.0, %v802
        %v804 = vpop.f32.mrf.mxu0
        %v805 = vadd.f32 0.0, %v804
        %806 = vmatmul.bf16.gmra.mxu0 %v473
        %v807 = vpop.f32.mrf.mxu0
        %v808 = vadd.f32 0.0, %v807
        %v809 = vpop.f32.mrf.mxu0
        %v810 = vadd.f32 0.0, %v809
        %811 = vmatmul.bf16.gmra.mxu0 %v474
        %v812 = vpop.f32.mrf.mxu0
        %v813 = vadd.f32 0.0, %v812
        %v814 = vpop.f32.mrf.mxu0
        %v815 = vadd.f32 0.0, %v814
        %816 = vmatmul.bf16.gmra.mxu0 %v475
        %v817 = vpop.f32.mrf.mxu0
        %v818 = vadd.f32 0.0, %v817
        %v819 = vpop.f32.mrf.mxu0
        %v820 = vadd.f32 0.0, %v819
        %821 = vdwg.mxu0
        %822 = vmatpush.bf16.msra.mxu0 %v712
        %823 = vmatpush.bf16.msra.mxu0 %v706
        %824 = vmatpush.bf16.msra.mxu0 %v700
        %825 = vmatpush.bf16.msra.mxu0 %v694
        %826 = vmatpush.bf16.msra.mxu0 %v688
        %827 = vmatpush.bf16.msra.mxu0 %v682
        %828 = vmatpush.bf16.msra.mxu0 %v676
        %829 = vmatpush.bf16.msra.mxu0 %v670
        %830 = vmatmul.bf16.gmra.mxu0 %v472
        %v831 = vpop.f32.mrf.mxu0
        %v832 = vadd.f32 0.0, %v831
        %v833 = vpop.f32.mrf.mxu0
        %v834 = vadd.f32 0.0, %v833
        %835 = vmatmul.bf16.gmra.mxu0 %v473
        %v836 = vpop.f32.mrf.mxu0
        %v837 = vadd.f32 0.0, %v836
        %v838 = vpop.f32.mrf.mxu0
        %v839 = vadd.f32 0.0, %v838
        %840 = vmatmul.bf16.gmra.mxu0 %v474
        %v841 = vpop.f32.mrf.mxu0
        %v842 = vadd.f32 0.0, %v841
        %v843 = vpop.f32.mrf.mxu0
        %v844 = vadd.f32 0.0, %v843
        %845 = vmatmul.bf16.gmra.mxu0 %v475
        %v846 = vpop.f32.mrf.mxu0
        %v847 = vadd.f32 0.0, %v846
        %v848 = vpop.f32.mrf.mxu0
        %v849 = vadd.f32 0.0, %v848
        %850 = vdwg.mxu0
        %851 = vmatpush.bf16.msra.mxu0 %v713
        %852 = vmatpush.bf16.msra.mxu0 %v707
        %853 = vmatpush.bf16.msra.mxu0 %v701
        %854 = vmatpush.bf16.msra.mxu0 %v695
        %855 = vmatpush.bf16.msra.mxu0 %v689
        %856 = vmatpush.bf16.msra.mxu0 %v683
        %857 = vmatpush.bf16.msra.mxu0 %v677
        %858 = vmatpush.bf16.msra.mxu0 %v671
        %859 = vmatmul.bf16.gmra.mxu0 %v472
        %v860 = vpop.f32.mrf.mxu0
        %v861 = vadd.f32 0.0, %v860
        %v862 = vpop.f32.mrf.mxu0
        %v863 = vadd.f32 0.0, %v862
        %864 = vmatmul.bf16.gmra.mxu0 %v473
        %v865 = vpop.f32.mrf.mxu0
        %v866 = vadd.f32 0.0, %v865
        %v867 = vpop.f32.mrf.mxu0
        %v868 = vadd.f32 0.0, %v867
        %869 = vmatmul.bf16.gmra.mxu0 %v474
        %v870 = vpop.f32.mrf.mxu0
        %v871 = vadd.f32 0.0, %v870
        %v872 = vpop.f32.mrf.mxu0
        %v873 = vadd.f32 0.0, %v872
        %874 = vmatmul.bf16.gmra.mxu0 %v475
        %v875 = vpop.f32.mrf.mxu0
        %v876 = vadd.f32 0.0, %v875
        %v877 = vpop.f32.mrf.mxu0
        %v878 = vadd.f32 0.0, %v877
        %879 = vdwg.mxu0
        %880 = vmatpush.bf16.msra.mxu0 %v714
        %881 = vmatpush.bf16.msra.mxu0 %v708
        %882 = vmatpush.bf16.msra.mxu0 %v702
        %883 = vmatpush.bf16.msra.mxu0 %v696
        %884 = vmatpush.bf16.msra.mxu0 %v690
        %885 = vmatpush.bf16.msra.mxu0 %v684
        %886 = vmatpush.bf16.msra.mxu0 %v678
        %887 = vmatpush.bf16.msra.mxu0 %v672
        %888 = vmatmul.bf16.gmra.mxu0 %v472
        %v889 = vpop.f32.mrf.mxu0
        %v890 = vadd.f32 0.0, %v889
        %v891 = vpop.f32.mrf.mxu0
        %v892 = vadd.f32 0.0, %v891
        %893 = vmatmul.bf16.gmra.mxu0 %v473
        %v894 = vpop.f32.mrf.mxu0
        %v895 = vadd.f32 0.0, %v894
        %v896 = vpop.f32.mrf.mxu0
        %v897 = vadd.f32 0.0, %v896
        %898 = vmatmul.bf16.gmra.mxu0 %v474
        %v899 = vpop.f32.mrf.mxu0
        %v900 = vadd.f32 0.0, %v899
        %v901 = vpop.f32.mrf.mxu0
        %v902 = vadd.f32 0.0, %v901
        %903 = vmatmul.bf16.gmra.mxu0 %v475
        %v904 = vpop.f32.mrf.mxu0
        %v905 = vadd.f32 0.0, %v904
        %v906 = vpop.f32.mrf.mxu0
        %v907 = vadd.f32 0.0, %v906
        %908 = vdwg.mxu0
        %909 = vmatpush.bf16.msra.mxu0 %v715
        %910 = vmatpush.bf16.msra.mxu0 %v709
        %911 = vmatpush.bf16.msra.mxu0 %v703
        %912 = vmatpush.bf16.msra.mxu0 %v697
        %913 = vmatpush.bf16.msra.mxu0 %v691
        %914 = vmatpush.bf16.msra.mxu0 %v685
        %915 = vmatpush.bf16.msra.mxu0 %v679
        %916 = vmatpush.bf16.msra.mxu0 %v673
        %917 = vmatmul.bf16.gmra.mxu0 %v472
        %v918 = vpop.f32.mrf.mxu0
        %v919 = vadd.f32 0.0, %v918
        %v920 = vpop.f32.mrf.mxu0
        %v921 = vadd.f32 0.0, %v920
        %922 = vmatmul.bf16.gmra.mxu0 %v473
        %v923 = vpop.f32.mrf.mxu0
        %v924 = vadd.f32 0.0, %v923
        %v925 = vpop.f32.mrf.mxu0
        %v926 = vadd.f32 0.0, %v925
        %927 = vmatmul.bf16.gmra.mxu0 %v474
        %v928 = vpop.f32.mrf.mxu0
        %v929 = vadd.f32 0.0, %v928
        %v930 = vpop.f32.mrf.mxu0
        %v931 = vadd.f32 0.0, %v930
        %932 = vmatmul.bf16.gmra.mxu0 %v475
        %v933 = vpop.f32.mrf.mxu0
        %v934 = vadd.f32 0.0, %v933
        %v935 = vpop.f32.mrf.mxu0
        %v936 = vadd.f32 0.0, %v935
        %937 = vdwg.mxu0
        %v938 = vpack.c.bf16 %v776, %v774
        %v939 = vpack.c.bf16 %v781, %v779
        %v940 = vpack.c.bf16 %v786, %v784
        %v941 = vpack.c.bf16 %v791, %v789
        %v942 = vpack.c.bf16 %v834, %v832
        %v943 = vpack.c.bf16 %v839, %v837
        %v944 = vpack.c.bf16 %v844, %v842
        %v945 = vpack.c.bf16 %v849, %v847
        %v946 = vpack.c.bf16 %v892, %v890
        %v947 = vpack.c.bf16 %v897, %v895
        %v948 = vpack.c.bf16 %v902, %v900
        %v949 = vpack.c.bf16 %v907, %v905
        %950 = vmatpush.bf16.xpose.msra.mxu0 0
        %951 = vmatpush.bf16.xpose.msra.mxu0 0
        %952 = vmatpush.bf16.xpose.msra.mxu0 0
        %953 = vmatpush.bf16.xpose.msra.mxu0 0
        %954 = vmatpush.bf16.xpose.msra.mxu0 %v945
        %955 = vmatpush.bf16.xpose.msra.mxu0 %v944
        %956 = vmatpush.bf16.xpose.msra.mxu0 %v943
        %957 = vmatpush.bf16.xpose.msra.mxu0 %v942
        %958 = vmatmul.bf16.gmra.mxu0 %v938
        %v959 = vpop.f32.mrf.mxu0
        %v960 = vadd.f32 0.0, %v959
        %v961 = vpop.f32.mrf.mxu0
        %v962 = vadd.f32 0.0, %v961
        %963 = vmatmul.bf16.gmra.mxu0 %v939
        %v964 = vpop.f32.mrf.mxu0
        %v965 = vadd.f32 0.0, %v964
        %v966 = vpop.f32.mrf.mxu0
        %v967 = vadd.f32 0.0, %v966
        %968 = vmatmul.bf16.gmra.mxu0 %v940
        %v969 = vpop.f32.mrf.mxu0
        %v970 = vadd.f32 0.0, %v969
        %v971 = vpop.f32.mrf.mxu0
        %v972 = vadd.f32 0.0, %v971
        %973 = vmatmul.bf16.gmra.mxu0 %v941
        %v974 = vpop.f32.mrf.mxu0
        %v975 = vadd.f32 0.0, %v974
        %v976 = vpop.f32.mrf.mxu0
        %v977 = vadd.f32 0.0, %v976
        %978 = vdwg.mxu0
        %vm979 = vcmask 523264
        %v980 = vsel %vm979, %v960, -inf
        %981 = vmax.xlane.f32.xlu0 %v980
        %v982 = vpop.xlane.xlu0 %981
        %v983 = vsel %vm979, %v962, -inf
        %984 = vmax.xlane.f32.xlu0 %v983
        %v985 = vpop.xlane.xlu0 %984
        %v986 = vsel %vm979, %v965, -inf
        %987 = vmax.xlane.f32.xlu0 %v986
        %v988 = vpop.xlane.xlu0 %987
        %v989 = vsel %vm979, %v967, -inf
        %990 = vmax.xlane.f32.xlu0 %v989
        %v991 = vpop.xlane.xlu0 %990
        %v992 = vsel %vm979, %v970, -inf
        %993 = vmax.xlane.f32.xlu0 %v992
        %v994 = vpop.xlane.xlu0 %993
        %v995 = vsel %vm979, %v972, -inf
        %996 = vmax.xlane.f32.xlu0 %v995
        %v997 = vpop.xlane.xlu0 %996
        %v998 = vsel %vm979, %v975, -inf
        %999 = vmax.xlane.f32.xlu0 %v998
        %v1000 = vpop.xlane.xlu0 %999
        %v1001 = vsel %vm979, %v977, -inf
        %1002 = vmax.xlane.f32.xlu0 %v1001
        %v1003 = vpop.xlane.xlu0 %1002
        %v1004 = vsub.f32 %v960, %v982
        %v1005 = vsub.f32 %v962, %v985
        %v1006 = vsub.f32 %v965, %v988
        %v1007 = vsub.f32 %v967, %v991
        %v1008 = vsub.f32 %v970, %v994
        %v1009 = vsub.f32 %v972, %v997
        %v1010 = vsub.f32 %v975, %v1000
        %v1011 = vsub.f32 %v977, %v1003
        %v1012 = vmul.f32 %v1004, 1.442695
        %v1013 = vpow.pop %v1012
        %v1014 = vmul.f32 %v1005, 1.442695
        %v1015 = vpow.pop %v1014
        %v1016 = vmul.f32 %v1006, 1.442695
        %v1017 = vpow.pop %v1016
        %v1018 = vmul.f32 %v1007, 1.442695
        %v1019 = vpow.pop %v1018
        %v1020 = vmul.f32 %v1008, 1.442695
        %v1021 = vpow.pop %v1020
        %v1022 = vmul.f32 %v1009, 1.442695
        %v1023 = vpow.pop %v1022
        %v1024 = vmul.f32 %v1010, 1.442695
        %v1025 = vpow.pop %v1024
        %v1026 = vmul.f32 %v1011, 1.442695
        %v1027 = vpow.pop %v1026
        %v1028 = vsel %vm979, %v1013, 0.0
        %1029 = vadd.xlane.f32.xlu0 %v1028
        %v1030 = vpop.xlane.xlu0 %1029
        %v1031 = vsel %vm979, %v1015, 0.0
        %1032 = vadd.xlane.f32.xlu0 %v1031
        %v1033 = vpop.xlane.xlu0 %1032
        %v1034 = vsel %vm979, %v1017, 0.0
        %1035 = vadd.xlane.f32.xlu0 %v1034
        %v1036 = vpop.xlane.xlu0 %1035
        %v1037 = vsel %vm979, %v1019, 0.0
        %1038 = vadd.xlane.f32.xlu0 %v1037
        %v1039 = vpop.xlane.xlu0 %1038
        %v1040 = vsel %vm979, %v1021, 0.0
        %1041 = vadd.xlane.f32.xlu0 %v1040
        %v1042 = vpop.xlane.xlu0 %1041
        %v1043 = vsel %vm979, %v1023, 0.0
        %1044 = vadd.xlane.f32.xlu0 %v1043
        %v1045 = vpop.xlane.xlu0 %1044
        %v1046 = vsel %vm979, %v1025, 0.0
        %1047 = vadd.xlane.f32.xlu0 %v1046
        %v1048 = vpop.xlane.xlu0 %1047
        %v1049 = vsel %vm979, %v1027, 0.0
        %1050 = vadd.xlane.f32.xlu0 %v1049
        %v1051 = vpop.xlane.xlu0 %1050
        %v1052 = vpack.c.bf16 %v1015, %v1013
        %v1053 = vpack.c.bf16 %v1019, %v1017
        %v1054 = vpack.c.bf16 %v1023, %v1021
        %v1055 = vpack.c.bf16 %v1027, %v1025
        %v1057 = vsel %vm979, %v1052, 0
        %v1060 = vsel %vm979, %v1053, 0
        %v1063 = vsel %vm979, %v1054, 0
        %v1066 = vsel %vm979, %v1055, 0
        %1068 = vmatpush.bf16.msra.mxu0 0
        %1069 = vmatpush.bf16.msra.mxu0 0
        %1070 = vmatpush.bf16.msra.mxu0 0
        %1071 = vmatpush.bf16.msra.mxu0 0
        %1072 = vmatpush.bf16.msra.mxu0 %v949
        %1073 = vmatpush.bf16.msra.mxu0 %v948
        %1074 = vmatpush.bf16.msra.mxu0 %v947
        %1075 = vmatpush.bf16.msra.mxu0 %v946
        %1076 = vmatmul.bf16.gmra.mxu0 %v1057
        %v1077 = vpop.f32.mrf.mxu0
        %v1078 = vadd.f32 0.0, %v1077
        %v1079 = vpop.f32.mrf.mxu0
        %v1080 = vadd.f32 0.0, %v1079
        %1081 = vmatmul.bf16.gmra.mxu0 %v1060
        %v1082 = vpop.f32.mrf.mxu0
        %v1083 = vadd.f32 0.0, %v1082
        %v1084 = vpop.f32.mrf.mxu0
        %v1085 = vadd.f32 0.0, %v1084
        %1086 = vmatmul.bf16.gmra.mxu0 %v1063
        %v1087 = vpop.f32.mrf.mxu0
        %v1088 = vadd.f32 0.0, %v1087
        %v1089 = vpop.f32.mrf.mxu0
        %v1090 = vadd.f32 0.0, %v1089
        %1091 = vmatmul.bf16.gmra.mxu0 %v1066
        %v1092 = vpop.f32.mrf.mxu0
        %v1093 = vadd.f32 0.0, %v1092
        %v1094 = vpop.f32.mrf.mxu0
        %v1095 = vadd.f32 0.0, %v1094
        %1096 = vdwg.mxu0
        %v1097 = vrcp.pop %v1030
        %v1098 = vrcp.pop %v1033
        %v1099 = vrcp.pop %v1036
        %v1100 = vrcp.pop %v1039
        %v1101 = vrcp.pop %v1042
        %v1102 = vrcp.pop %v1045
        %v1103 = vrcp.pop %v1048
        %v1104 = vrcp.pop %v1051
        %v1105 = vmul.f32 %v1078, %v1097
        %v1106 = vmul.f32 %v1080, %v1098
        %v1107 = vmul.f32 %v1083, %v1099
        %v1108 = vmul.f32 %v1085, %v1100
        %v1109 = vmul.f32 %v1088, %v1101
        %v1110 = vmul.f32 %v1090, %v1102
        %v1111 = vmul.f32 %v1093, %v1103
        %v1112 = vmul.f32 %v1095, %v1104
        %v1113 = vpack.c.bf16 %v805, %v803
        %v1114 = vpack.c.bf16 %v810, %v808
        %v1115 = vpack.c.bf16 %v815, %v813
        %v1116 = vpack.c.bf16 %v820, %v818
        %v1117 = vpack.c.bf16 %v863, %v861
        %v1118 = vpack.c.bf16 %v868, %v866
        %v1119 = vpack.c.bf16 %v873, %v871
        %v1120 = vpack.c.bf16 %v878, %v876
        %v1121 = vpack.c.bf16 %v921, %v919
        %v1122 = vpack.c.bf16 %v926, %v924
        %v1123 = vpack.c.bf16 %v931, %v929
        %v1124 = vpack.c.bf16 %v936, %v934
        %1125 = vmatpush.bf16.xpose.msra.mxu0 0
        %1126 = vmatpush.bf16.xpose.msra.mxu0 0
        %1127 = vmatpush.bf16.xpose.msra.mxu0 0
        %1128 = vmatpush.bf16.xpose.msra.mxu0 0
        %1129 = vmatpush.bf16.xpose.msra.mxu0 %v1120
        %1130 = vmatpush.bf16.xpose.msra.mxu0 %v1119
        %1131 = vmatpush.bf16.xpose.msra.mxu0 %v1118
        %1132 = vmatpush.bf16.xpose.msra.mxu0 %v1117
        %1133 = vmatmul.bf16.gmra.mxu0 %v1113
        %v1134 = vpop.f32.mrf.mxu0
        %v1135 = vadd.f32 0.0, %v1134
        %v1136 = vpop.f32.mrf.mxu0
        %v1137 = vadd.f32 0.0, %v1136
        %1138 = vmatmul.bf16.gmra.mxu0 %v1114
        %v1139 = vpop.f32.mrf.mxu0
        %v1140 = vadd.f32 0.0, %v1139
        %v1141 = vpop.f32.mrf.mxu0
        %v1142 = vadd.f32 0.0, %v1141
        %1143 = vmatmul.bf16.gmra.mxu0 %v1115
        %v1144 = vpop.f32.mrf.mxu0
        %v1145 = vadd.f32 0.0, %v1144
        %v1146 = vpop.f32.mrf.mxu0
        %v1147 = vadd.f32 0.0, %v1146
        %1148 = vmatmul.bf16.gmra.mxu0 %v1116
        %v1149 = vpop.f32.mrf.mxu0
        %v1150 = vadd.f32 0.0, %v1149
        %v1151 = vpop.f32.mrf.mxu0
        %v1152 = vadd.f32 0.0, %v1151
        %1153 = vdwg.mxu0
        %v1154 = vsel %vm979, %v1135, -inf
        %1155 = vmax.xlane.f32.xlu0 %v1154
        %v1156 = vpop.xlane.xlu0 %1155
        %v1157 = vsel %vm979, %v1137, -inf
        %1158 = vmax.xlane.f32.xlu0 %v1157
        %v1159 = vpop.xlane.xlu0 %1158
        %v1160 = vsel %vm979, %v1140, -inf
        %1161 = vmax.xlane.f32.xlu0 %v1160
        %v1162 = vpop.xlane.xlu0 %1161
        %v1163 = vsel %vm979, %v1142, -inf
        %1164 = vmax.xlane.f32.xlu0 %v1163
        %v1165 = vpop.xlane.xlu0 %1164
        %v1166 = vsel %vm979, %v1145, -inf
        %1167 = vmax.xlane.f32.xlu0 %v1166
        %v1168 = vpop.xlane.xlu0 %1167
        %v1169 = vsel %vm979, %v1147, -inf
        %1170 = vmax.xlane.f32.xlu0 %v1169
        %v1171 = vpop.xlane.xlu0 %1170
        %v1172 = vsel %vm979, %v1150, -inf
        %1173 = vmax.xlane.f32.xlu0 %v1172
        %v1174 = vpop.xlane.xlu0 %1173
        %v1175 = vsel %vm979, %v1152, -inf
        %1176 = vmax.xlane.f32.xlu0 %v1175
        %v1177 = vpop.xlane.xlu0 %1176
        %v1178 = vsub.f32 %v1135, %v1156
        %v1179 = vsub.f32 %v1137, %v1159
        %v1180 = vsub.f32 %v1140, %v1162
        %v1181 = vsub.f32 %v1142, %v1165
        %v1182 = vsub.f32 %v1145, %v1168
        %v1183 = vsub.f32 %v1147, %v1171
        %v1184 = vsub.f32 %v1150, %v1174
        %v1185 = vsub.f32 %v1152, %v1177
        %v1186 = vmul.f32 %v1178, 1.442695
        %v1187 = vpow.pop %v1186
        %v1188 = vmul.f32 %v1179, 1.442695
        %v1189 = vpow.pop %v1188
        %v1190 = vmul.f32 %v1180, 1.442695
        %v1191 = vpow.pop %v1190
        %v1192 = vmul.f32 %v1181, 1.442695
        %v1193 = vpow.pop %v1192
        %v1194 = vmul.f32 %v1182, 1.442695
        %v1195 = vpow.pop %v1194
        %v1196 = vmul.f32 %v1183, 1.442695
        %v1197 = vpow.pop %v1196
        %v1198 = vmul.f32 %v1184, 1.442695
        %v1199 = vpow.pop %v1198
        %v1200 = vmul.f32 %v1185, 1.442695
        %v1201 = vpow.pop %v1200
        %v1202 = vsel %vm979, %v1187, 0.0
        %1203 = vadd.xlane.f32.xlu0 %v1202
        %v1204 = vpop.xlane.xlu0 %1203
        %v1205 = vsel %vm979, %v1189, 0.0
        %1206 = vadd.xlane.f32.xlu0 %v1205
        %v1207 = vpop.xlane.xlu0 %1206
        %v1208 = vsel %vm979, %v1191, 0.0
        %1209 = vadd.xlane.f32.xlu0 %v1208
        %v1210 = vpop.xlane.xlu0 %1209
        %v1211 = vsel %vm979, %v1193, 0.0
        %1212 = vadd.xlane.f32.xlu0 %v1211
        %v1213 = vpop.xlane.xlu0 %1212
        %v1214 = vsel %vm979, %v1195, 0.0
        %1215 = vadd.xlane.f32.xlu0 %v1214
        %v1216 = vpop.xlane.xlu0 %1215
        %v1217 = vsel %vm979, %v1197, 0.0
        %1218 = vadd.xlane.f32.xlu0 %v1217
        %v1219 = vpop.xlane.xlu0 %1218
        %v1220 = vsel %vm979, %v1199, 0.0
        %1221 = vadd.xlane.f32.xlu0 %v1220
        %v1222 = vpop.xlane.xlu0 %1221
        %v1223 = vsel %vm979, %v1201, 0.0
        %1224 = vadd.xlane.f32.xlu0 %v1223
        %v1225 = vpop.xlane.xlu0 %1224
        %v1226 = vpack.c.bf16 %v1189, %v1187
        %v1227 = vpack.c.bf16 %v1193, %v1191
        %v1228 = vpack.c.bf16 %v1197, %v1195
        %v1229 = vpack.c.bf16 %v1201, %v1199
        %v1231 = vsel %vm979, %v1226, 0
        %v1234 = vsel %vm979, %v1227, 0
        %v1237 = vsel %vm979, %v1228, 0
        %v1240 = vsel %vm979, %v1229, 0
        %1242 = vmatpush.bf16.msra.mxu0 0
        %1243 = vmatpush.bf16.msra.mxu0 0
        %1244 = vmatpush.bf16.msra.mxu0 0
        %1245 = vmatpush.bf16.msra.mxu0 0
        %1246 = vmatpush.bf16.msra.mxu0 %v1124
        %1247 = vmatpush.bf16.msra.mxu0 %v1123
        %1248 = vmatpush.bf16.msra.mxu0 %v1122
        %1249 = vmatpush.bf16.msra.mxu0 %v1121
        %1250 = vmatmul.bf16.gmra.mxu0 %v1231
        %v1251 = vpop.f32.mrf.mxu0
        %v1252 = vadd.f32 0.0, %v1251
        %v1253 = vpop.f32.mrf.mxu0
        %v1254 = vadd.f32 0.0, %v1253
        %1255 = vmatmul.bf16.gmra.mxu0 %v1234
        %v1256 = vpop.f32.mrf.mxu0
        %v1257 = vadd.f32 0.0, %v1256
        %v1258 = vpop.f32.mrf.mxu0
        %v1259 = vadd.f32 0.0, %v1258
        %1260 = vmatmul.bf16.gmra.mxu0 %v1237
        %v1261 = vpop.f32.mrf.mxu0
        %v1262 = vadd.f32 0.0, %v1261
        %v1263 = vpop.f32.mrf.mxu0
        %v1264 = vadd.f32 0.0, %v1263
        %1265 = vmatmul.bf16.gmra.mxu0 %v1240
        %v1266 = vpop.f32.mrf.mxu0
        %v1267 = vadd.f32 0.0, %v1266
        %v1268 = vpop.f32.mrf.mxu0
        %v1269 = vadd.f32 0.0, %v1268
        %1270 = vdwg.mxu0
        %v1271 = vrcp.pop %v1204
        %v1272 = vrcp.pop %v1207
        %v1273 = vrcp.pop %v1210
        %v1274 = vrcp.pop %v1213
        %v1275 = vrcp.pop %v1216
        %v1276 = vrcp.pop %v1219
        %v1277 = vrcp.pop %v1222
        %v1278 = vrcp.pop %v1225
        %v1279 = vmul.f32 %v1252, %v1271
        %v1280 = vmul.f32 %v1254, %v1272
        %v1281 = vmul.f32 %v1257, %v1273
        %v1282 = vmul.f32 %v1259, %v1274
        %v1283 = vmul.f32 %v1262, %v1275
        %v1284 = vmul.f32 %v1264, %v1276
        %v1285 = vmul.f32 %v1267, %v1277
        %v1286 = vmul.f32 %v1269, %v1278
        %v1287 = vpack.c.bf16 %v1106, %v1105
        %v1288 = vpack.c.bf16 %v1280, %v1279
        %v1289 = vpack.c.bf16 %v1108, %v1107
        %v1290 = vpack.c.bf16 %v1282, %v1281
        %v1291 = vpack.c.bf16 %v1110, %v1109
        %v1292 = vpack.c.bf16 %v1284, %v1283
        %v1293 = vpack.c.bf16 %v1112, %v1111
        %v1294 = vpack.c.bf16 %v1286, %v1285
        %v1295 = vld [vmem:[#allocation2] sm:$0xf]
        %v1296 = vld [vmem:[#allocation2 + $0x4] sm:$0xf]
        %v1297 = vld [vmem:[#allocation2 + $0x8] sm:$0xf]
        %v1298 = vld [vmem:[#allocation2 + $0xc] sm:$0xf]
        %v1299 = vld [vmem:[#allocation2 + $0x10] sm:$0xf]
        %v1300 = vld [vmem:[#allocation2 + $0x14] sm:$0xf]
        %v1301 = vld [vmem:[#allocation2 + $0x18] sm:$0xf]
        %v1302 = vld [vmem:[#allocation2 + $0x1c] sm:$0xf]
        %v1303 = vld [vmem:[#allocation2 + $0x20] sm:$0xf]
        %v1304 = vld [vmem:[#allocation2 + $0x24] sm:$0xf]
        %v1305 = vld [vmem:[#allocation2 + $0x28] sm:$0xf]
        %v1306 = vld [vmem:[#allocation2 + $0x2c] sm:$0xf]
        %v1307 = vld [vmem:[#allocation2 + $0x30] sm:$0xf]
        %v1308 = vld [vmem:[#allocation2 + $0x34] sm:$0xf]
        %v1309 = vld [vmem:[#allocation2 + $0x38] sm:$0xf]
        %v1310 = vld [vmem:[#allocation2 + $0x3c] sm:$0xf]
        %v1311 = vld [vmem:[#allocation2 + $0x40] sm:$0xf]
        %v1312 = vld [vmem:[#allocation2 + $0x44] sm:$0xf]
        %v1313 = vld [vmem:[#allocation2 + $0x48] sm:$0xf]
        %v1314 = vld [vmem:[#allocation2 + $0x4c] sm:$0xf]
        %v1315 = vld [vmem:[#allocation2 + $0x50] sm:$0xf]
        %v1316 = vld [vmem:[#allocation2 + $0x54] sm:$0xf]
        %v1317 = vld [vmem:[#allocation2 + $0x58] sm:$0xf]
        %v1318 = vld [vmem:[#allocation2 + $0x5c] sm:$0xf]
        %v1319 = vld [vmem:[#allocation2 + $0x60] sm:$0xf]
        %v1320 = vld [vmem:[#allocation2 + $0x64] sm:$0xf]
        %v1321 = vld [vmem:[#allocation2 + $0x68] sm:$0xf]
        %v1322 = vld [vmem:[#allocation2 + $0x6c] sm:$0xf]
        %v1323 = vld [vmem:[#allocation2 + $0x70] sm:$0xf]
        %v1324 = vld [vmem:[#allocation2 + $0x74] sm:$0xf]
        %v1325 = vld [vmem:[#allocation2 + $0x78] sm:$0xf]
        %v1326 = vld [vmem:[#allocation2 + $0x7c] sm:$0xf]
        %v1327 = vld [vmem:[%s5] sm:$0x1]
        %v1329 = vperm.slane %v1327, 0
        %v1363 = vunpack.c.l.b16 %v1295
        %v1364 = vunpack.c.l.b16 %v1296
        %v1365 = vunpack.c.l.b16 %v1297
        %v1366 = vunpack.c.l.b16 %v1298
        %v1367 = vunpack.c.l.b16 %v1299
        %v1368 = vunpack.c.l.b16 %v1300
        %v1369 = vunpack.c.l.b16 %v1301
        %v1370 = vunpack.c.l.b16 %v1302
        %v1371 = vunpack.c.l.b16 %v1303
        %v1372 = vunpack.c.l.b16 %v1304
        %v1373 = vunpack.c.l.b16 %v1305
        %v1374 = vunpack.c.l.b16 %v1306
        %v1375 = vunpack.c.l.b16 %v1307
        %v1376 = vunpack.c.l.b16 %v1308
        %v1377 = vunpack.c.l.b16 %v1309
        %v1378 = vunpack.c.l.b16 %v1310
        %v1379 = vunpack.c.l.b16 %v1311
        %v1380 = vunpack.c.l.b16 %v1312
        %v1381 = vunpack.c.l.b16 %v1313
        %v1382 = vunpack.c.l.b16 %v1314
        %v1383 = vunpack.c.l.b16 %v1315
        %v1384 = vunpack.c.l.b16 %v1316
        %v1385 = vunpack.c.l.b16 %v1317
        %v1386 = vunpack.c.l.b16 %v1318
        %v1387 = vunpack.c.l.b16 %v1319
        %v1388 = vunpack.c.l.b16 %v1320
        %v1389 = vunpack.c.l.b16 %v1321
        %v1390 = vunpack.c.l.b16 %v1322
        %v1391 = vunpack.c.l.b16 %v1323
        %v1392 = vunpack.c.l.b16 %v1324
        %v1393 = vunpack.c.l.b16 %v1325
        %v1394 = vunpack.c.l.b16 %v1326
        %v1395 = vpack.c.b16 %v1364, %v1363
        %v1396 = vpack.c.b16 %v1366, %v1365
        %v1397 = vpack.c.b16 %v1368, %v1367
        %v1398 = vpack.c.b16 %v1370, %v1369
        %v1399 = vpack.c.b16 %v1372, %v1371
        %v1400 = vpack.c.b16 %v1374, %v1373
        %v1401 = vpack.c.b16 %v1376, %v1375
        %v1402 = vpack.c.b16 %v1378, %v1377
        %v1403 = vpack.c.b16 %v1380, %v1379
        %v1404 = vpack.c.b16 %v1382, %v1381
        %v1405 = vpack.c.b16 %v1384, %v1383
        %v1406 = vpack.c.b16 %v1386, %v1385
        %v1407 = vpack.c.b16 %v1388, %v1387
        %v1408 = vpack.c.b16 %v1390, %v1389
        %v1409 = vpack.c.b16 %v1392, %v1391
        %v1410 = vpack.c.b16 %v1394, %v1393
        %1427 = vmatpush.bf16.msra.mxu0 %v1402
        %1428 = vmatpush.bf16.msra.mxu0 %v1401
        %1429 = vmatpush.bf16.msra.mxu0 %v1400
        %1430 = vmatpush.bf16.msra.mxu0 %v1399
        %1431 = vmatpush.bf16.msra.mxu0 %v1398
        %1432 = vmatpush.bf16.msra.mxu0 %v1397
        %1433 = vmatpush.bf16.msra.mxu0 %v1396
        %1434 = vmatpush.bf16.msra.mxu0 %v1395
        %1435 = vmatmul.bf16.gmra.mxu0 %v1287
        %v1436 = vpop.f32.mrf.mxu0
        %v1437 = vadd.f32 %v1329, %v1436
        %v1438 = vpop.f32.mrf.mxu0
        %v1439 = vadd.f32 %v1329, %v1438
        %1440 = vmatmul.bf16.gmra.mxu0 %v1289
        %v1441 = vpop.f32.mrf.mxu0
        %v1442 = vadd.f32 %v1329, %v1441
        %v1443 = vpop.f32.mrf.mxu0
        %v1444 = vadd.f32 %v1329, %v1443
        %1445 = vmatmul.bf16.gmra.mxu0 %v1291
        %v1446 = vpop.f32.mrf.mxu0
        %v1447 = vadd.f32 %v1329, %v1446
        %v1448 = vpop.f32.mrf.mxu0
        %v1449 = vadd.f32 %v1329, %v1448
        %1450 = vmatmul.bf16.gmra.mxu0 %v1293
        %v1451 = vpop.f32.mrf.mxu0
        %v1452 = vadd.f32 %v1329, %v1451
        %v1453 = vpop.f32.mrf.mxu0
        %v1454 = vadd.f32 %v1329, %v1453
        %1455 = vdwg.mxu0
        %1456 = vmatpush.bf16.msra.mxu0 %v1410
        %1457 = vmatpush.bf16.msra.mxu0 %v1409
        %1458 = vmatpush.bf16.msra.mxu0 %v1408
        %1459 = vmatpush.bf16.msra.mxu0 %v1407
        %1460 = vmatpush.bf16.msra.mxu0 %v1406
        %1461 = vmatpush.bf16.msra.mxu0 %v1405
        %1462 = vmatpush.bf16.msra.mxu0 %v1404
        %1463 = vmatpush.bf16.msra.mxu0 %v1403
        %1464 = vmatmul.bf16.gmra.mxu0 %v1288
        %v1465 = vpop.f32.mrf.mxu0
        %v1466 = vadd.f32 %v1437, %v1465
        %v1467 = vpop.f32.mrf.mxu0
        %v1468 = vadd.f32 %v1439, %v1467
        %1469 = vmatmul.bf16.gmra.mxu0 %v1290
        %v1470 = vpop.f32.mrf.mxu0
        %v1471 = vadd.f32 %v1442, %v1470
        %v1472 = vpop.f32.mrf.mxu0
        %v1473 = vadd.f32 %v1444, %v1472
        %1474 = vmatmul.bf16.gmra.mxu0 %v1292
        %v1475 = vpop.f32.mrf.mxu0
        %v1476 = vadd.f32 %v1447, %v1475
        %v1477 = vpop.f32.mrf.mxu0
        %v1478 = vadd.f32 %v1449, %v1477
        %1479 = vmatmul.bf16.gmra.mxu0 %v1294
        %v1480 = vpop.f32.mrf.mxu0
        %v1481 = vadd.f32 %v1452, %v1480
        %v1482 = vpop.f32.mrf.mxu0
        %v1483 = vadd.f32 %v1454, %v1482
        %1484 = vdwg.mxu0
        %v1485 = vadd.f32 %v1466, %v464
        %v1486 = vadd.f32 %v1468, %v465
        %v1487 = vadd.f32 %v1471, %v466
        %v1488 = vadd.f32 %v1473, %v467
        %v1489 = vadd.f32 %v1476, %v468
        %v1490 = vadd.f32 %v1478, %v469
        %v1491 = vadd.f32 %v1481, %v470
        %v1492 = vadd.f32 %v1483, %v471
        %1493 = vst [vmem:[%s270] sm:$0xff] %v1485
        %1494 = vst [vmem:[%s270 + $0x8] sm:$0xff] %v1486
        %1495 = vst [vmem:[%s270 + $0x10] sm:$0xff] %v1487
        %1496 = vst [vmem:[%s270 + $0x18] sm:$0xff] %v1488
        %1497 = vst [vmem:[%s270 + $0x20] sm:$0xff] %v1489
        %1498 = vst [vmem:[%s270 + $0x28] sm:$0xff] %v1490
        %1499 = vst [vmem:[%s270 + $0x30] sm:$0xff] %v1491
        %1500 = vst [vmem:[%s270 + $0x38] sm:$0xff] %v1492
        %s1501 = smul.u32 8, %s18
        %p1502 = scmp.lt.s32.totalorder %s1501, 15
        %s1503 = scalar_select %p1502, %s1501, 15
        %s1504 = smul.addr %s1503, 8
        %s1505 = scalar_lea.vmem %s6, %s1504
        // Predicated region
        $region49: #{additive_condition_block.6} parent=43 // pred_check
          %p1506 = pneg %p167
        $region50: #{additive_condition_block.6} parent=43 // pred_check_branch
          %1508 = sbr.rel (%p1506) target = $region52
        $region51: #{additive_condition_block.6} parent=43 // pred_region
          %s1509 = smul.u32 8, %s18
        $region52: #{additive_condition_block.6} parent=43 // pred_fallthru
          _
      $region44: #{additive_condition_block.6} parent=5 // pred_fallthru
        _
      %p1510 = scmp.le.s32.totalorder 2, %s13
      // Predicated region
      $region53: #{additive_condition_block.6} parent=5 // pred_check
        %p1511 = pneg %p1510
      $region54: #{additive_condition_block.6} parent=5 // pred_check_branch
        %1513 = sbr.rel (%p1511) target = $region56
      $region55: #{additive_condition_block.6} parent=5 // pred_region
        %s1514 = ssub.s32 %s13, 2
        // Predicated region
        $region57: #{additive_condition_block.6} parent=55 // pred_check
          %p1515 = pneg %p173
        $region58: #{additive_condition_block.6} parent=55 // pred_check_branch
          %1517 = sbr.rel (%p1515) target = $region60
        $region59: #{additive_condition_block.6} parent=55 // pred_region
          %s1518 = smul.u32 8, %s19
          %p1519 = scmp.lt.s32.totalorder %s1518, 15
          %s1520 = scalar_select %p1519, %s1518, 15
          %s1521 = smul.addr %s1520, 8
          %s1522 = scalar_lea.vmem %s6, %s1521
        $region60: #{additive_condition_block.6} parent=55 // pred_fallthru
          _
      $region56: #{additive_condition_block.6} parent=5 // pred_fallthru
        _
    $region6: #{additive_condition_block.6} parent=1 // loop_footer
      %s17 = sadd.s32 1, %s13
    $region7: #{additive_condition_block.6} parent=1 // loop_footer_branch
      %12 = sbr.rel target = $region3
    $region8: #{additive_condition_block.6} parent=1 // loop_exit
      _
    %1523 = vsyncpa [#allocation3], 1
    %s1524 = scalar_lea.sflag [#allocation3], 1
    %1525 = vsyncpa %s1524, 1

// kernel: additive_condition_block.7
$region0: #{additive_condition_block.7}
  #allocation0 [shape = 'u32[]', space=smem, size = 0x4, offset = 0x4, fixed_abs, tag = 'smem constant byte address 0x4 - core index']
  #allocation1 [shape = 'u32[72,128]{1,0:T(1,128)}', space=vmem, size = 0x9000, scoped, tag = 'internal scratch']
  %s0 = inlined_call_operand.vmem [shape: f32[128,128], index: 0, kind: input, shape index: {}]
  %s1 = inlined_call_operand.vmem [shape: f32[1,128], index: 1, kind: input, shape index: {}]
  %s2 = inlined_call_operand.vmem [shape: f32[1,128], index: 2, kind: input, shape index: {}]
  %s3 = inlined_call_operand.hbm [shape: bf16[128,512], index: 3, kind: input, shape index: {}]
  %s4 = inlined_call_operand.vmem [shape: f32[1,512], index: 4, kind: input, shape index: {}]
  %s5 = inlined_call_operand.hbm [shape: bf16[128,512], index: 5, kind: input, shape index: {}]
  %s6 = inlined_call_operand.vmem [shape: f32[1,512], index: 6, kind: input, shape index: {}]
  %s7 = inlined_call_operand.hbm [shape: bf16[512,128], index: 7, kind: input, shape index: {}]
  %s8 = inlined_call_operand.vmem [shape: f32[1,128], index: 8, kind: input, shape index: {}]
  %s9 = inlined_call_operand.hbm [shape: f32[128,128], index: 9, kind: output, shape index: {}]
  %s10 = sld [smem:[#allocation0]]
  $region58: #{additive_condition_block.7} parent=0
    _
  %s12 = ssub.s32 1, %s10
  %s13 = scalar_select 0, %s12, %s10
  $region1: #{additive_condition_block.7} parent=0
    #allocation2 [shape = 'u8[131072]{0}', space=vmem, size = 0x20000, scoped, tag = 'input window, operand 3, single buffered']
    #allocation3 [shape = 's32[1]{0}', space=sflag, size = 0x4, scoped, tag = 'scoped memory for additive_condition_block.7']
    #allocation4 [shape = 's32[1]{0}', space=sflag, size = 0x4, scoped, tag = 'scoped memory for additive_condition_block.7']
    #allocation5 [shape = 'u8[131072]{0}', space=vmem, size = 0x20000, scoped, tag = 'input window, operand 5, single buffered']
    #allocation6 [shape = 's32[1]{0}', space=sflag, size = 0x4, scoped, tag = 'scoped memory for additive_condition_block.7']
    #allocation7 [shape = 'u8[131072]{0}', space=vmem, size = 0x20000, scoped, tag = 'input window, operand 7, single buffered']
    #allocation8 [shape = 'u8[65536]{0}', space=vmem, size = 0x10000, scoped, tag = 'output window, operand 0, single buffered']
    %14 = vsyncpa [#allocation3], 0
    %15 = vsyncpa [#allocation6], 0
    %16 = vsyncpa [#allocation4], 0
    // Predicated region
    $region2: #{additive_condition_block.7} parent=1 // pred_check
      _
    $region3: #{additive_condition_block.7} parent=1 // pred_check_branch
      %18 = sbr.rel (0) target = $region5
    $region4: #{additive_condition_block.7} parent=1 // pred_region
      _
    $region5: #{additive_condition_block.7} parent=1 // pred_fallthru
      _
    // Predicated region
    $region6: #{additive_condition_block.7} parent=1 // pred_check
      _
    $region7: #{additive_condition_block.7} parent=1 // pred_check_branch
      %20 = sbr.rel (0) target = $region9
    $region8: #{additive_condition_block.7} parent=1 // pred_region
      _
    $region9: #{additive_condition_block.7} parent=1 // pred_fallthru
      _
    // Predicated region
    $region10: #{additive_condition_block.7} parent=1 // pred_check
      _
    $region11: #{additive_condition_block.7} parent=1 // pred_check_branch
      %22 = sbr.rel (0) target = $region13
    $region12: #{additive_condition_block.7} parent=1 // pred_region
      _
    $region13: #{additive_condition_block.7} parent=1 // pred_fallthru
      _
    // Predicated region
    $region14: #{additive_condition_block.7} parent=1 // pred_check
      _
    $region15: #{additive_condition_block.7} parent=1 // pred_check_branch
      %24 = sbr.rel (0) target = $region17
    $region16: #{additive_condition_block.7} parent=1 // pred_region
      %26 = vsyncadd [#allocation3], 0
      %s27 = sshll.u32 %s3, 4
      %s28 = int_to_ptr.hbm [resolvable:$true] %s27
      %s29 = sshll.u32 [#allocation2], 4
      %s30 = int_to_ptr.vmem [resolvable:$true] %s29
      %35 = dma.hbm_to_vmem [thread:$0]  %s28, 4096, %s30, [#allocation3], 256, 256, 16
    $region17: #{additive_condition_block.7} parent=1 // pred_fallthru
      _
    // Predicated region
    $region18: #{additive_condition_block.7} parent=1 // pred_check
      _
    $region19: #{additive_condition_block.7} parent=1 // pred_check_branch
      %37 = sbr.rel (0) target = $region21
    $region20: #{additive_condition_block.7} parent=1 // pred_region
      _
    $region21: #{additive_condition_block.7} parent=1 // pred_fallthru
      _
    // Predicated region
    $region22: #{additive_condition_block.7} parent=1 // pred_check
      _
    $region23: #{additive_condition_block.7} parent=1 // pred_check_branch
      %39 = sbr.rel (0) target = $region25
    $region24: #{additive_condition_block.7} parent=1 // pred_region
      %41 = vsyncadd [#allocation6], 0
      %s42 = sshll.u32 %s5, 4
      %s43 = int_to_ptr.hbm [resolvable:$true] %s42
      %s44 = sshll.u32 [#allocation5], 4
      %s45 = int_to_ptr.vmem [resolvable:$true] %s44
      %50 = dma.hbm_to_vmem [thread:$0]  %s43, 4096, %s45, [#allocation6], 256, 256, 16
    $region25: #{additive_condition_block.7} parent=1 // pred_fallthru
      _
    // Predicated region
    $region26: #{additive_condition_block.7} parent=1 // pred_check
      _
    $region27: #{additive_condition_block.7} parent=1 // pred_check_branch
      %52 = sbr.rel (0) target = $region29
    $region28: #{additive_condition_block.7} parent=1 // pred_region
      _
    $region29: #{additive_condition_block.7} parent=1 // pred_fallthru
      _
    // Predicated region
    $region30: #{additive_condition_block.7} parent=1 // pred_check
      _
    $region31: #{additive_condition_block.7} parent=1 // pred_check_branch
      %54 = sbr.rel (0) target = $region33
    $region32: #{additive_condition_block.7} parent=1 // pred_region
      %56 = vsyncadd [#allocation6], 0
      %s57 = sshll.u32 %s7, 4
      %s58 = int_to_ptr.hbm [resolvable:$true] %s57
      %s59 = sshll.u32 [#allocation7], 4
      %s60 = int_to_ptr.vmem [resolvable:$true] %s59
      %65 = dma.hbm_to_vmem [thread:$0]  %s58, 4096, %s60, [#allocation6], 64, 64, 4
    $region33: #{additive_condition_block.7} parent=1 // pred_fallthru
      _
    // Predicated region
    $region34: #{additive_condition_block.7} parent=1 // pred_check
      _
    $region35: #{additive_condition_block.7} parent=1 // pred_check_branch
      %67 = sbr.rel (0) target = $region37
    $region36: #{additive_condition_block.7} parent=1 // pred_region
      _
    $region37: #{additive_condition_block.7} parent=1 // pred_fallthru
      _
    // Predicated region
    $region38: #{additive_condition_block.7} parent=1 // pred_check
      _
    $region39: #{additive_condition_block.7} parent=1 // pred_check_branch
      %69 = sbr.rel (0) target = $region41
    $region40: #{additive_condition_block.7} parent=1 // pred_region
      %71 = dma.done [#allocation3], 4096
    $region41: #{additive_condition_block.7} parent=1 // pred_fallthru
      _
    // Predicated region
    $region42: #{additive_condition_block.7} parent=1 // pred_check
      _
    $region43: #{additive_condition_block.7} parent=1 // pred_check_branch
      %73 = sbr.rel (0) target = $region45
    $region44: #{additive_condition_block.7} parent=1 // pred_region
      %75 = dma.done [#allocation6], 4096
    $region45: #{additive_condition_block.7} parent=1 // pred_fallthru
      _
    // Predicated region
    $region46: #{additive_condition_block.7} parent=1 // pred_check
      _
    $region47: #{additive_condition_block.7} parent=1 // pred_check_branch
      %77 = sbr.rel (0) target = $region49
    $region48: #{additive_condition_block.7} parent=1 // pred_region
      %79 = dma.done [#allocation6], 4096
    $region49: #{additive_condition_block.7} parent=1 // pred_fallthru
      _
    %v80 = vld [vmem:[%s0] sm:$0xff]
    %v81 = vld [vmem:[%s0 + $0x8] sm:$0xff]
    %v82 = vld [vmem:[%s0 + $0x10] sm:$0xff]
    %v83 = vld [vmem:[%s0 + $0x18] sm:$0xff]
    %v84 = vld [vmem:[%s0 + $0x20] sm:$0xff]
    %v85 = vld [vmem:[%s0 + $0x28] sm:$0xff]
    %v86 = vld [vmem:[%s0 + $0x30] sm:$0xff]
    %v87 = vld [vmem:[%s0 + $0x38] sm:$0xff]
    %v88 = vld [vmem:[%s0 + $0x40] sm:$0xff]
    %v89 = vld [vmem:[%s0 + $0x48] sm:$0xff]
    %v90 = vld [vmem:[%s0 + $0x50] sm:$0xff]
    %v91 = vld [vmem:[%s0 + $0x58] sm:$0xff]
    %v92 = vld [vmem:[%s0 + $0x60] sm:$0xff]
    %v93 = vld [vmem:[%s0 + $0x68] sm:$0xff]
    %v94 = vld [vmem:[%s0 + $0x70] sm:$0xff]
    %v95 = vld [vmem:[%s0 + $0x78] sm:$0xff]
    %96 = vadd.xlane.f32.xlu0 %v80
    %v97 = vpop.xlane.xlu0 %96
    %98 = vadd.xlane.f32.xlu0 %v81
    %v99 = vpop.xlane.xlu0 %98
    %100 = vadd.xlane.f32.xlu0 %v82
    %v101 = vpop.xlane.xlu0 %100
    %102 = vadd.xlane.f32.xlu0 %v83
    %v103 = vpop.xlane.xlu0 %102
    %104 = vadd.xlane.f32.xlu0 %v84
    %v105 = vpop.xlane.xlu0 %104
    %106 = vadd.xlane.f32.xlu0 %v85
    %v107 = vpop.xlane.xlu0 %106
    %108 = vadd.xlane.f32.xlu0 %v86
    %v109 = vpop.xlane.xlu0 %108
    %110 = vadd.xlane.f32.xlu0 %v87
    %v111 = vpop.xlane.xlu0 %110
    %112 = vadd.xlane.f32.xlu0 %v88
    %v113 = vpop.xlane.xlu0 %112
    %114 = vadd.xlane.f32.xlu0 %v89
    %v115 = vpop.xlane.xlu0 %114
    %116 = vadd.xlane.f32.xlu0 %v90
    %v117 = vpop.xlane.xlu0 %116
    %118 = vadd.xlane.f32.xlu0 %v91
    %v119 = vpop.xlane.xlu0 %118
    %120 = vadd.xlane.f32.xlu0 %v92
    %v121 = vpop.xlane.xlu0 %120
    %122 = vadd.xlane.f32.xlu0 %v93
    %v123 = vpop.xlane.xlu0 %122
    %124 = vadd.xlane.f32.xlu0 %v94
    %v125 = vpop.xlane.xlu0 %124
    %126 = vadd.xlane.f32.xlu0 %v95
    %v127 = vpop.xlane.xlu0 %126
    %v128 = vrcp.pop 128.0
    %v129 = vmul.f32 128.0, %v128
    %v130 = vsub.f32 1.0, %v129
    %v131 = vmul.f32 %v128, %v130
    %v132 = vadd.f32 %v128, %v131
    %vm133 = vweird.f32 %v128
    %v134 = vsel %vm133, %v128, %v132
    %v135 = vmul.f32 %v97, %v134
    %v136 = vmul.f32 %v99, %v134
    %v137 = vmul.f32 %v101, %v134
    %v138 = vmul.f32 %v103, %v134
    %v139 = vmul.f32 %v105, %v134
    %v140 = vmul.f32 %v107, %v134
    %v141 = vmul.f32 %v109, %v134
    %v142 = vmul.f32 %v111, %v134
    %v143 = vmul.f32 %v113, %v134
    %v144 = vmul.f32 %v115, %v134
    %v145 = vmul.f32 %v117, %v134
    %v146 = vmul.f32 %v119, %v134
    %v147 = vmul.f32 %v121, %v134
    %v148 = vmul.f32 %v123, %v134
    %v149 = vmul.f32 %v125, %v134
    %v150 = vmul.f32 %v127, %v134
    %v151 = vsub.f32 %v80, %v135
    %v152 = vsub.f32 %v81, %v136
    %v153 = vsub.f32 %v82, %v137
    %v154 = vsub.f32 %v83, %v138
    %v155 = vsub.f32 %v84, %v139
    %v156 = vsub.f32 %v85, %v140
    %v157 = vsub.f32 %v86, %v141
    %v158 = vsub.f32 %v87, %v142
    %v159 = vsub.f32 %v88, %v143
    %v160 = vsub.f32 %v89, %v144
    %v161 = vsub.f32 %v90, %v145
    %v162 = vsub.f32 %v91, %v146
    %v163 = vsub.f32 %v92, %v147
    %v164 = vsub.f32 %v93, %v148
    %v165 = vsub.f32 %v94, %v149
    %v166 = vsub.f32 %v95, %v150
    %v167 = vmul.f32 %v151, %v151
    %v168 = vmul.f32 %v152, %v152
    %v169 = vmul.f32 %v153, %v153
    %v170 = vmul.f32 %v154, %v154
    %v171 = vmul.f32 %v155, %v155
    %v172 = vmul.f32 %v156, %v156
    %v173 = vmul.f32 %v157, %v157
    %v174 = vmul.f32 %v158, %v158
    %v175 = vmul.f32 %v159, %v159
    %v176 = vmul.f32 %v160, %v160
    %v177 = vmul.f32 %v161, %v161
    %v178 = vmul.f32 %v162, %v162
    %v179 = vmul.f32 %v163, %v163
    %v180 = vmul.f32 %v164, %v164
    %v181 = vmul.f32 %v165, %v165
    %v182 = vmul.f32 %v166, %v166
    %183 = vadd.xlane.f32.xlu0 %v167
    %v184 = vpop.xlane.xlu0 %183
    %185 = vadd.xlane.f32.xlu0 %v168
    %v186 = vpop.xlane.xlu0 %185
    %187 = vadd.xlane.f32.xlu0 %v169
    %v188 = vpop.xlane.xlu0 %187
    %189 = vadd.xlane.f32.xlu0 %v170
    %v190 = vpop.xlane.xlu0 %189
    %191 = vadd.xlane.f32.xlu0 %v171
    %v192 = vpop.xlane.xlu0 %191
    %193 = vadd.xlane.f32.xlu0 %v172
    %v194 = vpop.xlane.xlu0 %193
    %195 = vadd.xlane.f32.xlu0 %v173
    %v196 = vpop.xlane.xlu0 %195
    %197 = vadd.xlane.f32.xlu0 %v174
    %v198 = vpop.xlane.xlu0 %197
    %199 = vadd.xlane.f32.xlu0 %v175
    %v200 = vpop.xlane.xlu0 %199
    %201 = vadd.xlane.f32.xlu0 %v176
    %v202 = vpop.xlane.xlu0 %201
    %203 = vadd.xlane.f32.xlu0 %v177
    %v204 = vpop.xlane.xlu0 %203
    %205 = vadd.xlane.f32.xlu0 %v178
    %v206 = vpop.xlane.xlu0 %205
    %207 = vadd.xlane.f32.xlu0 %v179
    %v208 = vpop.xlane.xlu0 %207
    %209 = vadd.xlane.f32.xlu0 %v180
    %v210 = vpop.xlane.xlu0 %209
    %211 = vadd.xlane.f32.xlu0 %v181
    %v212 = vpop.xlane.xlu0 %211
    %213 = vadd.xlane.f32.xlu0 %v182
    %v214 = vpop.xlane.xlu0 %213
    %v215 = vmul.f32 %v184, %v134
    %v216 = vmul.f32 %v186, %v134
    %v217 = vmul.f32 %v188, %v134
    %v218 = vmul.f32 %v190, %v134
    %v219 = vmul.f32 %v192, %v134
    %v220 = vmul.f32 %v194, %v134
    %v221 = vmul.f32 %v196, %v134
    %v222 = vmul.f32 %v198, %v134
    %v223 = vmul.f32 %v200, %v134
    %v224 = vmul.f32 %v202, %v134
    %v225 = vmul.f32 %v204, %v134
    %v226 = vmul.f32 %v206, %v134
    %v227 = vmul.f32 %v208, %v134
    %v228 = vmul.f32 %v210, %v134
    %v229 = vmul.f32 %v212, %v134
    %v230 = vmul.f32 %v214, %v134
    %v231 = vadd.f32 %v215, 1e-05
    %v232 = vadd.f32 %v216, 1e-05
    %v233 = vadd.f32 %v217, 1e-05
    %v234 = vadd.f32 %v218, 1e-05
    %v235 = vadd.f32 %v219, 1e-05
    %v236 = vadd.f32 %v220, 1e-05
    %v237 = vadd.f32 %v221, 1e-05
    %v238 = vadd.f32 %v222, 1e-05
    %v239 = vadd.f32 %v223, 1e-05
    %v240 = vadd.f32 %v224, 1e-05
    %v241 = vadd.f32 %v225, 1e-05
    %v242 = vadd.f32 %v226, 1e-05
    %v243 = vadd.f32 %v227, 1e-05
    %v244 = vadd.f32 %v228, 1e-05
    %v245 = vadd.f32 %v229, 1e-05
    %v246 = vadd.f32 %v230, 1e-05
    %v247 = vrsqrt.pop %v231
    %v248 = vmul.f32 %v247, %v231
    %v249 = vmul.f32 %v248, %v247
    %v250 = vmul.f32 0.5, %v249
    %v251 = vsub.f32 1.5, %v250
    %v252 = vmul.f32 %v247, %v251
    %vm253 = vweird.f32 %v231
    %vm254 = vweird.f32 %v247
    %vm255 = vmor %vm253, %vm254
    %v256 = vsel %vm255, %v247, %v252
    %v257 = vrsqrt.pop %v232
    %v258 = vmul.f32 %v257, %v232
    %v259 = vmul.f32 %v258, %v257
    %v260 = vmul.f32 0.5, %v259
    %v261 = vsub.f32 1.5, %v260
    %v262 = vmul.f32 %v257, %v261
    %vm263 = vweird.f32 %v232
    %vm264 = vweird.f32 %v257
    %vm265 = vmor %vm263, %vm264
    %v266 = vsel %vm265, %v257, %v262
    %v267 = vrsqrt.pop %v233
    %v268 = vmul.f32 %v267, %v233
    %v269 = vmul.f32 %v268, %v267
    %v270 = vmul.f32 0.5, %v269
    %v271 = vsub.f32 1.5, %v270
    %v272 = vmul.f32 %v267, %v271
    %vm273 = vweird.f32 %v233
    %vm274 = vweird.f32 %v267
    %vm275 = vmor %vm273, %vm274
    %v276 = vsel %vm275, %v267, %v272
    %v277 = vrsqrt.pop %v234
    %v278 = vmul.f32 %v277, %v234
    %v279 = vmul.f32 %v278, %v277
    %v280 = vmul.f32 0.5, %v279
    %v281 = vsub.f32 1.5, %v280
    %v282 = vmul.f32 %v277, %v281
    %vm283 = vweird.f32 %v234
    %vm284 = vweird.f32 %v277
    %vm285 = vmor %vm283, %vm284
    %v286 = vsel %vm285, %v277, %v282
    %v287 = vrsqrt.pop %v235
    %v288 = vmul.f32 %v287, %v235
    %v289 = vmul.f32 %v288, %v287
    %v290 = vmul.f32 0.5, %v289
    %v291 = vsub.f32 1.5, %v290
    %v292 = vmul.f32 %v287, %v291
    %vm293 = vweird.f32 %v235
    %vm294 = vweird.f32 %v287
    %vm295 = vmor %vm293, %vm294
    %v296 = vsel %vm295, %v287, %v292
    %v297 = vrsqrt.pop %v236
    %v298 = vmul.f32 %v297, %v236
    %v299 = vmul.f32 %v298, %v297
    %v300 = vmul.f32 0.5, %v299
    %v301 = vsub.f32 1.5, %v300
    %v302 = vmul.f32 %v297, %v301
    %vm303 = vweird.f32 %v236
    %vm304 = vweird.f32 %v297
    %vm305 = vmor %vm303, %vm304
    %v306 = vsel %vm305, %v297, %v302
    %v307 = vrsqrt.pop %v237
    %v308 = vmul.f32 %v307, %v237
    %v309 = vmul.f32 %v308, %v307
    %v310 = vmul.f32 0.5, %v309
    %v311 = vsub.f32 1.5, %v310
    %v312 = vmul.f32 %v307, %v311
    %vm313 = vweird.f32 %v237
    %vm314 = vweird.f32 %v307
    %vm315 = vmor %vm313, %vm314
    %v316 = vsel %vm315, %v307, %v312
    %v317 = vrsqrt.pop %v238
    %v318 = vmul.f32 %v317, %v238
    %v319 = vmul.f32 %v318, %v317
    %v320 = vmul.f32 0.5, %v319
    %v321 = vsub.f32 1.5, %v320
    %v322 = vmul.f32 %v317, %v321
    %vm323 = vweird.f32 %v238
    %vm324 = vweird.f32 %v317
    %vm325 = vmor %vm323, %vm324
    %v326 = vsel %vm325, %v317, %v322
    %v327 = vrsqrt.pop %v239
    %v328 = vmul.f32 %v327, %v239
    %v329 = vmul.f32 %v328, %v327
    %v330 = vmul.f32 0.5, %v329
    %v331 = vsub.f32 1.5, %v330
    %v332 = vmul.f32 %v327, %v331
    %vm333 = vweird.f32 %v239
    %vm334 = vweird.f32 %v327
    %vm335 = vmor %vm333, %vm334
    %v336 = vsel %vm335, %v327, %v332
    %v337 = vrsqrt.pop %v240
    %v338 = vmul.f32 %v337, %v240
    %v339 = vmul.f32 %v338, %v337
    %v340 = vmul.f32 0.5, %v339
    %v341 = vsub.f32 1.5, %v340
    %v342 = vmul.f32 %v337, %v341
    %vm343 = vweird.f32 %v240
    %vm344 = vweird.f32 %v337
    %vm345 = vmor %vm343, %vm344
    %v346 = vsel %vm345, %v337, %v342
    %v347 = vrsqrt.pop %v241
    %v348 = vmul.f32 %v347, %v241
    %v349 = vmul.f32 %v348, %v347
    %v350 = vmul.f32 0.5, %v349
    %v351 = vsub.f32 1.5, %v350
    %v352 = vmul.f32 %v347, %v351
    %vm353 = vweird.f32 %v241
    %vm354 = vweird.f32 %v347
    %vm355 = vmor %vm353, %vm354
    %v356 = vsel %vm355, %v347, %v352
    %v357 = vrsqrt.pop %v242
    %v358 = vmul.f32 %v357, %v242
    %v359 = vmul.f32 %v358, %v357
    %v360 = vmul.f32 0.5, %v359
    %v361 = vsub.f32 1.5, %v360
    %v362 = vmul.f32 %v357, %v361
    %vm363 = vweird.f32 %v242
    %vm364 = vweird.f32 %v357
    %vm365 = vmor %vm363, %vm364
    %v366 = vsel %vm365, %v357, %v362
    %v367 = vrsqrt.pop %v243
    %v368 = vmul.f32 %v367, %v243
    %v369 = vmul.f32 %v368, %v367
    %v370 = vmul.f32 0.5, %v369
    %v371 = vsub.f32 1.5, %v370
    %v372 = vmul.f32 %v367, %v371
    %vm373 = vweird.f32 %v243
    %vm374 = vweird.f32 %v367
    %vm375 = vmor %vm373, %vm374
    %v376 = vsel %vm375, %v367, %v372
    %v377 = vrsqrt.pop %v244
    %v378 = vmul.f32 %v377, %v244
    %v379 = vmul.f32 %v378, %v377
    %v380 = vmul.f32 0.5, %v379
    %v381 = vsub.f32 1.5, %v380
    %v382 = vmul.f32 %v377, %v381
    %vm383 = vweird.f32 %v244
    %vm384 = vweird.f32 %v377
    %vm385 = vmor %vm383, %vm384
    %v386 = vsel %vm385, %v377, %v382
    %v387 = vrsqrt.pop %v245
    %v388 = vmul.f32 %v387, %v245
    %v389 = vmul.f32 %v388, %v387
    %v390 = vmul.f32 0.5, %v389
    %v391 = vsub.f32 1.5, %v390
    %v392 = vmul.f32 %v387, %v391
    %vm393 = vweird.f32 %v245
    %vm394 = vweird.f32 %v387
    %vm395 = vmor %vm393, %vm394
    %v396 = vsel %vm395, %v387, %v392
    %v397 = vrsqrt.pop %v246
    %v398 = vmul.f32 %v397, %v246
    %v399 = vmul.f32 %v398, %v397
    %v400 = vmul.f32 0.5, %v399
    %v401 = vsub.f32 1.5, %v400
    %v402 = vmul.f32 %v397, %v401
    %vm403 = vweird.f32 %v246
    %vm404 = vweird.f32 %v397
    %vm405 = vmor %vm403, %vm404
    %v406 = vsel %vm405, %v397, %v402
    %v407 = vmul.f32 %v151, %v256
    %v408 = vmul.f32 %v152, %v266
    %v409 = vmul.f32 %v153, %v276
    %v410 = vmul.f32 %v154, %v286
    %v411 = vmul.f32 %v155, %v296
    %v412 = vmul.f32 %v156, %v306
    %v413 = vmul.f32 %v157, %v316
    %v414 = vmul.f32 %v158, %v326
    %v415 = vmul.f32 %v159, %v336
    %v416 = vmul.f32 %v160, %v346
    %v417 = vmul.f32 %v161, %v356
    %v418 = vmul.f32 %v162, %v366
    %v419 = vmul.f32 %v163, %v376
    %v420 = vmul.f32 %v164, %v386
    %v421 = vmul.f32 %v165, %v396
    %v422 = vmul.f32 %v166, %v406
    %v423 = vld [vmem:[%s1] sm:$0x1]
    %v425 = vperm.slane %v423, 0
    %v427 = vmul.f32 %v407, %v425
    %v428 = vmul.f32 %v408, %v425
    %v429 = vmul.f32 %v409, %v425
    %v430 = vmul.f32 %v410, %v425
    %v431 = vmul.f32 %v411, %v425
    %v432 = vmul.f32 %v412, %v425
    %v433 = vmul.f32 %v413, %v425
    %v434 = vmul.f32 %v414, %v425
    %v435 = vmul.f32 %v415, %v425
    %v436 = vmul.f32 %v416, %v425
    %v437 = vmul.f32 %v417, %v425
    %v438 = vmul.f32 %v418, %v425
    %v439 = vmul.f32 %v419, %v425
    %v440 = vmul.f32 %v420, %v425
    %v441 = vmul.f32 %v421, %v425
    %v442 = vmul.f32 %v422, %v425
    %v443 = vld [vmem:[%s2] sm:$0x1]
    %v445 = vperm.slane %v443, 0
    %v447 = vadd.f32 %v427, %v445
    %v448 = vadd.f32 %v428, %v445
    %v449 = vadd.f32 %v429, %v445
    %v450 = vadd.f32 %v430, %v445
    %v451 = vadd.f32 %v431, %v445
    %v452 = vadd.f32 %v432, %v445
    %v453 = vadd.f32 %v433, %v445
    %v454 = vadd.f32 %v434, %v445
    %v455 = vadd.f32 %v435, %v445
    %v456 = vadd.f32 %v436, %v445
    %v457 = vadd.f32 %v437, %v445
    %v458 = vadd.f32 %v438, %v445
    %v459 = vadd.f32 %v439, %v445
    %v460 = vadd.f32 %v440, %v445
    %v461 = vadd.f32 %v441, %v445
    %v462 = vadd.f32 %v442, %v445
    %v463 = vpack.c.bf16 %v448, %v447
    %v464 = vpack.c.bf16 %v450, %v449
    %v465 = vpack.c.bf16 %v452, %v451
    %v466 = vpack.c.bf16 %v454, %v453
    %v467 = vpack.c.bf16 %v456, %v455
    %v468 = vpack.c.bf16 %v458, %v457
    %v469 = vpack.c.bf16 %v460, %v459
    %v470 = vpack.c.bf16 %v462, %v461
    %v471 = vld [vmem:[#allocation5] sm:$0xff]
    %v472 = vld [vmem:[#allocation5 + $0x8] sm:$0xff]
    %v473 = vld [vmem:[#allocation5 + $0x10] sm:$0xff]
    %v474 = vld [vmem:[#allocation5 + $0x18] sm:$0xff]
    %v475 = vld [vmem:[#allocation5 + $0x20] sm:$0xff]
    %v476 = vld [vmem:[#allocation5 + $0x28] sm:$0xff]
    %v477 = vld [vmem:[#allocation5 + $0x30] sm:$0xff]
    %v478 = vld [vmem:[#allocation5 + $0x38] sm:$0xff]
    %v479 = vld [vmem:[#allocation5 + $0x40] sm:$0xff]
    %v480 = vld [vmem:[#allocation5 + $0x48] sm:$0xff]
    %v481 = vld [vmem:[#allocation5 + $0x50] sm:$0xff]
    %v482 = vld [vmem:[#allocation5 + $0x58] sm:$0xff]
    %v483 = vld [vmem:[#allocation5 + $0x60] sm:$0xff]
    %v484 = vld [vmem:[#allocation5 + $0x68] sm:$0xff]
    %v485 = vld [vmem:[#allocation5 + $0x70] sm:$0xff]
    %v486 = vld [vmem:[#allocation5 + $0x78] sm:$0xff]
    %v487 = vld [vmem:[#allocation5 + $0x80] sm:$0xff]
    %v488 = vld [vmem:[#allocation5 + $0x88] sm:$0xff]
    %v489 = vld [vmem:[#allocation5 + $0x90] sm:$0xff]
    %v490 = vld [vmem:[#allocation5 + $0x98] sm:$0xff]
    %v491 = vld [vmem:[#allocation5 + $0xa0] sm:$0xff]
    %v492 = vld [vmem:[#allocation5 + $0xa8] sm:$0xff]
    %v493 = vld [vmem:[#allocation5 + $0xb0] sm:$0xff]
    %v494 = vld [vmem:[#allocation5 + $0xb8] sm:$0xff]
    %v495 = vld [vmem:[#allocation5 + $0xc0] sm:$0xff]
    %v496 = vld [vmem:[#allocation5 + $0xc8] sm:$0xff]
    %v497 = vld [vmem:[#allocation5 + $0xd0] sm:$0xff]
    %v498 = vld [vmem:[#allocation5 + $0xd8] sm:$0xff]
    %v499 = vld [vmem:[#allocation5 + $0xe0] sm:$0xff]
    %v500 = vld [vmem:[#allocation5 + $0xe8] sm:$0xff]
    %v501 = vld [vmem:[#allocation5 + $0xf0] sm:$0xff]
    %v502 = vld [vmem:[#allocation5 + $0xf8] sm:$0xff]
    %v503 = vld [vmem:[%s6] sm:$0xf]
    %v505 = vperm.slane %v503, 0
    %v506 = vperm.slane %v503, 1
    %v507 = vperm.slane %v503, 2
    %v508 = vperm.slane %v503, 3
    %v545 = vunpack.c.l.b16 %v471
    %v546 = vunpack.c.h.b16 %v471
    %v547 = vunpack.c.l.b16 %v472
    %v548 = vunpack.c.h.b16 %v472
    %v549 = vunpack.c.l.b16 %v473
    %v550 = vunpack.c.h.b16 %v473
    %v551 = vunpack.c.l.b16 %v474
    %v552 = vunpack.c.h.b16 %v474
    %v553 = vunpack.c.l.b16 %v475
    %v554 = vunpack.c.h.b16 %v475
    %v555 = vunpack.c.l.b16 %v476
    %v556 = vunpack.c.h.b16 %v476
    %v557 = vunpack.c.l.b16 %v477
    %v558 = vunpack.c.h.b16 %v477
    %v559 = vunpack.c.l.b16 %v478
    %v560 = vunpack.c.h.b16 %v478
    %v561 = vunpack.c.l.b16 %v479
    %v562 = vunpack.c.h.b16 %v479
    %v563 = vunpack.c.l.b16 %v480
    %v564 = vunpack.c.h.b16 %v480
    %v565 = vunpack.c.l.b16 %v481
    %v566 = vunpack.c.h.b16 %v481
    %v567 = vunpack.c.l.b16 %v482
    %v568 = vunpack.c.h.b16 %v482
    %v569 = vunpack.c.l.b16 %v483
    %v570 = vunpack.c.h.b16 %v483
    %v571 = vunpack.c.l.b16 %v484
    %v572 = vunpack.c.h.b16 %v484
    %v573 = vunpack.c.l.b16 %v485
    %v574 = vunpack.c.h.b16 %v485
    %v575 = vunpack.c.l.b16 %v486
    %v576 = vunpack.c.h.b16 %v486
    %v577 = vunpack.c.l.b16 %v487
    %v578 = vunpack.c.h.b16 %v487
    %v579 = vunpack.c.l.b16 %v488
    %v580 = vunpack.c.h.b16 %v488
    %v581 = vunpack.c.l.b16 %v489
    %v582 = vunpack.c.h.b16 %v489
    %v583 = vunpack.c.l.b16 %v490
    %v584 = vunpack.c.h.b16 %v490
    %v585 = vunpack.c.l.b16 %v491
    %v586 = vunpack.c.h.b16 %v491
    %v587 = vunpack.c.l.b16 %v492
    %v588 = vunpack.c.h.b16 %v492
    %v589 = vunpack.c.l.b16 %v493
    %v590 = vunpack.c.h.b16 %v493
    %v591 = vunpack.c.l.b16 %v494
    %v592 = vunpack.c.h.b16 %v494
    %v593 = vunpack.c.l.b16 %v495
    %v594 = vunpack.c.h.b16 %v495
    %v595 = vunpack.c.l.b16 %v496
    %v596 = vunpack.c.h.b16 %v496
    %v597 = vunpack.c.l.b16 %v497
    %v598 = vunpack.c.h.b16 %v497
    %v599 = vunpack.c.l.b16 %v498
    %v600 = vunpack.c.h.b16 %v498
    %v601 = vunpack.c.l.b16 %v499
    %v602 = vunpack.c.h.b16 %v499
    %v603 = vunpack.c.l.b16 %v500
    %v604 = vunpack.c.h.b16 %v500
    %v605 = vunpack.c.l.b16 %v501
    %v606 = vunpack.c.h.b16 %v501
    %v607 = vunpack.c.l.b16 %v502
    %v608 = vunpack.c.h.b16 %v502
    %v609 = vpack.c.b16 %v549, %v545
    %v610 = vpack.c.b16 %v550, %v546
    %v611 = vpack.c.b16 %v551, %v547
    %v612 = vpack.c.b16 %v552, %v548
    %v613 = vpack.c.b16 %v557, %v553
    %v614 = vpack.c.b16 %v558, %v554
    %v615 = vpack.c.b16 %v559, %v555
    %v616 = vpack.c.b16 %v560, %v556
    %v617 = vpack.c.b16 %v565, %v561
    %v618 = vpack.c.b16 %v566, %v562
    %v619 = vpack.c.b16 %v567, %v563
    %v620 = vpack.c.b16 %v568, %v564
    %v621 = vpack.c.b16 %v573, %v569
    %v622 = vpack.c.b16 %v574, %v570
    %v623 = vpack.c.b16 %v575, %v571
    %v624 = vpack.c.b16 %v576, %v572
    %v625 = vpack.c.b16 %v581, %v577
    %v626 = vpack.c.b16 %v582, %v578
    %v627 = vpack.c.b16 %v583, %v579
    %v628 = vpack.c.b16 %v584, %v580
    %v629 = vpack.c.b16 %v589, %v585
    %v630 = vpack.c.b16 %v590, %v586
    %v631 = vpack.c.b16 %v591, %v587
    %v632 = vpack.c.b16 %v592, %v588
    %v633 = vpack.c.b16 %v597, %v593
    %v634 = vpack.c.b16 %v598, %v594
    %v635 = vpack.c.b16 %v599, %v595
    %v636 = vpack.c.b16 %v600, %v596
    %v637 = vpack.c.b16 %v605, %v601
    %v638 = vpack.c.b16 %v606, %v602
    %v639 = vpack.c.b16 %v607, %v603
    %v640 = vpack.c.b16 %v608, %v604
    %673 = vmatpush.bf16.msra.mxu0 %v637
    %674 = vmatpush.bf16.msra.mxu0 %v633
    %675 = vmatpush.bf16.msra.mxu0 %v629
    %676 = vmatpush.bf16.msra.mxu0 %v625
    %677 = vmatpush.bf16.msra.mxu0 %v621
    %678 = vmatpush.bf16.msra.mxu0 %v617
    %679 = vmatpush.bf16.msra.mxu0 %v613
    %680 = vmatpush.bf16.msra.mxu0 %v609
    %681 = vmatmul.bf16.gmra.mxu0 %v463
    %v682 = vpop.f32.mrf.mxu0
    %v683 = vadd.f32 %v505, %v682
    %v684 = vpop.f32.mrf.mxu0
    %v685 = vadd.f32 %v505, %v684
    %686 = vmatmul.bf16.gmra.mxu0 %v464
    %v687 = vpop.f32.mrf.mxu0
    %v688 = vadd.f32 %v505, %v687
    %v689 = vpop.f32.mrf.mxu0
    %v690 = vadd.f32 %v505, %v689
    %691 = vmatmul.bf16.gmra.mxu0 %v465
    %v692 = vpop.f32.mrf.mxu0
    %v693 = vadd.f32 %v505, %v692
    %v694 = vpop.f32.mrf.mxu0
    %v695 = vadd.f32 %v505, %v694
    %696 = vmatmul.bf16.gmra.mxu0 %v466
    %v697 = vpop.f32.mrf.mxu0
    %v698 = vadd.f32 %v505, %v697
    %v699 = vpop.f32.mrf.mxu0
    %v700 = vadd.f32 %v505, %v699
    %701 = vmatmul.bf16.gmra.mxu0 %v467
    %v702 = vpop.f32.mrf.mxu0
    %v703 = vadd.f32 %v505, %v702
    %v704 = vpop.f32.mrf.mxu0
    %v705 = vadd.f32 %v505, %v704
    %706 = vmatmul.bf16.gmra.mxu0 %v468
    %v707 = vpop.f32.mrf.mxu0
    %v708 = vadd.f32 %v505, %v707
    %v709 = vpop.f32.mrf.mxu0
    %v710 = vadd.f32 %v505, %v709
    %711 = vmatmul.bf16.gmra.mxu0 %v469
    %v712 = vpop.f32.mrf.mxu0
    %v713 = vadd.f32 %v505, %v712
    %v714 = vpop.f32.mrf.mxu0
    %v715 = vadd.f32 %v505, %v714
    %716 = vmatmul.bf16.gmra.mxu0 %v470
    %v717 = vpop.f32.mrf.mxu0
    %v718 = vadd.f32 %v505, %v717
    %v719 = vpop.f32.mrf.mxu0
    %v720 = vadd.f32 %v505, %v719
    %721 = vdwg.mxu0
    %722 = vmatpush.bf16.msra.mxu0 %v638
    %723 = vmatpush.bf16.msra.mxu0 %v634
    %724 = vmatpush.bf16.msra.mxu0 %v630
    %725 = vmatpush.bf16.msra.mxu0 %v626
    %726 = vmatpush.bf16.msra.mxu0 %v622
    %727 = vmatpush.bf16.msra.mxu0 %v618
    %728 = vmatpush.bf16.msra.mxu0 %v614
    %729 = vmatpush.bf16.msra.mxu0 %v610
    %730 = vmatmul.bf16.gmra.mxu0 %v463
    %v731 = vpop.f32.mrf.mxu0
    %v732 = vadd.f32 %v506, %v731
    %v733 = vpop.f32.mrf.mxu0
    %v734 = vadd.f32 %v506, %v733
    %735 = vmatmul.bf16.gmra.mxu0 %v464
    %v736 = vpop.f32.mrf.mxu0
    %v737 = vadd.f32 %v506, %v736
    %v738 = vpop.f32.mrf.mxu0
    %v739 = vadd.f32 %v506, %v738
    %740 = vmatmul.bf16.gmra.mxu0 %v465
    %v741 = vpop.f32.mrf.mxu0
    %v742 = vadd.f32 %v506, %v741
    %v743 = vpop.f32.mrf.mxu0
    %v744 = vadd.f32 %v506, %v743
    %745 = vmatmul.bf16.gmra.mxu0 %v466
    %v746 = vpop.f32.mrf.mxu0
    %v747 = vadd.f32 %v506, %v746
    %v748 = vpop.f32.mrf.mxu0
    %v749 = vadd.f32 %v506, %v748
    %750 = vmatmul.bf16.gmra.mxu0 %v467
    %v751 = vpop.f32.mrf.mxu0
    %v752 = vadd.f32 %v506, %v751
    %v753 = vpop.f32.mrf.mxu0
    %v754 = vadd.f32 %v506, %v753
    %755 = vmatmul.bf16.gmra.mxu0 %v468
    %v756 = vpop.f32.mrf.mxu0
    %v757 = vadd.f32 %v506, %v756
    %v758 = vpop.f32.mrf.mxu0
    %v759 = vadd.f32 %v506, %v758
    %760 = vmatmul.bf16.gmra.mxu0 %v469
    %v761 = vpop.f32.mrf.mxu0
    %v762 = vadd.f32 %v506, %v761
    %v763 = vpop.f32.mrf.mxu0
    %v764 = vadd.f32 %v506, %v763
    %765 = vmatmul.bf16.gmra.mxu0 %v470
    %v766 = vpop.f32.mrf.mxu0
    %v767 = vadd.f32 %v506, %v766
    %v768 = vpop.f32.mrf.mxu0
    %v769 = vadd.f32 %v506, %v768
    %770 = vdwg.mxu0
    %771 = vmatpush.bf16.msra.mxu0 %v639
    %772 = vmatpush.bf16.msra.mxu0 %v635
    %773 = vmatpush.bf16.msra.mxu0 %v631
    %774 = vmatpush.bf16.msra.mxu0 %v627
    %775 = vmatpush.bf16.msra.mxu0 %v623
    %776 = vmatpush.bf16.msra.mxu0 %v619
    %777 = vmatpush.bf16.msra.mxu0 %v615
    %778 = vmatpush.bf16.msra.mxu0 %v611
    %779 = vmatmul.bf16.gmra.mxu0 %v463
    %v780 = vpop.f32.mrf.mxu0
    %v781 = vadd.f32 %v507, %v780
    %v782 = vpop.f32.mrf.mxu0
    %v783 = vadd.f32 %v507, %v782
    %784 = vmatmul.bf16.gmra.mxu0 %v464
    %v785 = vpop.f32.mrf.mxu0
    %v786 = vadd.f32 %v507, %v785
    %v787 = vpop.f32.mrf.mxu0
    %v788 = vadd.f32 %v507, %v787
    %789 = vmatmul.bf16.gmra.mxu0 %v465
    %v790 = vpop.f32.mrf.mxu0
    %v791 = vadd.f32 %v507, %v790
    %v792 = vpop.f32.mrf.mxu0
    %v793 = vadd.f32 %v507, %v792
    %794 = vmatmul.bf16.gmra.mxu0 %v466
    %v795 = vpop.f32.mrf.mxu0
    %v796 = vadd.f32 %v507, %v795
    %v797 = vpop.f32.mrf.mxu0
    %v798 = vadd.f32 %v507, %v797
    %799 = vmatmul.bf16.gmra.mxu0 %v467
    %v800 = vpop.f32.mrf.mxu0
    %v801 = vadd.f32 %v507, %v800
    %v802 = vpop.f32.mrf.mxu0
    %v803 = vadd.f32 %v507, %v802
    %804 = vmatmul.bf16.gmra.mxu0 %v468
    %v805 = vpop.f32.mrf.mxu0
    %v806 = vadd.f32 %v507, %v805
    %v807 = vpop.f32.mrf.mxu0
    %v808 = vadd.f32 %v507, %v807
    %809 = vmatmul.bf16.gmra.mxu0 %v469
    %v810 = vpop.f32.mrf.mxu0
    %v811 = vadd.f32 %v507, %v810
    %v812 = vpop.f32.mrf.mxu0
    %v813 = vadd.f32 %v507, %v812
    %814 = vmatmul.bf16.gmra.mxu0 %v470
    %v815 = vpop.f32.mrf.mxu0
    %v816 = vadd.f32 %v507, %v815
    %v817 = vpop.f32.mrf.mxu0
    %v818 = vadd.f32 %v507, %v817
    %819 = vdwg.mxu0
    %820 = vmatpush.bf16.msra.mxu0 %v640
    %821 = vmatpush.bf16.msra.mxu0 %v636
    %822 = vmatpush.bf16.msra.mxu0 %v632
    %823 = vmatpush.bf16.msra.mxu0 %v628
    %824 = vmatpush.bf16.msra.mxu0 %v624
    %825 = vmatpush.bf16.msra.mxu0 %v620
    %826 = vmatpush.bf16.msra.mxu0 %v616
    %827 = vmatpush.bf16.msra.mxu0 %v612
    %828 = vmatmul.bf16.gmra.mxu0 %v463
    %v829 = vpop.f32.mrf.mxu0
    %v830 = vadd.f32 %v508, %v829
    %v831 = vpop.f32.mrf.mxu0
    %v832 = vadd.f32 %v508, %v831
    %833 = vmatmul.bf16.gmra.mxu0 %v464
    %v834 = vpop.f32.mrf.mxu0
    %v835 = vadd.f32 %v508, %v834
    %v836 = vpop.f32.mrf.mxu0
    %v837 = vadd.f32 %v508, %v836
    %838 = vmatmul.bf16.gmra.mxu0 %v465
    %v839 = vpop.f32.mrf.mxu0
    %v840 = vadd.f32 %v508, %v839
    %v841 = vpop.f32.mrf.mxu0
    %v842 = vadd.f32 %v508, %v841
    %843 = vmatmul.bf16.gmra.mxu0 %v466
    %v844 = vpop.f32.mrf.mxu0
    %v845 = vadd.f32 %v508, %v844
    %v846 = vpop.f32.mrf.mxu0
    %v847 = vadd.f32 %v508, %v846
    %848 = vmatmul.bf16.gmra.mxu0 %v467
    %v849 = vpop.f32.mrf.mxu0
    %v850 = vadd.f32 %v508, %v849
    %v851 = vpop.f32.mrf.mxu0
    %v852 = vadd.f32 %v508, %v851
    %853 = vmatmul.bf16.gmra.mxu0 %v468
    %v854 = vpop.f32.mrf.mxu0
    %v855 = vadd.f32 %v508, %v854
    %v856 = vpop.f32.mrf.mxu0
    %v857 = vadd.f32 %v508, %v856
    %858 = vmatmul.bf16.gmra.mxu0 %v469
    %v859 = vpop.f32.mrf.mxu0
    %v860 = vadd.f32 %v508, %v859
    %v861 = vpop.f32.mrf.mxu0
    %v862 = vadd.f32 %v508, %v861
    %863 = vmatmul.bf16.gmra.mxu0 %v470
    %v864 = vpop.f32.mrf.mxu0
    %v865 = vadd.f32 %v508, %v864
    %v866 = vpop.f32.mrf.mxu0
    %v867 = vadd.f32 %v508, %v866
    %868 = vdwg.mxu0
    %v869 = vmul.f32 %v683, 0.5
    %v870 = vmul.f32 %v732, 0.5
    %v871 = vmul.f32 %v781, 0.5
    %v872 = vmul.f32 %v830, 0.5
    %v873 = vmul.f32 %v685, 0.5
    %v874 = vmul.f32 %v734, 0.5
    %v875 = vmul.f32 %v783, 0.5
    %v876 = vmul.f32 %v832, 0.5
    %v877 = vmul.f32 %v688, 0.5
    %v878 = vmul.f32 %v737, 0.5
    %v879 = vmul.f32 %v786, 0.5
    %v880 = vmul.f32 %v835, 0.5
    %v881 = vmul.f32 %v690, 0.5
    %v882 = vmul.f32 %v739, 0.5
    %v883 = vmul.f32 %v788, 0.5
    %v884 = vmul.f32 %v837, 0.5
    %v885 = vmul.f32 %v693, 0.5
    %v886 = vmul.f32 %v742, 0.5
    %v887 = vmul.f32 %v791, 0.5
    %v888 = vmul.f32 %v840, 0.5
    %v889 = vmul.f32 %v695, 0.5
    %v890 = vmul.f32 %v744, 0.5
    %v891 = vmul.f32 %v793, 0.5
    %v892 = vmul.f32 %v842, 0.5
    %v893 = vmul.f32 %v698, 0.5
    %v894 = vmul.f32 %v747, 0.5
    %v895 = vmul.f32 %v796, 0.5
    %v896 = vmul.f32 %v845, 0.5
    %v897 = vmul.f32 %v700, 0.5
    %v898 = vmul.f32 %v749, 0.5
    %v899 = vmul.f32 %v798, 0.5
    %v900 = vmul.f32 %v847, 0.5
    %v901 = vmul.f32 %v703, 0.5
    %v902 = vmul.f32 %v752, 0.5
    %v903 = vmul.f32 %v801, 0.5
    %v904 = vmul.f32 %v850, 0.5
    %v905 = vmul.f32 %v705, 0.5
    %v906 = vmul.f32 %v754, 0.5
    %v907 = vmul.f32 %v803, 0.5
    %v908 = vmul.f32 %v852, 0.5
    %v909 = vmul.f32 %v708, 0.5
    %v910 = vmul.f32 %v757, 0.5
    %v911 = vmul.f32 %v806, 0.5
    %v912 = vmul.f32 %v855, 0.5
    %v913 = vmul.f32 %v710, 0.5
    %v914 = vmul.f32 %v759, 0.5
    %v915 = vmul.f32 %v808, 0.5
    %v916 = vmul.f32 %v857, 0.5
    %v917 = vmul.f32 %v713, 0.5
    %v918 = vmul.f32 %v762, 0.5
    %v919 = vmul.f32 %v811, 0.5
    %v920 = vmul.f32 %v860, 0.5
    %v921 = vmul.f32 %v715, 0.5
    %v922 = vmul.f32 %v764, 0.5
    %v923 = vmul.f32 %v813, 0.5
    %v924 = vmul.f32 %v862, 0.5
    %v925 = vmul.f32 %v718, 0.5
    %v926 = vmul.f32 %v767, 0.5
    %v927 = vmul.f32 %v816, 0.5
    %v928 = vmul.f32 %v865, 0.5
    %v929 = vmul.f32 %v720, 0.5
    %v930 = vmul.f32 %v769, 0.5
    %v931 = vmul.f32 %v818, 0.5
    %v932 = vmul.f32 %v867, 0.5
    %v933 = vmul.f32 %v683, 0.70710677
    %v934 = vmul.f32 %v732, 0.70710677
    %v935 = vmul.f32 %v781, 0.70710677
    %v936 = vmul.f32 %v830, 0.70710677
    %v937 = vmul.f32 %v685, 0.70710677
    %v938 = vmul.f32 %v734, 0.70710677
    %v939 = vmul.f32 %v783, 0.70710677
    %v940 = vmul.f32 %v832, 0.70710677
    %v941 = vmul.f32 %v688, 0.70710677
    %v942 = vmul.f32 %v737, 0.70710677
    %v943 = vmul.f32 %v786, 0.70710677
    %v944 = vmul.f32 %v835, 0.70710677
    %v945 = vmul.f32 %v690, 0.70710677
    %v946 = vmul.f32 %v739, 0.70710677
    %v947 = vmul.f32 %v788, 0.70710677
    %v948 = vmul.f32 %v837, 0.70710677
    %v949 = vmul.f32 %v693, 0.70710677
    %v950 = vmul.f32 %v742, 0.70710677
    %v951 = vmul.f32 %v791, 0.70710677
    %v952 = vmul.f32 %v840, 0.70710677
    %v953 = vmul.f32 %v695, 0.70710677
    %v954 = vmul.f32 %v744, 0.70710677
    %v955 = vmul.f32 %v793, 0.70710677
    %v956 = vmul.f32 %v842, 0.70710677
    %v957 = vmul.f32 %v698, 0.70710677
    %v958 = vmul.f32 %v747, 0.70710677
    %v959 = vmul.f32 %v796, 0.70710677
    %v960 = vmul.f32 %v845, 0.70710677
    %v961 = vmul.f32 %v700, 0.70710677
    %v962 = vmul.f32 %v749, 0.70710677
    %v963 = vmul.f32 %v798, 0.70710677
    %v964 = vmul.f32 %v847, 0.70710677
    %v965 = vmul.f32 %v703, 0.70710677
    %v966 = vmul.f32 %v752, 0.70710677
    %v967 = vmul.f32 %v801, 0.70710677
    %v968 = vmul.f32 %v850, 0.70710677
    %v969 = vmul.f32 %v705, 0.70710677
    %v970 = vmul.f32 %v754, 0.70710677
    %v971 = vmul.f32 %v803, 0.70710677
    %v972 = vmul.f32 %v852, 0.70710677
    %v973 = vmul.f32 %v708, 0.70710677
    %v974 = vmul.f32 %v757, 0.70710677
    %v975 = vmul.f32 %v806, 0.70710677
    %v976 = vmul.f32 %v855, 0.70710677
    %v977 = vmul.f32 %v710, 0.70710677
    %v978 = vmul.f32 %v759, 0.70710677
    %v979 = vmul.f32 %v808, 0.70710677
    %v980 = vmul.f32 %v857, 0.70710677
    %v981 = vmul.f32 %v713, 0.70710677
    %v982 = vmul.f32 %v762, 0.70710677
    %v983 = vmul.f32 %v811, 0.70710677
    %v984 = vmul.f32 %v860, 0.70710677
    %v985 = vmul.f32 %v715, 0.70710677
    %v986 = vmul.f32 %v764, 0.70710677
    %v987 = vmul.f32 %v813, 0.70710677
    %v988 = vmul.f32 %v862, 0.70710677
    %v989 = vmul.f32 %v718, 0.70710677
    %v990 = vmul.f32 %v767, 0.70710677
    %v991 = vmul.f32 %v816, 0.70710677
    %v992 = vmul.f32 %v865, 0.70710677
    %v993 = vmul.f32 %v720, 0.70710677
    %v994 = vmul.f32 %v769, 0.70710677
    %v995 = vmul.f32 %v818, 0.70710677
    %v996 = vmul.f32 %v867, 0.70710677
    %v997 = vand.u32 2147483647, %v933
    %v998 = vand.u32 2147483647, %v934
    %v999 = vand.u32 2147483647, %v935
    %v1000 = vand.u32 2147483647, %v936
    %v1001 = vand.u32 2147483647, %v937
    %v1002 = vand.u32 2147483647, %v938
    %v1003 = vand.u32 2147483647, %v939
    %v1004 = vand.u32 2147483647, %v940
    %v1005 = vand.u32 2147483647, %v941
    %v1006 = vand.u32 2147483647, %v942
    %v1007 = vand.u32 2147483647, %v943
    %v1008 = vand.u32 2147483647, %v944
    %v1009 = vand.u32 2147483647, %v945
    %v1010 = vand.u32 2147483647, %v946
    %v1011 = vand.u32 2147483647, %v947
    %v1012 = vand.u32 2147483647, %v948
    %v1013 = vand.u32 2147483647, %v949
    %v1014 = vand.u32 2147483647, %v950
    %v1015 = vand.u32 2147483647, %v951
    %v1016 = vand.u32 2147483647, %v952
    %v1017 = vand.u32 2147483647, %v953
    %v1018 = vand.u32 2147483647, %v954
    %v1019 = vand.u32 2147483647, %v955
    %v1020 = vand.u32 2147483647, %v956
    %v1021 = vand.u32 2147483647, %v957
    %v1022 = vand.u32 2147483647, %v958
    %v1023 = vand.u32 2147483647, %v959
    %v1024 = vand.u32 2147483647, %v960
    %v1025 = vand.u32 2147483647, %v961
    %v1026 = vand.u32 2147483647, %v962
    %v1027 = vand.u32 2147483647, %v963
    %v1028 = vand.u32 2147483647, %v964
    %v1029 = vand.u32 2147483647, %v965
    %v1030 = vand.u32 2147483647, %v966
    %v1031 = vand.u32 2147483647, %v967
    %v1032 = vand.u32 2147483647, %v968
    %v1033 = vand.u32 2147483647, %v969
    %v1034 = vand.u32 2147483647, %v970
    %v1035 = vand.u32 2147483647, %v971
    %v1036 = vand.u32 2147483647, %v972
    %v1037 = vand.u32 2147483647, %v973
    %v1038 = vand.u32 2147483647, %v974
    %v1039 = vand.u32 2147483647, %v975
    %v1040 = vand.u32 2147483647, %v976
    %v1041 = vand.u32 2147483647, %v977
    %v1042 = vand.u32 2147483647, %v978
    %v1043 = vand.u32 2147483647, %v979
    %v1044 = vand.u32 2147483647, %v980
    %v1045 = vand.u32 2147483647, %v981
    %v1046 = vand.u32 2147483647, %v982
    %v1047 = vand.u32 2147483647, %v983
    %v1048 = vand.u32 2147483647, %v984
    %v1049 = vand.u32 2147483647, %v985
    %v1050 = vand.u32 2147483647, %v986
    %v1051 = vand.u32 2147483647, %v987
    %v1052 = vand.u32 2147483647, %v988
    %v1053 = vand.u32 2147483647, %v989
    %v1054 = vand.u32 2147483647, %v990
    %v1055 = vand.u32 2147483647, %v991
    %v1056 = vand.u32 2147483647, %v992
    %v1057 = vand.u32 2147483647, %v993
    %v1058 = vand.u32 2147483647, %v994
    %v1059 = vand.u32 2147483647, %v995
    %v1060 = vand.u32 2147483647, %v996
    %v1061 = vmul.f32 %v997, 0.3275911
    %v1062 = vmul.f32 %v998, 0.3275911
    %v1063 = vmul.f32 %v999, 0.3275911
    %v1064 = vmul.f32 %v1000, 0.3275911
    %v1065 = vmul.f32 %v1001, 0.3275911
    %v1066 = vmul.f32 %v1002, 0.3275911
    %v1067 = vmul.f32 %v1003, 0.3275911
    %v1068 = vmul.f32 %v1004, 0.3275911
    %v1069 = vmul.f32 %v1005, 0.3275911
    %v1070 = vmul.f32 %v1006, 0.3275911
    %v1071 = vmul.f32 %v1007, 0.3275911
    %v1072 = vmul.f32 %v1008, 0.3275911
    %v1073 = vmul.f32 %v1009, 0.3275911
    %v1074 = vmul.f32 %v1010, 0.3275911
    %v1075 = vmul.f32 %v1011, 0.3275911
    %v1076 = vmul.f32 %v1012, 0.3275911
    %v1077 = vmul.f32 %v1013, 0.3275911
    %v1078 = vmul.f32 %v1014, 0.3275911
    %v1079 = vmul.f32 %v1015, 0.3275911
    %v1080 = vmul.f32 %v1016, 0.3275911
    %v1081 = vmul.f32 %v1017, 0.3275911
    %v1082 = vmul.f32 %v1018, 0.3275911
    %v1083 = vmul.f32 %v1019, 0.3275911
    %v1084 = vmul.f32 %v1020, 0.3275911
    %v1085 = vmul.f32 %v1021, 0.3275911
    %v1086 = vmul.f32 %v1022, 0.3275911
    %v1087 = vmul.f32 %v1023, 0.3275911
    %v1088 = vmul.f32 %v1024, 0.3275911
    %v1089 = vmul.f32 %v1025, 0.3275911
    %v1090 = vmul.f32 %v1026, 0.3275911
    %v1091 = vmul.f32 %v1027, 0.3275911
    %v1092 = vmul.f32 %v1028, 0.3275911
    %v1093 = vmul.f32 %v1029, 0.3275911
    %v1094 = vmul.f32 %v1030, 0.3275911
    %v1095 = vmul.f32 %v1031, 0.3275911
    %v1096 = vmul.f32 %v1032, 0.3275911
    %v1097 = vmul.f32 %v1033, 0.3275911
    %v1098 = vmul.f32 %v1034, 0.3275911
    %v1099 = vmul.f32 %v1035, 0.3275911
    %v1100 = vmul.f32 %v1036, 0.3275911
    %v1101 = vmul.f32 %v1037, 0.3275911
    %v1102 = vmul.f32 %v1038, 0.3275911
    %v1103 = vmul.f32 %v1039, 0.3275911
    %v1104 = vmul.f32 %v1040, 0.3275911
    %v1105 = vmul.f32 %v1041, 0.3275911
    %v1106 = vmul.f32 %v1042, 0.3275911
    %v1107 = vmul.f32 %v1043, 0.3275911
    %v1108 = vmul.f32 %v1044, 0.3275911
    %v1109 = vmul.f32 %v1045, 0.3275911
    %v1110 = vmul.f32 %v1046, 0.3275911
    %v1111 = vmul.f32 %v1047, 0.3275911
    %v1112 = vmul.f32 %v1048, 0.3275911
    %v1113 = vmul.f32 %v1049, 0.3275911
    %v1114 = vmul.f32 %v1050, 0.3275911
    %v1115 = vmul.f32 %v1051, 0.3275911
    %v1116 = vmul.f32 %v1052, 0.3275911
    %v1117 = vmul.f32 %v1053, 0.3275911
    %v1118 = vmul.f32 %v1054, 0.3275911
    %v1119 = vmul.f32 %v1055, 0.3275911
    %v1120 = vmul.f32 %v1056, 0.3275911
    %v1121 = vmul.f32 %v1057, 0.3275911
    %v1122 = vmul.f32 %v1058, 0.3275911
    %v1123 = vmul.f32 %v1059, 0.3275911
    %v1124 = vmul.f32 %v1060, 0.3275911
    %v1125 = vadd.f32 %v1061, 1.0
    %v1126 = vadd.f32 %v1062, 1.0
    %v1127 = vadd.f32 %v1063, 1.0
    %v1128 = vadd.f32 %v1064, 1.0
    %v1129 = vadd.f32 %v1065, 1.0
    %v1130 = vadd.f32 %v1066, 1.0
    %v1131 = vadd.f32 %v1067, 1.0
    %v1132 = vadd.f32 %v1068, 1.0
    %v1133 = vadd.f32 %v1069, 1.0
    %v1134 = vadd.f32 %v1070, 1.0
    %v1135 = vadd.f32 %v1071, 1.0
    %v1136 = vadd.f32 %v1072, 1.0
    %v1137 = vadd.f32 %v1073, 1.0
    %v1138 = vadd.f32 %v1074, 1.0
    %v1139 = vadd.f32 %v1075, 1.0
    %v1140 = vadd.f32 %v1076, 1.0
    %v1141 = vadd.f32 %v1077, 1.0
    %v1142 = vadd.f32 %v1078, 1.0
    %v1143 = vadd.f32 %v1079, 1.0
    %v1144 = vadd.f32 %v1080, 1.0
    %v1145 = vadd.f32 %v1081, 1.0
    %v1146 = vadd.f32 %v1082, 1.0
    %v1147 = vadd.f32 %v1083, 1.0
    %v1148 = vadd.f32 %v1084, 1.0
    %v1149 = vadd.f32 %v1085, 1.0
    %v1150 = vadd.f32 %v1086, 1.0
    %v1151 = vadd.f32 %v1087, 1.0
    %v1152 = vadd.f32 %v1088, 1.0
    %v1153 = vadd.f32 %v1089, 1.0
    %v1154 = vadd.f32 %v1090, 1.0
    %v1155 = vadd.f32 %v1091, 1.0
    %v1156 = vadd.f32 %v1092, 1.0
    %v1157 = vadd.f32 %v1093, 1.0
    %v1158 = vadd.f32 %v1094, 1.0
    %v1159 = vadd.f32 %v1095, 1.0
    %v1160 = vadd.f32 %v1096, 1.0
    %v1161 = vadd.f32 %v1097, 1.0
    %v1162 = vadd.f32 %v1098, 1.0
    %v1163 = vadd.f32 %v1099, 1.0
    %v1164 = vadd.f32 %v1100, 1.0
    %v1165 = vadd.f32 %v1101, 1.0
    %v1166 = vadd.f32 %v1102, 1.0
    %v1167 = vadd.f32 %v1103, 1.0
    %v1168 = vadd.f32 %v1104, 1.0
    %v1169 = vadd.f32 %v1105, 1.0
    %v1170 = vadd.f32 %v1106, 1.0
    %v1171 = vadd.f32 %v1107, 1.0
    %v1172 = vadd.f32 %v1108, 1.0
    %v1173 = vadd.f32 %v1109, 1.0
    %v1174 = vadd.f32 %v1110, 1.0
    %v1175 = vadd.f32 %v1111, 1.0
    %v1176 = vadd.f32 %v1112, 1.0
    %v1177 = vadd.f32 %v1113, 1.0
    %v1178 = vadd.f32 %v1114, 1.0
    %v1179 = vadd.f32 %v1115, 1.0
    %v1180 = vadd.f32 %v1116, 1.0
    %v1181 = vadd.f32 %v1117, 1.0
    %v1182 = vadd.f32 %v1118, 1.0
    %v1183 = vadd.f32 %v1119, 1.0
    %v1184 = vadd.f32 %v1120, 1.0
    %v1185 = vadd.f32 %v1121, 1.0
    %v1186 = vadd.f32 %v1122, 1.0
    %v1187 = vadd.f32 %v1123, 1.0
    %v1188 = vadd.f32 %v1124, 1.0
    %v1189 = vrcp.pop %v1125
    %v1190 = vmul.f32 %v1125, %v1189
    %v1191 = vsub.f32 1.0, %v1190
    %v1192 = vmul.f32 %v1189, %v1191
    %v1193 = vadd.f32 %v1189, %v1192
    %vm1194 = vweird.f32 %v1125
    %vm1195 = vweird.f32 %v1189
    %vm1196 = vmor %vm1194, %vm1195
    %v1197 = vsel %vm1196, %v1189, %v1193
    %v1198 = vand.u32 2147483647, %v1125
    %vm1199 = vcmp.eq.f32.partialorder %v1198, 8.507059e+37
    %v1200 = vand.u32 %v1125, 2147483648
    %v1201 = vor.u32 1.1754944e-38, %v1200
    %v1202 = vsel %vm1199, %v1201, %v1197
    %v1203 = vmul.f32 1.0, %v1202
    %v1204 = vrcp.pop %v1126
    %v1205 = vmul.f32 %v1126, %v1204
    %v1206 = vsub.f32 1.0, %v1205
    %v1207 = vmul.f32 %v1204, %v1206
    %v1208 = vadd.f32 %v1204, %v1207
    %vm1209 = vweird.f32 %v1126
    %vm1210 = vweird.f32 %v1204
    %vm1211 = vmor %vm1209, %vm1210
    %v1212 = vsel %vm1211, %v1204, %v1208
    %v1213 = vand.u32 2147483647, %v1126
    %vm1214 = vcmp.eq.f32.partialorder %v1213, 8.507059e+37
    %v1215 = vand.u32 %v1126, 2147483648
    %v1216 = vor.u32 1.1754944e-38, %v1215
    %v1217 = vsel %vm1214, %v1216, %v1212
    %v1218 = vmul.f32 1.0, %v1217
    %v1219 = vrcp.pop %v1127
    %v1220 = vmul.f32 %v1127, %v1219
    %v1221 = vsub.f32 1.0, %v1220
    %v1222 = vmul.f32 %v1219, %v1221
    %v1223 = vadd.f32 %v1219, %v1222
    %vm1224 = vweird.f32 %v1127
    %vm1225 = vweird.f32 %v1219
    %vm1226 = vmor %vm1224, %vm1225
    %v1227 = vsel %vm1226, %v1219, %v1223
    %v1228 = vand.u32 2147483647, %v1127
    %vm1229 = vcmp.eq.f32.partialorder %v1228, 8.507059e+37
    %v1230 = vand.u32 %v1127, 2147483648
    %v1231 = vor.u32 1.1754944e-38, %v1230
    %v1232 = vsel %vm1229, %v1231, %v1227
    %v1233 = vmul.f32 1.0, %v1232
    %v1234 = vrcp.pop %v1128
    %v1235 = vmul.f32 %v1128, %v1234
    %v1236 = vsub.f32 1.0, %v1235
    %v1237 = vmul.f32 %v1234, %v1236
    %v1238 = vadd.f32 %v1234, %v1237
    %vm1239 = vweird.f32 %v1128
    %vm1240 = vweird.f32 %v1234
    %vm1241 = vmor %vm1239, %vm1240
    %v1242 = vsel %vm1241, %v1234, %v1238
    %v1243 = vand.u32 2147483647, %v1128
    %vm1244 = vcmp.eq.f32.partialorder %v1243, 8.507059e+37
    %v1245 = vand.u32 %v1128, 2147483648
    %v1246 = vor.u32 1.1754944e-38, %v1245
    %v1247 = vsel %vm1244, %v1246, %v1242
    %v1248 = vmul.f32 1.0, %v1247
    %v1249 = vrcp.pop %v1129
    %v1250 = vmul.f32 %v1129, %v1249
    %v1251 = vsub.f32 1.0, %v1250
    %v1252 = vmul.f32 %v1249, %v1251
    %v1253 = vadd.f32 %v1249, %v1252
    %vm1254 = vweird.f32 %v1129
    %vm1255 = vweird.f32 %v1249
    %vm1256 = vmor %vm1254, %vm1255
    %v1257 = vsel %vm1256, %v1249, %v1253
    %v1258 = vand.u32 2147483647, %v1129
    %vm1259 = vcmp.eq.f32.partialorder %v1258, 8.507059e+37
    %v1260 = vand.u32 %v1129, 2147483648
    %v1261 = vor.u32 1.1754944e-38, %v1260
    %v1262 = vsel %vm1259, %v1261, %v1257
    %v1263 = vmul.f32 1.0, %v1262
    %v1264 = vrcp.pop %v1130
    %v1265 = vmul.f32 %v1130, %v1264
    %v1266 = vsub.f32 1.0, %v1265
    %v1267 = vmul.f32 %v1264, %v1266
    %v1268 = vadd.f32 %v1264, %v1267
    %vm1269 = vweird.f32 %v1130
    %vm1270 = vweird.f32 %v1264
    %vm1271 = vmor %vm1269, %vm1270
    %v1272 = vsel %vm1271, %v1264, %v1268
    %v1273 = vand.u32 2147483647, %v1130
    %vm1274 = vcmp.eq.f32.partialorder %v1273, 8.507059e+37
    %v1275 = vand.u32 %v1130, 2147483648
    %v1276 = vor.u32 1.1754944e-38, %v1275
    %v1277 = vsel %vm1274, %v1276, %v1272
    %v1278 = vmul.f32 1.0, %v1277
    %v1279 = vrcp.pop %v1131
    %v1280 = vmul.f32 %v1131, %v1279
    %v1281 = vsub.f32 1.0, %v1280
    %v1282 = vmul.f32 %v1279, %v1281
    %v1283 = vadd.f32 %v1279, %v1282
    %vm1284 = vweird.f32 %v1131
    %vm1285 = vweird.f32 %v1279
    %vm1286 = vmor %vm1284, %vm1285
    %v1287 = vsel %vm1286, %v1279, %v1283
    %v1288 = vand.u32 2147483647, %v1131
    %vm1289 = vcmp.eq.f32.partialorder %v1288, 8.507059e+37
    %v1290 = vand.u32 %v1131, 2147483648
    %v1291 = vor.u32 1.1754944e-38, %v1290
    %v1292 = vsel %vm1289, %v1291, %v1287
    %v1293 = vmul.f32 1.0, %v1292
    %v1294 = vrcp.pop %v1132
    %v1295 = vmul.f32 %v1132, %v1294
    %v1296 = vsub.f32 1.0, %v1295
    %v1297 = vmul.f32 %v1294, %v1296
    %v1298 = vadd.f32 %v1294, %v1297
    %vm1299 = vweird.f32 %v1132
    %vm1300 = vweird.f32 %v1294
    %vm1301 = vmor %vm1299, %vm1300
    %v1302 = vsel %vm1301, %v1294, %v1298
    %v1303 = vand.u32 2147483647, %v1132
    %vm1304 = vcmp.eq.f32.partialorder %v1303, 8.507059e+37
    %v1305 = vand.u32 %v1132, 2147483648
    %v1306 = vor.u32 1.1754944e-38, %v1305
    %v1307 = vsel %vm1304, %v1306, %v1302
    %v1308 = vmul.f32 1.0, %v1307
    %v1309 = vrcp.pop %v1133
    %v1310 = vmul.f32 %v1133, %v1309
    %v1311 = vsub.f32 1.0, %v1310
    %v1312 = vmul.f32 %v1309, %v1311
    %v1313 = vadd.f32 %v1309, %v1312
    %vm1314 = vweird.f32 %v1133
    %vm1315 = vweird.f32 %v1309
    %vm1316 = vmor %vm1314, %vm1315
    %v1317 = vsel %vm1316, %v1309, %v1313
    %v1318 = vand.u32 2147483647, %v1133
    %vm1319 = vcmp.eq.f32.partialorder %v1318, 8.507059e+37
    %v1320 = vand.u32 %v1133, 2147483648
    %v1321 = vor.u32 1.1754944e-38, %v1320
    %v1322 = vsel %vm1319, %v1321, %v1317
    %v1323 = vmul.f32 1.0, %v1322
    %v1324 = vrcp.pop %v1134
    %v1325 = vmul.f32 %v1134, %v1324
    %v1326 = vsub.f32 1.0, %v1325
    %v1327 = vmul.f32 %v1324, %v1326
    %v1328 = vadd.f32 %v1324, %v1327
    %vm1329 = vweird.f32 %v1134
    %vm1330 = vweird.f32 %v1324
    %vm1331 = vmor %vm1329, %vm1330
    %v1332 = vsel %vm1331, %v1324, %v1328
    %v1333 = vand.u32 2147483647, %v1134
    %vm1334 = vcmp.eq.f32.partialorder %v1333, 8.507059e+37
    %v1335 = vand.u32 %v1134, 2147483648
    %v1336 = vor.u32 1.1754944e-38, %v1335
    %v1337 = vsel %vm1334, %v1336, %v1332
    %v1338 = vmul.f32 1.0, %v1337
    %v1339 = vrcp.pop %v1135
    %v1340 = vmul.f32 %v1135, %v1339
    %v1341 = vsub.f32 1.0, %v1340
    %v1342 = vmul.f32 %v1339, %v1341
    %v1343 = vadd.f32 %v1339, %v1342
    %vm1344 = vweird.f32 %v1135
    %vm1345 = vweird.f32 %v1339
    %vm1346 = vmor %vm1344, %vm1345
    %v1347 = vsel %vm1346, %v1339, %v1343
    %v1348 = vand.u32 2147483647, %v1135
    %vm1349 = vcmp.eq.f32.partialorder %v1348, 8.507059e+37
    %v1350 = vand.u32 %v1135, 2147483648
    %v1351 = vor.u32 1.1754944e-38, %v1350
    %v1352 = vsel %vm1349, %v1351, %v1347
    %v1353 = vmul.f32 1.0, %v1352
    %v1354 = vrcp.pop %v1136
    %v1355 = vmul.f32 %v1136, %v1354
    %v1356 = vsub.f32 1.0, %v1355
    %v1357 = vmul.f32 %v1354, %v1356
    %v1358 = vadd.f32 %v1354, %v1357
    %vm1359 = vweird.f32 %v1136
    %vm1360 = vweird.f32 %v1354
    %vm1361 = vmor %vm1359, %vm1360
    %v1362 = vsel %vm1361, %v1354, %v1358
    %v1363 = vand.u32 2147483647, %v1136
    %vm1364 = vcmp.eq.f32.partialorder %v1363, 8.507059e+37
    %v1365 = vand.u32 %v1136, 2147483648
    %v1366 = vor.u32 1.1754944e-38, %v1365
    %v1367 = vsel %vm1364, %v1366, %v1362
    %v1368 = vmul.f32 1.0, %v1367
    %v1369 = vrcp.pop %v1137
    %v1370 = vmul.f32 %v1137, %v1369
    %v1371 = vsub.f32 1.0, %v1370
    %v1372 = vmul.f32 %v1369, %v1371
    %v1373 = vadd.f32 %v1369, %v1372
    %vm1374 = vweird.f32 %v1137
    %vm1375 = vweird.f32 %v1369
    %vm1376 = vmor %vm1374, %vm1375
    %v1377 = vsel %vm1376, %v1369, %v1373
    %v1378 = vand.u32 2147483647, %v1137
    %vm1379 = vcmp.eq.f32.partialorder %v1378, 8.507059e+37
    %v1380 = vand.u32 %v1137, 2147483648
    %v1381 = vor.u32 1.1754944e-38, %v1380
    %v1382 = vsel %vm1379, %v1381, %v1377
    %v1383 = vmul.f32 1.0, %v1382
    %v1384 = vrcp.pop %v1138
    %v1385 = vmul.f32 %v1138, %v1384
    %v1386 = vsub.f32 1.0, %v1385
    %v1387 = vmul.f32 %v1384, %v1386
    %v1388 = vadd.f32 %v1384, %v1387
    %vm1389 = vweird.f32 %v1138
    %vm1390 = vweird.f32 %v1384
    %vm1391 = vmor %vm1389, %vm1390
    %v1392 = vsel %vm1391, %v1384, %v1388
    %v1393 = vand.u32 2147483647, %v1138
    %vm1394 = vcmp.eq.f32.partialorder %v1393, 8.507059e+37
    %v1395 = vand.u32 %v1138, 2147483648
    %v1396 = vor.u32 1.1754944e-38, %v1395
    %v1397 = vsel %vm1394, %v1396, %v1392
    %v1398 = vmul.f32 1.0, %v1397
    %v1399 = vrcp.pop %v1139
    %v1400 = vmul.f32 %v1139, %v1399
    %v1401 = vsub.f32 1.0, %v1400
    %v1402 = vmul.f32 %v1399, %v1401
    %v1403 = vadd.f32 %v1399, %v1402
    %vm1404 = vweird.f32 %v1139
    %vm1405 = vweird.f32 %v1399
    %vm1406 = vmor %vm1404, %vm1405
    %v1407 = vsel %vm1406, %v1399, %v1403
    %v1408 = vand.u32 2147483647, %v1139
    %vm1409 = vcmp.eq.f32.partialorder %v1408, 8.507059e+37
    %v1410 = vand.u32 %v1139, 2147483648
    %v1411 = vor.u32 1.1754944e-38, %v1410
    %v1412 = vsel %vm1409, %v1411, %v1407
    %v1413 = vmul.f32 1.0, %v1412
    %v1414 = vrcp.pop %v1140
    %v1415 = vmul.f32 %v1140, %v1414
    %v1416 = vsub.f32 1.0, %v1415
    %v1417 = vmul.f32 %v1414, %v1416
    %v1418 = vadd.f32 %v1414, %v1417
    %vm1419 = vweird.f32 %v1140
    %vm1420 = vweird.f32 %v1414
    %vm1421 = vmor %vm1419, %vm1420
    %v1422 = vsel %vm1421, %v1414, %v1418
    %v1423 = vand.u32 2147483647, %v1140
    %vm1424 = vcmp.eq.f32.partialorder %v1423, 8.507059e+37
    %v1425 = vand.u32 %v1140, 2147483648
    %v1426 = vor.u32 1.1754944e-38, %v1425
    %v1427 = vsel %vm1424, %v1426, %v1422
    %v1428 = vmul.f32 1.0, %v1427
    %v1429 = vrcp.pop %v1141
    %v1430 = vmul.f32 %v1141, %v1429
    %v1431 = vsub.f32 1.0, %v1430
    %v1432 = vmul.f32 %v1429, %v1431
    %v1433 = vadd.f32 %v1429, %v1432
    %vm1434 = vweird.f32 %v1141
    %vm1435 = vweird.f32 %v1429
    %vm1436 = vmor %vm1434, %vm1435
    %v1437 = vsel %vm1436, %v1429, %v1433
    %v1438 = vand.u32 2147483647, %v1141
    %vm1439 = vcmp.eq.f32.partialorder %v1438, 8.507059e+37
    %v1440 = vand.u32 %v1141, 2147483648
    %v1441 = vor.u32 1.1754944e-38, %v1440
    %v1442 = vsel %vm1439, %v1441, %v1437
    %v1443 = vmul.f32 1.0, %v1442
    %v1444 = vrcp.pop %v1142
    %v1445 = vmul.f32 %v1142, %v1444
    %v1446 = vsub.f32 1.0, %v1445
    %v1447 = vmul.f32 %v1444, %v1446
    %v1448 = vadd.f32 %v1444, %v1447
    %vm1449 = vweird.f32 %v1142
    %vm1450 = vweird.f32 %v1444
    %vm1451 = vmor %vm1449, %vm1450
    %v1452 = vsel %vm1451, %v1444, %v1448
    %v1453 = vand.u32 2147483647, %v1142
    %vm1454 = vcmp.eq.f32.partialorder %v1453, 8.507059e+37
    %v1455 = vand.u32 %v1142, 2147483648
    %v1456 = vor.u32 1.1754944e-38, %v1455
    %v1457 = vsel %vm1454, %v1456, %v1452
    %v1458 = vmul.f32 1.0, %v1457
    %v1459 = vrcp.pop %v1143
    %v1460 = vmul.f32 %v1143, %v1459
    %v1461 = vsub.f32 1.0, %v1460
    %v1462 = vmul.f32 %v1459, %v1461
    %v1463 = vadd.f32 %v1459, %v1462
    %vm1464 = vweird.f32 %v1143
    %vm1465 = vweird.f32 %v1459
    %vm1466 = vmor %vm1464, %vm1465
    %v1467 = vsel %vm1466, %v1459, %v1463
    %v1468 = vand.u32 2147483647, %v1143
    %vm1469 = vcmp.eq.f32.partialorder %v1468, 8.507059e+37
    %v1470 = vand.u32 %v1143, 2147483648
    %v1471 = vor.u32 1.1754944e-38, %v1470
    %v1472 = vsel %vm1469, %v1471, %v1467
    %v1473 = vmul.f32 1.0, %v1472
    %v1474 = vrcp.pop %v1144
    %v1475 = vmul.f32 %v1144, %v1474
    %v1476 = vsub.f32 1.0, %v1475
    %v1477 = vmul.f32 %v1474, %v1476
    %v1478 = vadd.f32 %v1474, %v1477
    %vm1479 = vweird.f32 %v1144
    %vm1480 = vweird.f32 %v1474
    %vm1481 = vmor %vm1479, %vm1480
    %v1482 = vsel %vm1481, %v1474, %v1478
    %v1483 = vand.u32 2147483647, %v1144
    %vm1484 = vcmp.eq.f32.partialorder %v1483, 8.507059e+37
    %v1485 = vand.u32 %v1144, 2147483648
    %v1486 = vor.u32 1.1754944e-38, %v1485
    %v1487 = vsel %vm1484, %v1486, %v1482
    %v1488 = vmul.f32 1.0, %v1487
    %v1489 = vrcp.pop %v1145
    %v1490 = vmul.f32 %v1145, %v1489
    %v1491 = vsub.f32 1.0, %v1490
    %v1492 = vmul.f32 %v1489, %v1491
    %v1493 = vadd.f32 %v1489, %v1492
    %vm1494 = vweird.f32 %v1145
    %vm1495 = vweird.f32 %v1489
    %vm1496 = vmor %vm1494, %vm1495
    %v1497 = vsel %vm1496, %v1489, %v1493
    %v1498 = vand.u32 2147483647, %v1145
    %vm1499 = vcmp.eq.f32.partialorder %v1498, 8.507059e+37
    %v1500 = vand.u32 %v1145, 2147483648
    %v1501 = vor.u32 1.1754944e-38, %v1500
    %v1502 = vsel %vm1499, %v1501, %v1497
    %v1503 = vmul.f32 1.0, %v1502
    %v1504 = vrcp.pop %v1146
    %v1505 = vmul.f32 %v1146, %v1504
    %v1506 = vsub.f32 1.0, %v1505
    %v1507 = vmul.f32 %v1504, %v1506
    %v1508 = vadd.f32 %v1504, %v1507
    %vm1509 = vweird.f32 %v1146
    %vm1510 = vweird.f32 %v1504
    %vm1511 = vmor %vm1509, %vm1510
    %v1512 = vsel %vm1511, %v1504, %v1508
    %v1513 = vand.u32 2147483647, %v1146
    %vm1514 = vcmp.eq.f32.partialorder %v1513, 8.507059e+37
    %v1515 = vand.u32 %v1146, 2147483648
    %v1516 = vor.u32 1.1754944e-38, %v1515
    %v1517 = vsel %vm1514, %v1516, %v1512
    %v1518 = vmul.f32 1.0, %v1517
    %v1519 = vrcp.pop %v1147
    %v1520 = vmul.f32 %v1147, %v1519
    %v1521 = vsub.f32 1.0, %v1520
    %v1522 = vmul.f32 %v1519, %v1521
    %v1523 = vadd.f32 %v1519, %v1522
    %vm1524 = vweird.f32 %v1147
    %vm1525 = vweird.f32 %v1519
    %vm1526 = vmor %vm1524, %vm1525
    %v1527 = vsel %vm1526, %v1519, %v1523
    %v1528 = vand.u32 2147483647, %v1147
    %vm1529 = vcmp.eq.f32.partialorder %v1528, 8.507059e+37
    %v1530 = vand.u32 %v1147, 2147483648
    %v1531 = vor.u32 1.1754944e-38, %v1530
    %v1532 = vsel %vm1529, %v1531, %v1527
    %v1533 = vmul.f32 1.0, %v1532
    %v1534 = vrcp.pop %v1148
    %v1535 = vmul.f32 %v1148, %v1534
    %v1536 = vsub.f32 1.0, %v1535
    %v1537 = vmul.f32 %v1534, %v1536
    %v1538 = vadd.f32 %v1534, %v1537
    %vm1539 = vweird.f32 %v1148
    %vm1540 = vweird.f32 %v1534
    %vm1541 = vmor %vm1539, %vm1540
    %v1542 = vsel %vm1541, %v1534, %v1538
    %v1543 = vand.u32 2147483647, %v1148
    %vm1544 = vcmp.eq.f32.partialorder %v1543, 8.507059e+37
    %v1545 = vand.u32 %v1148, 2147483648
    %v1546 = vor.u32 1.1754944e-38, %v1545
    %v1547 = vsel %vm1544, %v1546, %v1542
    %v1548 = vmul.f32 1.0, %v1547
    %v1549 = vrcp.pop %v1149
    %v1550 = vmul.f32 %v1149, %v1549
    %v1551 = vsub.f32 1.0, %v1550
    %v1552 = vmul.f32 %v1549, %v1551
    %v1553 = vadd.f32 %v1549, %v1552
    %vm1554 = vweird.f32 %v1149
    %vm1555 = vweird.f32 %v1549
    %vm1556 = vmor %vm1554, %vm1555
    %v1557 = vsel %vm1556, %v1549, %v1553
    %v1558 = vand.u32 2147483647, %v1149
    %vm1559 = vcmp.eq.f32.partialorder %v1558, 8.507059e+37
    %v1560 = vand.u32 %v1149, 2147483648
    %v1561 = vor.u32 1.1754944e-38, %v1560
    %v1562 = vsel %vm1559, %v1561, %v1557
    %v1563 = vmul.f32 1.0, %v1562
    %v1564 = vrcp.pop %v1150
    %v1565 = vmul.f32 %v1150, %v1564
    %v1566 = vsub.f32 1.0, %v1565
    %v1567 = vmul.f32 %v1564, %v1566
    %v1568 = vadd.f32 %v1564, %v1567
    %vm1569 = vweird.f32 %v1150
    %vm1570 = vweird.f32 %v1564
    %vm1571 = vmor %vm1569, %vm1570
    %v1572 = vsel %vm1571, %v1564, %v1568
    %v1573 = vand.u32 2147483647, %v1150
    %vm1574 = vcmp.eq.f32.partialorder %v1573, 8.507059e+37
    %v1575 = vand.u32 %v1150, 2147483648
    %v1576 = vor.u32 1.1754944e-38, %v1575
    %v1577 = vsel %vm1574, %v1576, %v1572
    %v1578 = vmul.f32 1.0, %v1577
    %v1579 = vrcp.pop %v1151
    %v1580 = vmul.f32 %v1151, %v1579
    %v1581 = vsub.f32 1.0, %v1580
    %v1582 = vmul.f32 %v1579, %v1581
    %v1583 = vadd.f32 %v1579, %v1582
    %vm1584 = vweird.f32 %v1151
    %vm1585 = vweird.f32 %v1579
    %vm1586 = vmor %vm1584, %vm1585
    %v1587 = vsel %vm1586, %v1579, %v1583
    %v1588 = vand.u32 2147483647, %v1151
    %vm1589 = vcmp.eq.f32.partialorder %v1588, 8.507059e+37
    %v1590 = vand.u32 %v1151, 2147483648
    %v1591 = vor.u32 1.1754944e-38, %v1590
    %v1592 = vsel %vm1589, %v1591, %v1587
    %v1593 = vmul.f32 1.0, %v1592
    %v1594 = vrcp.pop %v1152
    %v1595 = vmul.f32 %v1152, %v1594
    %v1596 = vsub.f32 1.0, %v1595
    %v1597 = vmul.f32 %v1594, %v1596
    %v1598 = vadd.f32 %v1594, %v1597
    %vm1599 = vweird.f32 %v1152
    %vm1600 = vweird.f32 %v1594
    %vm1601 = vmor %vm1599, %vm1600
    %v1602 = vsel %vm1601, %v1594, %v1598
    %v1603 = vand.u32 2147483647, %v1152
    %vm1604 = vcmp.eq.f32.partialorder %v1603, 8.507059e+37
    %v1605 = vand.u32 %v1152, 2147483648
    %v1606 = vor.u32 1.1754944e-38, %v1605
    %v1607 = vsel %vm1604, %v1606, %v1602
    %v1608 = vmul.f32 1.0, %v1607
    %v1609 = vrcp.pop %v1153
    %v1610 = vmul.f32 %v1153, %v1609
    %v1611 = vsub.f32 1.0, %v1610
    %v1612 = vmul.f32 %v1609, %v1611
    %v1613 = vadd.f32 %v1609, %v1612
    %vm1614 = vweird.f32 %v1153
    %vm1615 = vweird.f32 %v1609
    %vm1616 = vmor %vm1614, %vm1615
    %v1617 = vsel %vm1616, %v1609, %v1613
    %v1618 = vand.u32 2147483647, %v1153
    %vm1619 = vcmp.eq.f32.partialorder %v1618, 8.507059e+37
    %v1620 = vand.u32 %v1153, 2147483648
    %v1621 = vor.u32 1.1754944e-38, %v1620
    %v1622 = vsel %vm1619, %v1621, %v1617
    %v1623 = vmul.f32 1.0, %v1622
    %v1624 = vrcp.pop %v1154
    %v1625 = vmul.f32 %v1154, %v1624
    %v1626 = vsub.f32 1.0, %v1625
    %v1627 = vmul.f32 %v1624, %v1626
    %v1628 = vadd.f32 %v1624, %v1627
    %vm1629 = vweird.f32 %v1154
    %vm1630 = vweird.f32 %v1624
    %vm1631 = vmor %vm1629, %vm1630
    %v1632 = vsel %vm1631, %v1624, %v1628
    %v1633 = vand.u32 2147483647, %v1154
    %vm1634 = vcmp.eq.f32.partialorder %v1633, 8.507059e+37
    %v1635 = vand.u32 %v1154, 2147483648
    %v1636 = vor.u32 1.1754944e-38, %v1635
    %v1637 = vsel %vm1634, %v1636, %v1632
    %v1638 = vmul.f32 1.0, %v1637
    %v1639 = vrcp.pop %v1155
    %v1640 = vmul.f32 %v1155, %v1639
    %v1641 = vsub.f32 1.0, %v1640
    %v1642 = vmul.f32 %v1639, %v1641
    %v1643 = vadd.f32 %v1639, %v1642
    %vm1644 = vweird.f32 %v1155
    %vm1645 = vweird.f32 %v1639
    %vm1646 = vmor %vm1644, %vm1645
    %v1647 = vsel %vm1646, %v1639, %v1643
    %v1648 = vand.u32 2147483647, %v1155
    %vm1649 = vcmp.eq.f32.partialorder %v1648, 8.507059e+37
    %v1650 = vand.u32 %v1155, 2147483648
    %v1651 = vor.u32 1.1754944e-38, %v1650
    %v1652 = vsel %vm1649, %v1651, %v1647
    %v1653 = vmul.f32 1.0, %v1652
    %v1654 = vrcp.pop %v1156
    %v1655 = vmul.f32 %v1156, %v1654
    %v1656 = vsub.f32 1.0, %v1655
    %v1657 = vmul.f32 %v1654, %v1656
    %v1658 = vadd.f32 %v1654, %v1657
    %vm1659 = vweird.f32 %v1156
    %vm1660 = vweird.f32 %v1654
    %vm1661 = vmor %vm1659, %vm1660
    %v1662 = vsel %vm1661, %v1654, %v1658
    %v1663 = vand.u32 2147483647, %v1156
    %vm1664 = vcmp.eq.f32.partialorder %v1663, 8.507059e+37
    %v1665 = vand.u32 %v1156, 2147483648
    %v1666 = vor.u32 1.1754944e-38, %v1665
    %v1667 = vsel %vm1664, %v1666, %v1662
    %v1668 = vmul.f32 1.0, %v1667
    %v1669 = vrcp.pop %v1157
    %v1670 = vmul.f32 %v1157, %v1669
    %v1671 = vsub.f32 1.0, %v1670
    %v1672 = vmul.f32 %v1669, %v1671
    %v1673 = vadd.f32 %v1669, %v1672
    %vm1674 = vweird.f32 %v1157
    %vm1675 = vweird.f32 %v1669
    %vm1676 = vmor %vm1674, %vm1675
    %v1677 = vsel %vm1676, %v1669, %v1673
    %v1678 = vand.u32 2147483647, %v1157
    %vm1679 = vcmp.eq.f32.partialorder %v1678, 8.507059e+37
    %v1680 = vand.u32 %v1157, 2147483648
    %v1681 = vor.u32 1.1754944e-38, %v1680
    %v1682 = vsel %vm1679, %v1681, %v1677
    %v1683 = vmul.f32 1.0, %v1682
    %v1684 = vrcp.pop %v1158
    %v1685 = vmul.f32 %v1158, %v1684
    %v1686 = vsub.f32 1.0, %v1685
    %v1687 = vmul.f32 %v1684, %v1686
    %v1688 = vadd.f32 %v1684, %v1687
    %vm1689 = vweird.f32 %v1158
    %vm1690 = vweird.f32 %v1684
    %vm1691 = vmor %vm1689, %vm1690
    %v1692 = vsel %vm1691, %v1684, %v1688
    %v1693 = vand.u32 2147483647, %v1158
    %vm1694 = vcmp.eq.f32.partialorder %v1693, 8.507059e+37
    %v1695 = vand.u32 %v1158, 2147483648
    %v1696 = vor.u32 1.1754944e-38, %v1695
    %v1697 = vsel %vm1694, %v1696, %v1692
    %v1698 = vmul.f32 1.0, %v1697
    %v1699 = vrcp.pop %v1159
    %v1700 = vmul.f32 %v1159, %v1699
    %v1701 = vsub.f32 1.0, %v1700
    %v1702 = vmul.f32 %v1699, %v1701
    %v1703 = vadd.f32 %v1699, %v1702
    %vm1704 = vweird.f32 %v1159
    %vm1705 = vweird.f32 %v1699
    %vm1706 = vmor %vm1704, %vm1705
    %v1707 = vsel %vm1706, %v1699, %v1703
    %v1708 = vand.u32 2147483647, %v1159
    %vm1709 = vcmp.eq.f32.partialorder %v1708, 8.507059e+37
    %v1710 = vand.u32 %v1159, 2147483648
    %v1711 = vor.u32 1.1754944e-38, %v1710
    %v1712 = vsel %vm1709, %v1711, %v1707
    %v1713 = vmul.f32 1.0, %v1712
    %v1714 = vrcp.pop %v1160
    %v1715 = vmul.f32 %v1160, %v1714
    %v1716 = vsub.f32 1.0, %v1715
    %v1717 = vmul.f32 %v1714, %v1716
    %v1718 = vadd.f32 %v1714, %v1717
    %vm1719 = vweird.f32 %v1160
    %vm1720 = vweird.f32 %v1714
    %vm1721 = vmor %vm1719, %vm1720
    %v1722 = vsel %vm1721, %v1714, %v1718
    %v1723 = vand.u32 2147483647, %v1160
    %vm1724 = vcmp.eq.f32.partialorder %v1723, 8.507059e+37
    %v1725 = vand.u32 %v1160, 2147483648
    %v1726 = vor.u32 1.1754944e-38, %v1725
    %v1727 = vsel %vm1724, %v1726, %v1722
    %v1728 = vmul.f32 1.0, %v1727
    %v1729 = vrcp.pop %v1161
    %v1730 = vmul.f32 %v1161, %v1729
    %v1731 = vsub.f32 1.0, %v1730
    %v1732 = vmul.f32 %v1729, %v1731
    %v1733 = vadd.f32 %v1729, %v1732
    %vm1734 = vweird.f32 %v1161
    %vm1735 = vweird.f32 %v1729
    %vm1736 = vmor %vm1734, %vm1735
    %v1737 = vsel %vm1736, %v1729, %v1733
    %v1738 = vand.u32 2147483647, %v1161
    %vm1739 = vcmp.eq.f32.partialorder %v1738, 8.507059e+37
    %v1740 = vand.u32 %v1161, 2147483648
    %v1741 = vor.u32 1.1754944e-38, %v1740
    %v1742 = vsel %vm1739, %v1741, %v1737
    %v1743 = vmul.f32 1.0, %v1742
    %v1744 = vrcp.pop %v1162
    %v1745 = vmul.f32 %v1162, %v1744
    %v1746 = vsub.f32 1.0, %v1745
    %v1747 = vmul.f32 %v1744, %v1746
    %v1748 = vadd.f32 %v1744, %v1747
    %vm1749 = vweird.f32 %v1162
    %vm1750 = vweird.f32 %v1744
    %vm1751 = vmor %vm1749, %vm1750
    %v1752 = vsel %vm1751, %v1744, %v1748
    %v1753 = vand.u32 2147483647, %v1162
    %vm1754 = vcmp.eq.f32.partialorder %v1753, 8.507059e+37
    %v1755 = vand.u32 %v1162, 2147483648
    %v1756 = vor.u32 1.1754944e-38, %v1755
    %v1757 = vsel %vm1754, %v1756, %v1752
    %v1758 = vmul.f32 1.0, %v1757
    %v1759 = vrcp.pop %v1163
    %v1760 = vmul.f32 %v1163, %v1759
    %v1761 = vsub.f32 1.0, %v1760
    %v1762 = vmul.f32 %v1759, %v1761
    %v1763 = vadd.f32 %v1759, %v1762
    %vm1764 = vweird.f32 %v1163
    %vm1765 = vweird.f32 %v1759
    %vm1766 = vmor %vm1764, %vm1765
    %v1767 = vsel %vm1766, %v1759, %v1763
    %v1768 = vand.u32 2147483647, %v1163
    %vm1769 = vcmp.eq.f32.partialorder %v1768, 8.507059e+37
    %v1770 = vand.u32 %v1163, 2147483648
    %v1771 = vor.u32 1.1754944e-38, %v1770
    %v1772 = vsel %vm1769, %v1771, %v1767
    %v1773 = vmul.f32 1.0, %v1772
    %v1774 = vrcp.pop %v1164
    %v1775 = vmul.f32 %v1164, %v1774
    %v1776 = vsub.f32 1.0, %v1775
    %v1777 = vmul.f32 %v1774, %v1776
    %v1778 = vadd.f32 %v1774, %v1777
    %vm1779 = vweird.f32 %v1164
    %vm1780 = vweird.f32 %v1774
    %vm1781 = vmor %vm1779, %vm1780
    %v1782 = vsel %vm1781, %v1774, %v1778
    %v1783 = vand.u32 2147483647, %v1164
    %vm1784 = vcmp.eq.f32.partialorder %v1783, 8.507059e+37
    %v1785 = vand.u32 %v1164, 2147483648
    %v1786 = vor.u32 1.1754944e-38, %v1785
    %v1787 = vsel %vm1784, %v1786, %v1782
    %v1788 = vmul.f32 1.0, %v1787
    %v1789 = vrcp.pop %v1165
    %v1790 = vmul.f32 %v1165, %v1789
    %v1791 = vsub.f32 1.0, %v1790
    %v1792 = vmul.f32 %v1789, %v1791
    %v1793 = vadd.f32 %v1789, %v1792
    %vm1794 = vweird.f32 %v1165
    %vm1795 = vweird.f32 %v1789
    %vm1796 = vmor %vm1794, %vm1795
    %v1797 = vsel %vm1796, %v1789, %v1793
    %v1798 = vand.u32 2147483647, %v1165
    %vm1799 = vcmp.eq.f32.partialorder %v1798, 8.507059e+37
    %v1800 = vand.u32 %v1165, 2147483648
    %v1801 = vor.u32 1.1754944e-38, %v1800
    %v1802 = vsel %vm1799, %v1801, %v1797
    %v1803 = vmul.f32 1.0, %v1802
    %v1804 = vrcp.pop %v1166
    %v1805 = vmul.f32 %v1166, %v1804
    %v1806 = vsub.f32 1.0, %v1805
    %v1807 = vmul.f32 %v1804, %v1806
    %v1808 = vadd.f32 %v1804, %v1807
    %vm1809 = vweird.f32 %v1166
    %vm1810 = vweird.f32 %v1804
    %vm1811 = vmor %vm1809, %vm1810
    %v1812 = vsel %vm1811, %v1804, %v1808
    %v1813 = vand.u32 2147483647, %v1166
    %vm1814 = vcmp.eq.f32.partialorder %v1813, 8.507059e+37
    %v1815 = vand.u32 %v1166, 2147483648
    %v1816 = vor.u32 1.1754944e-38, %v1815
    %v1817 = vsel %vm1814, %v1816, %v1812
    %v1818 = vmul.f32 1.0, %v1817
    %v1819 = vrcp.pop %v1167
    %v1820 = vmul.f32 %v1167, %v1819
    %v1821 = vsub.f32 1.0, %v1820
    %v1822 = vmul.f32 %v1819, %v1821
    %v1823 = vadd.f32 %v1819, %v1822
    %vm1824 = vweird.f32 %v1167
    %vm1825 = vweird.f32 %v1819
    %vm1826 = vmor %vm1824, %vm1825
    %v1827 = vsel %vm1826, %v1819, %v1823
    %v1828 = vand.u32 2147483647, %v1167
    %vm1829 = vcmp.eq.f32.partialorder %v1828, 8.507059e+37
    %v1830 = vand.u32 %v1167, 2147483648
    %v1831 = vor.u32 1.1754944e-38, %v1830
    %v1832 = vsel %vm1829, %v1831, %v1827
    %v1833 = vmul.f32 1.0, %v1832
    %v1834 = vrcp.pop %v1168
    %v1835 = vmul.f32 %v1168, %v1834
    %v1836 = vsub.f32 1.0, %v1835
    %v1837 = vmul.f32 %v1834, %v1836
    %v1838 = vadd.f32 %v1834, %v1837
    %vm1839 = vweird.f32 %v1168
    %vm1840 = vweird.f32 %v1834
    %vm1841 = vmor %vm1839, %vm1840
    %v1842 = vsel %vm1841, %v1834, %v1838
    %v1843 = vand.u32 2147483647, %v1168
    %vm1844 = vcmp.eq.f32.partialorder %v1843, 8.507059e+37
    %v1845 = vand.u32 %v1168, 2147483648
    %v1846 = vor.u32 1.1754944e-38, %v1845
    %v1847 = vsel %vm1844, %v1846, %v1842
    %v1848 = vmul.f32 1.0, %v1847
    %v1849 = vrcp.pop %v1169
    %v1850 = vmul.f32 %v1169, %v1849
    %v1851 = vsub.f32 1.0, %v1850
    %v1852 = vmul.f32 %v1849, %v1851
    %v1853 = vadd.f32 %v1849, %v1852
    %vm1854 = vweird.f32 %v1169
    %vm1855 = vweird.f32 %v1849
    %vm1856 = vmor %vm1854, %vm1855
    %v1857 = vsel %vm1856, %v1849, %v1853
    %v1858 = vand.u32 2147483647, %v1169
    %vm1859 = vcmp.eq.f32.partialorder %v1858, 8.507059e+37
    %v1860 = vand.u32 %v1169, 2147483648
    %v1861 = vor.u32 1.1754944e-38, %v1860
    %v1862 = vsel %vm1859, %v1861, %v1857
    %v1863 = vmul.f32 1.0, %v1862
    %v1864 = vrcp.pop %v1170
    %v1865 = vmul.f32 %v1170, %v1864
    %v1866 = vsub.f32 1.0, %v1865
    %v1867 = vmul.f32 %v1864, %v1866
    %v1868 = vadd.f32 %v1864, %v1867
    %vm1869 = vweird.f32 %v1170
    %vm1870 = vweird.f32 %v1864
    %vm1871 = vmor %vm1869, %vm1870
    %v1872 = vsel %vm1871, %v1864, %v1868
    %v1873 = vand.u32 2147483647, %v1170
    %vm1874 = vcmp.eq.f32.partialorder %v1873, 8.507059e+37
    %v1875 = vand.u32 %v1170, 2147483648
    %v1876 = vor.u32 1.1754944e-38, %v1875
    %v1877 = vsel %vm1874, %v1876, %v1872
    %v1878 = vmul.f32 1.0, %v1877
    %v1879 = vrcp.pop %v1171
    %v1880 = vmul.f32 %v1171, %v1879
    %v1881 = vsub.f32 1.0, %v1880
    %v1882 = vmul.f32 %v1879, %v1881
    %v1883 = vadd.f32 %v1879, %v1882
    %vm1884 = vweird.f32 %v1171
    %vm1885 = vweird.f32 %v1879
    %vm1886 = vmor %vm1884, %vm1885
    %v1887 = vsel %vm1886, %v1879, %v1883
    %v1888 = vand.u32 2147483647, %v1171
    %vm1889 = vcmp.eq.f32.partialorder %v1888, 8.507059e+37
    %v1890 = vand.u32 %v1171, 2147483648
    %v1891 = vor.u32 1.1754944e-38, %v1890
    %v1892 = vsel %vm1889, %v1891, %v1887
    %v1893 = vmul.f32 1.0, %v1892
    %v1894 = vrcp.pop %v1172
    %v1895 = vmul.f32 %v1172, %v1894
    %v1896 = vsub.f32 1.0, %v1895
    %v1897 = vmul.f32 %v1894, %v1896
    %v1898 = vadd.f32 %v1894, %v1897
    %vm1899 = vweird.f32 %v1172
    %vm1900 = vweird.f32 %v1894
    %vm1901 = vmor %vm1899, %vm1900
    %v1902 = vsel %vm1901, %v1894, %v1898
    %v1903 = vand.u32 2147483647, %v1172
    %vm1904 = vcmp.eq.f32.partialorder %v1903, 8.507059e+37
    %v1905 = vand.u32 %v1172, 2147483648
    %v1906 = vor.u32 1.1754944e-38, %v1905
    %v1907 = vsel %vm1904, %v1906, %v1902
    %v1908 = vmul.f32 1.0, %v1907
    %v1909 = vrcp.pop %v1173
    %v1910 = vmul.f32 %v1173, %v1909
    %v1911 = vsub.f32 1.0, %v1910
    %v1912 = vmul.f32 %v1909, %v1911
    %v1913 = vadd.f32 %v1909, %v1912
    %vm1914 = vweird.f32 %v1173
    %vm1915 = vweird.f32 %v1909
    %vm1916 = vmor %vm1914, %vm1915
    %v1917 = vsel %vm1916, %v1909, %v1913
    %v1918 = vand.u32 2147483647, %v1173
    %vm1919 = vcmp.eq.f32.partialorder %v1918, 8.507059e+37
    %v1920 = vand.u32 %v1173, 2147483648
    %v1921 = vor.u32 1.1754944e-38, %v1920
    %v1922 = vsel %vm1919, %v1921, %v1917
    %v1923 = vmul.f32 1.0, %v1922
    %v1924 = vrcp.pop %v1174
    %v1925 = vmul.f32 %v1174, %v1924
    %v1926 = vsub.f32 1.0, %v1925
    %v1927 = vmul.f32 %v1924, %v1926
    %v1928 = vadd.f32 %v1924, %v1927
    %vm1929 = vweird.f32 %v1174
    %vm1930 = vweird.f32 %v1924
    %vm1931 = vmor %vm1929, %vm1930
    %v1932 = vsel %vm1931, %v1924, %v1928
    %v1933 = vand.u32 2147483647, %v1174
    %vm1934 = vcmp.eq.f32.partialorder %v1933, 8.507059e+37
    %v1935 = vand.u32 %v1174, 2147483648
    %v1936 = vor.u32 1.1754944e-38, %v1935
    %v1937 = vsel %vm1934, %v1936, %v1932
    %v1938 = vmul.f32 1.0, %v1937
    %v1939 = vrcp.pop %v1175
    %v1940 = vmul.f32 %v1175, %v1939
    %v1941 = vsub.f32 1.0, %v1940
    %v1942 = vmul.f32 %v1939, %v1941
    %v1943 = vadd.f32 %v1939, %v1942
    %vm1944 = vweird.f32 %v1175
    %vm1945 = vweird.f32 %v1939
    %vm1946 = vmor %vm1944, %vm1945
    %v1947 = vsel %vm1946, %v1939, %v1943
    %v1948 = vand.u32 2147483647, %v1175
    %vm1949 = vcmp.eq.f32.partialorder %v1948, 8.507059e+37
    %v1950 = vand.u32 %v1175, 2147483648
    %v1951 = vor.u32 1.1754944e-38, %v1950
    %v1952 = vsel %vm1949, %v1951, %v1947
    %v1953 = vmul.f32 1.0, %v1952
    %v1954 = vrcp.pop %v1176
    %v1955 = vmul.f32 %v1176, %v1954
    %v1956 = vsub.f32 1.0, %v1955
    %v1957 = vmul.f32 %v1954, %v1956
    %v1958 = vadd.f32 %v1954, %v1957
    %vm1959 = vweird.f32 %v1176
    %vm1960 = vweird.f32 %v1954
    %vm1961 = vmor %vm1959, %vm1960
    %v1962 = vsel %vm1961, %v1954, %v1958
    %v1963 = vand.u32 2147483647, %v1176
    %vm1964 = vcmp.eq.f32.partialorder %v1963, 8.507059e+37
    %v1965 = vand.u32 %v1176, 2147483648
    %v1966 = vor.u32 1.1754944e-38, %v1965
    %v1967 = vsel %vm1964, %v1966, %v1962
    %v1968 = vmul.f32 1.0, %v1967
    %v1969 = vrcp.pop %v1177
    %v1970 = vmul.f32 %v1177, %v1969
    %v1971 = vsub.f32 1.0, %v1970
    %v1972 = vmul.f32 %v1969, %v1971
    %v1973 = vadd.f32 %v1969, %v1972
    %vm1974 = vweird.f32 %v1177
    %vm1975 = vweird.f32 %v1969
    %vm1976 = vmor %vm1974, %vm1975
    %v1977 = vsel %vm1976, %v1969, %v1973
    %v1978 = vand.u32 2147483647, %v1177
    %vm1979 = vcmp.eq.f32.partialorder %v1978, 8.507059e+37
    %v1980 = vand.u32 %v1177, 2147483648
    %v1981 = vor.u32 1.1754944e-38, %v1980
    %v1982 = vsel %vm1979, %v1981, %v1977
    %v1983 = vmul.f32 1.0, %v1982
    %v1984 = vrcp.pop %v1178
    %v1985 = vmul.f32 %v1178, %v1984
    %v1986 = vsub.f32 1.0, %v1985
    %v1987 = vmul.f32 %v1984, %v1986
    %v1988 = vadd.f32 %v1984, %v1987
    %vm1989 = vweird.f32 %v1178
    %vm1990 = vweird.f32 %v1984
    %vm1991 = vmor %vm1989, %vm1990
    %v1992 = vsel %vm1991, %v1984, %v1988
    %v1993 = vand.u32 2147483647, %v1178
    %vm1994 = vcmp.eq.f32.partialorder %v1993, 8.507059e+37
    %v1995 = vand.u32 %v1178, 2147483648
    %v1996 = vor.u32 1.1754944e-38, %v1995
    %v1997 = vsel %vm1994, %v1996, %v1992
    %v1998 = vmul.f32 1.0, %v1997
    %v1999 = vrcp.pop %v1179
    %v2000 = vmul.f32 %v1179, %v1999
    %v2001 = vsub.f32 1.0, %v2000
    %v2002 = vmul.f32 %v1999, %v2001
    %v2003 = vadd.f32 %v1999, %v2002
    %vm2004 = vweird.f32 %v1179
    %vm2005 = vweird.f32 %v1999
    %vm2006 = vmor %vm2004, %vm2005
    %v2007 = vsel %vm2006, %v1999, %v2003
    %v2008 = vand.u32 2147483647, %v1179
    %vm2009 = vcmp.eq.f32.partialorder %v2008, 8.507059e+37
    %v2010 = vand.u32 %v1179, 2147483648
    %v2011 = vor.u32 1.1754944e-38, %v2010
    %v2012 = vsel %vm2009, %v2011, %v2007
    %v2013 = vmul.f32 1.0, %v2012
    %v2014 = vrcp.pop %v1180
    %v2015 = vmul.f32 %v1180, %v2014
    %v2016 = vsub.f32 1.0, %v2015
    %v2017 = vmul.f32 %v2014, %v2016
    %v2018 = vadd.f32 %v2014, %v2017
    %vm2019 = vweird.f32 %v1180
    %vm2020 = vweird.f32 %v2014
    %vm2021 = vmor %vm2019, %vm2020
    %v2022 = vsel %vm2021, %v2014, %v2018
    %v2023 = vand.u32 2147483647, %v1180
    %vm2024 = vcmp.eq.f32.partialorder %v2023, 8.507059e+37
    %v2025 = vand.u32 %v1180, 2147483648
    %v2026 = vor.u32 1.1754944e-38, %v2025
    %v2027 = vsel %vm2024, %v2026, %v2022
    %v2028 = vmul.f32 1.0, %v2027
    %v2029 = vrcp.pop %v1181
    %v2030 = vmul.f32 %v1181, %v2029
    %v2031 = vsub.f32 1.0, %v2030
    %v2032 = vmul.f32 %v2029, %v2031
    %v2033 = vadd.f32 %v2029, %v2032
    %vm2034 = vweird.f32 %v1181
    %vm2035 = vweird.f32 %v2029
    %vm2036 = vmor %vm2034, %vm2035
    %v2037 = vsel %vm2036, %v2029, %v2033
    %v2038 = vand.u32 2147483647, %v1181
    %vm2039 = vcmp.eq.f32.partialorder %v2038, 8.507059e+37
    %v2040 = vand.u32 %v1181, 2147483648
    %v2041 = vor.u32 1.1754944e-38, %v2040
    %v2042 = vsel %vm2039, %v2041, %v2037
    %v2043 = vmul.f32 1.0, %v2042
    %v2044 = vrcp.pop %v1182
    %v2045 = vmul.f32 %v1182, %v2044
    %v2046 = vsub.f32 1.0, %v2045
    %v2047 = vmul.f32 %v2044, %v2046
    %v2048 = vadd.f32 %v2044, %v2047
    %vm2049 = vweird.f32 %v1182
    %vm2050 = vweird.f32 %v2044
    %vm2051 = vmor %vm2049, %vm2050
    %v2052 = vsel %vm2051, %v2044, %v2048
    %v2053 = vand.u32 2147483647, %v1182
    %vm2054 = vcmp.eq.f32.partialorder %v2053, 8.507059e+37
    %v2055 = vand.u32 %v1182, 2147483648
    %v2056 = vor.u32 1.1754944e-38, %v2055
    %v2057 = vsel %vm2054, %v2056, %v2052
    %v2058 = vmul.f32 1.0, %v2057
    %v2059 = vrcp.pop %v1183
    %v2060 = vmul.f32 %v1183, %v2059
    %v2061 = vsub.f32 1.0, %v2060
    %v2062 = vmul.f32 %v2059, %v2061
    %v2063 = vadd.f32 %v2059, %v2062
    %vm2064 = vweird.f32 %v1183
    %vm2065 = vweird.f32 %v2059
    %vm2066 = vmor %vm2064, %vm2065
    %v2067 = vsel %vm2066, %v2059, %v2063
    %v2068 = vand.u32 2147483647, %v1183
    %vm2069 = vcmp.eq.f32.partialorder %v2068, 8.507059e+37
    %v2070 = vand.u32 %v1183, 2147483648
    %v2071 = vor.u32 1.1754944e-38, %v2070
    %v2072 = vsel %vm2069, %v2071, %v2067
    %v2073 = vmul.f32 1.0, %v2072
    %v2074 = vrcp.pop %v1184
    %v2075 = vmul.f32 %v1184, %v2074
    %v2076 = vsub.f32 1.0, %v2075
    %v2077 = vmul.f32 %v2074, %v2076
    %v2078 = vadd.f32 %v2074, %v2077
    %vm2079 = vweird.f32 %v1184
    %vm2080 = vweird.f32 %v2074
    %vm2081 = vmor %vm2079, %vm2080
    %v2082 = vsel %vm2081, %v2074, %v2078
    %v2083 = vand.u32 2147483647, %v1184
    %vm2084 = vcmp.eq.f32.partialorder %v2083, 8.507059e+37
    %v2085 = vand.u32 %v1184, 2147483648
    %v2086 = vor.u32 1.1754944e-38, %v2085
    %v2087 = vsel %vm2084, %v2086, %v2082
    %v2088 = vmul.f32 1.0, %v2087
    %v2089 = vrcp.pop %v1185
    %v2090 = vmul.f32 %v1185, %v2089
    %v2091 = vsub.f32 1.0, %v2090
    %v2092 = vmul.f32 %v2089, %v2091
    %v2093 = vadd.f32 %v2089, %v2092
    %vm2094 = vweird.f32 %v1185
    %vm2095 = vweird.f32 %v2089
    %vm2096 = vmor %vm2094, %vm2095
    %v2097 = vsel %vm2096, %v2089, %v2093
    %v2098 = vand.u32 2147483647, %v1185
    %vm2099 = vcmp.eq.f32.partialorder %v2098, 8.507059e+37
    %v2100 = vand.u32 %v1185, 2147483648
    %v2101 = vor.u32 1.1754944e-38, %v2100
    %v2102 = vsel %vm2099, %v2101, %v2097
    %v2103 = vmul.f32 1.0, %v2102
    %v2104 = vrcp.pop %v1186
    %v2105 = vmul.f32 %v1186, %v2104
    %v2106 = vsub.f32 1.0, %v2105
    %v2107 = vmul.f32 %v2104, %v2106
    %v2108 = vadd.f32 %v2104, %v2107
    %vm2109 = vweird.f32 %v1186
    %vm2110 = vweird.f32 %v2104
    %vm2111 = vmor %vm2109, %vm2110
    %v2112 = vsel %vm2111, %v2104, %v2108
    %v2113 = vand.u32 2147483647, %v1186
    %vm2114 = vcmp.eq.f32.partialorder %v2113, 8.507059e+37
    %v2115 = vand.u32 %v1186, 2147483648
    %v2116 = vor.u32 1.1754944e-38, %v2115
    %v2117 = vsel %vm2114, %v2116, %v2112
    %v2118 = vmul.f32 1.0, %v2117
    %v2119 = vrcp.pop %v1187
    %v2120 = vmul.f32 %v1187, %v2119
    %v2121 = vsub.f32 1.0, %v2120
    %v2122 = vmul.f32 %v2119, %v2121
    %v2123 = vadd.f32 %v2119, %v2122
    %vm2124 = vweird.f32 %v1187
    %vm2125 = vweird.f32 %v2119
    %vm2126 = vmor %vm2124, %vm2125
    %v2127 = vsel %vm2126, %v2119, %v2123
    %v2128 = vand.u32 2147483647, %v1187
    %vm2129 = vcmp.eq.f32.partialorder %v2128, 8.507059e+37
    %v2130 = vand.u32 %v1187, 2147483648
    %v2131 = vor.u32 1.1754944e-38, %v2130
    %v2132 = vsel %vm2129, %v2131, %v2127
    %v2133 = vmul.f32 1.0, %v2132
    %v2134 = vrcp.pop %v1188
    %v2135 = vmul.f32 %v1188, %v2134
    %v2136 = vsub.f32 1.0, %v2135
    %v2137 = vmul.f32 %v2134, %v2136
    %v2138 = vadd.f32 %v2134, %v2137
    %vm2139 = vweird.f32 %v1188
    %vm2140 = vweird.f32 %v2134
    %vm2141 = vmor %vm2139, %vm2140
    %v2142 = vsel %vm2141, %v2134, %v2138
    %v2143 = vand.u32 2147483647, %v1188
    %vm2144 = vcmp.eq.f32.partialorder %v2143, 8.507059e+37
    %v2145 = vand.u32 %v1188, 2147483648
    %v2146 = vor.u32 1.1754944e-38, %v2145
    %v2147 = vsel %vm2144, %v2146, %v2142
    %v2148 = vmul.f32 1.0, %v2147
    %v2149 = vmul.f32 %v1203, 1.0614054
    %v2150 = vmul.f32 %v1218, 1.0614054
    %v2151 = vmul.f32 %v1233, 1.0614054
    %v2152 = vmul.f32 %v1248, 1.0614054
    %v2153 = vmul.f32 %v1263, 1.0614054
    %v2154 = vmul.f32 %v1278, 1.0614054
    %v2155 = vmul.f32 %v1293, 1.0614054
    %v2156 = vmul.f32 %v1308, 1.0614054
    %v2157 = vmul.f32 %v1323, 1.0614054
    %v2158 = vmul.f32 %v1338, 1.0614054
    %v2159 = vmul.f32 %v1353, 1.0614054
    %v2160 = vmul.f32 %v1368, 1.0614054
    %v2161 = vmul.f32 %v1383, 1.0614054
    %v2162 = vmul.f32 %v1398, 1.0614054
    %v2163 = vmul.f32 %v1413, 1.0614054
    %v2164 = vmul.f32 %v1428, 1.0614054
    %v2165 = vmul.f32 %v1443, 1.0614054
    %v2166 = vmul.f32 %v1458, 1.0614054
    %v2167 = vmul.f32 %v1473, 1.0614054
    %v2168 = vmul.f32 %v1488, 1.0614054
    %v2169 = vmul.f32 %v1503, 1.0614054
    %v2170 = vmul.f32 %v1518, 1.0614054
    %v2171 = vmul.f32 %v1533, 1.0614054
    %v2172 = vmul.f32 %v1548, 1.0614054
    %v2173 = vmul.f32 %v1563, 1.0614054
    %v2174 = vmul.f32 %v1578, 1.0614054
    %v2175 = vmul.f32 %v1593, 1.0614054
    %v2176 = vmul.f32 %v1608, 1.0614054
    %v2177 = vmul.f32 %v1623, 1.0614054
    %v2178 = vmul.f32 %v1638, 1.0614054
    %v2179 = vmul.f32 %v1653, 1.0614054
    %v2180 = vmul.f32 %v1668, 1.0614054
    %v2181 = vmul.f32 %v1683, 1.0614054
    %v2182 = vmul.f32 %v1698, 1.0614054
    %v2183 = vmul.f32 %v1713, 1.0614054
    %v2184 = vmul.f32 %v1728, 1.0614054
    %v2185 = vmul.f32 %v1743, 1.0614054
    %v2186 = vmul.f32 %v1758, 1.0614054
    %v2187 = vmul.f32 %v1773, 1.0614054
    %v2188 = vmul.f32 %v1788, 1.0614054
    %v2189 = vmul.f32 %v1803, 1.0614054
    %v2190 = vmul.f32 %v1818, 1.0614054
    %v2191 = vmul.f32 %v1833, 1.0614054
    %v2192 = vmul.f32 %v1848, 1.0614054
    %v2193 = vmul.f32 %v1863, 1.0614054
    %v2194 = vmul.f32 %v1878, 1.0614054
    %v2195 = vmul.f32 %v1893, 1.0614054
    %v2196 = vmul.f32 %v1908, 1.0614054
    %v2197 = vmul.f32 %v1923, 1.0614054
    %v2198 = vmul.f32 %v1938, 1.0614054
    %v2199 = vmul.f32 %v1953, 1.0614054
    %v2200 = vmul.f32 %v1968, 1.0614054
    %v2201 = vmul.f32 %v1983, 1.0614054
    %v2202 = vmul.f32 %v1998, 1.0614054
    %v2203 = vmul.f32 %v2013, 1.0614054
    %v2204 = vmul.f32 %v2028, 1.0614054
    %v2205 = vmul.f32 %v2043, 1.0614054
    %v2206 = vmul.f32 %v2058, 1.0614054
    %v2207 = vmul.f32 %v2073, 1.0614054
    %v2208 = vmul.f32 %v2088, 1.0614054
    %v2209 = vmul.f32 %v2103, 1.0614054
    %v2210 = vmul.f32 %v2118, 1.0614054
    %v2211 = vmul.f32 %v2133, 1.0614054
    %v2212 = vmul.f32 %v2148, 1.0614054
    %v2213 = vadd.f32 %v2149, -1.4531521
    %v2214 = vadd.f32 %v2150, -1.4531521
    %v2215 = vadd.f32 %v2151, -1.4531521
    %v2216 = vadd.f32 %v2152, -1.4531521
    %v2217 = vadd.f32 %v2153, -1.4531521
    %v2218 = vadd.f32 %v2154, -1.4531521
    %v2219 = vadd.f32 %v2155, -1.4531521
    %v2220 = vadd.f32 %v2156, -1.4531521
    %v2221 = vadd.f32 %v2157, -1.4531521
    %v2222 = vadd.f32 %v2158, -1.4531521
    %v2223 = vadd.f32 %v2159, -1.4531521
    %v2224 = vadd.f32 %v2160, -1.4531521
    %v2225 = vadd.f32 %v2161, -1.4531521
    %v2226 = vadd.f32 %v2162, -1.4531521
    %v2227 = vadd.f32 %v2163, -1.4531521
    %v2228 = vadd.f32 %v2164, -1.4531521
    %v2229 = vadd.f32 %v2165, -1.4531521
    %v2230 = vadd.f32 %v2166, -1.4531521
    %v2231 = vadd.f32 %v2167, -1.4531521
    %v2232 = vadd.f32 %v2168, -1.4531521
    %v2233 = vadd.f32 %v2169, -1.4531521
    %v2234 = vadd.f32 %v2170, -1.4531521
    %v2235 = vadd.f32 %v2171, -1.4531521
    %v2236 = vadd.f32 %v2172, -1.4531521
    %v2237 = vadd.f32 %v2173, -1.4531521
    %v2238 = vadd.f32 %v2174, -1.4531521
    %v2239 = vadd.f32 %v2175, -1.4531521
    %v2240 = vadd.f32 %v2176, -1.4531521
    %v2241 = vadd.f32 %v2177, -1.4531521
    %v2242 = vadd.f32 %v2178, -1.4531521
    %v2243 = vadd.f32 %v2179, -1.4531521
    %v2244 = vadd.f32 %v2180, -1.4531521
    %v2245 = vadd.f32 %v2181, -1.4531521
    %v2246 = vadd.f32 %v2182, -1.4531521
    %v2247 = vadd.f32 %v2183, -1.4531521
    %v2248 = vadd.f32 %v2184, -1.4531521
    %v2249 = vadd.f32 %v2185, -1.4531521
    %v2250 = vadd.f32 %v2186, -1.4531521
    %v2251 = vadd.f32 %v2187, -1.4531521
    %v2252 = vadd.f32 %v2188, -1.4531521
    %v2253 = vadd.f32 %v2189, -1.4531521
    %v2254 = vadd.f32 %v2190, -1.4531521
    %v2255 = vadd.f32 %v2191, -1.4531521
    %v2256 = vadd.f32 %v2192, -1.4531521
    %v2257 = vadd.f32 %v2193, -1.4531521
    %v2258 = vadd.f32 %v2194, -1.4531521
    %v2259 = vadd.f32 %v2195, -1.4531521
    %v2260 = vadd.f32 %v2196, -1.4531521
    %v2261 = vadd.f32 %v2197, -1.4531521
    %v2262 = vadd.f32 %v2198, -1.4531521
    %v2263 = vadd.f32 %v2199, -1.4531521
    %v2264 = vadd.f32 %v2200, -1.4531521
    %v2265 = vadd.f32 %v2201, -1.4531521
    %v2266 = vadd.f32 %v2202, -1.4531521
    %v2267 = vadd.f32 %v2203, -1.4531521
    %v2268 = vadd.f32 %v2204, -1.4531521
    %v2269 = vadd.f32 %v2205, -1.4531521
    %v2270 = vadd.f32 %v2206, -1.4531521
    %v2271 = vadd.f32 %v2207, -1.4531521
    %v2272 = vadd.f32 %v2208, -1.4531521
    %v2273 = vadd.f32 %v2209, -1.4531521
    %v2274 = vadd.f32 %v2210, -1.4531521
    %v2275 = vadd.f32 %v2211, -1.4531521
    %v2276 = vadd.f32 %v2212, -1.4531521
    %v2277 = vmul.f32 %v2213, %v1203
    %v2278 = vmul.f32 %v2214, %v1218
    %v2279 = vmul.f32 %v2215, %v1233
    %v2280 = vmul.f32 %v2216, %v1248
    %v2281 = vmul.f32 %v2217, %v1263
    %v2282 = vmul.f32 %v2218, %v1278
    %v2283 = vmul.f32 %v2219, %v1293
    %v2284 = vmul.f32 %v2220, %v1308
    %v2285 = vmul.f32 %v2221, %v1323
    %v2286 = vmul.f32 %v2222, %v1338
    %v2287 = vmul.f32 %v2223, %v1353
    %v2288 = vmul.f32 %v2224, %v1368
    %v2289 = vmul.f32 %v2225, %v1383
    %v2290 = vmul.f32 %v2226, %v1398
    %v2291 = vmul.f32 %v2227, %v1413
    %v2292 = vmul.f32 %v2228, %v1428
    %v2293 = vmul.f32 %v2229, %v1443
    %v2294 = vmul.f32 %v2230, %v1458
    %v2295 = vmul.f32 %v2231, %v1473
    %v2296 = vmul.f32 %v2232, %v1488
    %v2297 = vmul.f32 %v2233, %v1503
    %v2298 = vmul.f32 %v2234, %v1518
    %v2299 = vmul.f32 %v2235, %v1533
    %v2300 = vmul.f32 %v2236, %v1548
    %v2301 = vmul.f32 %v2237, %v1563
    %v2302 = vmul.f32 %v2238, %v1578
    %v2303 = vmul.f32 %v2239, %v1593
    %v2304 = vmul.f32 %v2240, %v1608
    %v2305 = vmul.f32 %v2241, %v1623
    %v2306 = vmul.f32 %v2242, %v1638
    %v2307 = vmul.f32 %v2243, %v1653
    %v2308 = vmul.f32 %v2244, %v1668
    %v2309 = vmul.f32 %v2245, %v1683
    %v2310 = vmul.f32 %v2246, %v1698
    %v2311 = vmul.f32 %v2247, %v1713
    %v2312 = vmul.f32 %v2248, %v1728
    %v2313 = vmul.f32 %v2249, %v1743
    %v2314 = vmul.f32 %v2250, %v1758
    %v2315 = vmul.f32 %v2251, %v1773
    %v2316 = vmul.f32 %v2252, %v1788
    %v2317 = vmul.f32 %v2253, %v1803
    %v2318 = vmul.f32 %v2254, %v1818
    %v2319 = vmul.f32 %v2255, %v1833
    %v2320 = vmul.f32 %v2256, %v1848
    %v2321 = vmul.f32 %v2257, %v1863
    %v2322 = vmul.f32 %v2258, %v1878
    %v2323 = vmul.f32 %v2259, %v1893
    %v2324 = vmul.f32 %v2260, %v1908
    %v2325 = vmul.f32 %v2261, %v1923
    %v2326 = vmul.f32 %v2262, %v1938
    %v2327 = vmul.f32 %v2263, %v1953
    %v2328 = vmul.f32 %v2264, %v1968
    %v2329 = vmul.f32 %v2265, %v1983
    %v2330 = vmul.f32 %v2266, %v1998
    %v2331 = vmul.f32 %v2267, %v2013
    %v2332 = vmul.f32 %v2268, %v2028
    %v2333 = vmul.f32 %v2269, %v2043
    %v2334 = vmul.f32 %v2270, %v2058
    %v2335 = vmul.f32 %v2271, %v2073
    %v2336 = vmul.f32 %v2272, %v2088
    %v2337 = vmul.f32 %v2273, %v2103
    %v2338 = vmul.f32 %v2274, %v2118
    %v2339 = vmul.f32 %v2275, %v2133
    %v2340 = vmul.f32 %v2276, %v2148
    %v2341 = vadd.f32 %v2277, 1.4214138
    %v2342 = vadd.f32 %v2278, 1.4214138
    %v2343 = vadd.f32 %v2279, 1.4214138
    %v2344 = vadd.f32 %v2280, 1.4214138
    %v2345 = vadd.f32 %v2281, 1.4214138
    %v2346 = vadd.f32 %v2282, 1.4214138
    %v2347 = vadd.f32 %v2283, 1.4214138
    %v2348 = vadd.f32 %v2284, 1.4214138
    %v2349 = vadd.f32 %v2285, 1.4214138
    %v2350 = vadd.f32 %v2286, 1.4214138
    %v2351 = vadd.f32 %v2287, 1.4214138
    %v2352 = vadd.f32 %v2288, 1.4214138
    %v2353 = vadd.f32 %v2289, 1.4214138
    %v2354 = vadd.f32 %v2290, 1.4214138
    %v2355 = vadd.f32 %v2291, 1.4214138
    %v2356 = vadd.f32 %v2292, 1.4214138
    %v2357 = vadd.f32 %v2293, 1.4214138
    %v2358 = vadd.f32 %v2294, 1.4214138
    %v2359 = vadd.f32 %v2295, 1.4214138
    %v2360 = vadd.f32 %v2296, 1.4214138
    %v2361 = vadd.f32 %v2297, 1.4214138
    %v2362 = vadd.f32 %v2298, 1.4214138
    %v2363 = vadd.f32 %v2299, 1.4214138
    %v2364 = vadd.f32 %v2300, 1.4214138
    %v2365 = vadd.f32 %v2301, 1.4214138
    %v2366 = vadd.f32 %v2302, 1.4214138
    %v2367 = vadd.f32 %v2303, 1.4214138
    %v2368 = vadd.f32 %v2304, 1.4214138
    %v2369 = vadd.f32 %v2305, 1.4214138
    %v2370 = vadd.f32 %v2306, 1.4214138
    %v2371 = vadd.f32 %v2307, 1.4214138
    %v2372 = vadd.f32 %v2308, 1.4214138
    %v2373 = vadd.f32 %v2309, 1.4214138
    %v2374 = vadd.f32 %v2310, 1.4214138
    %v2375 = vadd.f32 %v2311, 1.4214138
    %v2376 = vadd.f32 %v2312, 1.4214138
    %v2377 = vadd.f32 %v2313, 1.4214138
    %v2378 = vadd.f32 %v2314, 1.4214138
    %v2379 = vadd.f32 %v2315, 1.4214138
    %v2380 = vadd.f32 %v2316, 1.4214138
    %v2381 = vadd.f32 %v2317, 1.4214138
    %v2382 = vadd.f32 %v2318, 1.4214138
    %v2383 = vadd.f32 %v2319, 1.4214138
    %v2384 = vadd.f32 %v2320, 1.4214138
    %v2385 = vadd.f32 %v2321, 1.4214138
    %v2386 = vadd.f32 %v2322, 1.4214138
    %v2387 = vadd.f32 %v2323, 1.4214138
    %v2388 = vadd.f32 %v2324, 1.4214138
    %v2389 = vadd.f32 %v2325, 1.4214138
    %v2390 = vadd.f32 %v2326, 1.4214138
    %v2391 = vadd.f32 %v2327, 1.4214138
    %v2392 = vadd.f32 %v2328, 1.4214138
    %v2393 = vadd.f32 %v2329, 1.4214138
    %v2394 = vadd.f32 %v2330, 1.4214138
    %v2395 = vadd.f32 %v2331, 1.4214138
    %v2396 = vadd.f32 %v2332, 1.4214138
    %v2397 = vadd.f32 %v2333, 1.4214138
    %v2398 = vadd.f32 %v2334, 1.4214138
    %v2399 = vadd.f32 %v2335, 1.4214138
    %v2400 = vadd.f32 %v2336, 1.4214138
    %v2401 = vadd.f32 %v2337, 1.4214138
    %v2402 = vadd.f32 %v2338, 1.4214138
    %v2403 = vadd.f32 %v2339, 1.4214138
    %v2404 = vadd.f32 %v2340, 1.4214138
    %v2405 = vmul.f32 %v2341, %v1203
    %v2406 = vmul.f32 %v2342, %v1218
    %v2407 = vmul.f32 %v2343, %v1233
    %v2408 = vmul.f32 %v2344, %v1248
    %v2409 = vmul.f32 %v2345, %v1263
    %v2410 = vmul.f32 %v2346, %v1278
    %v2411 = vmul.f32 %v2347, %v1293
    %v2412 = vmul.f32 %v2348, %v1308
    %v2413 = vmul.f32 %v2349, %v1323
    %v2414 = vmul.f32 %v2350, %v1338
    %v2415 = vmul.f32 %v2351, %v1353
    %v2416 = vmul.f32 %v2352, %v1368
    %v2417 = vmul.f32 %v2353, %v1383
    %v2418 = vmul.f32 %v2354, %v1398
    %v2419 = vmul.f32 %v2355, %v1413
    %v2420 = vmul.f32 %v2356, %v1428
    %v2421 = vmul.f32 %v2357, %v1443
    %v2422 = vmul.f32 %v2358, %v1458
    %v2423 = vmul.f32 %v2359, %v1473
    %v2424 = vmul.f32 %v2360, %v1488
    %v2425 = vmul.f32 %v2361, %v1503
    %v2426 = vmul.f32 %v2362, %v1518
    %v2427 = vmul.f32 %v2363, %v1533
    %v2428 = vmul.f32 %v2364, %v1548
    %v2429 = vmul.f32 %v2365, %v1563
    %v2430 = vmul.f32 %v2366, %v1578
    %v2431 = vmul.f32 %v2367, %v1593
    %v2432 = vmul.f32 %v2368, %v1608
    %v2433 = vmul.f32 %v2369, %v1623
    %v2434 = vmul.f32 %v2370, %v1638
    %v2435 = vmul.f32 %v2371, %v1653
    %v2436 = vmul.f32 %v2372, %v1668
    %v2437 = vmul.f32 %v2373, %v1683
    %v2438 = vmul.f32 %v2374, %v1698
    %v2439 = vmul.f32 %v2375, %v1713
    %v2440 = vmul.f32 %v2376, %v1728
    %v2441 = vmul.f32 %v2377, %v1743
    %v2442 = vmul.f32 %v2378, %v1758
    %v2443 = vmul.f32 %v2379, %v1773
    %v2444 = vmul.f32 %v2380, %v1788
    %v2445 = vmul.f32 %v2381, %v1803
    %v2446 = vmul.f32 %v2382, %v1818
    %v2447 = vmul.f32 %v2383, %v1833
    %v2448 = vmul.f32 %v2384, %v1848
    %v2449 = vmul.f32 %v2385, %v1863
    %v2450 = vmul.f32 %v2386, %v1878
    %v2451 = vmul.f32 %v2387, %v1893
    %v2452 = vmul.f32 %v2388, %v1908
    %v2453 = vmul.f32 %v2389, %v1923
    %v2454 = vmul.f32 %v2390, %v1938
    %v2455 = vmul.f32 %v2391, %v1953
    %v2456 = vmul.f32 %v2392, %v1968
    %v2457 = vmul.f32 %v2393, %v1983
    %v2458 = vmul.f32 %v2394, %v1998
    %v2459 = vmul.f32 %v2395, %v2013
    %v2460 = vmul.f32 %v2396, %v2028
    %v2461 = vmul.f32 %v2397, %v2043
    %v2462 = vmul.f32 %v2398, %v2058
    %v2463 = vmul.f32 %v2399, %v2073
    %v2464 = vmul.f32 %v2400, %v2088
    %v2465 = vmul.f32 %v2401, %v2103
    %v2466 = vmul.f32 %v2402, %v2118
    %v2467 = vmul.f32 %v2403, %v2133
    %v2468 = vmul.f32 %v2404, %v2148
    %v2469 = vadd.f32 %v2405, -0.28449672
    %v2470 = vadd.f32 %v2406, -0.28449672
    %v2471 = vadd.f32 %v2407, -0.28449672
    %v2472 = vadd.f32 %v2408, -0.28449672
    %v2473 = vadd.f32 %v2409, -0.28449672
    %v2474 = vadd.f32 %v2410, -0.28449672
    %v2475 = vadd.f32 %v2411, -0.28449672
    %v2476 = vadd.f32 %v2412, -0.28449672
    %v2477 = vadd.f32 %v2413, -0.28449672
    %v2478 = vadd.f32 %v2414, -0.28449672
    %v2479 = vadd.f32 %v2415, -0.28449672
    %v2480 = vadd.f32 %v2416, -0.28449672
    %v2481 = vadd.f32 %v2417, -0.28449672
    %v2482 = vadd.f32 %v2418, -0.28449672
    %v2483 = vadd.f32 %v2419, -0.28449672
    %v2484 = vadd.f32 %v2420, -0.28449672
    %v2485 = vadd.f32 %v2421, -0.28449672
    %v2486 = vadd.f32 %v2422, -0.28449672
    %v2487 = vadd.f32 %v2423, -0.28449672
    %v2488 = vadd.f32 %v2424, -0.28449672
    %v2489 = vadd.f32 %v2425, -0.28449672
    %v2490 = vadd.f32 %v2426, -0.28449672
    %v2491 = vadd.f32 %v2427, -0.28449672
    %v2492 = vadd.f32 %v2428, -0.28449672
    %v2493 = vadd.f32 %v2429, -0.28449672
    %v2494 = vadd.f32 %v2430, -0.28449672
    %v2495 = vadd.f32 %v2431, -0.28449672
    %v2496 = vadd.f32 %v2432, -0.28449672
    %v2497 = vadd.f32 %v2433, -0.28449672
    %v2498 = vadd.f32 %v2434, -0.28449672
    %v2499 = vadd.f32 %v2435, -0.28449672
    %v2500 = vadd.f32 %v2436, -0.28449672
    %v2501 = vadd.f32 %v2437, -0.28449672
    %v2502 = vadd.f32 %v2438, -0.28449672
    %v2503 = vadd.f32 %v2439, -0.28449672
    %v2504 = vadd.f32 %v2440, -0.28449672
    %v2505 = vadd.f32 %v2441, -0.28449672
    %v2506 = vadd.f32 %v2442, -0.28449672
    %v2507 = vadd.f32 %v2443, -0.28449672
    %v2508 = vadd.f32 %v2444, -0.28449672
    %v2509 = vadd.f32 %v2445, -0.28449672
    %v2510 = vadd.f32 %v2446, -0.28449672
    %v2511 = vadd.f32 %v2447, -0.28449672
    %v2512 = vadd.f32 %v2448, -0.28449672
    %v2513 = vadd.f32 %v2449, -0.28449672
    %v2514 = vadd.f32 %v2450, -0.28449672
    %v2515 = vadd.f32 %v2451, -0.28449672
    %v2516 = vadd.f32 %v2452, -0.28449672
    %v2517 = vadd.f32 %v2453, -0.28449672
    %v2518 = vadd.f32 %v2454, -0.28449672
    %v2519 = vadd.f32 %v2455, -0.28449672
    %v2520 = vadd.f32 %v2456, -0.28449672
    %v2521 = vadd.f32 %v2457, -0.28449672
    %v2522 = vadd.f32 %v2458, -0.28449672
    %v2523 = vadd.f32 %v2459, -0.28449672
    %v2524 = vadd.f32 %v2460, -0.28449672
    %v2525 = vadd.f32 %v2461, -0.28449672
    %v2526 = vadd.f32 %v2462, -0.28449672
    %v2527 = vadd.f32 %v2463, -0.28449672
    %v2528 = vadd.f32 %v2464, -0.28449672
    %v2529 = vadd.f32 %v2465, -0.28449672
    %v2530 = vadd.f32 %v2466, -0.28449672
    %v2531 = vadd.f32 %v2467, -0.28449672
    %v2532 = vadd.f32 %v2468, -0.28449672
    %v2533 = vmul.f32 %v2469, %v1203
    %v2534 = vmul.f32 %v2470, %v1218
    %v2535 = vmul.f32 %v2471, %v1233
    %v2536 = vmul.f32 %v2472, %v1248
    %v2537 = vmul.f32 %v2473, %v1263
    %v2538 = vmul.f32 %v2474, %v1278
    %v2539 = vmul.f32 %v2475, %v1293
    %v2540 = vmul.f32 %v2476, %v1308
    %v2541 = vmul.f32 %v2477, %v1323
    %v2542 = vmul.f32 %v2478, %v1338
    %v2543 = vmul.f32 %v2479, %v1353
    %v2544 = vmul.f32 %v2480, %v1368
    %v2545 = vmul.f32 %v2481, %v1383
    %v2546 = vmul.f32 %v2482, %v1398
    %v2547 = vmul.f32 %v2483, %v1413
    %v2548 = vmul.f32 %v2484, %v1428
    %v2549 = vmul.f32 %v2485, %v1443
    %v2550 = vmul.f32 %v2486, %v1458
    %v2551 = vmul.f32 %v2487, %v1473
    %v2552 = vmul.f32 %v2488, %v1488
    %v2553 = vmul.f32 %v2489, %v1503
    %v2554 = vmul.f32 %v2490, %v1518
    %v2555 = vmul.f32 %v2491, %v1533
    %v2556 = vmul.f32 %v2492, %v1548
    %v2557 = vmul.f32 %v2493, %v1563
    %v2558 = vmul.f32 %v2494, %v1578
    %v2559 = vmul.f32 %v2495, %v1593
    %v2560 = vmul.f32 %v2496, %v1608
    %v2561 = vmul.f32 %v2497, %v1623
    %v2562 = vmul.f32 %v2498, %v1638
    %v2563 = vmul.f32 %v2499, %v1653
    %v2564 = vmul.f32 %v2500, %v1668
    %v2565 = vmul.f32 %v2501, %v1683
    %v2566 = vmul.f32 %v2502, %v1698
    %v2567 = vmul.f32 %v2503, %v1713
    %v2568 = vmul.f32 %v2504, %v1728
    %v2569 = vmul.f32 %v2505, %v1743
    %v2570 = vmul.f32 %v2506, %v1758
    %v2571 = vmul.f32 %v2507, %v1773
    %v2572 = vmul.f32 %v2508, %v1788
    %v2573 = vmul.f32 %v2509, %v1803
    %v2574 = vmul.f32 %v2510, %v1818
    %v2575 = vmul.f32 %v2511, %v1833
    %v2576 = vmul.f32 %v2512, %v1848
    %v2577 = vmul.f32 %v2513, %v1863
    %v2578 = vmul.f32 %v2514, %v1878
    %v2579 = vmul.f32 %v2515, %v1893
    %v2580 = vmul.f32 %v2516, %v1908
    %v2581 = vmul.f32 %v2517, %v1923
    %v2582 = vmul.f32 %v2518, %v1938
    %v2583 = vmul.f32 %v2519, %v1953
    %v2584 = vmul.f32 %v2520, %v1968
    %v2585 = vmul.f32 %v2521, %v1983
    %v2586 = vmul.f32 %v2522, %v1998
    %v2587 = vmul.f32 %v2523, %v2013
    %v2588 = vmul.f32 %v2524, %v2028
    %v2589 = vmul.f32 %v2525, %v2043
    %v2590 = vmul.f32 %v2526, %v2058
    %v2591 = vmul.f32 %v2527, %v2073
    %v2592 = vmul.f32 %v2528, %v2088
    %v2593 = vmul.f32 %v2529, %v2103
    %v2594 = vmul.f32 %v2530, %v2118
    %v2595 = vmul.f32 %v2531, %v2133
    %v2596 = vmul.f32 %v2532, %v2148
    %v2597 = vadd.f32 %v2533, 0.2548296
    %v2598 = vadd.f32 %v2534, 0.2548296
    %v2599 = vadd.f32 %v2535, 0.2548296
    %v2600 = vadd.f32 %v2536, 0.2548296
    %v2601 = vadd.f32 %v2537, 0.2548296
    %v2602 = vadd.f32 %v2538, 0.2548296
    %v2603 = vadd.f32 %v2539, 0.2548296
    %v2604 = vadd.f32 %v2540, 0.2548296
    %v2605 = vadd.f32 %v2541, 0.2548296
    %v2606 = vadd.f32 %v2542, 0.2548296
    %v2607 = vadd.f32 %v2543, 0.2548296
    %v2608 = vadd.f32 %v2544, 0.2548296
    %v2609 = vadd.f32 %v2545, 0.2548296
    %v2610 = vadd.f32 %v2546, 0.2548296
    %v2611 = vadd.f32 %v2547, 0.2548296
    %v2612 = vadd.f32 %v2548, 0.2548296
    %v2613 = vadd.f32 %v2549, 0.2548296
    %v2614 = vadd.f32 %v2550, 0.2548296
    %v2615 = vadd.f32 %v2551, 0.2548296
    %v2616 = vadd.f32 %v2552, 0.2548296
    %v2617 = vadd.f32 %v2553, 0.2548296
    %v2618 = vadd.f32 %v2554, 0.2548296
    %v2619 = vadd.f32 %v2555, 0.2548296
    %v2620 = vadd.f32 %v2556, 0.2548296
    %v2621 = vadd.f32 %v2557, 0.2548296
    %v2622 = vadd.f32 %v2558, 0.2548296
    %v2623 = vadd.f32 %v2559, 0.2548296
    %v2624 = vadd.f32 %v2560, 0.2548296
    %v2625 = vadd.f32 %v2561, 0.2548296
    %v2626 = vadd.f32 %v2562, 0.2548296
    %v2627 = vadd.f32 %v2563, 0.2548296
    %v2628 = vadd.f32 %v2564, 0.2548296
    %v2629 = vadd.f32 %v2565, 0.2548296
    %v2630 = vadd.f32 %v2566, 0.2548296
    %v2631 = vadd.f32 %v2567, 0.2548296
    %v2632 = vadd.f32 %v2568, 0.2548296
    %v2633 = vadd.f32 %v2569, 0.2548296
    %v2634 = vadd.f32 %v2570, 0.2548296
    %v2635 = vadd.f32 %v2571, 0.2548296
    %v2636 = vadd.f32 %v2572, 0.2548296
    %v2637 = vadd.f32 %v2573, 0.2548296
    %v2638 = vadd.f32 %v2574, 0.2548296
    %v2639 = vadd.f32 %v2575, 0.2548296
    %v2640 = vadd.f32 %v2576, 0.2548296
    %v2641 = vadd.f32 %v2577, 0.2548296
    %v2642 = vadd.f32 %v2578, 0.2548296
    %v2643 = vadd.f32 %v2579, 0.2548296
    %v2644 = vadd.f32 %v2580, 0.2548296
    %v2645 = vadd.f32 %v2581, 0.2548296
    %v2646 = vadd.f32 %v2582, 0.2548296
    %v2647 = vadd.f32 %v2583, 0.2548296
    %v2648 = vadd.f32 %v2584, 0.2548296
    %v2649 = vadd.f32 %v2585, 0.2548296
    %v2650 = vadd.f32 %v2586, 0.2548296
    %v2651 = vadd.f32 %v2587, 0.2548296
    %v2652 = vadd.f32 %v2588, 0.2548296
    %v2653 = vadd.f32 %v2589, 0.2548296
    %v2654 = vadd.f32 %v2590, 0.2548296
    %v2655 = vadd.f32 %v2591, 0.2548296
    %v2656 = vadd.f32 %v2592, 0.2548296
    %v2657 = vadd.f32 %v2593, 0.2548296
    %v2658 = vadd.f32 %v2594, 0.2548296
    %v2659 = vadd.f32 %v2595, 0.2548296
    %v2660 = vadd.f32 %v2596, 0.2548296
    %v2661 = vmul.f32 %v2597, %v1203
    %v2662 = vmul.f32 %v2598, %v1218
    %v2663 = vmul.f32 %v2599, %v1233
    %v2664 = vmul.f32 %v2600, %v1248
    %v2665 = vmul.f32 %v2601, %v1263
    %v2666 = vmul.f32 %v2602, %v1278
    %v2667 = vmul.f32 %v2603, %v1293
    %v2668 = vmul.f32 %v2604, %v1308
    %v2669 = vmul.f32 %v2605, %v1323
    %v2670 = vmul.f32 %v2606, %v1338
    %v2671 = vmul.f32 %v2607, %v1353
    %v2672 = vmul.f32 %v2608, %v1368
    %v2673 = vmul.f32 %v2609, %v1383
    %v2674 = vmul.f32 %v2610, %v1398
    %v2675 = vmul.f32 %v2611, %v1413
    %v2676 = vmul.f32 %v2612, %v1428
    %v2677 = vmul.f32 %v2613, %v1443
    %v2678 = vmul.f32 %v2614, %v1458
    %v2679 = vmul.f32 %v2615, %v1473
    %v2680 = vmul.f32 %v2616, %v1488
    %v2681 = vmul.f32 %v2617, %v1503
    %v2682 = vmul.f32 %v2618, %v1518
    %v2683 = vmul.f32 %v2619, %v1533
    %v2684 = vmul.f32 %v2620, %v1548
    %v2685 = vmul.f32 %v2621, %v1563
    %v2686 = vmul.f32 %v2622, %v1578
    %v2687 = vmul.f32 %v2623, %v1593
    %v2688 = vmul.f32 %v2624, %v1608
    %v2689 = vmul.f32 %v2625, %v1623
    %v2690 = vmul.f32 %v2626, %v1638
    %v2691 = vmul.f32 %v2627, %v1653
    %v2692 = vmul.f32 %v2628, %v1668
    %v2693 = vmul.f32 %v2629, %v1683
    %v2694 = vmul.f32 %v2630, %v1698
    %v2695 = vmul.f32 %v2631, %v1713
    %v2696 = vmul.f32 %v2632, %v1728
    %v2697 = vmul.f32 %v2633, %v1743
    %v2698 = vmul.f32 %v2634, %v1758
    %v2699 = vmul.f32 %v2635, %v1773
    %v2700 = vmul.f32 %v2636, %v1788
    %v2701 = vmul.f32 %v2637, %v1803
    %v2702 = vmul.f32 %v2638, %v1818
    %v2703 = vmul.f32 %v2639, %v1833
    %v2704 = vmul.f32 %v2640, %v1848
    %v2705 = vmul.f32 %v2641, %v1863
    %v2706 = vmul.f32 %v2642, %v1878
    %v2707 = vmul.f32 %v2643, %v1893
    %v2708 = vmul.f32 %v2644, %v1908
    %v2709 = vmul.f32 %v2645, %v1923
    %v2710 = vmul.f32 %v2646, %v1938
    %v2711 = vmul.f32 %v2647, %v1953
    %v2712 = vmul.f32 %v2648, %v1968
    %v2713 = vmul.f32 %v2649, %v1983
    %v2714 = vmul.f32 %v2650, %v1998
    %v2715 = vmul.f32 %v2651, %v2013
    %v2716 = vmul.f32 %v2652, %v2028
    %v2717 = vmul.f32 %v2653, %v2043
    %v2718 = vmul.f32 %v2654, %v2058
    %v2719 = vmul.f32 %v2655, %v2073
    %v2720 = vmul.f32 %v2656, %v2088
    %v2721 = vmul.f32 %v2657, %v2103
    %v2722 = vmul.f32 %v2658, %v2118
    %v2723 = vmul.f32 %v2659, %v2133
    %v2724 = vmul.f32 %v2660, %v2148
    %v2725 = vsub.f32 0.0, %v997
    %v2726 = vsub.f32 0.0, %v998
    %v2727 = vsub.f32 0.0, %v999
    %v2728 = vsub.f32 0.0, %v1000
    %v2729 = vsub.f32 0.0, %v1001
    %v2730 = vsub.f32 0.0, %v1002
    %v2731 = vsub.f32 0.0, %v1003
    %v2732 = vsub.f32 0.0, %v1004
    %v2733 = vsub.f32 0.0, %v1005
    %v2734 = vsub.f32 0.0, %v1006
    %v2735 = vsub.f32 0.0, %v1007
    %v2736 = vsub.f32 0.0, %v1008
    %v2737 = vsub.f32 0.0, %v1009
    %v2738 = vsub.f32 0.0, %v1010
    %v2739 = vsub.f32 0.0, %v1011
    %v2740 = vsub.f32 0.0, %v1012
    %v2741 = vsub.f32 0.0, %v1013
    %v2742 = vsub.f32 0.0, %v1014
    %v2743 = vsub.f32 0.0, %v1015
    %v2744 = vsub.f32 0.0, %v1016
    %v2745 = vsub.f32 0.0, %v1017
    %v2746 = vsub.f32 0.0, %v1018
    %v2747 = vsub.f32 0.0, %v1019
    %v2748 = vsub.f32 0.0, %v1020
    %v2749 = vsub.f32 0.0, %v1021
    %v2750 = vsub.f32 0.0, %v1022
    %v2751 = vsub.f32 0.0, %v1023
    %v2752 = vsub.f32 0.0, %v1024
    %v2753 = vsub.f32 0.0, %v1025
    %v2754 = vsub.f32 0.0, %v1026
    %v2755 = vsub.f32 0.0, %v1027
    %v2756 = vsub.f32 0.0, %v1028
    %v2757 = vsub.f32 0.0, %v1029
    %v2758 = vsub.f32 0.0, %v1030
    %v2759 = vsub.f32 0.0, %v1031
    %v2760 = vsub.f32 0.0, %v1032
    %v2761 = vsub.f32 0.0, %v1033
    %v2762 = vsub.f32 0.0, %v1034
    %v2763 = vsub.f32 0.0, %v1035
    %v2764 = vsub.f32 0.0, %v1036
    %v2765 = vsub.f32 0.0, %v1037
    %v2766 = vsub.f32 0.0, %v1038
    %v2767 = vsub.f32 0.0, %v1039
    %v2768 = vsub.f32 0.0, %v1040
    %v2769 = vsub.f32 0.0, %v1041
    %v2770 = vsub.f32 0.0, %v1042
    %v2771 = vsub.f32 0.0, %v1043
    %v2772 = vsub.f32 0.0, %v1044
    %v2773 = vsub.f32 0.0, %v1045
    %v2774 = vsub.f32 0.0, %v1046
    %v2775 = vsub.f32 0.0, %v1047
    %v2776 = vsub.f32 0.0, %v1048
    %v2777 = vsub.f32 0.0, %v1049
    %v2778 = vsub.f32 0.0, %v1050
    %v2779 = vsub.f32 0.0, %v1051
    %v2780 = vsub.f32 0.0, %v1052
    %v2781 = vsub.f32 0.0, %v1053
    %v2782 = vsub.f32 0.0, %v1054
    %v2783 = vsub.f32 0.0, %v1055
    %v2784 = vsub.f32 0.0, %v1056
    %v2785 = vsub.f32 0.0, %v1057
    %v2786 = vsub.f32 0.0, %v1058
    %v2787 = vsub.f32 0.0, %v1059
    %v2788 = vsub.f32 0.0, %v1060
    %v2789 = vmul.f32 %v2725, %v997
    %v2790 = vmul.f32 %v2726, %v998
    %v2791 = vmul.f32 %v2727, %v999
    %v2792 = vmul.f32 %v2728, %v1000
    %v2793 = vmul.f32 %v2729, %v1001
    %v2794 = vmul.f32 %v2730, %v1002
    %v2795 = vmul.f32 %v2731, %v1003
    %v2796 = vmul.f32 %v2732, %v1004
    %v2797 = vmul.f32 %v2733, %v1005
    %v2798 = vmul.f32 %v2734, %v1006
    %v2799 = vmul.f32 %v2735, %v1007
    %v2800 = vmul.f32 %v2736, %v1008
    %v2801 = vmul.f32 %v2737, %v1009
    %v2802 = vmul.f32 %v2738, %v1010
    %v2803 = vmul.f32 %v2739, %v1011
    %v2804 = vmul.f32 %v2740, %v1012
    %v2805 = vmul.f32 %v2741, %v1013
    %v2806 = vmul.f32 %v2742, %v1014
    %v2807 = vmul.f32 %v2743, %v1015
    %v2808 = vmul.f32 %v2744, %v1016
    %v2809 = vmul.f32 %v2745, %v1017
    %v2810 = vmul.f32 %v2746, %v1018
    %v2811 = vmul.f32 %v2747, %v1019
    %v2812 = vmul.f32 %v2748, %v1020
    %v2813 = vmul.f32 %v2749, %v1021
    %v2814 = vmul.f32 %v2750, %v1022
    %v2815 = vmul.f32 %v2751, %v1023
    %v2816 = vmul.f32 %v2752, %v1024
    %v2817 = vmul.f32 %v2753, %v1025
    %v2818 = vmul.f32 %v2754, %v1026
    %v2819 = vmul.f32 %v2755, %v1027
    %v2820 = vmul.f32 %v2756, %v1028
    %v2821 = vmul.f32 %v2757, %v1029
    %v2822 = vmul.f32 %v2758, %v1030
    %v2823 = vmul.f32 %v2759, %v1031
    %v2824 = vmul.f32 %v2760, %v1032
    %v2825 = vmul.f32 %v2761, %v1033
    %v2826 = vmul.f32 %v2762, %v1034
    %v2827 = vmul.f32 %v2763, %v1035
    %v2828 = vmul.f32 %v2764, %v1036
    %v2829 = vmul.f32 %v2765, %v1037
    %v2830 = vmul.f32 %v2766, %v1038
    %v2831 = vmul.f32 %v2767, %v1039
    %v2832 = vmul.f32 %v2768, %v1040
    %v2833 = vmul.f32 %v2769, %v1041
    %v2834 = vmul.f32 %v2770, %v1042
    %v2835 = vmul.f32 %v2771, %v1043
    %v2836 = vmul.f32 %v2772, %v1044
    %v2837 = vmul.f32 %v2773, %v1045
    %v2838 = vmul.f32 %v2774, %v1046
    %v2839 = vmul.f32 %v2775, %v1047
    %v2840 = vmul.f32 %v2776, %v1048
    %v2841 = vmul.f32 %v2777, %v1049
    %v2842 = vmul.f32 %v2778, %v1050
    %v2843 = vmul.f32 %v2779, %v1051
    %v2844 = vmul.f32 %v2780, %v1052
    %v2845 = vmul.f32 %v2781, %v1053
    %v2846 = vmul.f32 %v2782, %v1054
    %v2847 = vmul.f32 %v2783, %v1055
    %v2848 = vmul.f32 %v2784, %v1056
    %v2849 = vmul.f32 %v2785, %v1057
    %v2850 = vmul.f32 %v2786, %v1058
    %v2851 = vmul.f32 %v2787, %v1059
    %v2852 = vmul.f32 %v2788, %v1060
    %v2853 = vmul.f32 %v2789, 1.442695
    %v2854 = vpow.pop %v2853
    %v2855 = vmul.f32 %v2790, 1.442695
    %v2856 = vpow.pop %v2855
    %v2857 = vmul.f32 %v2791, 1.442695
    %v2858 = vpow.pop %v2857
    %v2859 = vmul.f32 %v2792, 1.442695
    %v2860 = vpow.pop %v2859
    %v2861 = vmul.f32 %v2793, 1.442695
    %v2862 = vpow.pop %v2861
    %v2863 = vmul.f32 %v2794, 1.442695
    %v2864 = vpow.pop %v2863
    %v2865 = vmul.f32 %v2795, 1.442695
    %v2866 = vpow.pop %v2865
    %v2867 = vmul.f32 %v2796, 1.442695
    %v2868 = vpow.pop %v2867
    %v2869 = vmul.f32 %v2797, 1.442695
    %v2870 = vpow.pop %v2869
    %v2871 = vmul.f32 %v2798, 1.442695
    %v2872 = vpow.pop %v2871
    %v2873 = vmul.f32 %v2799, 1.442695
    %v2874 = vpow.pop %v2873
    %v2875 = vmul.f32 %v2800, 1.442695
    %v2876 = vpow.pop %v2875
    %v2877 = vmul.f32 %v2801, 1.442695
    %v2878 = vpow.pop %v2877
    %v2879 = vmul.f32 %v2802, 1.442695
    %v2880 = vpow.pop %v2879
    %v2881 = vmul.f32 %v2803, 1.442695
    %v2882 = vpow.pop %v2881
    %v2883 = vmul.f32 %v2804, 1.442695
    %v2884 = vpow.pop %v2883
    %v2885 = vmul.f32 %v2805, 1.442695
    %v2886 = vpow.pop %v2885
    %v2887 = vmul.f32 %v2806, 1.442695
    %v2888 = vpow.pop %v2887
    %v2889 = vmul.f32 %v2807, 1.442695
    %v2890 = vpow.pop %v2889
    %v2891 = vmul.f32 %v2808, 1.442695
    %v2892 = vpow.pop %v2891
    %v2893 = vmul.f32 %v2809, 1.442695
    %v2894 = vpow.pop %v2893
    %v2895 = vmul.f32 %v2810, 1.442695
    %v2896 = vpow.pop %v2895
    %v2897 = vmul.f32 %v2811, 1.442695
    %v2898 = vpow.pop %v2897
    %v2899 = vmul.f32 %v2812, 1.442695
    %v2900 = vpow.pop %v2899
    %v2901 = vmul.f32 %v2813, 1.442695
    %v2902 = vpow.pop %v2901
    %v2903 = vmul.f32 %v2814, 1.442695
    %v2904 = vpow.pop %v2903
    %v2905 = vmul.f32 %v2815, 1.442695
    %v2906 = vpow.pop %v2905
    %v2907 = vmul.f32 %v2816, 1.442695
    %v2908 = vpow.pop %v2907
    %v2909 = vmul.f32 %v2817, 1.442695
    %v2910 = vpow.pop %v2909
    %v2911 = vmul.f32 %v2818, 1.442695
    %v2912 = vpow.pop %v2911
    %v2913 = vmul.f32 %v2819, 1.442695
    %v2914 = vpow.pop %v2913
    %v2915 = vmul.f32 %v2820, 1.442695
    %v2916 = vpow.pop %v2915
    %v2917 = vmul.f32 %v2821, 1.442695
    %v2918 = vpow.pop %v2917
    %v2919 = vmul.f32 %v2822, 1.442695
    %v2920 = vpow.pop %v2919
    %v2921 = vmul.f32 %v2823, 1.442695
    %v2922 = vpow.pop %v2921
    %v2923 = vmul.f32 %v2824, 1.442695
    %v2924 = vpow.pop %v2923
    %v2925 = vmul.f32 %v2825, 1.442695
    %v2926 = vpow.pop %v2925
    %v2927 = vmul.f32 %v2826, 1.442695
    %v2928 = vpow.pop %v2927
    %v2929 = vmul.f32 %v2827, 1.442695
    %v2930 = vpow.pop %v2929
    %v2931 = vmul.f32 %v2828, 1.442695
    %v2932 = vpow.pop %v2931
    %v2933 = vmul.f32 %v2829, 1.442695
    %v2934 = vpow.pop %v2933
    %v2935 = vmul.f32 %v2830, 1.442695
    %v2936 = vpow.pop %v2935
    %v2937 = vmul.f32 %v2831, 1.442695
    %v2938 = vpow.pop %v2937
    %v2939 = vmul.f32 %v2832, 1.442695
    %v2940 = vpow.pop %v2939
    %v2941 = vmul.f32 %v2833, 1.442695
    %v2942 = vpow.pop %v2941
    %v2943 = vmul.f32 %v2834, 1.442695
    %v2944 = vpow.pop %v2943
    %v2945 = vmul.f32 %v2835, 1.442695
    %v2946 = vpow.pop %v2945
    %v2947 = vmul.f32 %v2836, 1.442695
    %v2948 = vpow.pop %v2947
    %v2949 = vmul.f32 %v2837, 1.442695
    %v2950 = vpow.pop %v2949
    %v2951 = vmul.f32 %v2838, 1.442695
    %v2952 = vpow.pop %v2951
    %v2953 = vmul.f32 %v2839, 1.442695
    %v2954 = vpow.pop %v2953
    %v2955 = vmul.f32 %v2840, 1.442695
    %v2956 = vpow.pop %v2955
    %v2957 = vmul.f32 %v2841, 1.442695
    %v2958 = vpow.pop %v2957
    %v2959 = vmul.f32 %v2842, 1.442695
    %v2960 = vpow.pop %v2959
    %v2961 = vmul.f32 %v2843, 1.442695
    %v2962 = vpow.pop %v2961
    %v2963 = vmul.f32 %v2844, 1.442695
    %v2964 = vpow.pop %v2963
    %v2965 = vmul.f32 %v2845, 1.442695
    %v2966 = vpow.pop %v2965
    %v2967 = vmul.f32 %v2846, 1.442695
    %v2968 = vpow.pop %v2967
    %v2969 = vmul.f32 %v2847, 1.442695
    %v2970 = vpow.pop %v2969
    %v2971 = vmul.f32 %v2848, 1.442695
    %v2972 = vpow.pop %v2971
    %v2973 = vmul.f32 %v2849, 1.442695
    %v2974 = vpow.pop %v2973
    %v2975 = vmul.f32 %v2850, 1.442695
    %v2976 = vpow.pop %v2975
    %v2977 = vmul.f32 %v2851, 1.442695
    %v2978 = vpow.pop %v2977
    %v2979 = vmul.f32 %v2852, 1.442695
    %v2980 = vpow.pop %v2979
    %v2981 = vmul.f32 %v2661, %v2854
    %v2982 = vmul.f32 %v2662, %v2856
    %v2983 = vmul.f32 %v2663, %v2858
    %v2984 = vmul.f32 %v2664, %v2860
    %v2985 = vmul.f32 %v2665, %v2862
    %v2986 = vmul.f32 %v2666, %v2864
    %v2987 = vmul.f32 %v2667, %v2866
    %v2988 = vmul.f32 %v2668, %v2868
    %v2989 = vmul.f32 %v2669, %v2870
    %v2990 = vmul.f32 %v2670, %v2872
    %v2991 = vmul.f32 %v2671, %v2874
    %v2992 = vmul.f32 %v2672, %v2876
    %v2993 = vmul.f32 %v2673, %v2878
    %v2994 = vmul.f32 %v2674, %v2880
    %v2995 = vmul.f32 %v2675, %v2882
    %v2996 = vmul.f32 %v2676, %v2884
    %v2997 = vmul.f32 %v2677, %v2886
    %v2998 = vmul.f32 %v2678, %v2888
    %v2999 = vmul.f32 %v2679, %v2890
    %v3000 = vmul.f32 %v2680, %v2892
    %v3001 = vmul.f32 %v2681, %v2894
    %v3002 = vmul.f32 %v2682, %v2896
    %v3003 = vmul.f32 %v2683, %v2898
    %v3004 = vmul.f32 %v2684, %v2900
    %v3005 = vmul.f32 %v2685, %v2902
    %v3006 = vmul.f32 %v2686, %v2904
    %v3007 = vmul.f32 %v2687, %v2906
    %v3008 = vmul.f32 %v2688, %v2908
    %v3009 = vmul.f32 %v2689, %v2910
    %v3010 = vmul.f32 %v2690, %v2912
    %v3011 = vmul.f32 %v2691, %v2914
    %v3012 = vmul.f32 %v2692, %v2916
    %v3013 = vmul.f32 %v2693, %v2918
    %v3014 = vmul.f32 %v2694, %v2920
    %v3015 = vmul.f32 %v2695, %v2922
    %v3016 = vmul.f32 %v2696, %v2924
    %v3017 = vmul.f32 %v2697, %v2926
    %v3018 = vmul.f32 %v2698, %v2928
    %v3019 = vmul.f32 %v2699, %v2930
    %v3020 = vmul.f32 %v2700, %v2932
    %v3021 = vmul.f32 %v2701, %v2934
    %v3022 = vmul.f32 %v2702, %v2936
    %v3023 = vmul.f32 %v2703, %v2938
    %v3024 = vmul.f32 %v2704, %v2940
    %v3025 = vmul.f32 %v2705, %v2942
    %v3026 = vmul.f32 %v2706, %v2944
    %v3027 = vmul.f32 %v2707, %v2946
    %v3028 = vmul.f32 %v2708, %v2948
    %v3029 = vmul.f32 %v2709, %v2950
    %v3030 = vmul.f32 %v2710, %v2952
    %v3031 = vmul.f32 %v2711, %v2954
    %v3032 = vmul.f32 %v2712, %v2956
    %v3033 = vmul.f32 %v2713, %v2958
    %v3034 = vmul.f32 %v2714, %v2960
    %v3035 = vmul.f32 %v2715, %v2962
    %v3036 = vmul.f32 %v2716, %v2964
    %v3037 = vmul.f32 %v2717, %v2966
    %v3038 = vmul.f32 %v2718, %v2968
    %v3039 = vmul.f32 %v2719, %v2970
    %v3040 = vmul.f32 %v2720, %v2972
    %v3041 = vmul.f32 %v2721, %v2974
    %v3042 = vmul.f32 %v2722, %v2976
    %v3043 = vmul.f32 %v2723, %v2978
    %v3044 = vmul.f32 %v2724, %v2980
    %v3045 = vsub.f32 1.0, %v2981
    %v3046 = vsub.f32 1.0, %v2982
    %v3047 = vsub.f32 1.0, %v2983
    %v3048 = vsub.f32 1.0, %v2984
    %v3049 = vsub.f32 1.0, %v2985
    %v3050 = vsub.f32 1.0, %v2986
    %v3051 = vsub.f32 1.0, %v2987
    %v3052 = vsub.f32 1.0, %v2988
    %v3053 = vsub.f32 1.0, %v2989
    %v3054 = vsub.f32 1.0, %v2990
    %v3055 = vsub.f32 1.0, %v2991
    %v3056 = vsub.f32 1.0, %v2992
    %v3057 = vsub.f32 1.0, %v2993
    %v3058 = vsub.f32 1.0, %v2994
    %v3059 = vsub.f32 1.0, %v2995
    %v3060 = vsub.f32 1.0, %v2996
    %v3061 = vsub.f32 1.0, %v2997
    %v3062 = vsub.f32 1.0, %v2998
    %v3063 = vsub.f32 1.0, %v2999
    %v3064 = vsub.f32 1.0, %v3000
    %v3065 = vsub.f32 1.0, %v3001
    %v3066 = vsub.f32 1.0, %v3002
    %v3067 = vsub.f32 1.0, %v3003
    %v3068 = vsub.f32 1.0, %v3004
    %v3069 = vsub.f32 1.0, %v3005
    %v3070 = vsub.f32 1.0, %v3006
    %v3071 = vsub.f32 1.0, %v3007
    %v3072 = vsub.f32 1.0, %v3008
    %v3073 = vsub.f32 1.0, %v3009
    %v3074 = vsub.f32 1.0, %v3010
    %v3075 = vsub.f32 1.0, %v3011
    %v3076 = vsub.f32 1.0, %v3012
    %v3077 = vsub.f32 1.0, %v3013
    %v3078 = vsub.f32 1.0, %v3014
    %v3079 = vsub.f32 1.0, %v3015
    %v3080 = vsub.f32 1.0, %v3016
    %v3081 = vsub.f32 1.0, %v3017
    %v3082 = vsub.f32 1.0, %v3018
    %v3083 = vsub.f32 1.0, %v3019
    %v3084 = vsub.f32 1.0, %v3020
    %v3085 = vsub.f32 1.0, %v3021
    %v3086 = vsub.f32 1.0, %v3022
    %v3087 = vsub.f32 1.0, %v3023
    %v3088 = vsub.f32 1.0, %v3024
    %v3089 = vsub.f32 1.0, %v3025
    %v3090 = vsub.f32 1.0, %v3026
    %v3091 = vsub.f32 1.0, %v3027
    %v3092 = vsub.f32 1.0, %v3028
    %v3093 = vsub.f32 1.0, %v3029
    %v3094 = vsub.f32 1.0, %v3030
    %v3095 = vsub.f32 1.0, %v3031
    %v3096 = vsub.f32 1.0, %v3032
    %v3097 = vsub.f32 1.0, %v3033
    %v3098 = vsub.f32 1.0, %v3034
    %v3099 = vsub.f32 1.0, %v3035
    %v3100 = vsub.f32 1.0, %v3036
    %v3101 = vsub.f32 1.0, %v3037
    %v3102 = vsub.f32 1.0, %v3038
    %v3103 = vsub.f32 1.0, %v3039
    %v3104 = vsub.f32 1.0, %v3040
    %v3105 = vsub.f32 1.0, %v3041
    %v3106 = vsub.f32 1.0, %v3042
    %v3107 = vsub.f32 1.0, %v3043
    %v3108 = vsub.f32 1.0, %v3044
    %vm3109 = vcmp.lt.f32.partialorder %v933, 0.0
    %vm3110 = vcmp.lt.f32.partialorder %v934, 0.0
    %vm3111 = vcmp.lt.f32.partialorder %v935, 0.0
    %vm3112 = vcmp.lt.f32.partialorder %v936, 0.0
    %vm3113 = vcmp.lt.f32.partialorder %v937, 0.0
    %vm3114 = vcmp.lt.f32.partialorder %v938, 0.0
    %vm3115 = vcmp.lt.f32.partialorder %v939, 0.0
    %vm3116 = vcmp.lt.f32.partialorder %v940, 0.0
    %vm3117 = vcmp.lt.f32.partialorder %v941, 0.0
    %vm3118 = vcmp.lt.f32.partialorder %v942, 0.0
    %vm3119 = vcmp.lt.f32.partialorder %v943, 0.0
    %vm3120 = vcmp.lt.f32.partialorder %v944, 0.0
    %vm3121 = vcmp.lt.f32.partialorder %v945, 0.0
    %vm3122 = vcmp.lt.f32.partialorder %v946, 0.0
    %vm3123 = vcmp.lt.f32.partialorder %v947, 0.0
    %vm3124 = vcmp.lt.f32.partialorder %v948, 0.0
    %vm3125 = vcmp.lt.f32.partialorder %v949, 0.0
    %vm3126 = vcmp.lt.f32.partialorder %v950, 0.0
    %vm3127 = vcmp.lt.f32.partialorder %v951, 0.0
    %vm3128 = vcmp.lt.f32.partialorder %v952, 0.0
    %vm3129 = vcmp.lt.f32.partialorder %v953, 0.0
    %vm3130 = vcmp.lt.f32.partialorder %v954, 0.0
    %vm3131 = vcmp.lt.f32.partialorder %v955, 0.0
    %vm3132 = vcmp.lt.f32.partialorder %v956, 0.0
    %vm3133 = vcmp.lt.f32.partialorder %v957, 0.0
    %vm3134 = vcmp.lt.f32.partialorder %v958, 0.0
    %vm3135 = vcmp.lt.f32.partialorder %v959, 0.0
    %vm3136 = vcmp.lt.f32.partialorder %v960, 0.0
    %vm3137 = vcmp.lt.f32.partialorder %v961, 0.0
    %vm3138 = vcmp.lt.f32.partialorder %v962, 0.0
    %vm3139 = vcmp.lt.f32.partialorder %v963, 0.0
    %vm3140 = vcmp.lt.f32.partialorder %v964, 0.0
    %vm3141 = vcmp.lt.f32.partialorder %v965, 0.0
    %vm3142 = vcmp.lt.f32.partialorder %v966, 0.0
    %vm3143 = vcmp.lt.f32.partialorder %v967, 0.0
    %vm3144 = vcmp.lt.f32.partialorder %v968, 0.0
    %vm3145 = vcmp.lt.f32.partialorder %v969, 0.0
    %vm3146 = vcmp.lt.f32.partialorder %v970, 0.0
    %vm3147 = vcmp.lt.f32.partialorder %v971, 0.0
    %vm3148 = vcmp.lt.f32.partialorder %v972, 0.0
    %vm3149 = vcmp.lt.f32.partialorder %v973, 0.0
    %vm3150 = vcmp.lt.f32.partialorder %v974, 0.0
    %vm3151 = vcmp.lt.f32.partialorder %v975, 0.0
    %vm3152 = vcmp.lt.f32.partialorder %v976, 0.0
    %vm3153 = vcmp.lt.f32.partialorder %v977, 0.0
    %vm3154 = vcmp.lt.f32.partialorder %v978, 0.0
    %vm3155 = vcmp.lt.f32.partialorder %v979, 0.0
    %vm3156 = vcmp.lt.f32.partialorder %v980, 0.0
    %vm3157 = vcmp.lt.f32.partialorder %v981, 0.0
    %vm3158 = vcmp.lt.f32.partialorder %v982, 0.0
    %vm3159 = vcmp.lt.f32.partialorder %v983, 0.0
    %vm3160 = vcmp.lt.f32.partialorder %v984, 0.0
    %vm3161 = vcmp.lt.f32.partialorder %v985, 0.0
    %vm3162 = vcmp.lt.f32.partialorder %v986, 0.0
    %vm3163 = vcmp.lt.f32.partialorder %v987, 0.0
    %vm3164 = vcmp.lt.f32.partialorder %v988, 0.0
    %vm3165 = vcmp.lt.f32.partialorder %v989, 0.0
    %vm3166 = vcmp.lt.f32.partialorder %v990, 0.0
    %vm3167 = vcmp.lt.f32.partialorder %v991, 0.0
    %vm3168 = vcmp.lt.f32.partialorder %v992, 0.0
    %vm3169 = vcmp.lt.f32.partialorder %v993, 0.0
    %vm3170 = vcmp.lt.f32.partialorder %v994, 0.0
    %vm3171 = vcmp.lt.f32.partialorder %v995, 0.0
    %vm3172 = vcmp.lt.f32.partialorder %v996, 0.0
    %v3173 = vsub.f32 0.0, %v3045
    %v3174 = vsub.f32 0.0, %v3046
    %v3175 = vsub.f32 0.0, %v3047
    %v3176 = vsub.f32 0.0, %v3048
    %v3177 = vsub.f32 0.0, %v3049
    %v3178 = vsub.f32 0.0, %v3050
    %v3179 = vsub.f32 0.0, %v3051
    %v3180 = vsub.f32 0.0, %v3052
    %v3181 = vsub.f32 0.0, %v3053
    %v3182 = vsub.f32 0.0, %v3054
    %v3183 = vsub.f32 0.0, %v3055
    %v3184 = vsub.f32 0.0, %v3056
    %v3185 = vsub.f32 0.0, %v3057
    %v3186 = vsub.f32 0.0, %v3058
    %v3187 = vsub.f32 0.0, %v3059
    %v3188 = vsub.f32 0.0, %v3060
    %v3189 = vsub.f32 0.0, %v3061
    %v3190 = vsub.f32 0.0, %v3062
    %v3191 = vsub.f32 0.0, %v3063
    %v3192 = vsub.f32 0.0, %v3064
    %v3193 = vsub.f32 0.0, %v3065
    %v3194 = vsub.f32 0.0, %v3066
    %v3195 = vsub.f32 0.0, %v3067
    %v3196 = vsub.f32 0.0, %v3068
    %v3197 = vsub.f32 0.0, %v3069
    %v3198 = vsub.f32 0.0, %v3070
    %v3199 = vsub.f32 0.0, %v3071
    %v3200 = vsub.f32 0.0, %v3072
    %v3201 = vsub.f32 0.0, %v3073
    %v3202 = vsub.f32 0.0, %v3074
    %v3203 = vsub.f32 0.0, %v3075
    %v3204 = vsub.f32 0.0, %v3076
    %v3205 = vsub.f32 0.0, %v3077
    %v3206 = vsub.f32 0.0, %v3078
    %v3207 = vsub.f32 0.0, %v3079
    %v3208 = vsub.f32 0.0, %v3080
    %v3209 = vsub.f32 0.0, %v3081
    %v3210 = vsub.f32 0.0, %v3082
    %v3211 = vsub.f32 0.0, %v3083
    %v3212 = vsub.f32 0.0, %v3084
    %v3213 = vsub.f32 0.0, %v3085
    %v3214 = vsub.f32 0.0, %v3086
    %v3215 = vsub.f32 0.0, %v3087
    %v3216 = vsub.f32 0.0, %v3088
    %v3217 = vsub.f32 0.0, %v3089
    %v3218 = vsub.f32 0.0, %v3090
    %v3219 = vsub.f32 0.0, %v3091
    %v3220 = vsub.f32 0.0, %v3092
    %v3221 = vsub.f32 0.0, %v3093
    %v3222 = vsub.f32 0.0, %v3094
    %v3223 = vsub.f32 0.0, %v3095
    %v3224 = vsub.f32 0.0, %v3096
    %v3225 = vsub.f32 0.0, %v3097
    %v3226 = vsub.f32 0.0, %v3098
    %v3227 = vsub.f32 0.0, %v3099
    %v3228 = vsub.f32 0.0, %v3100
    %v3229 = vsub.f32 0.0, %v3101
    %v3230 = vsub.f32 0.0, %v3102
    %v3231 = vsub.f32 0.0, %v3103
    %v3232 = vsub.f32 0.0, %v3104
    %v3233 = vsub.f32 0.0, %v3105
    %v3234 = vsub.f32 0.0, %v3106
    %v3235 = vsub.f32 0.0, %v3107
    %v3236 = vsub.f32 0.0, %v3108
    %v3237 = vsel %vm3109, %v3173, %v3045
    %v3238 = vsel %vm3110, %v3174, %v3046
    %v3239 = vsel %vm3111, %v3175, %v3047
    %v3240 = vsel %vm3112, %v3176, %v3048
    %v3241 = vsel %vm3113, %v3177, %v3049
    %v3242 = vsel %vm3114, %v3178, %v3050
    %v3243 = vsel %vm3115, %v3179, %v3051
    %v3244 = vsel %vm3116, %v3180, %v3052
    %v3245 = vsel %vm3117, %v3181, %v3053
    %v3246 = vsel %vm3118, %v3182, %v3054
    %v3247 = vsel %vm3119, %v3183, %v3055
    %v3248 = vsel %vm3120, %v3184, %v3056
    %v3249 = vsel %vm3121, %v3185, %v3057
    %v3250 = vsel %vm3122, %v3186, %v3058
    %v3251 = vsel %vm3123, %v3187, %v3059
    %v3252 = vsel %vm3124, %v3188, %v3060
    %v3253 = vsel %vm3125, %v3189, %v3061
    %v3254 = vsel %vm3126, %v3190, %v3062
    %v3255 = vsel %vm3127, %v3191, %v3063
    %v3256 = vsel %vm3128, %v3192, %v3064
    %v3257 = vsel %vm3129, %v3193, %v3065
    %v3258 = vsel %vm3130, %v3194, %v3066
    %v3259 = vsel %vm3131, %v3195, %v3067
    %v3260 = vsel %vm3132, %v3196, %v3068
    %v3261 = vsel %vm3133, %v3197, %v3069
    %v3262 = vsel %vm3134, %v3198, %v3070
    %v3263 = vsel %vm3135, %v3199, %v3071
    %v3264 = vsel %vm3136, %v3200, %v3072
    %v3265 = vsel %vm3137, %v3201, %v3073
    %v3266 = vsel %vm3138, %v3202, %v3074
    %v3267 = vsel %vm3139, %v3203, %v3075
    %v3268 = vsel %vm3140, %v3204, %v3076
    %v3269 = vsel %vm3141, %v3205, %v3077
    %v3270 = vsel %vm3142, %v3206, %v3078
    %v3271 = vsel %vm3143, %v3207, %v3079
    %v3272 = vsel %vm3144, %v3208, %v3080
    %v3273 = vsel %vm3145, %v3209, %v3081
    %v3274 = vsel %vm3146, %v3210, %v3082
    %v3275 = vsel %vm3147, %v3211, %v3083
    %v3276 = vsel %vm3148, %v3212, %v3084
    %v3277 = vsel %vm3149, %v3213, %v3085
    %v3278 = vsel %vm3150, %v3214, %v3086
    %v3279 = vsel %vm3151, %v3215, %v3087
    %v3280 = vsel %vm3152, %v3216, %v3088
    %v3281 = vsel %vm3153, %v3217, %v3089
    %v3282 = vsel %vm3154, %v3218, %v3090
    %v3283 = vsel %vm3155, %v3219, %v3091
    %v3284 = vsel %vm3156, %v3220, %v3092
    %v3285 = vsel %vm3157, %v3221, %v3093
    %v3286 = vsel %vm3158, %v3222, %v3094
    %v3287 = vsel %vm3159, %v3223, %v3095
    %v3288 = vsel %vm3160, %v3224, %v3096
    %v3289 = vsel %vm3161, %v3225, %v3097
    %v3290 = vsel %vm3162, %v3226, %v3098
    %v3291 = vsel %vm3163, %v3227, %v3099
    %v3292 = vsel %vm3164, %v3228, %v3100
    %v3293 = vsel %vm3165, %v3229, %v3101
    %v3294 = vsel %vm3166, %v3230, %v3102
    %v3295 = vsel %vm3167, %v3231, %v3103
    %v3296 = vsel %vm3168, %v3232, %v3104
    %v3297 = vsel %vm3169, %v3233, %v3105
    %v3298 = vsel %vm3170, %v3234, %v3106
    %v3299 = vsel %vm3171, %v3235, %v3107
    %v3300 = vsel %vm3172, %v3236, %v3108
    %v3301 = vadd.f32 %v3237, 1.0
    %v3302 = vadd.f32 %v3238, 1.0
    %v3303 = vadd.f32 %v3239, 1.0
    %v3304 = vadd.f32 %v3240, 1.0
    %v3305 = vadd.f32 %v3241, 1.0
    %v3306 = vadd.f32 %v3242, 1.0
    %v3307 = vadd.f32 %v3243, 1.0
    %v3308 = vadd.f32 %v3244, 1.0
    %v3309 = vadd.f32 %v3245, 1.0
    %v3310 = vadd.f32 %v3246, 1.0
    %v3311 = vadd.f32 %v3247, 1.0
    %v3312 = vadd.f32 %v3248, 1.0
    %v3313 = vadd.f32 %v3249, 1.0
    %v3314 = vadd.f32 %v3250, 1.0
    %v3315 = vadd.f32 %v3251, 1.0
    %v3316 = vadd.f32 %v3252, 1.0
    %v3317 = vadd.f32 %v3253, 1.0
    %v3318 = vadd.f32 %v3254, 1.0
    %v3319 = vadd.f32 %v3255, 1.0
    %v3320 = vadd.f32 %v3256, 1.0
    %v3321 = vadd.f32 %v3257, 1.0
    %v3322 = vadd.f32 %v3258, 1.0
    %v3323 = vadd.f32 %v3259, 1.0
    %v3324 = vadd.f32 %v3260, 1.0
    %v3325 = vadd.f32 %v3261, 1.0
    %v3326 = vadd.f32 %v3262, 1.0
    %v3327 = vadd.f32 %v3263, 1.0
    %v3328 = vadd.f32 %v3264, 1.0
    %v3329 = vadd.f32 %v3265, 1.0
    %v3330 = vadd.f32 %v3266, 1.0
    %v3331 = vadd.f32 %v3267, 1.0
    %v3332 = vadd.f32 %v3268, 1.0
    %v3333 = vadd.f32 %v3269, 1.0
    %v3334 = vadd.f32 %v3270, 1.0
    %v3335 = vadd.f32 %v3271, 1.0
    %v3336 = vadd.f32 %v3272, 1.0
    %v3337 = vadd.f32 %v3273, 1.0
    %v3338 = vadd.f32 %v3274, 1.0
    %v3339 = vadd.f32 %v3275, 1.0
    %v3340 = vadd.f32 %v3276, 1.0
    %v3341 = vadd.f32 %v3277, 1.0
    %v3342 = vadd.f32 %v3278, 1.0
    %v3343 = vadd.f32 %v3279, 1.0
    %v3344 = vadd.f32 %v3280, 1.0
    %v3345 = vadd.f32 %v3281, 1.0
    %v3346 = vadd.f32 %v3282, 1.0
    %v3347 = vadd.f32 %v3283, 1.0
    %v3348 = vadd.f32 %v3284, 1.0
    %v3349 = vadd.f32 %v3285, 1.0
    %v3350 = vadd.f32 %v3286, 1.0
    %v3351 = vadd.f32 %v3287, 1.0
    %v3352 = vadd.f32 %v3288, 1.0
    %v3353 = vadd.f32 %v3289, 1.0
    %v3354 = vadd.f32 %v3290, 1.0
    %v3355 = vadd.f32 %v3291, 1.0
    %v3356 = vadd.f32 %v3292, 1.0
    %v3357 = vadd.f32 %v3293, 1.0
    %v3358 = vadd.f32 %v3294, 1.0
    %v3359 = vadd.f32 %v3295, 1.0
    %v3360 = vadd.f32 %v3296, 1.0
    %v3361 = vadd.f32 %v3297, 1.0
    %v3362 = vadd.f32 %v3298, 1.0
    %v3363 = vadd.f32 %v3299, 1.0
    %v3364 = vadd.f32 %v3300, 1.0
    %v3365 = vmul.f32 %v869, %v3301
    %v3366 = vmul.f32 %v870, %v3302
    %v3367 = vmul.f32 %v871, %v3303
    %v3368 = vmul.f32 %v872, %v3304
    %v3369 = vmul.f32 %v873, %v3305
    %v3370 = vmul.f32 %v874, %v3306
    %v3371 = vmul.f32 %v875, %v3307
    %v3372 = vmul.f32 %v876, %v3308
    %v3373 = vmul.f32 %v877, %v3309
    %v3374 = vmul.f32 %v878, %v3310
    %v3375 = vmul.f32 %v879, %v3311
    %v3376 = vmul.f32 %v880, %v3312
    %v3377 = vmul.f32 %v881, %v3313
    %v3378 = vmul.f32 %v882, %v3314
    %v3379 = vmul.f32 %v883, %v3315
    %v3380 = vmul.f32 %v884, %v3316
    %v3381 = vmul.f32 %v885, %v3317
    %v3382 = vmul.f32 %v886, %v3318
    %v3383 = vmul.f32 %v887, %v3319
    %v3384 = vmul.f32 %v888, %v3320
    %v3385 = vmul.f32 %v889, %v3321
    %v3386 = vmul.f32 %v890, %v3322
    %v3387 = vmul.f32 %v891, %v3323
    %v3388 = vmul.f32 %v892, %v3324
    %v3389 = vmul.f32 %v893, %v3325
    %v3390 = vmul.f32 %v894, %v3326
    %v3391 = vmul.f32 %v895, %v3327
    %v3392 = vmul.f32 %v896, %v3328
    %v3393 = vmul.f32 %v897, %v3329
    %v3394 = vmul.f32 %v898, %v3330
    %v3395 = vmul.f32 %v899, %v3331
    %v3396 = vmul.f32 %v900, %v3332
    %v3397 = vmul.f32 %v901, %v3333
    %v3398 = vmul.f32 %v902, %v3334
    %v3399 = vmul.f32 %v903, %v3335
    %v3400 = vmul.f32 %v904, %v3336
    %v3401 = vmul.f32 %v905, %v3337
    %v3402 = vmul.f32 %v906, %v3338
    %v3403 = vmul.f32 %v907, %v3339
    %v3404 = vmul.f32 %v908, %v3340
    %v3405 = vmul.f32 %v909, %v3341
    %v3406 = vmul.f32 %v910, %v3342
    %v3407 = vmul.f32 %v911, %v3343
    %v3408 = vmul.f32 %v912, %v3344
    %v3409 = vmul.f32 %v913, %v3345
    %v3410 = vmul.f32 %v914, %v3346
    %v3411 = vmul.f32 %v915, %v3347
    %v3412 = vmul.f32 %v916, %v3348
    %v3413 = vmul.f32 %v917, %v3349
    %v3414 = vmul.f32 %v918, %v3350
    %v3415 = vmul.f32 %v919, %v3351
    %v3416 = vmul.f32 %v920, %v3352
    %v3417 = vmul.f32 %v921, %v3353
    %v3418 = vmul.f32 %v922, %v3354
    %v3419 = vmul.f32 %v923, %v3355
    %v3420 = vmul.f32 %v924, %v3356
    %v3421 = vmul.f32 %v925, %v3357
    %v3422 = vmul.f32 %v926, %v3358
    %v3423 = vmul.f32 %v927, %v3359
    %v3424 = vmul.f32 %v928, %v3360
    %v3425 = vmul.f32 %v929, %v3361
    %v3426 = vmul.f32 %v930, %v3362
    %v3427 = vmul.f32 %v931, %v3363
    %v3428 = vmul.f32 %v932, %v3364
    %v3429 = vld [vmem:[#allocation2] sm:$0xff]
    %v3430 = vld [vmem:[#allocation2 + $0x8] sm:$0xff]
    %v3431 = vld [vmem:[#allocation2 + $0x10] sm:$0xff]
    %v3432 = vld [vmem:[#allocation2 + $0x18] sm:$0xff]
    %v3433 = vld [vmem:[#allocation2 + $0x20] sm:$0xff]
    %v3434 = vld [vmem:[#allocation2 + $0x28] sm:$0xff]
    %v3435 = vld [vmem:[#allocation2 + $0x30] sm:$0xff]
    %v3436 = vld [vmem:[#allocation2 + $0x38] sm:$0xff]
    %v3437 = vld [vmem:[#allocation2 + $0x40] sm:$0xff]
    %v3438 = vld [vmem:[#allocation2 + $0x48] sm:$0xff]
    %v3439 = vld [vmem:[#allocation2 + $0x50] sm:$0xff]
    %v3440 = vld [vmem:[#allocation2 + $0x58] sm:$0xff]
    %v3441 = vld [vmem:[#allocation2 + $0x60] sm:$0xff]
    %v3442 = vld [vmem:[#allocation2 + $0x68] sm:$0xff]
    %v3443 = vld [vmem:[#allocation2 + $0x70] sm:$0xff]
    %v3444 = vld [vmem:[#allocation2 + $0x78] sm:$0xff]
    %v3445 = vld [vmem:[#allocation2 + $0x80] sm:$0xff]
    %v3446 = vld [vmem:[#allocation2 + $0x88] sm:$0xff]
    %v3447 = vld [vmem:[#allocation2 + $0x90] sm:$0xff]
    %v3448 = vld [vmem:[#allocation2 + $0x98] sm:$0xff]
    %v3449 = vld [vmem:[#allocation2 + $0xa0] sm:$0xff]
    %v3450 = vld [vmem:[#allocation2 + $0xa8] sm:$0xff]
    %v3451 = vld [vmem:[#allocation2 + $0xb0] sm:$0xff]
    %v3452 = vld [vmem:[#allocation2 + $0xb8] sm:$0xff]
    %v3453 = vld [vmem:[#allocation2 + $0xc0] sm:$0xff]
    %v3454 = vld [vmem:[#allocation2 + $0xc8] sm:$0xff]
    %v3455 = vld [vmem:[#allocation2 + $0xd0] sm:$0xff]
    %v3456 = vld [vmem:[#allocation2 + $0xd8] sm:$0xff]
    %v3457 = vld [vmem:[#allocation2 + $0xe0] sm:$0xff]
    %v3458 = vld [vmem:[#allocation2 + $0xe8] sm:$0xff]
    %v3459 = vld [vmem:[#allocation2 + $0xf0] sm:$0xff]
    %v3460 = vld [vmem:[#allocation2 + $0xf8] sm:$0xff]
    %v3461 = vld [vmem:[%s4] sm:$0xf]
    %v3463 = vperm.slane %v3461, 0
    %v3464 = vperm.slane %v3461, 1
    %v3465 = vperm.slane %v3461, 2
    %v3466 = vperm.slane %v3461, 3
    %v3503 = vunpack.c.l.b16 %v3429
    %v3504 = vunpack.c.h.b16 %v3429
    %v3505 = vunpack.c.l.b16 %v3430
    %v3506 = vunpack.c.h.b16 %v3430
    %v3507 = vunpack.c.l.b16 %v3431
    %v3508 = vunpack.c.h.b16 %v3431
    %v3509 = vunpack.c.l.b16 %v3432
    %v3510 = vunpack.c.h.b16 %v3432
    %v3511 = vunpack.c.l.b16 %v3433
    %v3512 = vunpack.c.h.b16 %v3433
    %v3513 = vunpack.c.l.b16 %v3434
    %v3514 = vunpack.c.h.b16 %v3434
    %v3515 = vunpack.c.l.b16 %v3435
    %v3516 = vunpack.c.h.b16 %v3435
    %v3517 = vunpack.c.l.b16 %v3436
    %v3518 = vunpack.c.h.b16 %v3436
    %v3519 = vunpack.c.l.b16 %v3437
    %v3520 = vunpack.c.h.b16 %v3437
    %v3521 = vunpack.c.l.b16 %v3438
    %v3522 = vunpack.c.h.b16 %v3438
    %v3523 = vunpack.c.l.b16 %v3439
    %v3524 = vunpack.c.h.b16 %v3439
    %v3525 = vunpack.c.l.b16 %v3440
    %v3526 = vunpack.c.h.b16 %v3440
    %v3527 = vunpack.c.l.b16 %v3441
    %v3528 = vunpack.c.h.b16 %v3441
    %v3529 = vunpack.c.l.b16 %v3442
    %v3530 = vunpack.c.h.b16 %v3442
    %v3531 = vunpack.c.l.b16 %v3443
    %v3532 = vunpack.c.h.b16 %v3443
    %v3533 = vunpack.c.l.b16 %v3444
    %v3534 = vunpack.c.h.b16 %v3444
    %v3535 = vunpack.c.l.b16 %v3445
    %v3536 = vunpack.c.h.b16 %v3445
    %v3537 = vunpack.c.l.b16 %v3446
    %v3538 = vunpack.c.h.b16 %v3446
    %v3539 = vunpack.c.l.b16 %v3447
    %v3540 = vunpack.c.h.b16 %v3447
    %v3541 = vunpack.c.l.b16 %v3448
    %v3542 = vunpack.c.h.b16 %v3448
    %v3543 = vunpack.c.l.b16 %v3449
    %v3544 = vunpack.c.h.b16 %v3449
    %v3545 = vunpack.c.l.b16 %v3450
    %v3546 = vunpack.c.h.b16 %v3450
    %v3547 = vunpack.c.l.b16 %v3451
    %v3548 = vunpack.c.h.b16 %v3451
    %v3549 = vunpack.c.l.b16 %v3452
    %v3550 = vunpack.c.h.b16 %v3452
    %v3551 = vunpack.c.l.b16 %v3453
    %v3552 = vunpack.c.h.b16 %v3453
    %v3553 = vunpack.c.l.b16 %v3454
    %v3554 = vunpack.c.h.b16 %v3454
    %v3555 = vunpack.c.l.b16 %v3455
    %v3556 = vunpack.c.h.b16 %v3455
    %v3557 = vunpack.c.l.b16 %v3456
    %v3558 = vunpack.c.h.b16 %v3456
    %v3559 = vunpack.c.l.b16 %v3457
    %v3560 = vunpack.c.h.b16 %v3457
    %v3561 = vunpack.c.l.b16 %v3458
    %v3562 = vunpack.c.h.b16 %v3458
    %v3563 = vunpack.c.l.b16 %v3459
    %v3564 = vunpack.c.h.b16 %v3459
    %v3565 = vunpack.c.l.b16 %v3460
    %v3566 = vunpack.c.h.b16 %v3460
    %v3567 = vpack.c.b16 %v3507, %v3503
    %v3568 = vpack.c.b16 %v3508, %v3504
    %v3569 = vpack.c.b16 %v3509, %v3505
    %v3570 = vpack.c.b16 %v3510, %v3506
    %v3571 = vpack.c.b16 %v3515, %v3511
    %v3572 = vpack.c.b16 %v3516, %v3512
    %v3573 = vpack.c.b16 %v3517, %v3513
    %v3574 = vpack.c.b16 %v3518, %v3514
    %v3575 = vpack.c.b16 %v3523, %v3519
    %v3576 = vpack.c.b16 %v3524, %v3520
    %v3577 = vpack.c.b16 %v3525, %v3521
    %v3578 = vpack.c.b16 %v3526, %v3522
    %v3579 = vpack.c.b16 %v3531, %v3527
    %v3580 = vpack.c.b16 %v3532, %v3528
    %v3581 = vpack.c.b16 %v3533, %v3529
    %v3582 = vpack.c.b16 %v3534, %v3530
    %v3583 = vpack.c.b16 %v3539, %v3535
    %v3584 = vpack.c.b16 %v3540, %v3536
    %v3585 = vpack.c.b16 %v3541, %v3537
    %v3586 = vpack.c.b16 %v3542, %v3538
    %v3587 = vpack.c.b16 %v3547, %v3543
    %v3588 = vpack.c.b16 %v3548, %v3544
    %v3589 = vpack.c.b16 %v3549, %v3545
    %v3590 = vpack.c.b16 %v3550, %v3546
    %v3591 = vpack.c.b16 %v3555, %v3551
    %v3592 = vpack.c.b16 %v3556, %v3552
    %v3593 = vpack.c.b16 %v3557, %v3553
    %v3594 = vpack.c.b16 %v3558, %v3554
    %v3595 = vpack.c.b16 %v3563, %v3559
    %v3596 = vpack.c.b16 %v3564, %v3560
    %v3597 = vpack.c.b16 %v3565, %v3561
    %v3598 = vpack.c.b16 %v3566, %v3562
    %3631 = vmatpush.bf16.msra.mxu0 %v3595
    %3632 = vmatpush.bf16.msra.mxu0 %v3591
    %3633 = vmatpush.bf16.msra.mxu0 %v3587
    %3634 = vmatpush.bf16.msra.mxu0 %v3583
    %3635 = vmatpush.bf16.msra.mxu0 %v3579
    %3636 = vmatpush.bf16.msra.mxu0 %v3575
    %3637 = vmatpush.bf16.msra.mxu0 %v3571
    %3638 = vmatpush.bf16.msra.mxu0 %v3567
    %3639 = vmatmul.bf16.gmra.mxu0 %v463
    %v3640 = vpop.f32.mrf.mxu0
    %v3641 = vadd.f32 %v3463, %v3640
    %v3642 = vpop.f32.mrf.mxu0
    %v3643 = vadd.f32 %v3463, %v3642
    %3644 = vmatmul.bf16.gmra.mxu0 %v464
    %v3645 = vpop.f32.mrf.mxu0
    %v3646 = vadd.f32 %v3463, %v3645
    %v3647 = vpop.f32.mrf.mxu0
    %v3648 = vadd.f32 %v3463, %v3647
    %3649 = vmatmul.bf16.gmra.mxu0 %v465
    %v3650 = vpop.f32.mrf.mxu0
    %v3651 = vadd.f32 %v3463, %v3650
    %v3652 = vpop.f32.mrf.mxu0
    %v3653 = vadd.f32 %v3463, %v3652
    %3654 = vmatmul.bf16.gmra.mxu0 %v466
    %v3655 = vpop.f32.mrf.mxu0
    %v3656 = vadd.f32 %v3463, %v3655
    %v3657 = vpop.f32.mrf.mxu0
    %v3658 = vadd.f32 %v3463, %v3657
    %3659 = vmatmul.bf16.gmra.mxu0 %v467
    %v3660 = vpop.f32.mrf.mxu0
    %v3661 = vadd.f32 %v3463, %v3660
    %v3662 = vpop.f32.mrf.mxu0
    %v3663 = vadd.f32 %v3463, %v3662
    %3664 = vmatmul.bf16.gmra.mxu0 %v468
    %v3665 = vpop.f32.mrf.mxu0
    %v3666 = vadd.f32 %v3463, %v3665
    %v3667 = vpop.f32.mrf.mxu0
    %v3668 = vadd.f32 %v3463, %v3667
    %3669 = vmatmul.bf16.gmra.mxu0 %v469
    %v3670 = vpop.f32.mrf.mxu0
    %v3671 = vadd.f32 %v3463, %v3670
    %v3672 = vpop.f32.mrf.mxu0
    %v3673 = vadd.f32 %v3463, %v3672
    %3674 = vmatmul.bf16.gmra.mxu0 %v470
    %v3675 = vpop.f32.mrf.mxu0
    %v3676 = vadd.f32 %v3463, %v3675
    %v3677 = vpop.f32.mrf.mxu0
    %v3678 = vadd.f32 %v3463, %v3677
    %3679 = vdwg.mxu0
    %3680 = vmatpush.bf16.msra.mxu0 %v3596
    %3681 = vmatpush.bf16.msra.mxu0 %v3592
    %3682 = vmatpush.bf16.msra.mxu0 %v3588
    %3683 = vmatpush.bf16.msra.mxu0 %v3584
    %3684 = vmatpush.bf16.msra.mxu0 %v3580
    %3685 = vmatpush.bf16.msra.mxu0 %v3576
    %3686 = vmatpush.bf16.msra.mxu0 %v3572
    %3687 = vmatpush.bf16.msra.mxu0 %v3568
    %3688 = vmatmul.bf16.gmra.mxu0 %v463
    %v3689 = vpop.f32.mrf.mxu0
    %v3690 = vadd.f32 %v3464, %v3689
    %v3691 = vpop.f32.mrf.mxu0
    %v3692 = vadd.f32 %v3464, %v3691
    %3693 = vmatmul.bf16.gmra.mxu0 %v464
    %v3694 = vpop.f32.mrf.mxu0
    %v3695 = vadd.f32 %v3464, %v3694
    %v3696 = vpop.f32.mrf.mxu0
    %v3697 = vadd.f32 %v3464, %v3696
    %3698 = vmatmul.bf16.gmra.mxu0 %v465
    %v3699 = vpop.f32.mrf.mxu0
    %v3700 = vadd.f32 %v3464, %v3699
    %v3701 = vpop.f32.mrf.mxu0
    %v3702 = vadd.f32 %v3464, %v3701
    %3703 = vmatmul.bf16.gmra.mxu0 %v466
    %v3704 = vpop.f32.mrf.mxu0
    %v3705 = vadd.f32 %v3464, %v3704
    %v3706 = vpop.f32.mrf.mxu0
    %v3707 = vadd.f32 %v3464, %v3706
    %3708 = vmatmul.bf16.gmra.mxu0 %v467
    %v3709 = vpop.f32.mrf.mxu0
    %v3710 = vadd.f32 %v3464, %v3709
    %v3711 = vpop.f32.mrf.mxu0
    %v3712 = vadd.f32 %v3464, %v3711
    %3713 = vmatmul.bf16.gmra.mxu0 %v468
    %v3714 = vpop.f32.mrf.mxu0
    %v3715 = vadd.f32 %v3464, %v3714
    %v3716 = vpop.f32.mrf.mxu0
    %v3717 = vadd.f32 %v3464, %v3716
    %3718 = vmatmul.bf16.gmra.mxu0 %v469
    %v3719 = vpop.f32.mrf.mxu0
    %v3720 = vadd.f32 %v3464, %v3719
    %v3721 = vpop.f32.mrf.mxu0
    %v3722 = vadd.f32 %v3464, %v3721
    %3723 = vmatmul.bf16.gmra.mxu0 %v470
    %v3724 = vpop.f32.mrf.mxu0
    %v3725 = vadd.f32 %v3464, %v3724
    %v3726 = vpop.f32.mrf.mxu0
    %v3727 = vadd.f32 %v3464, %v3726
    %3728 = vdwg.mxu0
    %3729 = vmatpush.bf16.msra.mxu0 %v3597
    %3730 = vmatpush.bf16.msra.mxu0 %v3593
    %3731 = vmatpush.bf16.msra.mxu0 %v3589
    %3732 = vmatpush.bf16.msra.mxu0 %v3585
    %3733 = vmatpush.bf16.msra.mxu0 %v3581
    %3734 = vmatpush.bf16.msra.mxu0 %v3577
    %3735 = vmatpush.bf16.msra.mxu0 %v3573
    %3736 = vmatpush.bf16.msra.mxu0 %v3569
    %3737 = vmatmul.bf16.gmra.mxu0 %v463
    %v3738 = vpop.f32.mrf.mxu0
    %v3739 = vadd.f32 %v3465, %v3738
    %v3740 = vpop.f32.mrf.mxu0
    %v3741 = vadd.f32 %v3465, %v3740
    %3742 = vmatmul.bf16.gmra.mxu0 %v464
    %v3743 = vpop.f32.mrf.mxu0
    %v3744 = vadd.f32 %v3465, %v3743
    %v3745 = vpop.f32.mrf.mxu0
    %v3746 = vadd.f32 %v3465, %v3745
    %3747 = vmatmul.bf16.gmra.mxu0 %v465
    %v3748 = vpop.f32.mrf.mxu0
    %v3749 = vadd.f32 %v3465, %v3748
    %v3750 = vpop.f32.mrf.mxu0
    %v3751 = vadd.f32 %v3465, %v3750
    %3752 = vmatmul.bf16.gmra.mxu0 %v466
    %v3753 = vpop.f32.mrf.mxu0
    %v3754 = vadd.f32 %v3465, %v3753
    %v3755 = vpop.f32.mrf.mxu0
    %v3756 = vadd.f32 %v3465, %v3755
    %3757 = vmatmul.bf16.gmra.mxu0 %v467
    %v3758 = vpop.f32.mrf.mxu0
    %v3759 = vadd.f32 %v3465, %v3758
    %v3760 = vpop.f32.mrf.mxu0
    %v3761 = vadd.f32 %v3465, %v3760
    %3762 = vmatmul.bf16.gmra.mxu0 %v468
    %v3763 = vpop.f32.mrf.mxu0
    %v3764 = vadd.f32 %v3465, %v3763
    %v3765 = vpop.f32.mrf.mxu0
    %v3766 = vadd.f32 %v3465, %v3765
    %3767 = vmatmul.bf16.gmra.mxu0 %v469
    %v3768 = vpop.f32.mrf.mxu0
    %v3769 = vadd.f32 %v3465, %v3768
    %v3770 = vpop.f32.mrf.mxu0
    %v3771 = vadd.f32 %v3465, %v3770
    %3772 = vmatmul.bf16.gmra.mxu0 %v470
    %v3773 = vpop.f32.mrf.mxu0
    %v3774 = vadd.f32 %v3465, %v3773
    %v3775 = vpop.f32.mrf.mxu0
    %v3776 = vadd.f32 %v3465, %v3775
    %3777 = vdwg.mxu0
    %3778 = vmatpush.bf16.msra.mxu0 %v3598
    %3779 = vmatpush.bf16.msra.mxu0 %v3594
    %3780 = vmatpush.bf16.msra.mxu0 %v3590
    %3781 = vmatpush.bf16.msra.mxu0 %v3586
    %3782 = vmatpush.bf16.msra.mxu0 %v3582
    %3783 = vmatpush.bf16.msra.mxu0 %v3578
    %3784 = vmatpush.bf16.msra.mxu0 %v3574
    %3785 = vmatpush.bf16.msra.mxu0 %v3570
    %3786 = vmatmul.bf16.gmra.mxu0 %v463
    %v3787 = vpop.f32.mrf.mxu0
    %v3788 = vadd.f32 %v3466, %v3787
    %v3789 = vpop.f32.mrf.mxu0
    %v3790 = vadd.f32 %v3466, %v3789
    %3791 = vmatmul.bf16.gmra.mxu0 %v464
    %v3792 = vpop.f32.mrf.mxu0
    %v3793 = vadd.f32 %v3466, %v3792
    %v3794 = vpop.f32.mrf.mxu0
    %v3795 = vadd.f32 %v3466, %v3794
    %3796 = vmatmul.bf16.gmra.mxu0 %v465
    %v3797 = vpop.f32.mrf.mxu0
    %v3798 = vadd.f32 %v3466, %v3797
    %v3799 = vpop.f32.mrf.mxu0
    %v3800 = vadd.f32 %v3466, %v3799
    %3801 = vmatmul.bf16.gmra.mxu0 %v466
    %v3802 = vpop.f32.mrf.mxu0
    %v3803 = vadd.f32 %v3466, %v3802
    %v3804 = vpop.f32.mrf.mxu0
    %v3805 = vadd.f32 %v3466, %v3804
    %3806 = vmatmul.bf16.gmra.mxu0 %v467
    %v3807 = vpop.f32.mrf.mxu0
    %v3808 = vadd.f32 %v3466, %v3807
    %v3809 = vpop.f32.mrf.mxu0
    %v3810 = vadd.f32 %v3466, %v3809
    %3811 = vmatmul.bf16.gmra.mxu0 %v468
    %v3812 = vpop.f32.mrf.mxu0
    %v3813 = vadd.f32 %v3466, %v3812
    %v3814 = vpop.f32.mrf.mxu0
    %v3815 = vadd.f32 %v3466, %v3814
    %3816 = vmatmul.bf16.gmra.mxu0 %v469
    %v3817 = vpop.f32.mrf.mxu0
    %v3818 = vadd.f32 %v3466, %v3817
    %v3819 = vpop.f32.mrf.mxu0
    %v3820 = vadd.f32 %v3466, %v3819
    %3821 = vmatmul.bf16.gmra.mxu0 %v470
    %v3822 = vpop.f32.mrf.mxu0
    %v3823 = vadd.f32 %v3466, %v3822
    %v3824 = vpop.f32.mrf.mxu0
    %v3825 = vadd.f32 %v3466, %v3824
    %3826 = vdwg.mxu0
    %v3827 = vmul.f32 %v3641, %v3365
    %v3828 = vmul.f32 %v3690, %v3366
    %v3829 = vmul.f32 %v3739, %v3367
    %v3830 = vmul.f32 %v3788, %v3368
    %v3831 = vmul.f32 %v3643, %v3369
    %v3832 = vmul.f32 %v3692, %v3370
    %v3833 = vmul.f32 %v3741, %v3371
    %v3834 = vmul.f32 %v3790, %v3372
    %v3835 = vmul.f32 %v3646, %v3373
    %v3836 = vmul.f32 %v3695, %v3374
    %v3837 = vmul.f32 %v3744, %v3375
    %v3838 = vmul.f32 %v3793, %v3376
    %v3839 = vmul.f32 %v3648, %v3377
    %v3840 = vmul.f32 %v3697, %v3378
    %v3841 = vmul.f32 %v3746, %v3379
    %v3842 = vmul.f32 %v3795, %v3380
    %v3843 = vmul.f32 %v3651, %v3381
    %v3844 = vmul.f32 %v3700, %v3382
    %v3845 = vmul.f32 %v3749, %v3383
    %v3846 = vmul.f32 %v3798, %v3384
    %v3847 = vmul.f32 %v3653, %v3385
    %v3848 = vmul.f32 %v3702, %v3386
    %v3849 = vmul.f32 %v3751, %v3387
    %v3850 = vmul.f32 %v3800, %v3388
    %v3851 = vmul.f32 %v3656, %v3389
    %v3852 = vmul.f32 %v3705, %v3390
    %v3853 = vmul.f32 %v3754, %v3391
    %v3854 = vmul.f32 %v3803, %v3392
    %v3855 = vmul.f32 %v3658, %v3393
    %v3856 = vmul.f32 %v3707, %v3394
    %v3857 = vmul.f32 %v3756, %v3395
    %v3858 = vmul.f32 %v3805, %v3396
    %v3859 = vmul.f32 %v3661, %v3397
    %v3860 = vmul.f32 %v3710, %v3398
    %v3861 = vmul.f32 %v3759, %v3399
    %v3862 = vmul.f32 %v3808, %v3400
    %v3863 = vmul.f32 %v3663, %v3401
    %v3864 = vmul.f32 %v3712, %v3402
    %v3865 = vmul.f32 %v3761, %v3403
    %v3866 = vmul.f32 %v3810, %v3404
    %v3867 = vmul.f32 %v3666, %v3405
    %v3868 = vmul.f32 %v3715, %v3406
    %v3869 = vmul.f32 %v3764, %v3407
    %v3870 = vmul.f32 %v3813, %v3408
    %v3871 = vmul.f32 %v3668, %v3409
    %v3872 = vmul.f32 %v3717, %v3410
    %v3873 = vmul.f32 %v3766, %v3411
    %v3874 = vmul.f32 %v3815, %v3412
    %v3875 = vmul.f32 %v3671, %v3413
    %v3876 = vmul.f32 %v3720, %v3414
    %v3877 = vmul.f32 %v3769, %v3415
    %v3878 = vmul.f32 %v3818, %v3416
    %v3879 = vmul.f32 %v3673, %v3417
    %v3880 = vmul.f32 %v3722, %v3418
    %v3881 = vmul.f32 %v3771, %v3419
    %v3882 = vmul.f32 %v3820, %v3420
    %v3883 = vmul.f32 %v3676, %v3421
    %v3884 = vmul.f32 %v3725, %v3422
    %v3885 = vmul.f32 %v3774, %v3423
    %v3886 = vmul.f32 %v3823, %v3424
    %v3887 = vmul.f32 %v3678, %v3425
    %v3888 = vmul.f32 %v3727, %v3426
    %v3889 = vmul.f32 %v3776, %v3427
    %v3890 = vmul.f32 %v3825, %v3428
    %v3891 = vpack.c.bf16 %v3831, %v3827
    %v3892 = vpack.c.bf16 %v3832, %v3828
    %v3893 = vpack.c.bf16 %v3833, %v3829
    %v3894 = vpack.c.bf16 %v3834, %v3830
    %v3895 = vpack.c.bf16 %v3839, %v3835
    %v3896 = vpack.c.bf16 %v3840, %v3836
    %v3897 = vpack.c.bf16 %v3841, %v3837
    %v3898 = vpack.c.bf16 %v3842, %v3838
    %v3899 = vpack.c.bf16 %v3847, %v3843
    %v3900 = vpack.c.bf16 %v3848, %v3844
    %v3901 = vpack.c.bf16 %v3849, %v3845
    %v3902 = vpack.c.bf16 %v3850, %v3846
    %v3903 = vpack.c.bf16 %v3855, %v3851
    %v3904 = vpack.c.bf16 %v3856, %v3852
    %v3905 = vpack.c.bf16 %v3857, %v3853
    %v3906 = vpack.c.bf16 %v3858, %v3854
    %v3907 = vpack.c.bf16 %v3863, %v3859
    %v3908 = vpack.c.bf16 %v3864, %v3860
    %v3909 = vpack.c.bf16 %v3865, %v3861
    %v3910 = vpack.c.bf16 %v3866, %v3862
    %v3911 = vpack.c.bf16 %v3871, %v3867
    %v3912 = vpack.c.bf16 %v3872, %v3868
    %v3913 = vpack.c.bf16 %v3873, %v3869
    %v3914 = vpack.c.bf16 %v3874, %v3870
    %v3915 = vpack.c.bf16 %v3879, %v3875
    %v3916 = vpack.c.bf16 %v3880, %v3876
    %v3917 = vpack.c.bf16 %v3881, %v3877
    %v3918 = vpack.c.bf16 %v3882, %v3878
    %v3919 = vpack.c.bf16 %v3887, %v3883
    %v3920 = vpack.c.bf16 %v3888, %v3884
    %v3921 = vpack.c.bf16 %v3889, %v3885
    %v3922 = vpack.c.bf16 %v3890, %v3886
    %v3923 = vld [vmem:[#allocation7] sm:$0xf]
    %v3924 = vld [vmem:[#allocation7 + $0x4] sm:$0xf]
    %v3925 = vld [vmem:[#allocation7 + $0x8] sm:$0xf]
    %v3926 = vld [vmem:[#allocation7 + $0xc] sm:$0xf]
    %v3927 = vld [vmem:[#allocation7 + $0x10] sm:$0xf]
    %v3928 = vld [vmem:[#allocation7 + $0x14] sm:$0xf]
    %v3929 = vld [vmem:[#allocation7 + $0x18] sm:$0xf]
    %v3930 = vld [vmem:[#allocation7 + $0x1c] sm:$0xf]
    %v3931 = vld [vmem:[#allocation7 + $0x20] sm:$0xf]
    %v3932 = vld [vmem:[#allocation7 + $0x24] sm:$0xf]
    %v3933 = vld [vmem:[#allocation7 + $0x28] sm:$0xf]
    %v3934 = vld [vmem:[#allocation7 + $0x2c] sm:$0xf]
    %v3935 = vld [vmem:[#allocation7 + $0x30] sm:$0xf]
    %v3936 = vld [vmem:[#allocation7 + $0x34] sm:$0xf]
    %v3937 = vld [vmem:[#allocation7 + $0x38] sm:$0xf]
    %v3938 = vld [vmem:[#allocation7 + $0x3c] sm:$0xf]
    %v3939 = vld [vmem:[#allocation7 + $0x40] sm:$0xf]
    %v3940 = vld [vmem:[#allocation7 + $0x44] sm:$0xf]
    %v3941 = vld [vmem:[#allocation7 + $0x48] sm:$0xf]
    %v3942 = vld [vmem:[#allocation7 + $0x4c] sm:$0xf]
    %v3943 = vld [vmem:[#allocation7 + $0x50] sm:$0xf]
    %v3944 = vld [vmem:[#allocation7 + $0x54] sm:$0xf]
    %v3945 = vld [vmem:[#allocation7 + $0x58] sm:$0xf]
    %v3946 = vld [vmem:[#allocation7 + $0x5c] sm:$0xf]
    %v3947 = vld [vmem:[#allocation7 + $0x60] sm:$0xf]
    %v3948 = vld [vmem:[#allocation7 + $0x64] sm:$0xf]
    %v3949 = vld [vmem:[#allocation7 + $0x68] sm:$0xf]
    %v3950 = vld [vmem:[#allocation7 + $0x6c] sm:$0xf]
    %v3951 = vld [vmem:[#allocation7 + $0x70] sm:$0xf]
    %v3952 = vld [vmem:[#allocation7 + $0x74] sm:$0xf]
    %v3953 = vld [vmem:[#allocation7 + $0x78] sm:$0xf]
    %v3954 = vld [vmem:[#allocation7 + $0x7c] sm:$0xf]
    %v3955 = vld [vmem:[#allocation7 + $0x80] sm:$0xf]
    %v3956 = vld [vmem:[#allocation7 + $0x84] sm:$0xf]
    %v3957 = vld [vmem:[#allocation7 + $0x88] sm:$0xf]
    %v3958 = vld [vmem:[#allocation7 + $0x8c] sm:$0xf]
    %v3959 = vld [vmem:[#allocation7 + $0x90] sm:$0xf]
    %v3960 = vld [vmem:[#allocation7 + $0x94] sm:$0xf]
    %v3961 = vld [vmem:[#allocation7 + $0x98] sm:$0xf]
    %v3962 = vld [vmem:[#allocation7 + $0x9c] sm:$0xf]
    %v3963 = vld [vmem:[#allocation7 + $0xa0] sm:$0xf]
    %v3964 = vld [vmem:[#allocation7 + $0xa4] sm:$0xf]
    %v3965 = vld [vmem:[#allocation7 + $0xa8] sm:$0xf]
    %v3966 = vld [vmem:[#allocation7 + $0xac] sm:$0xf]
    %v3967 = vld [vmem:[#allocation7 + $0xb0] sm:$0xf]
    %v3968 = vld [vmem:[#allocation7 + $0xb4] sm:$0xf]
    %v3969 = vld [vmem:[#allocation7 + $0xb8] sm:$0xf]
    %v3970 = vld [vmem:[#allocation7 + $0xbc] sm:$0xf]
    %v3971 = vld [vmem:[#allocation7 + $0xc0] sm:$0xf]
    %v3972 = vld [vmem:[#allocation7 + $0xc4] sm:$0xf]
    %v3973 = vld [vmem:[#allocation7 + $0xc8] sm:$0xf]
    %v3974 = vld [vmem:[#allocation7 + $0xcc] sm:$0xf]
    %v3975 = vld [vmem:[#allocation7 + $0xd0] sm:$0xf]
    %v3976 = vld [vmem:[#allocation7 + $0xd4] sm:$0xf]
    %v3977 = vld [vmem:[#allocation7 + $0xd8] sm:$0xf]
    %v3978 = vld [vmem:[#allocation7 + $0xdc] sm:$0xf]
    %v3979 = vld [vmem:[#allocation7 + $0xe0] sm:$0xf]
    %v3980 = vld [vmem:[#allocation7 + $0xe4] sm:$0xf]
    %v3981 = vld [vmem:[#allocation7 + $0xe8] sm:$0xf]
    %v3982 = vld [vmem:[#allocation7 + $0xec] sm:$0xf]
    %v3983 = vld [vmem:[#allocation7 + $0xf0] sm:$0xf]
    %v3984 = vld [vmem:[#allocation7 + $0xf4] sm:$0xf]
    %v3985 = vld [vmem:[#allocation7 + $0xf8] sm:$0xf]
    %v3986 = vld [vmem:[#allocation7 + $0xfc] sm:$0xf]
    %v3987 = vld [vmem:[%s8] sm:$0x1]
    %v3989 = vperm.slane %v3987, 0
    %v4055 = vunpack.c.l.b16 %v3923
    %v4056 = vunpack.c.l.b16 %v3924
    %v4057 = vunpack.c.l.b16 %v3925
    %v4058 = vunpack.c.l.b16 %v3926
    %v4059 = vunpack.c.l.b16 %v3927
    %v4060 = vunpack.c.l.b16 %v3928
    %v4061 = vunpack.c.l.b16 %v3929
    %v4062 = vunpack.c.l.b16 %v3930
    %v4063 = vunpack.c.l.b16 %v3931
    %v4064 = vunpack.c.l.b16 %v3932
    %v4065 = vunpack.c.l.b16 %v3933
    %v4066 = vunpack.c.l.b16 %v3934
    %v4067 = vunpack.c.l.b16 %v3935
    %v4068 = vunpack.c.l.b16 %v3936
    %v4069 = vunpack.c.l.b16 %v3937
    %v4070 = vunpack.c.l.b16 %v3938
    %v4071 = vunpack.c.l.b16 %v3939
    %v4072 = vunpack.c.l.b16 %v3940
    %v4073 = vunpack.c.l.b16 %v3941
    %v4074 = vunpack.c.l.b16 %v3942
    %v4075 = vunpack.c.l.b16 %v3943
    %v4076 = vunpack.c.l.b16 %v3944
    %v4077 = vunpack.c.l.b16 %v3945
    %v4078 = vunpack.c.l.b16 %v3946
    %v4079 = vunpack.c.l.b16 %v3947
    %v4080 = vunpack.c.l.b16 %v3948
    %v4081 = vunpack.c.l.b16 %v3949
    %v4082 = vunpack.c.l.b16 %v3950
    %v4083 = vunpack.c.l.b16 %v3951
    %v4084 = vunpack.c.l.b16 %v3952
    %v4085 = vunpack.c.l.b16 %v3953
    %v4086 = vunpack.c.l.b16 %v3954
    %v4087 = vunpack.c.l.b16 %v3955
    %v4088 = vunpack.c.l.b16 %v3956
    %v4089 = vunpack.c.l.b16 %v3957
    %v4090 = vunpack.c.l.b16 %v3958
    %v4091 = vunpack.c.l.b16 %v3959
    %v4092 = vunpack.c.l.b16 %v3960
    %v4093 = vunpack.c.l.b16 %v3961
    %v4094 = vunpack.c.l.b16 %v3962
    %v4095 = vunpack.c.l.b16 %v3963
    %v4096 = vunpack.c.l.b16 %v3964
    %v4097 = vunpack.c.l.b16 %v3965
    %v4098 = vunpack.c.l.b16 %v3966
    %v4099 = vunpack.c.l.b16 %v3967
    %v4100 = vunpack.c.l.b16 %v3968
    %v4101 = vunpack.c.l.b16 %v3969
    %v4102 = vunpack.c.l.b16 %v3970
    %v4103 = vunpack.c.l.b16 %v3971
    %v4104 = vunpack.c.l.b16 %v3972
    %v4105 = vunpack.c.l.b16 %v3973
    %v4106 = vunpack.c.l.b16 %v3974
    %v4107 = vunpack.c.l.b16 %v3975
    %v4108 = vunpack.c.l.b16 %v3976
    %v4109 = vunpack.c.l.b16 %v3977
    %v4110 = vunpack.c.l.b16 %v3978
    %v4111 = vunpack.c.l.b16 %v3979
    %v4112 = vunpack.c.l.b16 %v3980
    %v4113 = vunpack.c.l.b16 %v3981
    %v4114 = vunpack.c.l.b16 %v3982
    %v4115 = vunpack.c.l.b16 %v3983
    %v4116 = vunpack.c.l.b16 %v3984
    %v4117 = vunpack.c.l.b16 %v3985
    %v4118 = vunpack.c.l.b16 %v3986
    %v4119 = vpack.c.b16 %v4056, %v4055
    %v4120 = vpack.c.b16 %v4058, %v4057
    %v4121 = vpack.c.b16 %v4060, %v4059
    %v4122 = vpack.c.b16 %v4062, %v4061
    %v4123 = vpack.c.b16 %v4064, %v4063
    %v4124 = vpack.c.b16 %v4066, %v4065
    %v4125 = vpack.c.b16 %v4068, %v4067
    %v4126 = vpack.c.b16 %v4070, %v4069
    %v4127 = vpack.c.b16 %v4072, %v4071
    %v4128 = vpack.c.b16 %v4074, %v4073
    %v4129 = vpack.c.b16 %v4076, %v4075
    %v4130 = vpack.c.b16 %v4078, %v4077
    %v4131 = vpack.c.b16 %v4080, %v4079
    %v4132 = vpack.c.b16 %v4082, %v4081
    %v4133 = vpack.c.b16 %v4084, %v4083
    %v4134 = vpack.c.b16 %v4086, %v4085
    %v4135 = vpack.c.b16 %v4088, %v4087
    %v4136 = vpack.c.b16 %v4090, %v4089
    %v4137 = vpack.c.b16 %v4092, %v4091
    %v4138 = vpack.c.b16 %v4094, %v4093
    %v4139 = vpack.c.b16 %v4096, %v4095
    %v4140 = vpack.c.b16 %v4098, %v4097
    %v4141 = vpack.c.b16 %v4100, %v4099
    %v4142 = vpack.c.b16 %v4102, %v4101
    %v4143 = vpack.c.b16 %v4104, %v4103
    %v4144 = vpack.c.b16 %v4106, %v4105
    %v4145 = vpack.c.b16 %v4108, %v4107
    %v4146 = vpack.c.b16 %v4110, %v4109
    %v4147 = vpack.c.b16 %v4112, %v4111
    %v4148 = vpack.c.b16 %v4114, %v4113
    %v4149 = vpack.c.b16 %v4116, %v4115
    %v4150 = vpack.c.b16 %v4118, %v4117
    %4183 = vmatpush.bf16.msra.mxu0 %v4126
    %4184 = vmatpush.bf16.msra.mxu0 %v4125
    %4185 = vmatpush.bf16.msra.mxu0 %v4124
    %4186 = vmatpush.bf16.msra.mxu0 %v4123
    %4187 = vmatpush.bf16.msra.mxu0 %v4122
    %4188 = vmatpush.bf16.msra.mxu0 %v4121
    %4189 = vmatpush.bf16.msra.mxu0 %v4120
    %4190 = vmatpush.bf16.msra.mxu0 %v4119
    %4191 = vmatmul.bf16.gmra.mxu0 %v3891
    %v4192 = vpop.f32.mrf.mxu0
    %v4193 = vadd.f32 %v3989, %v4192
    %v4194 = vpop.f32.mrf.mxu0
    %v4195 = vadd.f32 %v3989, %v4194
    %4196 = vmatmul.bf16.gmra.mxu0 %v3895
    %v4197 = vpop.f32.mrf.mxu0
    %v4198 = vadd.f32 %v3989, %v4197
    %v4199 = vpop.f32.mrf.mxu0
    %v4200 = vadd.f32 %v3989, %v4199
    %4201 = vmatmul.bf16.gmra.mxu0 %v3899
    %v4202 = vpop.f32.mrf.mxu0
    %v4203 = vadd.f32 %v3989, %v4202
    %v4204 = vpop.f32.mrf.mxu0
    %v4205 = vadd.f32 %v3989, %v4204
    %4206 = vmatmul.bf16.gmra.mxu0 %v3903
    %v4207 = vpop.f32.mrf.mxu0
    %v4208 = vadd.f32 %v3989, %v4207
    %v4209 = vpop.f32.mrf.mxu0
    %v4210 = vadd.f32 %v3989, %v4209
    %4211 = vmatmul.bf16.gmra.mxu0 %v3907
    %v4212 = vpop.f32.mrf.mxu0
    %v4213 = vadd.f32 %v3989, %v4212
    %v4214 = vpop.f32.mrf.mxu0
    %v4215 = vadd.f32 %v3989, %v4214
    %4216 = vmatmul.bf16.gmra.mxu0 %v3911
    %v4217 = vpop.f32.mrf.mxu0
    %v4218 = vadd.f32 %v3989, %v4217
    %v4219 = vpop.f32.mrf.mxu0
    %v4220 = vadd.f32 %v3989, %v4219
    %4221 = vmatmul.bf16.gmra.mxu0 %v3915
    %v4222 = vpop.f32.mrf.mxu0
    %v4223 = vadd.f32 %v3989, %v4222
    %v4224 = vpop.f32.mrf.mxu0
    %v4225 = vadd.f32 %v3989, %v4224
    %4226 = vmatmul.bf16.gmra.mxu0 %v3919
    %v4227 = vpop.f32.mrf.mxu0
    %v4228 = vadd.f32 %v3989, %v4227
    %v4229 = vpop.f32.mrf.mxu0
    %v4230 = vadd.f32 %v3989, %v4229
    %4231 = vdwg.mxu0
    %4232 = vmatpush.bf16.msra.mxu0 %v4134
    %4233 = vmatpush.bf16.msra.mxu0 %v4133
    %4234 = vmatpush.bf16.msra.mxu0 %v4132
    %4235 = vmatpush.bf16.msra.mxu0 %v4131
    %4236 = vmatpush.bf16.msra.mxu0 %v4130
    %4237 = vmatpush.bf16.msra.mxu0 %v4129
    %4238 = vmatpush.bf16.msra.mxu0 %v4128
    %4239 = vmatpush.bf16.msra.mxu0 %v4127
    %4240 = vmatmul.bf16.gmra.mxu0 %v3892
    %v4241 = vpop.f32.mrf.mxu0
    %v4242 = vadd.f32 %v4193, %v4241
    %v4243 = vpop.f32.mrf.mxu0
    %v4244 = vadd.f32 %v4195, %v4243
    %4245 = vmatmul.bf16.gmra.mxu0 %v3896
    %v4246 = vpop.f32.mrf.mxu0
    %v4247 = vadd.f32 %v4198, %v4246
    %v4248 = vpop.f32.mrf.mxu0
    %v4249 = vadd.f32 %v4200, %v4248
    %4250 = vmatmul.bf16.gmra.mxu0 %v3900
    %v4251 = vpop.f32.mrf.mxu0
    %v4252 = vadd.f32 %v4203, %v4251
    %v4253 = vpop.f32.mrf.mxu0
    %v4254 = vadd.f32 %v4205, %v4253
    %4255 = vmatmul.bf16.gmra.mxu0 %v3904
    %v4256 = vpop.f32.mrf.mxu0
    %v4257 = vadd.f32 %v4208, %v4256
    %v4258 = vpop.f32.mrf.mxu0
    %v4259 = vadd.f32 %v4210, %v4258
    %4260 = vmatmul.bf16.gmra.mxu0 %v3908
    %v4261 = vpop.f32.mrf.mxu0
    %v4262 = vadd.f32 %v4213, %v4261
    %v4263 = vpop.f32.mrf.mxu0
    %v4264 = vadd.f32 %v4215, %v4263
    %4265 = vmatmul.bf16.gmra.mxu0 %v3912
    %v4266 = vpop.f32.mrf.mxu0
    %v4267 = vadd.f32 %v4218, %v4266
    %v4268 = vpop.f32.mrf.mxu0
    %v4269 = vadd.f32 %v4220, %v4268
    %4270 = vmatmul.bf16.gmra.mxu0 %v3916
    %v4271 = vpop.f32.mrf.mxu0
    %v4272 = vadd.f32 %v4223, %v4271
    %v4273 = vpop.f32.mrf.mxu0
    %v4274 = vadd.f32 %v4225, %v4273
    %4275 = vmatmul.bf16.gmra.mxu0 %v3920
    %v4276 = vpop.f32.mrf.mxu0
    %v4277 = vadd.f32 %v4228, %v4276
    %v4278 = vpop.f32.mrf.mxu0
    %v4279 = vadd.f32 %v4230, %v4278
    %4280 = vdwg.mxu0
    %4281 = vmatpush.bf16.msra.mxu0 %v4142
    %4282 = vmatpush.bf16.msra.mxu0 %v4141
    %4283 = vmatpush.bf16.msra.mxu0 %v4140
    %4284 = vmatpush.bf16.msra.mxu0 %v4139
    %4285 = vmatpush.bf16.msra.mxu0 %v4138
    %4286 = vmatpush.bf16.msra.mxu0 %v4137
    %4287 = vmatpush.bf16.msra.mxu0 %v4136
    %4288 = vmatpush.bf16.msra.mxu0 %v4135
    %4289 = vmatmul.bf16.gmra.mxu0 %v3893
    %v4290 = vpop.f32.mrf.mxu0
    %v4291 = vadd.f32 %v4242, %v4290
    %v4292 = vpop.f32.mrf.mxu0
    %v4293 = vadd.f32 %v4244, %v4292
    %4294 = vmatmul.bf16.gmra.mxu0 %v3897
    %v4295 = vpop.f32.mrf.mxu0
    %v4296 = vadd.f32 %v4247, %v4295
    %v4297 = vpop.f32.mrf.mxu0
    %v4298 = vadd.f32 %v4249, %v4297
    %4299 = vmatmul.bf16.gmra.mxu0 %v3901
    %v4300 = vpop.f32.mrf.mxu0
    %v4301 = vadd.f32 %v4252, %v4300
    %v4302 = vpop.f32.mrf.mxu0
    %v4303 = vadd.f32 %v4254, %v4302
    %4304 = vmatmul.bf16.gmra.mxu0 %v3905
    %v4305 = vpop.f32.mrf.mxu0
    %v4306 = vadd.f32 %v4257, %v4305
    %v4307 = vpop.f32.mrf.mxu0
    %v4308 = vadd.f32 %v4259, %v4307
    %4309 = vmatmul.bf16.gmra.mxu0 %v3909
    %v4310 = vpop.f32.mrf.mxu0
    %v4311 = vadd.f32 %v4262, %v4310
    %v4312 = vpop.f32.mrf.mxu0
    %v4313 = vadd.f32 %v4264, %v4312
    %4314 = vmatmul.bf16.gmra.mxu0 %v3913
    %v4315 = vpop.f32.mrf.mxu0
    %v4316 = vadd.f32 %v4267, %v4315
    %v4317 = vpop.f32.mrf.mxu0
    %v4318 = vadd.f32 %v4269, %v4317
    %4319 = vmatmul.bf16.gmra.mxu0 %v3917
    %v4320 = vpop.f32.mrf.mxu0
    %v4321 = vadd.f32 %v4272, %v4320
    %v4322 = vpop.f32.mrf.mxu0
    %v4323 = vadd.f32 %v4274, %v4322
    %4324 = vmatmul.bf16.gmra.mxu0 %v3921
    %v4325 = vpop.f32.mrf.mxu0
    %v4326 = vadd.f32 %v4277, %v4325
    %v4327 = vpop.f32.mrf.mxu0
    %v4328 = vadd.f32 %v4279, %v4327
    %4329 = vdwg.mxu0
    %4330 = vmatpush.bf16.msra.mxu0 %v4150
    %4331 = vmatpush.bf16.msra.mxu0 %v4149
    %4332 = vmatpush.bf16.msra.mxu0 %v4148
    %4333 = vmatpush.bf16.msra.mxu0 %v4147
    %4334 = vmatpush.bf16.msra.mxu0 %v4146
    %4335 = vmatpush.bf16.msra.mxu0 %v4145
    %4336 = vmatpush.bf16.msra.mxu0 %v4144
    %4337 = vmatpush.bf16.msra.mxu0 %v4143
    %4338 = vmatmul.bf16.gmra.mxu0 %v3894
    %v4339 = vpop.f32.mrf.mxu0
    %v4340 = vadd.f32 %v4291, %v4339
    %v4341 = vpop.f32.mrf.mxu0
    %v4342 = vadd.f32 %v4293, %v4341
    %4343 = vmatmul.bf16.gmra.mxu0 %v3898
    %v4344 = vpop.f32.mrf.mxu0
    %v4345 = vadd.f32 %v4296, %v4344
    %v4346 = vpop.f32.mrf.mxu0
    %v4347 = vadd.f32 %v4298, %v4346
    %4348 = vmatmul.bf16.gmra.mxu0 %v3902
    %v4349 = vpop.f32.mrf.mxu0
    %v4350 = vadd.f32 %v4301, %v4349
    %v4351 = vpop.f32.mrf.mxu0
    %v4352 = vadd.f32 %v4303, %v4351
    %4353 = vmatmul.bf16.gmra.mxu0 %v3906
    %v4354 = vpop.f32.mrf.mxu0
    %v4355 = vadd.f32 %v4306, %v4354
    %v4356 = vpop.f32.mrf.mxu0
    %v4357 = vadd.f32 %v4308, %v4356
    %4358 = vmatmul.bf16.gmra.mxu0 %v3910
    %v4359 = vpop.f32.mrf.mxu0
    %v4360 = vadd.f32 %v4311, %v4359
    %v4361 = vpop.f32.mrf.mxu0
    %v4362 = vadd.f32 %v4313, %v4361
    %4363 = vmatmul.bf16.gmra.mxu0 %v3914
    %v4364 = vpop.f32.mrf.mxu0
    %v4365 = vadd.f32 %v4316, %v4364
    %v4366 = vpop.f32.mrf.mxu0
    %v4367 = vadd.f32 %v4318, %v4366
    %4368 = vmatmul.bf16.gmra.mxu0 %v3918
    %v4369 = vpop.f32.mrf.mxu0
    %v4370 = vadd.f32 %v4321, %v4369
    %v4371 = vpop.f32.mrf.mxu0
    %v4372 = vadd.f32 %v4323, %v4371
    %4373 = vmatmul.bf16.gmra.mxu0 %v3922
    %v4374 = vpop.f32.mrf.mxu0
    %v4375 = vadd.f32 %v4326, %v4374
    %v4376 = vpop.f32.mrf.mxu0
    %v4377 = vadd.f32 %v4328, %v4376
    %4378 = vdwg.mxu0
    %v4379 = vadd.f32 %v4340, %v447
    %v4380 = vadd.f32 %v4342, %v448
    %v4381 = vadd.f32 %v4345, %v449
    %v4382 = vadd.f32 %v4347, %v450
    %v4383 = vadd.f32 %v4350, %v451
    %v4384 = vadd.f32 %v4352, %v452
    %v4385 = vadd.f32 %v4355, %v453
    %v4386 = vadd.f32 %v4357, %v454
    %v4387 = vadd.f32 %v4360, %v455
    %v4388 = vadd.f32 %v4362, %v456
    %v4389 = vadd.f32 %v4365, %v457
    %v4390 = vadd.f32 %v4367, %v458
    %v4391 = vadd.f32 %v4370, %v459
    %v4392 = vadd.f32 %v4372, %v460
    %v4393 = vadd.f32 %v4375, %v461
    %v4394 = vadd.f32 %v4377, %v462
    %4395 = vst [vmem:[#allocation8] sm:$0xff] %v4379
    %4396 = vst [vmem:[#allocation8 + $0x8] sm:$0xff] %v4380
    %4397 = vst [vmem:[#allocation8 + $0x10] sm:$0xff] %v4381
    %4398 = vst [vmem:[#allocation8 + $0x18] sm:$0xff] %v4382
    %4399 = vst [vmem:[#allocation8 + $0x20] sm:$0xff] %v4383
    %4400 = vst [vmem:[#allocation8 + $0x28] sm:$0xff] %v4384
    %4401 = vst [vmem:[#allocation8 + $0x30] sm:$0xff] %v4385
    %4402 = vst [vmem:[#allocation8 + $0x38] sm:$0xff] %v4386
    %4403 = vst [vmem:[#allocation8 + $0x40] sm:$0xff] %v4387
    %4404 = vst [vmem:[#allocation8 + $0x48] sm:$0xff] %v4388
    %4405 = vst [vmem:[#allocation8 + $0x50] sm:$0xff] %v4389
    %4406 = vst [vmem:[#allocation8 + $0x58] sm:$0xff] %v4390
    %4407 = vst [vmem:[#allocation8 + $0x60] sm:$0xff] %v4391
    %4408 = vst [vmem:[#allocation8 + $0x68] sm:$0xff] %v4392
    %4409 = vst [vmem:[#allocation8 + $0x70] sm:$0xff] %v4393
    %4410 = vst [vmem:[#allocation8 + $0x78] sm:$0xff] %v4394
    // Predicated region
    $region50: #{additive_condition_block.7} parent=1 // pred_check
      _
    $region51: #{additive_condition_block.7} parent=1 // pred_check_branch
      %4412 = sbr.rel (0) target = $region53
    $region52: #{additive_condition_block.7} parent=1 // pred_region
      %4414 = vsyncadd [#allocation4], 0
      %s4415 = sshll.u32 [#allocation8], 4
      %s4416 = int_to_ptr.vmem [resolvable:$true] %s4415
      %s4417 = sshll.u32 %s9, 4
      %s4418 = int_to_ptr.hbm [resolvable:$true] %s4417
      %4423 = dma.vmem_to_hbm [thread:$0]  %s4416, 2048, %s4418, [#allocation4], 128, 128, 8
    $region53: #{additive_condition_block.7} parent=1 // pred_fallthru
      _
    // Predicated region
    $region54: #{additive_condition_block.7} parent=1 // pred_check
      _
    $region55: #{additive_condition_block.7} parent=1 // pred_check_branch
      %4425 = sbr.rel (0) target = $region57
    $region56: #{additive_condition_block.7} parent=1 // pred_region
      %4427 = dma.done [#allocation4], 2048
    $region57: #{additive_condition_block.7} parent=1 // pred_fallthru
      _
    %4428 = vsyncpa [#allocation3], 1
    %4429 = vsyncpa [#allocation6], 1
    %4430 = vsyncpa [#allocation4], 1

</llo_original>
